<compile_context>
chip_gen: v6e
topology: v6e:2x2x1
jax: 0.10.0
libtpu: 0.0.40
codegen_flags: <defaults>
</compile_context>

<pallas_src>
import jax
import jax.numpy as jnp
from jax.experimental import pallas as pl
from jax.experimental.pallas import tpu as pltpu

MM_DTYPE = jnp.bfloat16   # MXU input dtype (accumulation stays f32)


def _make_block_kernel(H, W, C):
    """Fused BasicBlock kernel for one image (inplanes == planes == C)."""
    Wp = W + 2              # padded width
    R = H * Wp              # rows computed per conv (padded-width enumeration)
    F = (H + 3) * Wp        # flat padded activation rows (1 top, 2 bottom halo)

    def kernel(xf_ref, w1_ref, w2_ref, bn_ref, mask_ref, o_ref,
               inter_ref, patch_ref):
        # xf_ref   : (F, C)        bf16  flat zero-padded input image
        # w1_ref   : (3, 3C, C)    bf16  conv1 taps, dy-major, (dx, cin) folded K
        # w2_ref   : (3, 3C, C)    bf16  conv2 taps
        # bn_ref   : (4, C)        f32   rows = scale1, bias1, scale2, bias2
        # mask_ref : (R, 1)        f32   1.0 on real columns, 0.0 on the two
        #                                padded-width "garbage" columns
        # o_ref    : (R, C)        f32   conv2 output over the padded-width grid
        # inter_ref: (F, C)        f32   VMEM scratch: flat padded intermediate
        # patch_ref: (R, 3C)       bf16  VMEM scratch: per-dy im2col patch

        def conv3x3(src_ref, w_ref):
            """3x3 conv, stride 1, over the flat padded layout.

            Every tap is a contiguous sublane slice of src_ref; the three dx
            taps are packed along the lane axis of patch_ref, giving 3 MXU
            matmuls with K = 3*C per conv (no strided per-tap reshapes)."""
            acc = jnp.zeros((R, C), jnp.float32)
            for dy in range(3):
                base = dy * Wp
                for dx in range(3):
                    patch_ref[:, dx * C:(dx + 1) * C] = (
                        src_ref[base + dx: base + dx + R, :]
                        .astype(patch_ref.dtype))
                acc = acc + jnp.dot(patch_ref[...], w_ref[dy],
                                    preferred_element_type=jnp.float32)
            return acc

        # ---- conv1 + bn1 + relu -> flat padded intermediate (VMEM only) ----
        h1 = conv3x3(xf_ref, w1_ref)
        h1 = jnp.maximum(h1 * bn_ref[0:1, :] + bn_ref[1:2, :], 0.0)
        h1 = h1 * mask_ref[...]          # zero the padded-width garbage columns
        # Zero the halo strips each step (no reliance on program_id==0, so the
        # kernel stays correct when the grid is core-sharded), then write the
        # interior.  The masked garbage columns land exactly on the left/right
        # halo columns of the flat layout, so they come out zero as required.
        inter_ref[0:Wp + 1, :] = jnp.zeros((Wp + 1, C), jnp.float32)
        inter_ref[Wp + 1 + R:F, :] = jnp.zeros((F - (Wp + 1 + R), C),
                                               jnp.float32)
        inter_ref[Wp + 1:Wp + 1 + R, :] = h1

        # ---- conv2 + bn2 + residual + relu (f32 epilogue) ----
        h2 = conv3x3(inter_ref, w2_ref)
        res = xf_ref[Wp + 1:Wp + 1 + R, :].astype(jnp.float32)
        out = h2 * bn_ref[2:3, :] + (bn_ref[3:4, :] + res)
        o_ref[...] = jnp.maximum(out, 0.0).astype(o_ref.dtype)

    return kernel


def fold_bn(gamma, beta, running_mean, running_var, eps=1e-5):
    """Inference-mode BatchNorm folded to per-channel scale/bias."""
    scale = gamma / jnp.sqrt(running_var + eps)
    bias = beta - running_mean * scale
    return scale, bias


def basic_block_forward(x_nchw, params):
    """Fused BasicBlock forward (stride=1, downsample=None); NCHW in/out."""
    N, Cin, H, W = x_nchw.shape
    w1, w2 = params["w1"], params["w2"]          # HWIO: (3, 3, C, C)
    Cout = w1.shape[-1]
    assert Cin == Cout, "stride=1 / no-downsample BasicBlock needs Cin == Cout"
    C = Cout
    Wp, R, F = W + 2, H * (W + 2), (H + 3) * (W + 2)

    # Flat padded bf16 input (one fused XLA pad+reshape+cast pass; conv2's halo
    # is built entirely in VMEM inside the kernel).
    x_nhwc = jnp.transpose(x_nchw, (0, 2, 3, 1))
    xf = jnp.pad(x_nhwc, ((0, 0), (1, 2), (1, 1), (0, 0)))
    xf = xf.reshape(N, F, C).astype(MM_DTYPE)

    # Weights with dx folded into the contraction dim: (3, 3C, C), bf16.
    w1k = w1.reshape(3, 3 * C, C).astype(MM_DTYPE)
    w2k = w2.reshape(3, 3 * C, C).astype(MM_DTYPE)

    # Folded BN params, stacked: rows = scale1, bias1, scale2, bias2.
    bn = jnp.stack([params["scale1"], params["bias1"],
                    params["scale2"], params["bias2"]]).astype(jnp.float32)

    # Mask that kills the two padded-width columns of each image row.
    mask = (jnp.arange(R, dtype=jnp.int32) % Wp < W)
    mask = mask.astype(jnp.float32).reshape(R, 1)

    kernel = _make_block_kernel(H, W, C)

    cost = pl.CostEstimate(
        flops=2 * 2 * 9 * N * R * C * C,          # two 3x3 convs
        transcendentals=0,
        bytes_accessed=(xf.size * 2 + w1k.size * 2 + w2k.size * 2
                        + bn.size * 4 + mask.size * 4 + N * R * C * 4))

    out_flat = pl.pallas_call(
        kernel,
        out_shape=jax.ShapeDtypeStruct((N, R, C), x_nchw.dtype),
        grid_spec=pltpu.PrefetchScalarGridSpec(
            num_scalar_prefetch=0,
            grid=(N,),                                           # one image/step
            in_specs=[
                pl.BlockSpec((None, F, C), lambda n: (n, 0, 0)),     # xf
                pl.BlockSpec((3, 3 * C, C), lambda n: (0, 0, 0)),    # w1 (resident)
                pl.BlockSpec((3, 3 * C, C), lambda n: (0, 0, 0)),    # w2 (resident)
                pl.BlockSpec((4, C), lambda n: (0, 0)),              # bn
                pl.BlockSpec((R, 1), lambda n: (0, 0)),              # mask
            ],
            out_specs=pl.BlockSpec((None, R, C), lambda n: (n, 0, 0)),
            scratch_shapes=[
                pltpu.VMEM((F, C), jnp.float32),      # flat padded intermediate
                pltpu.VMEM((R, 3 * C), MM_DTYPE),     # per-dy im2col patch
            ]),
        compiler_params=pltpu.CompilerParams(
            dimension_semantics=("parallel",),        # megacore on v7x
            vmem_limit_bytes=32 * 1024 * 1024,        # safe on v5e/v6e/v7x
        ),
        cost_estimate=cost,
    )(xf, w1k, w2k, bn, mask)

    # Drop the two padded-width columns, back to NCHW (cheap XLA reshapes).
    out = out_flat.reshape(N, H, Wp, C)[:, :, :W, :]
    return jnp.transpose(out, (0, 3, 1, 2))


def _reference_forward(x_nchw, params, bf16_inputs=False):
    """Pure-JAX reference (f32 lax.conv, HIGHEST precision)."""
    x = jnp.transpose(x_nchw, (0, 2, 3, 1))
    w1, w2 = params["w1"], params["w2"]
    if bf16_inputs:   # model the kernel's bf16 MXU inputs exactly
        x = x.astype(jnp.bfloat16).astype(jnp.float32)
        w1 = w1.astype(jnp.bfloat16).astype(jnp.float32)
        w2 = w2.astype(jnp.bfloat16).astype(jnp.float32)
    dn = jax.lax.conv_dimension_numbers(x.shape, w1.shape,
                                        ("NHWC", "HWIO", "NHWC"))
    out = jax.lax.conv_general_dilated(x, w1, (1, 1), "SAME",
                                       dimension_numbers=dn,
                                       precision=jax.lax.Precision.HIGHEST)
    out = jnp.maximum(out * params["scale1"] + params["bias1"], 0.0)
    out = jax.lax.conv_general_dilated(out, w2, (1, 1), "SAME",
                                       dimension_numbers=dn,
                                       precision=jax.lax.Precision.HIGHEST)
    out = jnp.maximum(out * params["scale2"] + params["bias2"] + x, 0.0)
    return jnp.transpose(out, (0, 3, 1, 2))


if __name__ == "__main__":
    # Shapes consistent with BasicBlock(inplanes=4, planes=4, stride=1).
    N, C, H, W = 2, 4, 16, 16
    inplanes = planes = C

    key = jax.random.PRNGKey(0)
    k = jax.random.split(key, 10)

    x = jax.random.normal(k[0], (N, C, H, W), jnp.float32)

    # Conv weights in HWIO (3, 3, Cin, Cout).
    w1 = jax.random.normal(k[1], (3, 3, inplanes, planes), jnp.float32) * 0.1
    w2 = jax.random.normal(k[2], (3, 3, planes, planes), jnp.float32) * 0.1

    # BatchNorm (inference mode) parameters, folded into scale/bias.
    g1 = 1.0 + 0.1 * jax.random.normal(k[3], (planes,), jnp.float32)
    b1 = 0.1 * jax.random.normal(k[4], (planes,), jnp.float32)
    m1 = 0.1 * jax.random.normal(k[5], (planes,), jnp.float32)
    v1 = jnp.abs(jax.random.normal(k[6], (planes,), jnp.float32)) + 0.5
    g2 = 1.0 + 0.1 * jax.random.normal(k[7], (planes,), jnp.float32)
    b2 = 0.1 * jax.random.normal(k[8], (planes,), jnp.float32)
    m2 = 0.1 * jax.random.normal(k[9], (planes,), jnp.float32)
    v2 = jnp.ones((planes,), jnp.float32)

    s1, bi1 = fold_bn(g1, b1, m1, v1)
    s2, bi2 = fold_bn(g2, b2, m2, v2)

    params = {"w1": w1, "scale1": s1, "bias1": bi1,
              "w2": w2, "scale2": s2, "bias2": bi2}

    out = jax.block_until_ready(basic_block_forward(x, params))
    assert out.shape == (N, planes, H, W), out.shape

    # Tight check: same bf16-rounded inputs, f32 math -> validates kernel logic.
    ref_bf16 = _reference_forward(x, params, bf16_inputs=True)
    err_tight = float(jnp.max(jnp.abs(out - ref_bf16)))
    assert jnp.allclose(out, ref_bf16, atol=2e-3, rtol=2e-3), err_tight

    # Loose check against the pure-f32 module semantics (bf16 MXU inputs).
    ref_f32 = _reference_forward(x, params, bf16_inputs=False)
    err_loose = float(jnp.max(jnp.abs(out - ref_f32)))
    assert jnp.allclose(out, ref_f32, atol=5e-2, rtol=5e-2), err_loose

    print("KERNEL_OK")
</pallas_src>

<mosaic_0001>
module attributes {stable_mosaic.version = 11 : i64} {
  func.func @kernel(%arg0: i32, %arg1: memref<1x342x4xbf16, #tpu.memory_space<vmem>>, %arg2: memref<3x12x4xbf16, #tpu.memory_space<vmem>>, %arg3: memref<3x12x4xbf16, #tpu.memory_space<vmem>>, %arg4: memref<4x4xf32, #tpu.memory_space<vmem>>, %arg5: memref<288x1xf32, #tpu.memory_space<vmem>>, %arg6: memref<1x288x4xf32, #tpu.memory_space<vmem>>, %arg7: memref<342x4xf32, #tpu.memory_space<vmem>>, %arg8: memref<288x12xbf16, #tpu.memory_space<vmem>>) attributes {dimension_semantics = [#tpu.dimension_semantics<parallel>], iteration_bounds = array<i64: 2>, scalar_prefetch = 0 : i64, scratch_operands = 2 : i64, tpu.core_type = #tpu.core_type<tc>, window_params = [{transform_indices = @transform_0, window_bounds = array<i64: 1, 342, 4>}, {pipeline_mode = #tpu.pipeline_mode<synchronous>, transform_indices = @transform_1, window_bounds = array<i64: 3, 12, 4>}, {pipeline_mode = #tpu.pipeline_mode<synchronous>, transform_indices = @transform_2, window_bounds = array<i64: 3, 12, 4>}, {pipeline_mode = #tpu.pipeline_mode<synchronous>, transform_indices = @transform_3, window_bounds = array<i64: 4, 4>}, {pipeline_mode = #tpu.pipeline_mode<synchronous>, transform_indices = @transform_4, window_bounds = array<i64: 288, 1>}, {transform_indices = @transform_5, window_bounds = array<i64: 1, 288, 4>}]} {
    %cst = arith.constant 0.000000e+00 : f32
    %0 = vector.broadcast %cst : f32 to vector<288x4xf32>
    %c0 = arith.constant 0 : index
    %c0_0 = arith.constant 0 : index
    %c0_1 = arith.constant 0 : index
    %1 = vector.load %arg1[%c0, %c0_0, %c0_1] : memref<1x342x4xbf16, #tpu.memory_space<vmem>>, vector<1x288x4xbf16>
    %2 = vector.shape_cast %1 : vector<1x288x4xbf16> to vector<288x4xbf16>
    %c0_2 = arith.constant 0 : index
    %c0_3 = arith.constant 0 : index
    %3 = vector.load %arg8[%c0_2, %c0_3] : memref<288x12xbf16, #tpu.memory_space<vmem>>, vector<288x4xbf16>
    tpu.vector_store %arg8[%c0_2, %c0_3], %2 {strides = array<i32>} : memref<288x12xbf16, #tpu.memory_space<vmem>>, vector<288x4xbf16>,
    %c0_4 = arith.constant 0 : index
    %c1 = arith.constant 1 : index
    %c0_5 = arith.constant 0 : index
    %4 = vector.load %arg1[%c0_4, %c1, %c0_5] : memref<1x342x4xbf16, #tpu.memory_space<vmem>>, vector<1x288x4xbf16>
    %5 = vector.shape_cast %4 : vector<1x288x4xbf16> to vector<288x4xbf16>
    %c0_6 = arith.constant 0 : index
    %c4 = arith.constant 4 : index
    %6 = vector.load %arg8[%c0_6, %c4] : memref<288x12xbf16, #tpu.memory_space<vmem>>, vector<288x4xbf16>
    tpu.vector_store %arg8[%c0_6, %c4], %5 {strides = array<i32>} : memref<288x12xbf16, #tpu.memory_space<vmem>>, vector<288x4xbf16>,
    %c0_7 = arith.constant 0 : index
    %c2 = arith.constant 2 : index
    %c0_8 = arith.constant 0 : index
    %7 = vector.load %arg1[%c0_7, %c2, %c0_8] : memref<1x342x4xbf16, #tpu.memory_space<vmem>>, vector<1x288x4xbf16>
    %8 = vector.shape_cast %7 : vector<1x288x4xbf16> to vector<288x4xbf16>
    %c0_9 = arith.constant 0 : index
    %c8 = arith.constant 8 : index
    %9 = vector.load %arg8[%c0_9, %c8] : memref<288x12xbf16, #tpu.memory_space<vmem>>, vector<288x4xbf16>
    tpu.vector_store %arg8[%c0_9, %c8], %8 {strides = array<i32>} : memref<288x12xbf16, #tpu.memory_space<vmem>>, vector<288x4xbf16>,
    %c0_10 = arith.constant 0 : index
    %c0_11 = arith.constant 0 : index
    %10 = vector.load %arg8[%c0_10, %c0_11] : memref<288x12xbf16, #tpu.memory_space<vmem>>, vector<288x12xbf16>
    %c0_12 = arith.constant 0 : index
    %c0_13 = arith.constant 0 : index
    %c0_14 = arith.constant 0 : index
    %11 = vector.load %arg2[%c0_12, %c0_13, %c0_14] : memref<3x12x4xbf16, #tpu.memory_space<vmem>>, vector<1x12x4xbf16>
    %12 = vector.shape_cast %11 : vector<1x12x4xbf16> to vector<12x4xbf16>
    %cst_15 = arith.constant dense<0.000000e+00> : vector<288x4xf32>
    %13 = tpu.matmul %10, %12, %cst_15 {dimension_numbers = #tpu.dot_dimension_numbers<[1], [0], [0], [1], [0, 0, 1, 1], [], []>} : vector<288x12xbf16>, vector<12x4xbf16>, vector<288x4xf32> -> vector<288x4xf32>
    %14 = arith.addf %0, %13 : vector<288x4xf32>
    %c0_16 = arith.constant 0 : index
    %c18 = arith.constant 18 : index
    %c0_17 = arith.constant 0 : index
    %15 = vector.load %arg1[%c0_16, %c18, %c0_17] : memref<1x342x4xbf16, #tpu.memory_space<vmem>>, vector<1x288x4xbf16>
    %16 = vector.shape_cast %15 : vector<1x288x4xbf16> to vector<288x4xbf16>
    %c0_18 = arith.constant 0 : index
    %c0_19 = arith.constant 0 : index
    %17 = vector.load %arg8[%c0_18, %c0_19] : memref<288x12xbf16, #tpu.memory_space<vmem>>, vector<288x4xbf16>
    tpu.vector_store %arg8[%c0_18, %c0_19], %16 {strides = array<i32>} : memref<288x12xbf16, #tpu.memory_space<vmem>>, vector<288x4xbf16>,
    %c0_20 = arith.constant 0 : index
    %c19 = arith.constant 19 : index
    %c0_21 = arith.constant 0 : index
    %18 = vector.load %arg1[%c0_20, %c19, %c0_21] : memref<1x342x4xbf16, #tpu.memory_space<vmem>>, vector<1x288x4xbf16>
    %19 = vector.shape_cast %18 : vector<1x288x4xbf16> to vector<288x4xbf16>
    %c0_22 = arith.constant 0 : index
    %c4_23 = arith.constant 4 : index
    %20 = vector.load %arg8[%c0_22, %c4_23] : memref<288x12xbf16, #tpu.memory_space<vmem>>, vector<288x4xbf16>
    tpu.vector_store %arg8[%c0_22, %c4_23], %19 {strides = array<i32>} : memref<288x12xbf16, #tpu.memory_space<vmem>>, vector<288x4xbf16>,
    %c0_24 = arith.constant 0 : index
    %c20 = arith.constant 20 : index
    %c0_25 = arith.constant 0 : index
    %21 = vector.load %arg1[%c0_24, %c20, %c0_25] : memref<1x342x4xbf16, #tpu.memory_space<vmem>>, vector<1x288x4xbf16>
    %22 = vector.shape_cast %21 : vector<1x288x4xbf16> to vector<288x4xbf16>
    %c0_26 = arith.constant 0 : index
    %c8_27 = arith.constant 8 : index
    %23 = vector.load %arg8[%c0_26, %c8_27] : memref<288x12xbf16, #tpu.memory_space<vmem>>, vector<288x4xbf16>
    tpu.vector_store %arg8[%c0_26, %c8_27], %22 {strides = array<i32>} : memref<288x12xbf16, #tpu.memory_space<vmem>>, vector<288x4xbf16>,
    %c0_28 = arith.constant 0 : index
    %c0_29 = arith.constant 0 : index
    %24 = vector.load %arg8[%c0_28, %c0_29] : memref<288x12xbf16, #tpu.memory_space<vmem>>, vector<288x12xbf16>
    %c1_30 = arith.constant 1 : index
    %c0_31 = arith.constant 0 : index
    %c0_32 = arith.constant 0 : index
    %25 = vector.load %arg2[%c1_30, %c0_31, %c0_32] : memref<3x12x4xbf16, #tpu.memory_space<vmem>>, vector<1x12x4xbf16>
    %26 = vector.shape_cast %25 : vector<1x12x4xbf16> to vector<12x4xbf16>
    %cst_33 = arith.constant dense<0.000000e+00> : vector<288x4xf32>
    %27 = tpu.matmul %24, %26, %cst_33 {dimension_numbers = #tpu.dot_dimension_numbers<[1], [0], [0], [1], [0, 0, 1, 1], [], []>} : vector<288x12xbf16>, vector<12x4xbf16>, vector<288x4xf32> -> vector<288x4xf32>
    %28 = arith.addf %14, %27 : vector<288x4xf32>
    %c0_34 = arith.constant 0 : index
    %c36 = arith.constant 36 : index
    %c0_35 = arith.constant 0 : index
    %29 = vector.load %arg1[%c0_34, %c36, %c0_35] : memref<1x342x4xbf16, #tpu.memory_space<vmem>>, vector<1x288x4xbf16>
    %30 = vector.shape_cast %29 : vector<1x288x4xbf16> to vector<288x4xbf16>
    %c0_36 = arith.constant 0 : index
    %c0_37 = arith.constant 0 : index
    %31 = vector.load %arg8[%c0_36, %c0_37] : memref<288x12xbf16, #tpu.memory_space<vmem>>, vector<288x4xbf16>
    tpu.vector_store %arg8[%c0_36, %c0_37], %30 {strides = array<i32>} : memref<288x12xbf16, #tpu.memory_space<vmem>>, vector<288x4xbf16>,
    %c0_38 = arith.constant 0 : index
    %c37 = arith.constant 37 : index
    %c0_39 = arith.constant 0 : index
    %32 = vector.load %arg1[%c0_38, %c37, %c0_39] : memref<1x342x4xbf16, #tpu.memory_space<vmem>>, vector<1x288x4xbf16>
    %33 = vector.shape_cast %32 : vector<1x288x4xbf16> to vector<288x4xbf16>
    %c0_40 = arith.constant 0 : index
    %c4_41 = arith.constant 4 : index
    %34 = vector.load %arg8[%c0_40, %c4_41] : memref<288x12xbf16, #tpu.memory_space<vmem>>, vector<288x4xbf16>
    tpu.vector_store %arg8[%c0_40, %c4_41], %33 {strides = array<i32>} : memref<288x12xbf16, #tpu.memory_space<vmem>>, vector<288x4xbf16>,
    %c0_42 = arith.constant 0 : index
    %c38 = arith.constant 38 : index
    %c0_43 = arith.constant 0 : index
    %35 = vector.load %arg1[%c0_42, %c38, %c0_43] : memref<1x342x4xbf16, #tpu.memory_space<vmem>>, vector<1x288x4xbf16>
    %36 = vector.shape_cast %35 : vector<1x288x4xbf16> to vector<288x4xbf16>
    %c0_44 = arith.constant 0 : index
    %c8_45 = arith.constant 8 : index
    %37 = vector.load %arg8[%c0_44, %c8_45] : memref<288x12xbf16, #tpu.memory_space<vmem>>, vector<288x4xbf16>
    tpu.vector_store %arg8[%c0_44, %c8_45], %36 {strides = array<i32>} : memref<288x12xbf16, #tpu.memory_space<vmem>>, vector<288x4xbf16>,
    %c0_46 = arith.constant 0 : index
    %c0_47 = arith.constant 0 : index
    %38 = vector.load %arg8[%c0_46, %c0_47] : memref<288x12xbf16, #tpu.memory_space<vmem>>, vector<288x12xbf16>
    %c2_48 = arith.constant 2 : index
    %c0_49 = arith.constant 0 : index
    %c0_50 = arith.constant 0 : index
    %39 = vector.load %arg2[%c2_48, %c0_49, %c0_50] : memref<3x12x4xbf16, #tpu.memory_space<vmem>>, vector<1x12x4xbf16>
    %40 = vector.shape_cast %39 : vector<1x12x4xbf16> to vector<12x4xbf16>
    %cst_51 = arith.constant dense<0.000000e+00> : vector<288x4xf32>
    %41 = tpu.matmul %38, %40, %cst_51 {dimension_numbers = #tpu.dot_dimension_numbers<[1], [0], [0], [1], [0, 0, 1, 1], [], []>} : vector<288x12xbf16>, vector<12x4xbf16>, vector<288x4xf32> -> vector<288x4xf32>
    %42 = arith.addf %28, %41 : vector<288x4xf32>
    %c0_52 = arith.constant 0 : index
    %c0_53 = arith.constant 0 : index
    %43 = vector.load %arg4[%c0_52, %c0_53] : memref<4x4xf32, #tpu.memory_space<vmem>>, vector<1x4xf32>
    %44 = vector.broadcast %43 : vector<1x4xf32> to vector<288x4xf32>
    %45 = arith.mulf %42, %44 : vector<288x4xf32>
    %c1_54 = arith.constant 1 : index
    %c0_55 = arith.constant 0 : index
    %46 = vector.load %arg4[%c1_54, %c0_55] : memref<4x4xf32, #tpu.memory_space<vmem>>, vector<1x4xf32>
    %47 = vector.broadcast %46 : vector<1x4xf32> to vector<288x4xf32>
    %48 = arith.addf %45, %47 : vector<288x4xf32>
    %cst_56 = arith.constant 0.000000e+00 : f32
    %49 = vector.broadcast %cst_56 : f32 to vector<288x4xf32>
    %50 = arith.maximumf %48, %49 : vector<288x4xf32>
    %c0_57 = arith.constant 0 : index
    %c0_58 = arith.constant 0 : index
    %51 = vector.load %arg5[%c0_57, %c0_58] : memref<288x1xf32, #tpu.memory_space<vmem>>, vector<288x1xf32>
    %52 = vector.broadcast %51 : vector<288x1xf32> to vector<288x4xf32>
    %53 = arith.mulf %50, %52 : vector<288x4xf32>
    %cst_59 = arith.constant 0.000000e+00 : f32
    %54 = vector.broadcast %cst_59 : f32 to vector<19x4xf32>
    %c0_60 = arith.constant 0 : index
    %c0_61 = arith.constant 0 : index
    %55 = vector.load %arg7[%c0_60, %c0_61] : memref<342x4xf32, #tpu.memory_space<vmem>>, vector<19x4xf32>
    tpu.vector_store %arg7[%c0_60, %c0_61], %54 {strides = array<i32>} : memref<342x4xf32, #tpu.memory_space<vmem>>, vector<19x4xf32>,
    %cst_62 = arith.constant 0.000000e+00 : f32
    %56 = vector.broadcast %cst_62 : f32 to vector<35x4xf32>
    %c307 = arith.constant 307 : index
    %c0_63 = arith.constant 0 : index
    %57 = vector.load %arg7[%c307, %c0_63] : memref<342x4xf32, #tpu.memory_space<vmem>>, vector<35x4xf32>
    tpu.vector_store %arg7[%c307, %c0_63], %56 {strides = array<i32>} : memref<342x4xf32, #tpu.memory_space<vmem>>, vector<35x4xf32>,
    %c19_64 = arith.constant 19 : index
    %c0_65 = arith.constant 0 : index
    %58 = vector.load %arg7[%c19_64, %c0_65] : memref<342x4xf32, #tpu.memory_space<vmem>>, vector<288x4xf32>
    tpu.vector_store %arg7[%c19_64, %c0_65], %53 {strides = array<i32>} : memref<342x4xf32, #tpu.memory_space<vmem>>, vector<288x4xf32>,
    %cst_66 = arith.constant 0.000000e+00 : f32
    %59 = vector.broadcast %cst_66 : f32 to vector<288x4xf32>
    %c0_67 = arith.constant 0 : index
    %c0_68 = arith.constant 0 : index
    %60 = vector.load %arg7[%c0_67, %c0_68] : memref<342x4xf32, #tpu.memory_space<vmem>>, vector<288x4xf32>
    %61 = arith.truncf %60 : vector<288x4xf32> to vector<288x4xbf16>
    %c0_69 = arith.constant 0 : index
    %c0_70 = arith.constant 0 : index
    %62 = vector.load %arg8[%c0_69, %c0_70] : memref<288x12xbf16, #tpu.memory_space<vmem>>, vector<288x4xbf16>
    tpu.vector_store %arg8[%c0_69, %c0_70], %61 {strides = array<i32>} : memref<288x12xbf16, #tpu.memory_space<vmem>>, vector<288x4xbf16>,
    %c1_71 = arith.constant 1 : index
    %c0_72 = arith.constant 0 : index
    %63 = vector.load %arg7[%c1_71, %c0_72] : memref<342x4xf32, #tpu.memory_space<vmem>>, vector<288x4xf32>
    %64 = arith.truncf %63 : vector<288x4xf32> to vector<288x4xbf16>
    %c0_73 = arith.constant 0 : index
    %c4_74 = arith.constant 4 : index
    %65 = vector.load %arg8[%c0_73, %c4_74] : memref<288x12xbf16, #tpu.memory_space<vmem>>, vector<288x4xbf16>
    tpu.vector_store %arg8[%c0_73, %c4_74], %64 {strides = array<i32>} : memref<288x12xbf16, #tpu.memory_space<vmem>>, vector<288x4xbf16>,
    %c2_75 = arith.constant 2 : index
    %c0_76 = arith.constant 0 : index
    %66 = vector.load %arg7[%c2_75, %c0_76] : memref<342x4xf32, #tpu.memory_space<vmem>>, vector<288x4xf32>
    %67 = arith.truncf %66 : vector<288x4xf32> to vector<288x4xbf16>
    %c0_77 = arith.constant 0 : index
    %c8_78 = arith.constant 8 : index
    %68 = vector.load %arg8[%c0_77, %c8_78] : memref<288x12xbf16, #tpu.memory_space<vmem>>, vector<288x4xbf16>
    tpu.vector_store %arg8[%c0_77, %c8_78], %67 {strides = array<i32>} : memref<288x12xbf16, #tpu.memory_space<vmem>>, vector<288x4xbf16>,
    %c0_79 = arith.constant 0 : index
    %c0_80 = arith.constant 0 : index
    %69 = vector.load %arg8[%c0_79, %c0_80] : memref<288x12xbf16, #tpu.memory_space<vmem>>, vector<288x12xbf16>
    %c0_81 = arith.constant 0 : index
    %c0_82 = arith.constant 0 : index
    %c0_83 = arith.constant 0 : index
    %70 = vector.load %arg3[%c0_81, %c0_82, %c0_83] : memref<3x12x4xbf16, #tpu.memory_space<vmem>>, vector<1x12x4xbf16>
    %71 = vector.shape_cast %70 : vector<1x12x4xbf16> to vector<12x4xbf16>
    %cst_84 = arith.constant dense<0.000000e+00> : vector<288x4xf32>
    %72 = tpu.matmul %69, %71, %cst_84 {dimension_numbers = #tpu.dot_dimension_numbers<[1], [0], [0], [1], [0, 0, 1, 1], [], []>} : vector<288x12xbf16>, vector<12x4xbf16>, vector<288x4xf32> -> vector<288x4xf32>
    %73 = arith.addf %59, %72 : vector<288x4xf32>
    %c18_85 = arith.constant 18 : index
    %c0_86 = arith.constant 0 : index
    %74 = vector.load %arg7[%c18_85, %c0_86] : memref<342x4xf32, #tpu.memory_space<vmem>>, vector<288x4xf32>
    %75 = arith.truncf %74 : vector<288x4xf32> to vector<288x4xbf16>
    %c0_87 = arith.constant 0 : index
    %c0_88 = arith.constant 0 : index
    %76 = vector.load %arg8[%c0_87, %c0_88] : memref<288x12xbf16, #tpu.memory_space<vmem>>, vector<288x4xbf16>
    tpu.vector_store %arg8[%c0_87, %c0_88], %75 {strides = array<i32>} : memref<288x12xbf16, #tpu.memory_space<vmem>>, vector<288x4xbf16>,
    %c19_89 = arith.constant 19 : index
    %c0_90 = arith.constant 0 : index
    %77 = vector.load %arg7[%c19_89, %c0_90] : memref<342x4xf32, #tpu.memory_space<vmem>>, vector<288x4xf32>
    %78 = arith.truncf %77 : vector<288x4xf32> to vector<288x4xbf16>
    %c0_91 = arith.constant 0 : index
    %c4_92 = arith.constant 4 : index
    %79 = vector.load %arg8[%c0_91, %c4_92] : memref<288x12xbf16, #tpu.memory_space<vmem>>, vector<288x4xbf16>
    tpu.vector_store %arg8[%c0_91, %c4_92], %78 {strides = array<i32>} : memref<288x12xbf16, #tpu.memory_space<vmem>>, vector<288x4xbf16>,
    %c20_93 = arith.constant 20 : index
    %c0_94 = arith.constant 0 : index
    %80 = vector.load %arg7[%c20_93, %c0_94] : memref<342x4xf32, #tpu.memory_space<vmem>>, vector<288x4xf32>
    %81 = arith.truncf %80 : vector<288x4xf32> to vector<288x4xbf16>
    %c0_95 = arith.constant 0 : index
    %c8_96 = arith.constant 8 : index
    %82 = vector.load %arg8[%c0_95, %c8_96] : memref<288x12xbf16, #tpu.memory_space<vmem>>, vector<288x4xbf16>
    tpu.vector_store %arg8[%c0_95, %c8_96], %81 {strides = array<i32>} : memref<288x12xbf16, #tpu.memory_space<vmem>>, vector<288x4xbf16>,
    %c0_97 = arith.constant 0 : index
    %c0_98 = arith.constant 0 : index
    %83 = vector.load %arg8[%c0_97, %c0_98] : memref<288x12xbf16, #tpu.memory_space<vmem>>, vector<288x12xbf16>
    %c1_99 = arith.constant 1 : index
    %c0_100 = arith.constant 0 : index
    %c0_101 = arith.constant 0 : index
    %84 = vector.load %arg3[%c1_99, %c0_100, %c0_101] : memref<3x12x4xbf16, #tpu.memory_space<vmem>>, vector<1x12x4xbf16>
    %85 = vector.shape_cast %84 : vector<1x12x4xbf16> to vector<12x4xbf16>
    %cst_102 = arith.constant dense<0.000000e+00> : vector<288x4xf32>
    %86 = tpu.matmul %83, %85, %cst_102 {dimension_numbers = #tpu.dot_dimension_numbers<[1], [0], [0], [1], [0, 0, 1, 1], [], []>} : vector<288x12xbf16>, vector<12x4xbf16>, vector<288x4xf32> -> vector<288x4xf32>
    %87 = arith.addf %73, %86 : vector<288x4xf32>
    %c36_103 = arith.constant 36 : index
    %c0_104 = arith.constant 0 : index
    %88 = vector.load %arg7[%c36_103, %c0_104] : memref<342x4xf32, #tpu.memory_space<vmem>>, vector<288x4xf32>
    %89 = arith.truncf %88 : vector<288x4xf32> to vector<288x4xbf16>
    %c0_105 = arith.constant 0 : index
    %c0_106 = arith.constant 0 : index
    %90 = vector.load %arg8[%c0_105, %c0_106] : memref<288x12xbf16, #tpu.memory_space<vmem>>, vector<288x4xbf16>
    tpu.vector_store %arg8[%c0_105, %c0_106], %89 {strides = array<i32>} : memref<288x12xbf16, #tpu.memory_space<vmem>>, vector<288x4xbf16>,
    %c37_107 = arith.constant 37 : index
    %c0_108 = arith.constant 0 : index
    %91 = vector.load %arg7[%c37_107, %c0_108] : memref<342x4xf32, #tpu.memory_space<vmem>>, vector<288x4xf32>
    %92 = arith.truncf %91 : vector<288x4xf32> to vector<288x4xbf16>
    %c0_109 = arith.constant 0 : index
    %c4_110 = arith.constant 4 : index
    %93 = vector.load %arg8[%c0_109, %c4_110] : memref<288x12xbf16, #tpu.memory_space<vmem>>, vector<288x4xbf16>
    tpu.vector_store %arg8[%c0_109, %c4_110], %92 {strides = array<i32>} : memref<288x12xbf16, #tpu.memory_space<vmem>>, vector<288x4xbf16>,
    %c38_111 = arith.constant 38 : index
    %c0_112 = arith.constant 0 : index
    %94 = vector.load %arg7[%c38_111, %c0_112] : memref<342x4xf32, #tpu.memory_space<vmem>>, vector<288x4xf32>
    %95 = arith.truncf %94 : vector<288x4xf32> to vector<288x4xbf16>
    %c0_113 = arith.constant 0 : index
    %c8_114 = arith.constant 8 : index
    %96 = vector.load %arg8[%c0_113, %c8_114] : memref<288x12xbf16, #tpu.memory_space<vmem>>, vector<288x4xbf16>
    tpu.vector_store %arg8[%c0_113, %c8_114], %95 {strides = array<i32>} : memref<288x12xbf16, #tpu.memory_space<vmem>>, vector<288x4xbf16>,
    %c0_115 = arith.constant 0 : index
    %c0_116 = arith.constant 0 : index
    %97 = vector.load %arg8[%c0_115, %c0_116] : memref<288x12xbf16, #tpu.memory_space<vmem>>, vector<288x12xbf16>
    %c2_117 = arith.constant 2 : index
    %c0_118 = arith.constant 0 : index
    %c0_119 = arith.constant 0 : index
    %98 = vector.load %arg3[%c2_117, %c0_118, %c0_119] : memref<3x12x4xbf16, #tpu.memory_space<vmem>>, vector<1x12x4xbf16>
    %99 = vector.shape_cast %98 : vector<1x12x4xbf16> to vector<12x4xbf16>
    %cst_120 = arith.constant dense<0.000000e+00> : vector<288x4xf32>
    %100 = tpu.matmul %97, %99, %cst_120 {dimension_numbers = #tpu.dot_dimension_numbers<[1], [0], [0], [1], [0, 0, 1, 1], [], []>} : vector<288x12xbf16>, vector<12x4xbf16>, vector<288x4xf32> -> vector<288x4xf32>
    %101 = arith.addf %87, %100 : vector<288x4xf32>
    %c0_121 = arith.constant 0 : index
    %c19_122 = arith.constant 19 : index
    %c0_123 = arith.constant 0 : index
    %102 = vector.load %arg1[%c0_121, %c19_122, %c0_123] : memref<1x342x4xbf16, #tpu.memory_space<vmem>>, vector<1x288x4xbf16>
    %103 = vector.shape_cast %102 : vector<1x288x4xbf16> to vector<288x4xbf16>
    %104 = arith.extf %103 : vector<288x4xbf16> to vector<288x4xf32>
    %c2_124 = arith.constant 2 : index
    %c0_125 = arith.constant 0 : index
    %105 = vector.load %arg4[%c2_124, %c0_125] : memref<4x4xf32, #tpu.memory_space<vmem>>, vector<1x4xf32>
    %106 = vector.broadcast %105 : vector<1x4xf32> to vector<288x4xf32>
    %107 = arith.mulf %101, %106 : vector<288x4xf32>
    %c3 = arith.constant 3 : index
    %c0_126 = arith.constant 0 : index
    %108 = vector.load %arg4[%c3, %c0_126] : memref<4x4xf32, #tpu.memory_space<vmem>>, vector<1x4xf32>
    %109 = vector.broadcast %108 : vector<1x4xf32> to vector<288x4xf32>
    %110 = arith.addf %109, %104 : vector<288x4xf32>
    %111 = arith.addf %107, %110 : vector<288x4xf32>
    %cst_127 = arith.constant 0.000000e+00 : f32
    %112 = vector.broadcast %cst_127 : f32 to vector<288x4xf32>
    %113 = arith.maximumf %111, %112 : vector<288x4xf32>
    %c0_128 = arith.constant 0 : index
    %c0_129 = arith.constant 0 : index
    %c0_130 = arith.constant 0 : index
    %114 = vector.load %arg6[%c0_128, %c0_129, %c0_130] : memref<1x288x4xf32, #tpu.memory_space<vmem>>, vector<1x288x4xf32>
    %115 = vector.shape_cast %114 : vector<1x288x4xf32> to vector<288x4xf32>
    %116 = vector.shape_cast %113 : vector<288x4xf32> to vector<1x288x4xf32>
    tpu.vector_store %arg6[%c0_128, %c0_129, %c0_130], %116 {strides = array<i32>} : memref<1x288x4xf32, #tpu.memory_space<vmem>>, vector<1x288x4xf32>,
    return
  }
  func.func @transform_0(%arg0: i32) -> (i32, i32, i32) {
    %c0_i32 = arith.constant 0 : i32
    %c0_i32_0 = arith.constant 0 : i32
    %c0_i32_1 = arith.constant 0 : i32
    return %arg0, %c0_i32, %c0_i32_0 : i32, i32, i32
  }
  func.func @transform_1(%arg0: i32) -> (i32, i32, i32) {
    %c0_i32 = arith.constant 0 : i32
    %c0_i32_0 = arith.constant 0 : i32
    %c0_i32_1 = arith.constant 0 : i32
    %c0_i32_2 = arith.constant 0 : i32
    return %c0_i32, %c0_i32_0, %c0_i32_1 : i32, i32, i32
  }
  func.func @transform_2(%arg0: i32) -> (i32, i32, i32) {
    %c0_i32 = arith.constant 0 : i32
    %c0_i32_0 = arith.constant 0 : i32
    %c0_i32_1 = arith.constant 0 : i32
    %c0_i32_2 = arith.constant 0 : i32
    return %c0_i32, %c0_i32_0, %c0_i32_1 : i32, i32, i32
  }
  func.func @transform_3(%arg0: i32) -> (i32, i32) {
    %c0_i32 = arith.constant 0 : i32
    %c0_i32_0 = arith.constant 0 : i32
    %c0_i32_1 = arith.constant 0 : i32
    return %c0_i32, %c0_i32_0 : i32, i32
  }
  func.func @transform_4(%arg0: i32) -> (i32, i32) {
    %c0_i32 = arith.constant 0 : i32
    %c0_i32_0 = arith.constant 0 : i32
    %c0_i32_1 = arith.constant 0 : i32
    return %c0_i32, %c0_i32_0 : i32, i32
  }
  func.func @transform_5(%arg0: i32) -> (i32, i32, i32) {
    %c0_i32 = arith.constant 0 : i32
    %c0_i32_0 = arith.constant 0 : i32
    %c0_i32_1 = arith.constant 0 : i32
    return %arg0, %c0_i32, %c0_i32_0 : i32, i32, i32
  }
}

</mosaic_0001>

<llo_original>
// kernel: tpu_custom_call.1
$region0: #{tpu_custom_call.1}
  #allocation0 [shape = 'u32[]', space=smem, size = 0x4, offset = 0x4, fixed_abs, tag = 'smem constant byte address 0x4 - core index']
  #allocation1 [shape = 'u32[144,128]{1,0:T(1,128)}', space=vmem, size = 0x12000, scoped, tag = 'internal scratch']
  #allocation2 [shape = 'f32[342,4]{1,0:T(8,128)}', space=vmem, size = 0x2b000, scoped, tag = 'scratch operand']
  #allocation3 [shape = 'bf16[288,12]{1,0:T(8,128)(2,1)}', space=vmem, size = 0x12000, scoped, tag = 'scratch operand']
  %s0 = inlined_call_operand.vmem [shape: bf16[2,342,4], index: 0, kind: input, shape index: {}]
  %s1 = inlined_call_operand.vmem [shape: bf16[3,12,4], index: 1, kind: input, shape index: {}]
  %s2 = inlined_call_operand.vmem [shape: bf16[3,12,4], index: 2, kind: input, shape index: {}]
  %s3 = inlined_call_operand.vmem [shape: f32[4,4], index: 3, kind: input, shape index: {}]
  %s4 = inlined_call_operand.vmem [shape: f32[288,1], index: 4, kind: input, shape index: {}]
  %s5 = inlined_call_operand.vmem [shape: f32[2,288,4], index: 5, kind: output, shape index: {}]
  %s6 = sld [smem:[#allocation0]]
  $region53: #{tpu_custom_call.1} parent=0
    _
  %s8 = ssub.s32 1, %s6
  %s9 = scalar_select 0, %s8, %s6
  loop: start=0, step=1, limit=4
  $region2: #{tpu_custom_call.1} parent=0 // loop_pre_header
    _
  $region3: #{tpu_custom_call.1} parent=0 // loop_header
    %s11 = sphi 0, %s15
    %p12 = scmp.ge.s32.totalorder %s11, 4
    %s21 = sphi 0, %s23
    %s24 = sphi 0, %s21
    %s25 = sphi 0, %s24
    %s41 = sphi 0, %s25
    %s45 = sphi 0, %s45
    %s47 = sphi 0, %s45
    %s48 = sphi 0, %s47
    %s62 = sphi 0, %s48
    %s66 = sphi 0, %s66
    %s68 = sphi 0, %s66
    %s69 = sphi 0, %s68
    %s83 = sphi 0, %s69
    %s87 = sphi 0, %s87
    %s89 = sphi 0, %s87
    %s90 = sphi 0, %s89
    %s104 = sphi 0, %s90
    %s108 = sphi 0, %s108
    %s110 = sphi 0, %s108
    %s111 = sphi 0, %s110
    %s125 = sphi 0, %s111
    %s131 = sphi 0, %s133
    %s134 = sphi 0, %s131
    %s135 = sphi 0, %s134
    %s151 = sphi 0, %s135
  $region4: #{tpu_custom_call.1} parent=0 // loop_header_branch
    %14 = sbr.rel (%p12) target = $region8
  $region5: #{tpu_custom_call.1} parent=0 // loop_body
    %s16 = ssub.s32 %s11, 1
    %s17 = ssub.s32 %s11, 2
    %s18 = sadd.s32 %s11, 1
    %s19 = ssub.s32 %s11, %s18
    %p20 = scmp.eq.s32.totalorder %s19, 0
    %s22 = sadd.s32 %s21, 1
    %s23 = scalar_select %p20, %s21, %s22
    %p26 = pneg %p20
    %p27 = scmp.eq.s32.totalorder %s11, 1
    %p28 = por %p26, %p27
    %p29 = scmp.ne.s32.totalorder %s21, %s24
    %p30 = scmp.eq.s32.totalorder %s11, 0
    %p31 = por %p29, %p30
    %p32 = scmp.ne.s32.totalorder %s21, %s24
    %p33 = scmp.eq.s32.totalorder %s16, 1
    %p34 = por %p32, %p33
    %p35 = scmp.ne.s32.totalorder %s24, %s25
    %p36 = scmp.eq.s32.totalorder %s16, 0
    %p37 = por %p35, %p36
    %p38 = scmp.ne.s32.totalorder %s24, %s25
    %p39 = scmp.eq.s32.totalorder %s17, 1
    %p40 = por %p38, %p39
    %p42 = scmp.ne.s32.totalorder %s25, %s41
    %p43 = scmp.eq.s32.totalorder %s17, 0
    %p44 = por %p42, %p43
    %s46 = sadd.s32 %s45, 1
    %p49 = scmp.eq.s32.totalorder %s11, 1
    %p50 = scmp.ne.s32.totalorder %s45, %s47
    %p51 = scmp.eq.s32.totalorder %s11, 0
    %p52 = por %p50, %p51
    %p53 = scmp.ne.s32.totalorder %s45, %s47
    %p54 = scmp.eq.s32.totalorder %s16, 1
    %p55 = por %p53, %p54
    %p56 = scmp.ne.s32.totalorder %s47, %s48
    %p57 = scmp.eq.s32.totalorder %s16, 0
    %p58 = por %p56, %p57
    %p59 = scmp.ne.s32.totalorder %s47, %s48
    %p60 = scmp.eq.s32.totalorder %s17, 1
    %p61 = por %p59, %p60
    %p63 = scmp.ne.s32.totalorder %s48, %s62
    %p64 = scmp.eq.s32.totalorder %s17, 0
    %p65 = por %p63, %p64
    %s67 = sadd.s32 %s66, 1
    %p70 = scmp.eq.s32.totalorder %s11, 1
    %p71 = scmp.ne.s32.totalorder %s66, %s68
    %p72 = scmp.eq.s32.totalorder %s11, 0
    %p73 = por %p71, %p72
    %p74 = scmp.ne.s32.totalorder %s66, %s68
    %p75 = scmp.eq.s32.totalorder %s16, 1
    %p76 = por %p74, %p75
    %p77 = scmp.ne.s32.totalorder %s68, %s69
    %p78 = scmp.eq.s32.totalorder %s16, 0
    %p79 = por %p77, %p78
    %p80 = scmp.ne.s32.totalorder %s68, %s69
    %p81 = scmp.eq.s32.totalorder %s17, 1
    %p82 = por %p80, %p81
    %p84 = scmp.ne.s32.totalorder %s69, %s83
    %p85 = scmp.eq.s32.totalorder %s17, 0
    %p86 = por %p84, %p85
    %s88 = sadd.s32 %s87, 1
    %p91 = scmp.eq.s32.totalorder %s11, 1
    %p92 = scmp.ne.s32.totalorder %s87, %s89
    %p93 = scmp.eq.s32.totalorder %s11, 0
    %p94 = por %p92, %p93
    %p95 = scmp.ne.s32.totalorder %s87, %s89
    %p96 = scmp.eq.s32.totalorder %s16, 1
    %p97 = por %p95, %p96
    %p98 = scmp.ne.s32.totalorder %s89, %s90
    %p99 = scmp.eq.s32.totalorder %s16, 0
    %p100 = por %p98, %p99
    %p101 = scmp.ne.s32.totalorder %s89, %s90
    %p102 = scmp.eq.s32.totalorder %s17, 1
    %p103 = por %p101, %p102
    %p105 = scmp.ne.s32.totalorder %s90, %s104
    %p106 = scmp.eq.s32.totalorder %s17, 0
    %p107 = por %p105, %p106
    %s109 = sadd.s32 %s108, 1
    %p112 = scmp.eq.s32.totalorder %s11, 1
    %p113 = scmp.ne.s32.totalorder %s108, %s110
    %p114 = scmp.eq.s32.totalorder %s11, 0
    %p115 = por %p113, %p114
    %p116 = scmp.ne.s32.totalorder %s108, %s110
    %p117 = scmp.eq.s32.totalorder %s16, 1
    %p118 = por %p116, %p117
    %p119 = scmp.ne.s32.totalorder %s110, %s111
    %p120 = scmp.eq.s32.totalorder %s16, 0
    %p121 = por %p119, %p120
    %p122 = scmp.ne.s32.totalorder %s110, %s111
    %p123 = scmp.eq.s32.totalorder %s17, 1
    %p124 = por %p122, %p123
    %p126 = scmp.ne.s32.totalorder %s111, %s125
    %p127 = scmp.eq.s32.totalorder %s17, 0
    %p128 = por %p126, %p127
    %s129 = ssub.s32 %s11, %s18
    %p130 = scmp.eq.s32.totalorder %s129, 0
    %s132 = sadd.s32 %s131, 1
    %s133 = scalar_select %p130, %s131, %s132
    %p136 = pneg %p130
    %p137 = scmp.eq.s32.totalorder %s11, 1
    %p138 = por %p136, %p137
    %p139 = scmp.ne.s32.totalorder %s131, %s134
    %p140 = scmp.eq.s32.totalorder %s11, 0
    %p141 = por %p139, %p140
    %p142 = scmp.ne.s32.totalorder %s131, %s134
    %p143 = scmp.eq.s32.totalorder %s16, 1
    %p144 = por %p142, %p143
    %p145 = scmp.ne.s32.totalorder %s134, %s135
    %p146 = scmp.eq.s32.totalorder %s16, 0
    %p147 = por %p145, %p146
    %p148 = scmp.ne.s32.totalorder %s134, %s135
    %p149 = scmp.eq.s32.totalorder %s17, 1
    %p150 = por %p148, %p149
    %p152 = scmp.ne.s32.totalorder %s135, %s151
    %p153 = scmp.eq.s32.totalorder %s17, 0
    %p154 = por %p152, %p153
    %p155 = scmp.le.s32.totalorder 1, %s11
    %p156 = scmp.lt.s32.totalorder %s11, 3
    %p157 = pnand %p155, %p156
    %p158 = pneg %p157
    // Predicated region
    $region9: #{tpu_custom_call.1} parent=5 // pred_check
      _
    $region10: #{tpu_custom_call.1} parent=5 // pred_check_branch
      %160 = sbr.rel (%p157) target = $region12
    $region11: #{tpu_custom_call.1} parent=5 // pred_region
      %s161 = ssub.s32 %s11, 1
      // Predicated region
      $region13: #{tpu_custom_call.1} parent=11 // pred_check
        %p162 = pneg %p58
      $region14: #{tpu_custom_call.1} parent=11 // pred_check_branch
        %164 = sbr.rel (%p162) target = $region16
      $region15: #{tpu_custom_call.1} parent=11 // pred_region
        _
      $region16: #{tpu_custom_call.1} parent=11 // pred_fallthru
        _
      // Predicated region
      $region17: #{tpu_custom_call.1} parent=11 // pred_check
        %p165 = pneg %p79
      $region18: #{tpu_custom_call.1} parent=11 // pred_check_branch
        %167 = sbr.rel (%p165) target = $region20
      $region19: #{tpu_custom_call.1} parent=11 // pred_region
        _
      $region20: #{tpu_custom_call.1} parent=11 // pred_fallthru
        _
      // Predicated region
      $region21: #{tpu_custom_call.1} parent=11 // pred_check
        %p168 = pneg %p100
      $region22: #{tpu_custom_call.1} parent=11 // pred_check_branch
        %170 = sbr.rel (%p168) target = $region24
      $region23: #{tpu_custom_call.1} parent=11 // pred_region
        _
      $region24: #{tpu_custom_call.1} parent=11 // pred_fallthru
        _
      // Predicated region
      $region25: #{tpu_custom_call.1} parent=11 // pred_check
        %p171 = pneg %p121
      $region26: #{tpu_custom_call.1} parent=11 // pred_check_branch
        %173 = sbr.rel (%p171) target = $region28
      $region27: #{tpu_custom_call.1} parent=11 // pred_region
        _
      $region28: #{tpu_custom_call.1} parent=11 // pred_fallthru
        _
    $region12: #{tpu_custom_call.1} parent=5 // pred_fallthru
      _
    %p174 = scmp.lt.s32.totalorder %s11, 2
    // Predicated region
    $region29: #{tpu_custom_call.1} parent=5 // pred_check
      %p175 = pneg %p174
    $region30: #{tpu_custom_call.1} parent=5 // pred_check_branch
      %177 = sbr.rel (%p175) target = $region32
    $region31: #{tpu_custom_call.1} parent=5 // pred_region
      // Predicated region
      $region33: #{tpu_custom_call.1} parent=31 // pred_check
        %p178 = pneg %p31
      $region34: #{tpu_custom_call.1} parent=31 // pred_check_branch
        %180 = sbr.rel (%p178) target = $region36
      $region35: #{tpu_custom_call.1} parent=31 // pred_region
        %p181 = scmp.lt.s32.totalorder %s11, 1
        %s182 = scalar_select %p181, %s11, 1
        %s183 = smul.addr %s182, 43
        %s184 = smul.addr %s183, 4
        %s185 = scalar_lea.vmem %s0, %s184
      $region36: #{tpu_custom_call.1} parent=31 // pred_fallthru
        _
    $region32: #{tpu_custom_call.1} parent=5 // pred_fallthru
      _
    %p186 = scmp.le.s32.totalorder 1, %s11
    %p187 = scmp.lt.s32.totalorder %s11, 3
    %p188 = pnand %p186, %p187
    %p189 = pneg %p188
    // Predicated region
    $region37: #{tpu_custom_call.1} parent=5 // pred_check
      _
    $region38: #{tpu_custom_call.1} parent=5 // pred_check_branch
      %191 = sbr.rel (%p188) target = $region40
    $region39: #{tpu_custom_call.1} parent=5 // pred_region
      %s192 = ssub.s32 %s11, 1
      %p193 = scmp.lt.s32.totalorder %s16, 1
      %s194 = scalar_select %p193, %s16, 1
      %s195 = smul.addr %s194, 43
      %s196 = smul.addr %s195, 4
      %s197 = scalar_lea.vmem %s0, %s196
      %p198 = pneg %p37
      %p199 = pneg %p34
      %p200 = pneg %p58
      %p201 = pneg %p55
      %p202 = pneg %p79
      %p203 = pneg %p76
      %p204 = pneg %p100
      %p205 = pneg %p97
      %p206 = pneg %p121
      %p207 = pneg %p118
      %p208 = pneg %p147
      %p209 = pneg %p144
      %p210 = scmp.lt.s32.totalorder %s16, 1
      %s211 = scalar_select %p210, %s16, 1
      %s212 = smul.addr %s211, 36
      %s213 = smul.addr %s212, 8
      %s214 = scalar_lea.vmem %s5, %s213
      %p215 = scmp.lt.s32.totalorder %s16, 1
      %s216 = scalar_select %p215, %s16, 1
      %s217 = smul.addr %s216, 43
      %s218 = smul.addr %s217, 4
      %s219 = scalar_lea.vmem %s0, %s218
      %p220 = scmp.lt.s32.totalorder %s16, 1
      %s221 = scalar_select %p220, %s16, 1
      %s222 = smul.addr %s221, 36
      %s223 = smul.addr %s222, 8
      %s224 = scalar_lea.vmem %s5, %s223
      %v226 = vld [vmem:[%s219] sm:$0xf]
      %v227 = vld [vmem:[%s219 + $0x4] sm:$0xf]
      %v228 = vld [vmem:[%s219 + $0x8] sm:$0xf]
      %v229 = vld [vmem:[%s219 + $0xc] sm:$0xf]
      %v230 = vld [vmem:[%s219 + $0x10] sm:$0xf]
      %v231 = vld [vmem:[%s219 + $0x14] sm:$0xf]
      %v232 = vld [vmem:[%s219 + $0x18] sm:$0xf]
      %v233 = vld [vmem:[%s219 + $0x1c] sm:$0xf]
      %v234 = vld [vmem:[%s219 + $0x20] sm:$0xf]
      %v235 = vld [vmem:[%s219 + $0x24] sm:$0xf]
      %v236 = vld [vmem:[%s219 + $0x28] sm:$0xf]
      %v237 = vld [vmem:[%s219 + $0x2c] sm:$0xf]
      %v238 = vld [vmem:[%s219 + $0x30] sm:$0xf]
      %v239 = vld [vmem:[%s219 + $0x34] sm:$0xf]
      %v240 = vld [vmem:[%s219 + $0x38] sm:$0xf]
      %v241 = vld [vmem:[%s219 + $0x3c] sm:$0xf]
      %v242 = vld [vmem:[%s219 + $0x40] sm:$0xf]
      %v243 = vld [vmem:[%s219 + $0x44] sm:$0xf]
      %v244 = vld [vmem:[%s219 + $0x48] sm:$0xf]
      %v245 = vld [vmem:[%s219 + $0x4c] sm:$0xf]
      %v246 = vld [vmem:[%s219 + $0x50] sm:$0xf]
      %v247 = vld [vmem:[%s219 + $0x54] sm:$0xf]
      %v248 = vld [vmem:[%s219 + $0x58] sm:$0xf]
      %v249 = vld [vmem:[%s219 + $0x5c] sm:$0xf]
      %v250 = vld [vmem:[%s219 + $0x60] sm:$0xf]
      %v251 = vld [vmem:[%s219 + $0x64] sm:$0xf]
      %v252 = vld [vmem:[%s219 + $0x68] sm:$0xf]
      %v253 = vld [vmem:[%s219 + $0x6c] sm:$0xf]
      %v254 = vld [vmem:[%s219 + $0x70] sm:$0xf]
      %v255 = vld [vmem:[%s219 + $0x74] sm:$0xf]
      %v256 = vld [vmem:[%s219 + $0x78] sm:$0xf]
      %v257 = vld [vmem:[%s219 + $0x7c] sm:$0xf]
      %v258 = vld [vmem:[%s219 + $0x80] sm:$0xf]
      %v259 = vld [vmem:[%s219 + $0x84] sm:$0xf]
      %v260 = vld [vmem:[%s219 + $0x88] sm:$0xf]
      %v261 = vld [vmem:[%s219 + $0x8c] sm:$0xf]
      %vm262 = vcmask 27648
      %263 = vst.msk [vmem:[#allocation3] sm:$0xf] %vm262, %v226
      %264 = vst.msk [vmem:[#allocation3 + $0x4] sm:$0xf] %vm262, %v227
      %265 = vst.msk [vmem:[#allocation3 + $0x8] sm:$0xf] %vm262, %v228
      %266 = vst.msk [vmem:[#allocation3 + $0xc] sm:$0xf] %vm262, %v229
      %267 = vst.msk [vmem:[#allocation3 + $0x10] sm:$0xf] %vm262, %v230
      %268 = vst.msk [vmem:[#allocation3 + $0x14] sm:$0xf] %vm262, %v231
      %269 = vst.msk [vmem:[#allocation3 + $0x18] sm:$0xf] %vm262, %v232
      %270 = vst.msk [vmem:[#allocation3 + $0x1c] sm:$0xf] %vm262, %v233
      %271 = vst.msk [vmem:[#allocation3 + $0x20] sm:$0xf] %vm262, %v234
      %272 = vst.msk [vmem:[#allocation3 + $0x24] sm:$0xf] %vm262, %v235
      %273 = vst.msk [vmem:[#allocation3 + $0x28] sm:$0xf] %vm262, %v236
      %274 = vst.msk [vmem:[#allocation3 + $0x2c] sm:$0xf] %vm262, %v237
      %275 = vst.msk [vmem:[#allocation3 + $0x30] sm:$0xf] %vm262, %v238
      %276 = vst.msk [vmem:[#allocation3 + $0x34] sm:$0xf] %vm262, %v239
      %277 = vst.msk [vmem:[#allocation3 + $0x38] sm:$0xf] %vm262, %v240
      %278 = vst.msk [vmem:[#allocation3 + $0x3c] sm:$0xf] %vm262, %v241
      %279 = vst.msk [vmem:[#allocation3 + $0x40] sm:$0xf] %vm262, %v242
      %280 = vst.msk [vmem:[#allocation3 + $0x44] sm:$0xf] %vm262, %v243
      %281 = vst.msk [vmem:[#allocation3 + $0x48] sm:$0xf] %vm262, %v244
      %282 = vst.msk [vmem:[#allocation3 + $0x4c] sm:$0xf] %vm262, %v245
      %283 = vst.msk [vmem:[#allocation3 + $0x50] sm:$0xf] %vm262, %v246
      %284 = vst.msk [vmem:[#allocation3 + $0x54] sm:$0xf] %vm262, %v247
      %285 = vst.msk [vmem:[#allocation3 + $0x58] sm:$0xf] %vm262, %v248
      %286 = vst.msk [vmem:[#allocation3 + $0x5c] sm:$0xf] %vm262, %v249
      %287 = vst.msk [vmem:[#allocation3 + $0x60] sm:$0xf] %vm262, %v250
      %288 = vst.msk [vmem:[#allocation3 + $0x64] sm:$0xf] %vm262, %v251
      %289 = vst.msk [vmem:[#allocation3 + $0x68] sm:$0xf] %vm262, %v252
      %290 = vst.msk [vmem:[#allocation3 + $0x6c] sm:$0xf] %vm262, %v253
      %291 = vst.msk [vmem:[#allocation3 + $0x70] sm:$0xf] %vm262, %v254
      %292 = vst.msk [vmem:[#allocation3 + $0x74] sm:$0xf] %vm262, %v255
      %293 = vst.msk [vmem:[#allocation3 + $0x78] sm:$0xf] %vm262, %v256
      %294 = vst.msk [vmem:[#allocation3 + $0x7c] sm:$0xf] %vm262, %v257
      %295 = vst.msk [vmem:[#allocation3 + $0x80] sm:$0xf] %vm262, %v258
      %296 = vst.msk [vmem:[#allocation3 + $0x84] sm:$0xf] %vm262, %v259
      %297 = vst.msk [vmem:[#allocation3 + $0x88] sm:$0xf] %vm262, %v260
      %298 = vst.msk [vmem:[#allocation3 + $0x8c] sm:$0xf] %vm262, %v261
      %v299 = vld [vmem:[%s219] sm:$0xf]
      %v300 = vld [vmem:[%s219 + $0x4] sm:$0xf]
      %v301 = vld [vmem:[%s219 + $0x8] sm:$0xf]
      %v302 = vld [vmem:[%s219 + $0xc] sm:$0xf]
      %v303 = vld [vmem:[%s219 + $0x10] sm:$0xf]
      %v304 = vld [vmem:[%s219 + $0x14] sm:$0xf]
      %v305 = vld [vmem:[%s219 + $0x18] sm:$0xf]
      %v306 = vld [vmem:[%s219 + $0x1c] sm:$0xf]
      %v307 = vld [vmem:[%s219 + $0x20] sm:$0xf]
      %v308 = vld [vmem:[%s219 + $0x24] sm:$0xf]
      %v309 = vld [vmem:[%s219 + $0x28] sm:$0xf]
      %v310 = vld [vmem:[%s219 + $0x2c] sm:$0xf]
      %v311 = vld [vmem:[%s219 + $0x30] sm:$0xf]
      %v312 = vld [vmem:[%s219 + $0x34] sm:$0xf]
      %v313 = vld [vmem:[%s219 + $0x38] sm:$0xf]
      %v314 = vld [vmem:[%s219 + $0x3c] sm:$0xf]
      %v315 = vld [vmem:[%s219 + $0x40] sm:$0xf]
      %v316 = vld [vmem:[%s219 + $0x44] sm:$0xf]
      %v317 = vld [vmem:[%s219 + $0x48] sm:$0xf]
      %v318 = vld [vmem:[%s219 + $0x4c] sm:$0xf]
      %v319 = vld [vmem:[%s219 + $0x50] sm:$0xf]
      %v320 = vld [vmem:[%s219 + $0x54] sm:$0xf]
      %v321 = vld [vmem:[%s219 + $0x58] sm:$0xf]
      %v322 = vld [vmem:[%s219 + $0x5c] sm:$0xf]
      %v323 = vld [vmem:[%s219 + $0x60] sm:$0xf]
      %v324 = vld [vmem:[%s219 + $0x64] sm:$0xf]
      %v325 = vld [vmem:[%s219 + $0x68] sm:$0xf]
      %v326 = vld [vmem:[%s219 + $0x6c] sm:$0xf]
      %v327 = vld [vmem:[%s219 + $0x70] sm:$0xf]
      %v328 = vld [vmem:[%s219 + $0x74] sm:$0xf]
      %v329 = vld [vmem:[%s219 + $0x78] sm:$0xf]
      %v330 = vld [vmem:[%s219 + $0x7c] sm:$0xf]
      %v331 = vld [vmem:[%s219 + $0x80] sm:$0xf]
      %v332 = vld [vmem:[%s219 + $0x84] sm:$0xf]
      %v333 = vld [vmem:[%s219 + $0x88] sm:$0xf]
      %v334 = vld [vmem:[%s219 + $0x8c] sm:$0xf]
      %v335 = vld [vmem:[%s219 + $0x90] sm:$0x1]
      %vm336 = vsmask.f32 3328
      %vm337 = vsmask.f32 7440
      %vm338 = vmor %vm336, %vm337
      %v340 = vshrl.u32 %v299, 16
      %v342 = vrot.slane %v340, 4
      %v343 = vshll.u32 %v299, 16
      %v345 = vrot.slane %v343, 5
      %v346 = vor.u32 %v342, %v345
      %v347 = vrot.slane %v346, 4
      %v349 = vshll.u32 %v300, 16
      %v351 = vrot.slane %v349, 5
      %v352 = vsel %vm338, %v347, %v351
      %v353 = vshrl.u32 %v300, 16
      %v355 = vrot.slane %v353, 4
      %v356 = vor.u32 %v355, %v351
      %v357 = vrot.slane %v356, 4
      %v359 = vshll.u32 %v301, 16
      %v361 = vrot.slane %v359, 5
      %v362 = vsel %vm338, %v357, %v361
      %v363 = vshrl.u32 %v301, 16
      %v365 = vrot.slane %v363, 4
      %v366 = vor.u32 %v365, %v361
      %v367 = vrot.slane %v366, 4
      %v369 = vshll.u32 %v302, 16
      %v371 = vrot.slane %v369, 5
      %v372 = vsel %vm338, %v367, %v371
      %v373 = vshrl.u32 %v302, 16
      %v375 = vrot.slane %v373, 4
      %v376 = vor.u32 %v375, %v371
      %v377 = vrot.slane %v376, 4
      %v379 = vshll.u32 %v303, 16
      %v381 = vrot.slane %v379, 5
      %v382 = vsel %vm338, %v377, %v381
      %v383 = vshrl.u32 %v303, 16
      %v385 = vrot.slane %v383, 4
      %v386 = vor.u32 %v385, %v381
      %v387 = vrot.slane %v386, 4
      %v389 = vshll.u32 %v304, 16
      %v391 = vrot.slane %v389, 5
      %v392 = vsel %vm338, %v387, %v391
      %v393 = vshrl.u32 %v304, 16
      %v395 = vrot.slane %v393, 4
      %v396 = vor.u32 %v395, %v391
      %v397 = vrot.slane %v396, 4
      %v399 = vshll.u32 %v305, 16
      %v401 = vrot.slane %v399, 5
      %v402 = vsel %vm338, %v397, %v401
      %v403 = vshrl.u32 %v305, 16
      %v405 = vrot.slane %v403, 4
      %v406 = vor.u32 %v405, %v401
      %v407 = vrot.slane %v406, 4
      %v409 = vshll.u32 %v306, 16
      %v411 = vrot.slane %v409, 5
      %v412 = vsel %vm338, %v407, %v411
      %v413 = vshrl.u32 %v306, 16
      %v415 = vrot.slane %v413, 4
      %v416 = vor.u32 %v415, %v411
      %v417 = vrot.slane %v416, 4
      %v419 = vshll.u32 %v307, 16
      %v421 = vrot.slane %v419, 5
      %v422 = vsel %vm338, %v417, %v421
      %v423 = vshrl.u32 %v307, 16
      %v425 = vrot.slane %v423, 4
      %v426 = vor.u32 %v425, %v421
      %v427 = vrot.slane %v426, 4
      %v429 = vshll.u32 %v308, 16
      %v431 = vrot.slane %v429, 5
      %v432 = vsel %vm338, %v427, %v431
      %v433 = vshrl.u32 %v308, 16
      %v435 = vrot.slane %v433, 4
      %v436 = vor.u32 %v435, %v431
      %v437 = vrot.slane %v436, 4
      %v439 = vshll.u32 %v309, 16
      %v441 = vrot.slane %v439, 5
      %v442 = vsel %vm338, %v437, %v441
      %v443 = vshrl.u32 %v309, 16
      %v445 = vrot.slane %v443, 4
      %v446 = vor.u32 %v445, %v441
      %v447 = vrot.slane %v446, 4
      %v449 = vshll.u32 %v310, 16
      %v451 = vrot.slane %v449, 5
      %v452 = vsel %vm338, %v447, %v451
      %v453 = vshrl.u32 %v310, 16
      %v455 = vrot.slane %v453, 4
      %v456 = vor.u32 %v455, %v451
      %v457 = vrot.slane %v456, 4
      %v459 = vshll.u32 %v311, 16
      %v461 = vrot.slane %v459, 5
      %v462 = vsel %vm338, %v457, %v461
      %v463 = vshrl.u32 %v311, 16
      %v465 = vrot.slane %v463, 4
      %v466 = vor.u32 %v465, %v461
      %v467 = vrot.slane %v466, 4
      %v469 = vshll.u32 %v312, 16
      %v471 = vrot.slane %v469, 5
      %v472 = vsel %vm338, %v467, %v471
      %v473 = vshrl.u32 %v312, 16
      %v475 = vrot.slane %v473, 4
      %v476 = vor.u32 %v475, %v471
      %v477 = vrot.slane %v476, 4
      %v479 = vshll.u32 %v313, 16
      %v481 = vrot.slane %v479, 5
      %v482 = vsel %vm338, %v477, %v481
      %v483 = vshrl.u32 %v313, 16
      %v485 = vrot.slane %v483, 4
      %v486 = vor.u32 %v485, %v481
      %v487 = vrot.slane %v486, 4
      %v489 = vshll.u32 %v314, 16
      %v491 = vrot.slane %v489, 5
      %v492 = vsel %vm338, %v487, %v491
      %v493 = vshrl.u32 %v314, 16
      %v495 = vrot.slane %v493, 4
      %v496 = vor.u32 %v495, %v491
      %v497 = vrot.slane %v496, 4
      %v499 = vshll.u32 %v315, 16
      %v501 = vrot.slane %v499, 5
      %v502 = vsel %vm338, %v497, %v501
      %v503 = vshrl.u32 %v315, 16
      %v505 = vrot.slane %v503, 4
      %v506 = vor.u32 %v505, %v501
      %v507 = vrot.slane %v506, 4
      %v509 = vshll.u32 %v316, 16
      %v511 = vrot.slane %v509, 5
      %v512 = vsel %vm338, %v507, %v511
      %v513 = vshrl.u32 %v316, 16
      %v515 = vrot.slane %v513, 4
      %v516 = vor.u32 %v515, %v511
      %v517 = vrot.slane %v516, 4
      %v519 = vshll.u32 %v317, 16
      %v521 = vrot.slane %v519, 5
      %v522 = vsel %vm338, %v517, %v521
      %v523 = vshrl.u32 %v317, 16
      %v525 = vrot.slane %v523, 4
      %v526 = vor.u32 %v525, %v521
      %v527 = vrot.slane %v526, 4
      %v529 = vshll.u32 %v318, 16
      %v531 = vrot.slane %v529, 5
      %v532 = vsel %vm338, %v527, %v531
      %v533 = vshrl.u32 %v318, 16
      %v535 = vrot.slane %v533, 4
      %v536 = vor.u32 %v535, %v531
      %v537 = vrot.slane %v536, 4
      %v539 = vshll.u32 %v319, 16
      %v541 = vrot.slane %v539, 5
      %v542 = vsel %vm338, %v537, %v541
      %v543 = vshrl.u32 %v319, 16
      %v545 = vrot.slane %v543, 4
      %v546 = vor.u32 %v545, %v541
      %v547 = vrot.slane %v546, 4
      %v549 = vshll.u32 %v320, 16
      %v551 = vrot.slane %v549, 5
      %v552 = vsel %vm338, %v547, %v551
      %v553 = vshrl.u32 %v320, 16
      %v555 = vrot.slane %v553, 4
      %v556 = vor.u32 %v555, %v551
      %v557 = vrot.slane %v556, 4
      %v559 = vshll.u32 %v321, 16
      %v561 = vrot.slane %v559, 5
      %v562 = vsel %vm338, %v557, %v561
      %v563 = vshrl.u32 %v321, 16
      %v565 = vrot.slane %v563, 4
      %v566 = vor.u32 %v565, %v561
      %v567 = vrot.slane %v566, 4
      %v569 = vshll.u32 %v322, 16
      %v571 = vrot.slane %v569, 5
      %v572 = vsel %vm338, %v567, %v571
      %v573 = vshrl.u32 %v322, 16
      %v575 = vrot.slane %v573, 4
      %v576 = vor.u32 %v575, %v571
      %v577 = vrot.slane %v576, 4
      %v579 = vshll.u32 %v323, 16
      %v581 = vrot.slane %v579, 5
      %v582 = vsel %vm338, %v577, %v581
      %v583 = vshrl.u32 %v323, 16
      %v585 = vrot.slane %v583, 4
      %v586 = vor.u32 %v585, %v581
      %v587 = vrot.slane %v586, 4
      %v589 = vshll.u32 %v324, 16
      %v591 = vrot.slane %v589, 5
      %v592 = vsel %vm338, %v587, %v591
      %v593 = vshrl.u32 %v324, 16
      %v595 = vrot.slane %v593, 4
      %v596 = vor.u32 %v595, %v591
      %v597 = vrot.slane %v596, 4
      %v599 = vshll.u32 %v325, 16
      %v601 = vrot.slane %v599, 5
      %v602 = vsel %vm338, %v597, %v601
      %v603 = vshrl.u32 %v325, 16
      %v605 = vrot.slane %v603, 4
      %v606 = vor.u32 %v605, %v601
      %v607 = vrot.slane %v606, 4
      %v609 = vshll.u32 %v326, 16
      %v611 = vrot.slane %v609, 5
      %v612 = vsel %vm338, %v607, %v611
      %v613 = vshrl.u32 %v326, 16
      %v615 = vrot.slane %v613, 4
      %v616 = vor.u32 %v615, %v611
      %v617 = vrot.slane %v616, 4
      %v619 = vshll.u32 %v327, 16
      %v621 = vrot.slane %v619, 5
      %v622 = vsel %vm338, %v617, %v621
      %v623 = vshrl.u32 %v327, 16
      %v625 = vrot.slane %v623, 4
      %v626 = vor.u32 %v625, %v621
      %v627 = vrot.slane %v626, 4
      %v629 = vshll.u32 %v328, 16
      %v631 = vrot.slane %v629, 5
      %v632 = vsel %vm338, %v627, %v631
      %v633 = vshrl.u32 %v328, 16
      %v635 = vrot.slane %v633, 4
      %v636 = vor.u32 %v635, %v631
      %v637 = vrot.slane %v636, 4
      %v639 = vshll.u32 %v329, 16
      %v641 = vrot.slane %v639, 5
      %v642 = vsel %vm338, %v637, %v641
      %v643 = vshrl.u32 %v329, 16
      %v645 = vrot.slane %v643, 4
      %v646 = vor.u32 %v645, %v641
      %v647 = vrot.slane %v646, 4
      %v649 = vshll.u32 %v330, 16
      %v651 = vrot.slane %v649, 5
      %v652 = vsel %vm338, %v647, %v651
      %v653 = vshrl.u32 %v330, 16
      %v655 = vrot.slane %v653, 4
      %v656 = vor.u32 %v655, %v651
      %v657 = vrot.slane %v656, 4
      %v659 = vshll.u32 %v331, 16
      %v661 = vrot.slane %v659, 5
      %v662 = vsel %vm338, %v657, %v661
      %v663 = vshrl.u32 %v331, 16
      %v665 = vrot.slane %v663, 4
      %v666 = vor.u32 %v665, %v661
      %v667 = vrot.slane %v666, 4
      %v669 = vshll.u32 %v332, 16
      %v671 = vrot.slane %v669, 5
      %v672 = vsel %vm338, %v667, %v671
      %v673 = vshrl.u32 %v332, 16
      %v675 = vrot.slane %v673, 4
      %v676 = vor.u32 %v675, %v671
      %v677 = vrot.slane %v676, 4
      %v679 = vshll.u32 %v333, 16
      %v681 = vrot.slane %v679, 5
      %v682 = vsel %vm338, %v677, %v681
      %v683 = vshrl.u32 %v333, 16
      %v685 = vrot.slane %v683, 4
      %v686 = vor.u32 %v685, %v681
      %v687 = vrot.slane %v686, 4
      %v689 = vshll.u32 %v334, 16
      %v691 = vrot.slane %v689, 5
      %v692 = vsel %vm338, %v687, %v691
      %v693 = vshrl.u32 %v334, 16
      %v695 = vrot.slane %v693, 4
      %v696 = vor.u32 %v695, %v691
      %v697 = vrot.slane %v696, 4
      %v699 = vshll.u32 %v335, 16
      %v701 = vrot.slane %v699, 5
      %v702 = vsel %vm338, %v697, %v701
      %703 = vrot.lane.b32.xlu0 %v352, 4
      %v704 = vpop.permute.xlu0 %703
      %705 = vrot.lane.b32.xlu0 %v362, 4
      %v706 = vpop.permute.xlu0 %705
      %707 = vrot.lane.b32.xlu0 %v372, 4
      %v708 = vpop.permute.xlu0 %707
      %709 = vrot.lane.b32.xlu0 %v382, 4
      %v710 = vpop.permute.xlu0 %709
      %711 = vrot.lane.b32.xlu0 %v392, 4
      %v712 = vpop.permute.xlu0 %711
      %713 = vrot.lane.b32.xlu0 %v402, 4
      %v714 = vpop.permute.xlu0 %713
      %715 = vrot.lane.b32.xlu0 %v412, 4
      %v716 = vpop.permute.xlu0 %715
      %717 = vrot.lane.b32.xlu0 %v422, 4
      %v718 = vpop.permute.xlu0 %717
      %719 = vrot.lane.b32.xlu0 %v432, 4
      %v720 = vpop.permute.xlu0 %719
      %721 = vrot.lane.b32.xlu0 %v442, 4
      %v722 = vpop.permute.xlu0 %721
      %723 = vrot.lane.b32.xlu0 %v452, 4
      %v724 = vpop.permute.xlu0 %723
      %725 = vrot.lane.b32.xlu0 %v462, 4
      %v726 = vpop.permute.xlu0 %725
      %727 = vrot.lane.b32.xlu0 %v472, 4
      %v728 = vpop.permute.xlu0 %727
      %729 = vrot.lane.b32.xlu0 %v482, 4
      %v730 = vpop.permute.xlu0 %729
      %731 = vrot.lane.b32.xlu0 %v492, 4
      %v732 = vpop.permute.xlu0 %731
      %733 = vrot.lane.b32.xlu0 %v502, 4
      %v734 = vpop.permute.xlu0 %733
      %735 = vrot.lane.b32.xlu0 %v512, 4
      %v736 = vpop.permute.xlu0 %735
      %737 = vrot.lane.b32.xlu0 %v522, 4
      %v738 = vpop.permute.xlu0 %737
      %739 = vrot.lane.b32.xlu0 %v532, 4
      %v740 = vpop.permute.xlu0 %739
      %741 = vrot.lane.b32.xlu0 %v542, 4
      %v742 = vpop.permute.xlu0 %741
      %743 = vrot.lane.b32.xlu0 %v552, 4
      %v744 = vpop.permute.xlu0 %743
      %745 = vrot.lane.b32.xlu0 %v562, 4
      %v746 = vpop.permute.xlu0 %745
      %747 = vrot.lane.b32.xlu0 %v572, 4
      %v748 = vpop.permute.xlu0 %747
      %749 = vrot.lane.b32.xlu0 %v582, 4
      %v750 = vpop.permute.xlu0 %749
      %751 = vrot.lane.b32.xlu0 %v592, 4
      %v752 = vpop.permute.xlu0 %751
      %753 = vrot.lane.b32.xlu0 %v602, 4
      %v754 = vpop.permute.xlu0 %753
      %755 = vrot.lane.b32.xlu0 %v612, 4
      %v756 = vpop.permute.xlu0 %755
      %757 = vrot.lane.b32.xlu0 %v622, 4
      %v758 = vpop.permute.xlu0 %757
      %759 = vrot.lane.b32.xlu0 %v632, 4
      %v760 = vpop.permute.xlu0 %759
      %761 = vrot.lane.b32.xlu0 %v642, 4
      %v762 = vpop.permute.xlu0 %761
      %763 = vrot.lane.b32.xlu0 %v652, 4
      %v764 = vpop.permute.xlu0 %763
      %765 = vrot.lane.b32.xlu0 %v662, 4
      %v766 = vpop.permute.xlu0 %765
      %767 = vrot.lane.b32.xlu0 %v672, 4
      %v768 = vpop.permute.xlu0 %767
      %769 = vrot.lane.b32.xlu0 %v682, 4
      %v770 = vpop.permute.xlu0 %769
      %771 = vrot.lane.b32.xlu0 %v692, 4
      %v772 = vpop.permute.xlu0 %771
      %773 = vrot.lane.b32.xlu0 %v702, 4
      %v774 = vpop.permute.xlu0 %773
      %vm811 = vcmask 60448
      %812 = vst.msk [vmem:[#allocation3] sm:$0xf] %vm811, %v704
      %813 = vst.msk [vmem:[#allocation3 + $0x4] sm:$0xf] %vm811, %v706
      %814 = vst.msk [vmem:[#allocation3 + $0x8] sm:$0xf] %vm811, %v708
      %815 = vst.msk [vmem:[#allocation3 + $0xc] sm:$0xf] %vm811, %v710
      %816 = vst.msk [vmem:[#allocation3 + $0x10] sm:$0xf] %vm811, %v712
      %817 = vst.msk [vmem:[#allocation3 + $0x14] sm:$0xf] %vm811, %v714
      %818 = vst.msk [vmem:[#allocation3 + $0x18] sm:$0xf] %vm811, %v716
      %819 = vst.msk [vmem:[#allocation3 + $0x1c] sm:$0xf] %vm811, %v718
      %820 = vst.msk [vmem:[#allocation3 + $0x20] sm:$0xf] %vm811, %v720
      %821 = vst.msk [vmem:[#allocation3 + $0x24] sm:$0xf] %vm811, %v722
      %822 = vst.msk [vmem:[#allocation3 + $0x28] sm:$0xf] %vm811, %v724
      %823 = vst.msk [vmem:[#allocation3 + $0x2c] sm:$0xf] %vm811, %v726
      %824 = vst.msk [vmem:[#allocation3 + $0x30] sm:$0xf] %vm811, %v728
      %825 = vst.msk [vmem:[#allocation3 + $0x34] sm:$0xf] %vm811, %v730
      %826 = vst.msk [vmem:[#allocation3 + $0x38] sm:$0xf] %vm811, %v732
      %827 = vst.msk [vmem:[#allocation3 + $0x3c] sm:$0xf] %vm811, %v734
      %828 = vst.msk [vmem:[#allocation3 + $0x40] sm:$0xf] %vm811, %v736
      %829 = vst.msk [vmem:[#allocation3 + $0x44] sm:$0xf] %vm811, %v738
      %830 = vst.msk [vmem:[#allocation3 + $0x48] sm:$0xf] %vm811, %v740
      %831 = vst.msk [vmem:[#allocation3 + $0x4c] sm:$0xf] %vm811, %v742
      %832 = vst.msk [vmem:[#allocation3 + $0x50] sm:$0xf] %vm811, %v744
      %833 = vst.msk [vmem:[#allocation3 + $0x54] sm:$0xf] %vm811, %v746
      %834 = vst.msk [vmem:[#allocation3 + $0x58] sm:$0xf] %vm811, %v748
      %835 = vst.msk [vmem:[#allocation3 + $0x5c] sm:$0xf] %vm811, %v750
      %836 = vst.msk [vmem:[#allocation3 + $0x60] sm:$0xf] %vm811, %v752
      %837 = vst.msk [vmem:[#allocation3 + $0x64] sm:$0xf] %vm811, %v754
      %838 = vst.msk [vmem:[#allocation3 + $0x68] sm:$0xf] %vm811, %v756
      %839 = vst.msk [vmem:[#allocation3 + $0x6c] sm:$0xf] %vm811, %v758
      %840 = vst.msk [vmem:[#allocation3 + $0x70] sm:$0xf] %vm811, %v760
      %841 = vst.msk [vmem:[#allocation3 + $0x74] sm:$0xf] %vm811, %v762
      %842 = vst.msk [vmem:[#allocation3 + $0x78] sm:$0xf] %vm811, %v764
      %843 = vst.msk [vmem:[#allocation3 + $0x7c] sm:$0xf] %vm811, %v766
      %844 = vst.msk [vmem:[#allocation3 + $0x80] sm:$0xf] %vm811, %v768
      %845 = vst.msk [vmem:[#allocation3 + $0x84] sm:$0xf] %vm811, %v770
      %846 = vst.msk [vmem:[#allocation3 + $0x88] sm:$0xf] %vm811, %v772
      %847 = vst.msk [vmem:[#allocation3 + $0x8c] sm:$0xf] %vm811, %v774
      %v848 = vld [vmem:[%s219] sm:$0xe]
      %v849 = vld [vmem:[%s219 + $0x4] sm:$0xf]
      %v850 = vld [vmem:[%s219 + $0x8] sm:$0xf]
      %v851 = vld [vmem:[%s219 + $0xc] sm:$0xf]
      %v852 = vld [vmem:[%s219 + $0x10] sm:$0xf]
      %v853 = vld [vmem:[%s219 + $0x14] sm:$0xf]
      %v854 = vld [vmem:[%s219 + $0x18] sm:$0xf]
      %v855 = vld [vmem:[%s219 + $0x1c] sm:$0xf]
      %v856 = vld [vmem:[%s219 + $0x20] sm:$0xf]
      %v857 = vld [vmem:[%s219 + $0x24] sm:$0xf]
      %v858 = vld [vmem:[%s219 + $0x28] sm:$0xf]
      %v859 = vld [vmem:[%s219 + $0x2c] sm:$0xf]
      %v860 = vld [vmem:[%s219 + $0x30] sm:$0xf]
      %v861 = vld [vmem:[%s219 + $0x34] sm:$0xf]
      %v862 = vld [vmem:[%s219 + $0x38] sm:$0xf]
      %v863 = vld [vmem:[%s219 + $0x3c] sm:$0xf]
      %v864 = vld [vmem:[%s219 + $0x40] sm:$0xf]
      %v865 = vld [vmem:[%s219 + $0x44] sm:$0xf]
      %v866 = vld [vmem:[%s219 + $0x48] sm:$0xf]
      %v867 = vld [vmem:[%s219 + $0x4c] sm:$0xf]
      %v868 = vld [vmem:[%s219 + $0x50] sm:$0xf]
      %v869 = vld [vmem:[%s219 + $0x54] sm:$0xf]
      %v870 = vld [vmem:[%s219 + $0x58] sm:$0xf]
      %v871 = vld [vmem:[%s219 + $0x5c] sm:$0xf]
      %v872 = vld [vmem:[%s219 + $0x60] sm:$0xf]
      %v873 = vld [vmem:[%s219 + $0x64] sm:$0xf]
      %v874 = vld [vmem:[%s219 + $0x68] sm:$0xf]
      %v875 = vld [vmem:[%s219 + $0x6c] sm:$0xf]
      %v876 = vld [vmem:[%s219 + $0x70] sm:$0xf]
      %v877 = vld [vmem:[%s219 + $0x74] sm:$0xf]
      %v878 = vld [vmem:[%s219 + $0x78] sm:$0xf]
      %v879 = vld [vmem:[%s219 + $0x7c] sm:$0xf]
      %v880 = vld [vmem:[%s219 + $0x80] sm:$0xf]
      %v881 = vld [vmem:[%s219 + $0x84] sm:$0xf]
      %v882 = vld [vmem:[%s219 + $0x88] sm:$0xf]
      %v883 = vld [vmem:[%s219 + $0x8c] sm:$0xf]
      %v884 = vld [vmem:[%s219 + $0x90] sm:$0x1]
      %vm922 = vcmask 1042432
      %vm923 = vcmask 1046532
      %vm924 = vmor %vm922, %vm923
      %v925 = vrot.slane %v848, 5
      %v926 = vrot.slane %v925, 4
      %v927 = vrot.slane %v849, 5
      %v928 = vsel %vm924, %v926, %v927
      %v929 = vrot.slane %v927, 4
      %v930 = vrot.slane %v850, 5
      %v931 = vsel %vm924, %v929, %v930
      %v932 = vrot.slane %v930, 4
      %v933 = vrot.slane %v851, 5
      %v934 = vsel %vm924, %v932, %v933
      %v935 = vrot.slane %v933, 4
      %v936 = vrot.slane %v852, 5
      %v937 = vsel %vm924, %v935, %v936
      %v938 = vrot.slane %v936, 4
      %v939 = vrot.slane %v853, 5
      %v940 = vsel %vm924, %v938, %v939
      %v941 = vrot.slane %v939, 4
      %v942 = vrot.slane %v854, 5
      %v943 = vsel %vm924, %v941, %v942
      %v944 = vrot.slane %v942, 4
      %v945 = vrot.slane %v855, 5
      %v946 = vsel %vm924, %v944, %v945
      %v947 = vrot.slane %v945, 4
      %v948 = vrot.slane %v856, 5
      %v949 = vsel %vm924, %v947, %v948
      %v950 = vrot.slane %v948, 4
      %v951 = vrot.slane %v857, 5
      %v952 = vsel %vm924, %v950, %v951
      %v953 = vrot.slane %v951, 4
      %v954 = vrot.slane %v858, 5
      %v955 = vsel %vm924, %v953, %v954
      %v956 = vrot.slane %v954, 4
      %v957 = vrot.slane %v859, 5
      %v958 = vsel %vm924, %v956, %v957
      %v959 = vrot.slane %v957, 4
      %v960 = vrot.slane %v860, 5
      %v961 = vsel %vm924, %v959, %v960
      %v962 = vrot.slane %v960, 4
      %v963 = vrot.slane %v861, 5
      %v964 = vsel %vm924, %v962, %v963
      %v965 = vrot.slane %v963, 4
      %v966 = vrot.slane %v862, 5
      %v967 = vsel %vm924, %v965, %v966
      %v968 = vrot.slane %v966, 4
      %v969 = vrot.slane %v863, 5
      %v970 = vsel %vm924, %v968, %v969
      %v971 = vrot.slane %v969, 4
      %v972 = vrot.slane %v864, 5
      %v973 = vsel %vm924, %v971, %v972
      %v974 = vrot.slane %v972, 4
      %v975 = vrot.slane %v865, 5
      %v976 = vsel %vm924, %v974, %v975
      %v977 = vrot.slane %v975, 4
      %v978 = vrot.slane %v866, 5
      %v979 = vsel %vm924, %v977, %v978
      %v980 = vrot.slane %v978, 4
      %v981 = vrot.slane %v867, 5
      %v982 = vsel %vm924, %v980, %v981
      %v983 = vrot.slane %v981, 4
      %v984 = vrot.slane %v868, 5
      %v985 = vsel %vm924, %v983, %v984
      %v986 = vrot.slane %v984, 4
      %v987 = vrot.slane %v869, 5
      %v988 = vsel %vm924, %v986, %v987
      %v989 = vrot.slane %v987, 4
      %v990 = vrot.slane %v870, 5
      %v991 = vsel %vm924, %v989, %v990
      %v992 = vrot.slane %v990, 4
      %v993 = vrot.slane %v871, 5
      %v994 = vsel %vm924, %v992, %v993
      %v995 = vrot.slane %v993, 4
      %v996 = vrot.slane %v872, 5
      %v997 = vsel %vm924, %v995, %v996
      %v998 = vrot.slane %v996, 4
      %v999 = vrot.slane %v873, 5
      %v1000 = vsel %vm924, %v998, %v999
      %v1001 = vrot.slane %v999, 4
      %v1002 = vrot.slane %v874, 5
      %v1003 = vsel %vm924, %v1001, %v1002
      %v1004 = vrot.slane %v1002, 4
      %v1005 = vrot.slane %v875, 5
      %v1006 = vsel %vm924, %v1004, %v1005
      %v1007 = vrot.slane %v1005, 4
      %v1008 = vrot.slane %v876, 5
      %v1009 = vsel %vm924, %v1007, %v1008
      %v1010 = vrot.slane %v1008, 4
      %v1011 = vrot.slane %v877, 5
      %v1012 = vsel %vm924, %v1010, %v1011
      %v1013 = vrot.slane %v1011, 4
      %v1014 = vrot.slane %v878, 5
      %v1015 = vsel %vm924, %v1013, %v1014
      %v1016 = vrot.slane %v1014, 4
      %v1017 = vrot.slane %v879, 5
      %v1018 = vsel %vm924, %v1016, %v1017
      %v1019 = vrot.slane %v1017, 4
      %v1020 = vrot.slane %v880, 5
      %v1021 = vsel %vm924, %v1019, %v1020
      %v1022 = vrot.slane %v1020, 4
      %v1023 = vrot.slane %v881, 5
      %v1024 = vsel %vm924, %v1022, %v1023
      %v1025 = vrot.slane %v1023, 4
      %v1026 = vrot.slane %v882, 5
      %v1027 = vsel %vm924, %v1025, %v1026
      %v1028 = vrot.slane %v1026, 4
      %v1029 = vrot.slane %v883, 5
      %v1030 = vsel %vm924, %v1028, %v1029
      %v1031 = vrot.slane %v1029, 4
      %v1032 = vrot.slane %v884, 5
      %v1033 = vsel %vm924, %v1031, %v1032
      %1034 = vrot.lane.b32.xlu0 %v928, 8
      %v1035 = vpop.permute.xlu0 %1034
      %1036 = vrot.lane.b32.xlu0 %v931, 8
      %v1037 = vpop.permute.xlu0 %1036
      %1038 = vrot.lane.b32.xlu0 %v934, 8
      %v1039 = vpop.permute.xlu0 %1038
      %1040 = vrot.lane.b32.xlu0 %v937, 8
      %v1041 = vpop.permute.xlu0 %1040
      %1042 = vrot.lane.b32.xlu0 %v940, 8
      %v1043 = vpop.permute.xlu0 %1042
      %1044 = vrot.lane.b32.xlu0 %v943, 8
      %v1045 = vpop.permute.xlu0 %1044
      %1046 = vrot.lane.b32.xlu0 %v946, 8
      %v1047 = vpop.permute.xlu0 %1046
      %1048 = vrot.lane.b32.xlu0 %v949, 8
      %v1049 = vpop.permute.xlu0 %1048
      %1050 = vrot.lane.b32.xlu0 %v952, 8
      %v1051 = vpop.permute.xlu0 %1050
      %1052 = vrot.lane.b32.xlu0 %v955, 8
      %v1053 = vpop.permute.xlu0 %1052
      %1054 = vrot.lane.b32.xlu0 %v958, 8
      %v1055 = vpop.permute.xlu0 %1054
      %1056 = vrot.lane.b32.xlu0 %v961, 8
      %v1057 = vpop.permute.xlu0 %1056
      %1058 = vrot.lane.b32.xlu0 %v964, 8
      %v1059 = vpop.permute.xlu0 %1058
      %1060 = vrot.lane.b32.xlu0 %v967, 8
      %v1061 = vpop.permute.xlu0 %1060
      %1062 = vrot.lane.b32.xlu0 %v970, 8
      %v1063 = vpop.permute.xlu0 %1062
      %1064 = vrot.lane.b32.xlu0 %v973, 8
      %v1065 = vpop.permute.xlu0 %1064
      %1066 = vrot.lane.b32.xlu0 %v976, 8
      %v1067 = vpop.permute.xlu0 %1066
      %1068 = vrot.lane.b32.xlu0 %v979, 8
      %v1069 = vpop.permute.xlu0 %1068
      %1070 = vrot.lane.b32.xlu0 %v982, 8
      %v1071 = vpop.permute.xlu0 %1070
      %1072 = vrot.lane.b32.xlu0 %v985, 8
      %v1073 = vpop.permute.xlu0 %1072
      %1074 = vrot.lane.b32.xlu0 %v988, 8
      %v1075 = vpop.permute.xlu0 %1074
      %1076 = vrot.lane.b32.xlu0 %v991, 8
      %v1077 = vpop.permute.xlu0 %1076
      %1078 = vrot.lane.b32.xlu0 %v994, 8
      %v1079 = vpop.permute.xlu0 %1078
      %1080 = vrot.lane.b32.xlu0 %v997, 8
      %v1081 = vpop.permute.xlu0 %1080
      %1082 = vrot.lane.b32.xlu0 %v1000, 8
      %v1083 = vpop.permute.xlu0 %1082
      %1084 = vrot.lane.b32.xlu0 %v1003, 8
      %v1085 = vpop.permute.xlu0 %1084
      %1086 = vrot.lane.b32.xlu0 %v1006, 8
      %v1087 = vpop.permute.xlu0 %1086
      %1088 = vrot.lane.b32.xlu0 %v1009, 8
      %v1089 = vpop.permute.xlu0 %1088
      %1090 = vrot.lane.b32.xlu0 %v1012, 8
      %v1091 = vpop.permute.xlu0 %1090
      %1092 = vrot.lane.b32.xlu0 %v1015, 8
      %v1093 = vpop.permute.xlu0 %1092
      %1094 = vrot.lane.b32.xlu0 %v1018, 8
      %v1095 = vpop.permute.xlu0 %1094
      %1096 = vrot.lane.b32.xlu0 %v1021, 8
      %v1097 = vpop.permute.xlu0 %1096
      %1098 = vrot.lane.b32.xlu0 %v1024, 8
      %v1099 = vpop.permute.xlu0 %1098
      %1100 = vrot.lane.b32.xlu0 %v1027, 8
      %v1101 = vpop.permute.xlu0 %1100
      %1102 = vrot.lane.b32.xlu0 %v1030, 8
      %v1103 = vpop.permute.xlu0 %1102
      %1104 = vrot.lane.b32.xlu0 %v1033, 8
      %v1105 = vpop.permute.xlu0 %1104
      %vm1142 = vcmask 93248
      %1143 = vst.msk [vmem:[#allocation3] sm:$0xf] %vm1142, %v1035
      %1144 = vst.msk [vmem:[#allocation3 + $0x4] sm:$0xf] %vm1142, %v1037
      %1145 = vst.msk [vmem:[#allocation3 + $0x8] sm:$0xf] %vm1142, %v1039
      %1146 = vst.msk [vmem:[#allocation3 + $0xc] sm:$0xf] %vm1142, %v1041
      %1147 = vst.msk [vmem:[#allocation3 + $0x10] sm:$0xf] %vm1142, %v1043
      %1148 = vst.msk [vmem:[#allocation3 + $0x14] sm:$0xf] %vm1142, %v1045
      %1149 = vst.msk [vmem:[#allocation3 + $0x18] sm:$0xf] %vm1142, %v1047
      %1150 = vst.msk [vmem:[#allocation3 + $0x1c] sm:$0xf] %vm1142, %v1049
      %1151 = vst.msk [vmem:[#allocation3 + $0x20] sm:$0xf] %vm1142, %v1051
      %1152 = vst.msk [vmem:[#allocation3 + $0x24] sm:$0xf] %vm1142, %v1053
      %1153 = vst.msk [vmem:[#allocation3 + $0x28] sm:$0xf] %vm1142, %v1055
      %1154 = vst.msk [vmem:[#allocation3 + $0x2c] sm:$0xf] %vm1142, %v1057
      %1155 = vst.msk [vmem:[#allocation3 + $0x30] sm:$0xf] %vm1142, %v1059
      %1156 = vst.msk [vmem:[#allocation3 + $0x34] sm:$0xf] %vm1142, %v1061
      %1157 = vst.msk [vmem:[#allocation3 + $0x38] sm:$0xf] %vm1142, %v1063
      %1158 = vst.msk [vmem:[#allocation3 + $0x3c] sm:$0xf] %vm1142, %v1065
      %1159 = vst.msk [vmem:[#allocation3 + $0x40] sm:$0xf] %vm1142, %v1067
      %1160 = vst.msk [vmem:[#allocation3 + $0x44] sm:$0xf] %vm1142, %v1069
      %1161 = vst.msk [vmem:[#allocation3 + $0x48] sm:$0xf] %vm1142, %v1071
      %1162 = vst.msk [vmem:[#allocation3 + $0x4c] sm:$0xf] %vm1142, %v1073
      %1163 = vst.msk [vmem:[#allocation3 + $0x50] sm:$0xf] %vm1142, %v1075
      %1164 = vst.msk [vmem:[#allocation3 + $0x54] sm:$0xf] %vm1142, %v1077
      %1165 = vst.msk [vmem:[#allocation3 + $0x58] sm:$0xf] %vm1142, %v1079
      %1166 = vst.msk [vmem:[#allocation3 + $0x5c] sm:$0xf] %vm1142, %v1081
      %1167 = vst.msk [vmem:[#allocation3 + $0x60] sm:$0xf] %vm1142, %v1083
      %1168 = vst.msk [vmem:[#allocation3 + $0x64] sm:$0xf] %vm1142, %v1085
      %1169 = vst.msk [vmem:[#allocation3 + $0x68] sm:$0xf] %vm1142, %v1087
      %1170 = vst.msk [vmem:[#allocation3 + $0x6c] sm:$0xf] %vm1142, %v1089
      %1171 = vst.msk [vmem:[#allocation3 + $0x70] sm:$0xf] %vm1142, %v1091
      %1172 = vst.msk [vmem:[#allocation3 + $0x74] sm:$0xf] %vm1142, %v1093
      %1173 = vst.msk [vmem:[#allocation3 + $0x78] sm:$0xf] %vm1142, %v1095
      %1174 = vst.msk [vmem:[#allocation3 + $0x7c] sm:$0xf] %vm1142, %v1097
      %1175 = vst.msk [vmem:[#allocation3 + $0x80] sm:$0xf] %vm1142, %v1099
      %1176 = vst.msk [vmem:[#allocation3 + $0x84] sm:$0xf] %vm1142, %v1101
      %1177 = vst.msk [vmem:[#allocation3 + $0x88] sm:$0xf] %vm1142, %v1103
      %1178 = vst.msk [vmem:[#allocation3 + $0x8c] sm:$0xf] %vm1142, %v1105
      %v1179 = vld [vmem:[#allocation3] sm:$0xf]
      %v1180 = vld [vmem:[#allocation3 + $0x4] sm:$0xf]
      %v1181 = vld [vmem:[#allocation3 + $0x8] sm:$0xf]
      %v1182 = vld [vmem:[#allocation3 + $0xc] sm:$0xf]
      %v1183 = vld [vmem:[#allocation3 + $0x10] sm:$0xf]
      %v1184 = vld [vmem:[#allocation3 + $0x14] sm:$0xf]
      %v1185 = vld [vmem:[#allocation3 + $0x18] sm:$0xf]
      %v1186 = vld [vmem:[#allocation3 + $0x1c] sm:$0xf]
      %v1187 = vld [vmem:[#allocation3 + $0x20] sm:$0xf]
      %v1188 = vld [vmem:[#allocation3 + $0x24] sm:$0xf]
      %v1189 = vld [vmem:[#allocation3 + $0x28] sm:$0xf]
      %v1190 = vld [vmem:[#allocation3 + $0x2c] sm:$0xf]
      %v1191 = vld [vmem:[#allocation3 + $0x30] sm:$0xf]
      %v1192 = vld [vmem:[#allocation3 + $0x34] sm:$0xf]
      %v1193 = vld [vmem:[#allocation3 + $0x38] sm:$0xf]
      %v1194 = vld [vmem:[#allocation3 + $0x3c] sm:$0xf]
      %v1195 = vld [vmem:[#allocation3 + $0x40] sm:$0xf]
      %v1196 = vld [vmem:[#allocation3 + $0x44] sm:$0xf]
      %v1197 = vld [vmem:[#allocation3 + $0x48] sm:$0xf]
      %v1198 = vld [vmem:[#allocation3 + $0x4c] sm:$0xf]
      %v1199 = vld [vmem:[#allocation3 + $0x50] sm:$0xf]
      %v1200 = vld [vmem:[#allocation3 + $0x54] sm:$0xf]
      %v1201 = vld [vmem:[#allocation3 + $0x58] sm:$0xf]
      %v1202 = vld [vmem:[#allocation3 + $0x5c] sm:$0xf]
      %v1203 = vld [vmem:[#allocation3 + $0x60] sm:$0xf]
      %v1204 = vld [vmem:[#allocation3 + $0x64] sm:$0xf]
      %v1205 = vld [vmem:[#allocation3 + $0x68] sm:$0xf]
      %v1206 = vld [vmem:[#allocation3 + $0x6c] sm:$0xf]
      %v1207 = vld [vmem:[#allocation3 + $0x70] sm:$0xf]
      %v1208 = vld [vmem:[#allocation3 + $0x74] sm:$0xf]
      %v1209 = vld [vmem:[#allocation3 + $0x78] sm:$0xf]
      %v1210 = vld [vmem:[#allocation3 + $0x7c] sm:$0xf]
      %v1211 = vld [vmem:[#allocation3 + $0x80] sm:$0xf]
      %v1212 = vld [vmem:[#allocation3 + $0x84] sm:$0xf]
      %v1213 = vld [vmem:[#allocation3 + $0x88] sm:$0xf]
      %v1214 = vld [vmem:[#allocation3 + $0x8c] sm:$0xf]
      %v1215 = vld [vmem:[%s1] sm:$0xf]
      %v1216 = vld [vmem:[%s1 + $0x4] sm:$0x3]
      %v1217 = vld [vmem:[%s219 + $0x8] sm:$0xe]
      %v1218 = vld [vmem:[%s219 + $0xc] sm:$0xf]
      %v1219 = vld [vmem:[%s219 + $0x10] sm:$0xf]
      %v1220 = vld [vmem:[%s219 + $0x14] sm:$0xf]
      %v1221 = vld [vmem:[%s219 + $0x18] sm:$0xf]
      %v1222 = vld [vmem:[%s219 + $0x1c] sm:$0xf]
      %v1223 = vld [vmem:[%s219 + $0x20] sm:$0xf]
      %v1224 = vld [vmem:[%s219 + $0x24] sm:$0xf]
      %v1225 = vld [vmem:[%s219 + $0x28] sm:$0xf]
      %v1226 = vld [vmem:[%s219 + $0x2c] sm:$0xf]
      %v1227 = vld [vmem:[%s219 + $0x30] sm:$0xf]
      %v1228 = vld [vmem:[%s219 + $0x34] sm:$0xf]
      %v1229 = vld [vmem:[%s219 + $0x38] sm:$0xf]
      %v1230 = vld [vmem:[%s219 + $0x3c] sm:$0xf]
      %v1231 = vld [vmem:[%s219 + $0x40] sm:$0xf]
      %v1232 = vld [vmem:[%s219 + $0x44] sm:$0xf]
      %v1233 = vld [vmem:[%s219 + $0x48] sm:$0xf]
      %v1234 = vld [vmem:[%s219 + $0x4c] sm:$0xf]
      %v1235 = vld [vmem:[%s219 + $0x50] sm:$0xf]
      %v1236 = vld [vmem:[%s219 + $0x54] sm:$0xf]
      %v1237 = vld [vmem:[%s219 + $0x58] sm:$0xf]
      %v1238 = vld [vmem:[%s219 + $0x5c] sm:$0xf]
      %v1239 = vld [vmem:[%s219 + $0x60] sm:$0xf]
      %v1240 = vld [vmem:[%s219 + $0x64] sm:$0xf]
      %v1241 = vld [vmem:[%s219 + $0x68] sm:$0xf]
      %v1242 = vld [vmem:[%s219 + $0x6c] sm:$0xf]
      %v1243 = vld [vmem:[%s219 + $0x70] sm:$0xf]
      %v1244 = vld [vmem:[%s219 + $0x74] sm:$0xf]
      %v1245 = vld [vmem:[%s219 + $0x78] sm:$0xf]
      %v1246 = vld [vmem:[%s219 + $0x7c] sm:$0xf]
      %v1247 = vld [vmem:[%s219 + $0x80] sm:$0xf]
      %v1248 = vld [vmem:[%s219 + $0x84] sm:$0xf]
      %v1249 = vld [vmem:[%s219 + $0x88] sm:$0xf]
      %v1250 = vld [vmem:[%s219 + $0x8c] sm:$0xf]
      %v1251 = vld [vmem:[%s219 + $0x90] sm:$0xf]
      %v1252 = vld [vmem:[%s219 + $0x94] sm:$0xf]
      %v1253 = vld [vmem:[%s219 + $0x98] sm:$0x1]
      %v1291 = vrot.slane %v1217, 5
      %v1292 = vrot.slane %v1291, 4
      %v1293 = vrot.slane %v1218, 5
      %v1294 = vsel %vm924, %v1292, %v1293
      %v1295 = vrot.slane %v1293, 4
      %v1296 = vrot.slane %v1219, 5
      %v1297 = vsel %vm924, %v1295, %v1296
      %v1298 = vrot.slane %v1296, 4
      %v1299 = vrot.slane %v1220, 5
      %v1300 = vsel %vm924, %v1298, %v1299
      %v1301 = vrot.slane %v1299, 4
      %v1302 = vrot.slane %v1221, 5
      %v1303 = vsel %vm924, %v1301, %v1302
      %v1304 = vrot.slane %v1302, 4
      %v1305 = vrot.slane %v1222, 5
      %v1306 = vsel %vm924, %v1304, %v1305
      %v1307 = vrot.slane %v1305, 4
      %v1308 = vrot.slane %v1223, 5
      %v1309 = vsel %vm924, %v1307, %v1308
      %v1310 = vrot.slane %v1308, 4
      %v1311 = vrot.slane %v1224, 5
      %v1312 = vsel %vm924, %v1310, %v1311
      %v1313 = vrot.slane %v1311, 4
      %v1314 = vrot.slane %v1225, 5
      %v1315 = vsel %vm924, %v1313, %v1314
      %v1316 = vrot.slane %v1314, 4
      %v1317 = vrot.slane %v1226, 5
      %v1318 = vsel %vm924, %v1316, %v1317
      %v1319 = vrot.slane %v1317, 4
      %v1320 = vrot.slane %v1227, 5
      %v1321 = vsel %vm924, %v1319, %v1320
      %v1322 = vrot.slane %v1320, 4
      %v1323 = vrot.slane %v1228, 5
      %v1324 = vsel %vm924, %v1322, %v1323
      %v1325 = vrot.slane %v1323, 4
      %v1326 = vrot.slane %v1229, 5
      %v1327 = vsel %vm924, %v1325, %v1326
      %v1328 = vrot.slane %v1326, 4
      %v1329 = vrot.slane %v1230, 5
      %v1330 = vsel %vm924, %v1328, %v1329
      %v1331 = vrot.slane %v1329, 4
      %v1332 = vrot.slane %v1231, 5
      %v1333 = vsel %vm924, %v1331, %v1332
      %v1334 = vrot.slane %v1332, 4
      %v1335 = vrot.slane %v1232, 5
      %v1336 = vsel %vm924, %v1334, %v1335
      %v1337 = vrot.slane %v1335, 4
      %v1338 = vrot.slane %v1233, 5
      %v1339 = vsel %vm924, %v1337, %v1338
      %v1340 = vrot.slane %v1338, 4
      %v1341 = vrot.slane %v1234, 5
      %v1342 = vsel %vm924, %v1340, %v1341
      %v1343 = vrot.slane %v1341, 4
      %v1344 = vrot.slane %v1235, 5
      %v1345 = vsel %vm924, %v1343, %v1344
      %v1346 = vrot.slane %v1344, 4
      %v1347 = vrot.slane %v1236, 5
      %v1348 = vsel %vm924, %v1346, %v1347
      %v1349 = vrot.slane %v1347, 4
      %v1350 = vrot.slane %v1237, 5
      %v1351 = vsel %vm924, %v1349, %v1350
      %v1352 = vrot.slane %v1350, 4
      %v1353 = vrot.slane %v1238, 5
      %v1354 = vsel %vm924, %v1352, %v1353
      %v1355 = vrot.slane %v1353, 4
      %v1356 = vrot.slane %v1239, 5
      %v1357 = vsel %vm924, %v1355, %v1356
      %v1358 = vrot.slane %v1356, 4
      %v1359 = vrot.slane %v1240, 5
      %v1360 = vsel %vm924, %v1358, %v1359
      %v1361 = vrot.slane %v1359, 4
      %v1362 = vrot.slane %v1241, 5
      %v1363 = vsel %vm924, %v1361, %v1362
      %v1364 = vrot.slane %v1362, 4
      %v1365 = vrot.slane %v1242, 5
      %v1366 = vsel %vm924, %v1364, %v1365
      %v1367 = vrot.slane %v1365, 4
      %v1368 = vrot.slane %v1243, 5
      %v1369 = vsel %vm924, %v1367, %v1368
      %v1370 = vrot.slane %v1368, 4
      %v1371 = vrot.slane %v1244, 5
      %v1372 = vsel %vm924, %v1370, %v1371
      %v1373 = vrot.slane %v1371, 4
      %v1374 = vrot.slane %v1245, 5
      %v1375 = vsel %vm924, %v1373, %v1374
      %v1376 = vrot.slane %v1374, 4
      %v1377 = vrot.slane %v1246, 5
      %v1378 = vsel %vm924, %v1376, %v1377
      %v1379 = vrot.slane %v1377, 4
      %v1380 = vrot.slane %v1247, 5
      %v1381 = vsel %vm924, %v1379, %v1380
      %v1382 = vrot.slane %v1380, 4
      %v1383 = vrot.slane %v1248, 5
      %v1384 = vsel %vm924, %v1382, %v1383
      %v1385 = vrot.slane %v1383, 4
      %v1386 = vrot.slane %v1249, 5
      %v1387 = vsel %vm924, %v1385, %v1386
      %v1388 = vrot.slane %v1386, 4
      %v1389 = vrot.slane %v1250, 5
      %v1390 = vsel %vm924, %v1388, %v1389
      %v1391 = vrot.slane %v1389, 4
      %v1392 = vrot.slane %v1251, 5
      %v1393 = vsel %vm924, %v1391, %v1392
      %v1394 = vrot.slane %v1392, 4
      %v1395 = vrot.slane %v1252, 5
      %v1396 = vsel %vm924, %v1394, %v1395
      %v1397 = vrot.slane %v1395, 4
      %v1398 = vrot.slane %v1253, 5
      %v1399 = vsel %vm924, %v1397, %v1398
      %1436 = vst.msk [vmem:[#allocation3] sm:$0xf] %vm262, %v1294
      %1437 = vst.msk [vmem:[#allocation3 + $0x4] sm:$0xf] %vm262, %v1297
      %1438 = vst.msk [vmem:[#allocation3 + $0x8] sm:$0xf] %vm262, %v1300
      %1439 = vst.msk [vmem:[#allocation3 + $0xc] sm:$0xf] %vm262, %v1303
      %1440 = vst.msk [vmem:[#allocation3 + $0x10] sm:$0xf] %vm262, %v1306
      %1441 = vst.msk [vmem:[#allocation3 + $0x14] sm:$0xf] %vm262, %v1309
      %1442 = vst.msk [vmem:[#allocation3 + $0x18] sm:$0xf] %vm262, %v1312
      %1443 = vst.msk [vmem:[#allocation3 + $0x1c] sm:$0xf] %vm262, %v1315
      %1444 = vst.msk [vmem:[#allocation3 + $0x20] sm:$0xf] %vm262, %v1318
      %1445 = vst.msk [vmem:[#allocation3 + $0x24] sm:$0xf] %vm262, %v1321
      %1446 = vst.msk [vmem:[#allocation3 + $0x28] sm:$0xf] %vm262, %v1324
      %1447 = vst.msk [vmem:[#allocation3 + $0x2c] sm:$0xf] %vm262, %v1327
      %1448 = vst.msk [vmem:[#allocation3 + $0x30] sm:$0xf] %vm262, %v1330
      %1449 = vst.msk [vmem:[#allocation3 + $0x34] sm:$0xf] %vm262, %v1333
      %1450 = vst.msk [vmem:[#allocation3 + $0x38] sm:$0xf] %vm262, %v1336
      %1451 = vst.msk [vmem:[#allocation3 + $0x3c] sm:$0xf] %vm262, %v1339
      %1452 = vst.msk [vmem:[#allocation3 + $0x40] sm:$0xf] %vm262, %v1342
      %1453 = vst.msk [vmem:[#allocation3 + $0x44] sm:$0xf] %vm262, %v1345
      %1454 = vst.msk [vmem:[#allocation3 + $0x48] sm:$0xf] %vm262, %v1348
      %1455 = vst.msk [vmem:[#allocation3 + $0x4c] sm:$0xf] %vm262, %v1351
      %1456 = vst.msk [vmem:[#allocation3 + $0x50] sm:$0xf] %vm262, %v1354
      %1457 = vst.msk [vmem:[#allocation3 + $0x54] sm:$0xf] %vm262, %v1357
      %1458 = vst.msk [vmem:[#allocation3 + $0x58] sm:$0xf] %vm262, %v1360
      %1459 = vst.msk [vmem:[#allocation3 + $0x5c] sm:$0xf] %vm262, %v1363
      %1460 = vst.msk [vmem:[#allocation3 + $0x60] sm:$0xf] %vm262, %v1366
      %1461 = vst.msk [vmem:[#allocation3 + $0x64] sm:$0xf] %vm262, %v1369
      %1462 = vst.msk [vmem:[#allocation3 + $0x68] sm:$0xf] %vm262, %v1372
      %1463 = vst.msk [vmem:[#allocation3 + $0x6c] sm:$0xf] %vm262, %v1375
      %1464 = vst.msk [vmem:[#allocation3 + $0x70] sm:$0xf] %vm262, %v1378
      %1465 = vst.msk [vmem:[#allocation3 + $0x74] sm:$0xf] %vm262, %v1381
      %1466 = vst.msk [vmem:[#allocation3 + $0x78] sm:$0xf] %vm262, %v1384
      %1467 = vst.msk [vmem:[#allocation3 + $0x7c] sm:$0xf] %vm262, %v1387
      %1468 = vst.msk [vmem:[#allocation3 + $0x80] sm:$0xf] %vm262, %v1390
      %1469 = vst.msk [vmem:[#allocation3 + $0x84] sm:$0xf] %vm262, %v1393
      %1470 = vst.msk [vmem:[#allocation3 + $0x88] sm:$0xf] %vm262, %v1396
      %1471 = vst.msk [vmem:[#allocation3 + $0x8c] sm:$0xf] %vm262, %v1399
      %v1472 = vld [vmem:[%s219 + $0x8] sm:$0xe]
      %v1473 = vld [vmem:[%s219 + $0xc] sm:$0xf]
      %v1474 = vld [vmem:[%s219 + $0x10] sm:$0xf]
      %v1475 = vld [vmem:[%s219 + $0x14] sm:$0xf]
      %v1476 = vld [vmem:[%s219 + $0x18] sm:$0xf]
      %v1477 = vld [vmem:[%s219 + $0x1c] sm:$0xf]
      %v1478 = vld [vmem:[%s219 + $0x20] sm:$0xf]
      %v1479 = vld [vmem:[%s219 + $0x24] sm:$0xf]
      %v1480 = vld [vmem:[%s219 + $0x28] sm:$0xf]
      %v1481 = vld [vmem:[%s219 + $0x2c] sm:$0xf]
      %v1482 = vld [vmem:[%s219 + $0x30] sm:$0xf]
      %v1483 = vld [vmem:[%s219 + $0x34] sm:$0xf]
      %v1484 = vld [vmem:[%s219 + $0x38] sm:$0xf]
      %v1485 = vld [vmem:[%s219 + $0x3c] sm:$0xf]
      %v1486 = vld [vmem:[%s219 + $0x40] sm:$0xf]
      %v1487 = vld [vmem:[%s219 + $0x44] sm:$0xf]
      %v1488 = vld [vmem:[%s219 + $0x48] sm:$0xf]
      %v1489 = vld [vmem:[%s219 + $0x4c] sm:$0xf]
      %v1490 = vld [vmem:[%s219 + $0x50] sm:$0xf]
      %v1491 = vld [vmem:[%s219 + $0x54] sm:$0xf]
      %v1492 = vld [vmem:[%s219 + $0x58] sm:$0xf]
      %v1493 = vld [vmem:[%s219 + $0x5c] sm:$0xf]
      %v1494 = vld [vmem:[%s219 + $0x60] sm:$0xf]
      %v1495 = vld [vmem:[%s219 + $0x64] sm:$0xf]
      %v1496 = vld [vmem:[%s219 + $0x68] sm:$0xf]
      %v1497 = vld [vmem:[%s219 + $0x6c] sm:$0xf]
      %v1498 = vld [vmem:[%s219 + $0x70] sm:$0xf]
      %v1499 = vld [vmem:[%s219 + $0x74] sm:$0xf]
      %v1500 = vld [vmem:[%s219 + $0x78] sm:$0xf]
      %v1501 = vld [vmem:[%s219 + $0x7c] sm:$0xf]
      %v1502 = vld [vmem:[%s219 + $0x80] sm:$0xf]
      %v1503 = vld [vmem:[%s219 + $0x84] sm:$0xf]
      %v1504 = vld [vmem:[%s219 + $0x88] sm:$0xf]
      %v1505 = vld [vmem:[%s219 + $0x8c] sm:$0xf]
      %v1506 = vld [vmem:[%s219 + $0x90] sm:$0xf]
      %v1507 = vld [vmem:[%s219 + $0x94] sm:$0xf]
      %v1508 = vld [vmem:[%s219 + $0x98] sm:$0x3]
      %vm1509 = vsmask.f32 2304
      %vm1510 = vsmask.f32 6416
      %vm1511 = vmor %vm1509, %vm1510
      %v1513 = vshrl.u32 %v1472, 16
      %v1515 = vrot.slane %v1513, 5
      %v1516 = vshll.u32 %v1472, 16
      %v1518 = vrot.slane %v1516, 6
      %v1519 = vor.u32 %v1515, %v1518
      %v1520 = vrot.slane %v1519, 4
      %v1522 = vshrl.u32 %v1473, 16
      %v1524 = vrot.slane %v1522, 5
      %v1525 = vshll.u32 %v1473, 16
      %v1527 = vrot.slane %v1525, 6
      %v1528 = vor.u32 %v1524, %v1527
      %v1529 = vsel %vm1511, %v1520, %v1528
      %v1530 = vrot.slane %v1528, 4
      %v1532 = vshrl.u32 %v1474, 16
      %v1534 = vrot.slane %v1532, 5
      %v1535 = vshll.u32 %v1474, 16
      %v1537 = vrot.slane %v1535, 6
      %v1538 = vor.u32 %v1534, %v1537
      %v1539 = vsel %vm1511, %v1530, %v1538
      %v1540 = vrot.slane %v1538, 4
      %v1542 = vshrl.u32 %v1475, 16
      %v1544 = vrot.slane %v1542, 5
      %v1545 = vshll.u32 %v1475, 16
      %v1547 = vrot.slane %v1545, 6
      %v1548 = vor.u32 %v1544, %v1547
      %v1549 = vsel %vm1511, %v1540, %v1548
      %v1550 = vrot.slane %v1548, 4
      %v1552 = vshrl.u32 %v1476, 16
      %v1554 = vrot.slane %v1552, 5
      %v1555 = vshll.u32 %v1476, 16
      %v1557 = vrot.slane %v1555, 6
      %v1558 = vor.u32 %v1554, %v1557
      %v1559 = vsel %vm1511, %v1550, %v1558
      %v1560 = vrot.slane %v1558, 4
      %v1562 = vshrl.u32 %v1477, 16
      %v1564 = vrot.slane %v1562, 5
      %v1565 = vshll.u32 %v1477, 16
      %v1567 = vrot.slane %v1565, 6
      %v1568 = vor.u32 %v1564, %v1567
      %v1569 = vsel %vm1511, %v1560, %v1568
      %v1570 = vrot.slane %v1568, 4
      %v1572 = vshrl.u32 %v1478, 16
      %v1574 = vrot.slane %v1572, 5
      %v1575 = vshll.u32 %v1478, 16
      %v1577 = vrot.slane %v1575, 6
      %v1578 = vor.u32 %v1574, %v1577
      %v1579 = vsel %vm1511, %v1570, %v1578
      %v1580 = vrot.slane %v1578, 4
      %v1582 = vshrl.u32 %v1479, 16
      %v1584 = vrot.slane %v1582, 5
      %v1585 = vshll.u32 %v1479, 16
      %v1587 = vrot.slane %v1585, 6
      %v1588 = vor.u32 %v1584, %v1587
      %v1589 = vsel %vm1511, %v1580, %v1588
      %v1590 = vrot.slane %v1588, 4
      %v1592 = vshrl.u32 %v1480, 16
      %v1594 = vrot.slane %v1592, 5
      %v1595 = vshll.u32 %v1480, 16
      %v1597 = vrot.slane %v1595, 6
      %v1598 = vor.u32 %v1594, %v1597
      %v1599 = vsel %vm1511, %v1590, %v1598
      %v1600 = vrot.slane %v1598, 4
      %v1602 = vshrl.u32 %v1481, 16
      %v1604 = vrot.slane %v1602, 5
      %v1605 = vshll.u32 %v1481, 16
      %v1607 = vrot.slane %v1605, 6
      %v1608 = vor.u32 %v1604, %v1607
      %v1609 = vsel %vm1511, %v1600, %v1608
      %v1610 = vrot.slane %v1608, 4
      %v1612 = vshrl.u32 %v1482, 16
      %v1614 = vrot.slane %v1612, 5
      %v1615 = vshll.u32 %v1482, 16
      %v1617 = vrot.slane %v1615, 6
      %v1618 = vor.u32 %v1614, %v1617
      %v1619 = vsel %vm1511, %v1610, %v1618
      %v1620 = vrot.slane %v1618, 4
      %v1622 = vshrl.u32 %v1483, 16
      %v1624 = vrot.slane %v1622, 5
      %v1625 = vshll.u32 %v1483, 16
      %v1627 = vrot.slane %v1625, 6
      %v1628 = vor.u32 %v1624, %v1627
      %v1629 = vsel %vm1511, %v1620, %v1628
      %v1630 = vrot.slane %v1628, 4
      %v1632 = vshrl.u32 %v1484, 16
      %v1634 = vrot.slane %v1632, 5
      %v1635 = vshll.u32 %v1484, 16
      %v1637 = vrot.slane %v1635, 6
      %v1638 = vor.u32 %v1634, %v1637
      %v1639 = vsel %vm1511, %v1630, %v1638
      %v1640 = vrot.slane %v1638, 4
      %v1642 = vshrl.u32 %v1485, 16
      %v1644 = vrot.slane %v1642, 5
      %v1645 = vshll.u32 %v1485, 16
      %v1647 = vrot.slane %v1645, 6
      %v1648 = vor.u32 %v1644, %v1647
      %v1649 = vsel %vm1511, %v1640, %v1648
      %v1650 = vrot.slane %v1648, 4
      %v1652 = vshrl.u32 %v1486, 16
      %v1654 = vrot.slane %v1652, 5
      %v1655 = vshll.u32 %v1486, 16
      %v1657 = vrot.slane %v1655, 6
      %v1658 = vor.u32 %v1654, %v1657
      %v1659 = vsel %vm1511, %v1650, %v1658
      %v1660 = vrot.slane %v1658, 4
      %v1662 = vshrl.u32 %v1487, 16
      %v1664 = vrot.slane %v1662, 5
      %v1665 = vshll.u32 %v1487, 16
      %v1667 = vrot.slane %v1665, 6
      %v1668 = vor.u32 %v1664, %v1667
      %v1669 = vsel %vm1511, %v1660, %v1668
      %v1670 = vrot.slane %v1668, 4
      %v1672 = vshrl.u32 %v1488, 16
      %v1674 = vrot.slane %v1672, 5
      %v1675 = vshll.u32 %v1488, 16
      %v1677 = vrot.slane %v1675, 6
      %v1678 = vor.u32 %v1674, %v1677
      %v1679 = vsel %vm1511, %v1670, %v1678
      %v1680 = vrot.slane %v1678, 4
      %v1682 = vshrl.u32 %v1489, 16
      %v1684 = vrot.slane %v1682, 5
      %v1685 = vshll.u32 %v1489, 16
      %v1687 = vrot.slane %v1685, 6
      %v1688 = vor.u32 %v1684, %v1687
      %v1689 = vsel %vm1511, %v1680, %v1688
      %v1690 = vrot.slane %v1688, 4
      %v1692 = vshrl.u32 %v1490, 16
      %v1694 = vrot.slane %v1692, 5
      %v1695 = vshll.u32 %v1490, 16
      %v1697 = vrot.slane %v1695, 6
      %v1698 = vor.u32 %v1694, %v1697
      %v1699 = vsel %vm1511, %v1690, %v1698
      %v1700 = vrot.slane %v1698, 4
      %v1702 = vshrl.u32 %v1491, 16
      %v1704 = vrot.slane %v1702, 5
      %v1705 = vshll.u32 %v1491, 16
      %v1707 = vrot.slane %v1705, 6
      %v1708 = vor.u32 %v1704, %v1707
      %v1709 = vsel %vm1511, %v1700, %v1708
      %v1710 = vrot.slane %v1708, 4
      %v1712 = vshrl.u32 %v1492, 16
      %v1714 = vrot.slane %v1712, 5
      %v1715 = vshll.u32 %v1492, 16
      %v1717 = vrot.slane %v1715, 6
      %v1718 = vor.u32 %v1714, %v1717
      %v1719 = vsel %vm1511, %v1710, %v1718
      %v1720 = vrot.slane %v1718, 4
      %v1722 = vshrl.u32 %v1493, 16
      %v1724 = vrot.slane %v1722, 5
      %v1725 = vshll.u32 %v1493, 16
      %v1727 = vrot.slane %v1725, 6
      %v1728 = vor.u32 %v1724, %v1727
      %v1729 = vsel %vm1511, %v1720, %v1728
      %v1730 = vrot.slane %v1728, 4
      %v1732 = vshrl.u32 %v1494, 16
      %v1734 = vrot.slane %v1732, 5
      %v1735 = vshll.u32 %v1494, 16
      %v1737 = vrot.slane %v1735, 6
      %v1738 = vor.u32 %v1734, %v1737
      %v1739 = vsel %vm1511, %v1730, %v1738
      %v1740 = vrot.slane %v1738, 4
      %v1742 = vshrl.u32 %v1495, 16
      %v1744 = vrot.slane %v1742, 5
      %v1745 = vshll.u32 %v1495, 16
      %v1747 = vrot.slane %v1745, 6
      %v1748 = vor.u32 %v1744, %v1747
      %v1749 = vsel %vm1511, %v1740, %v1748
      %v1750 = vrot.slane %v1748, 4
      %v1752 = vshrl.u32 %v1496, 16
      %v1754 = vrot.slane %v1752, 5
      %v1755 = vshll.u32 %v1496, 16
      %v1757 = vrot.slane %v1755, 6
      %v1758 = vor.u32 %v1754, %v1757
      %v1759 = vsel %vm1511, %v1750, %v1758
      %v1760 = vrot.slane %v1758, 4
      %v1762 = vshrl.u32 %v1497, 16
      %v1764 = vrot.slane %v1762, 5
      %v1765 = vshll.u32 %v1497, 16
      %v1767 = vrot.slane %v1765, 6
      %v1768 = vor.u32 %v1764, %v1767
      %v1769 = vsel %vm1511, %v1760, %v1768
      %v1770 = vrot.slane %v1768, 4
      %v1772 = vshrl.u32 %v1498, 16
      %v1774 = vrot.slane %v1772, 5
      %v1775 = vshll.u32 %v1498, 16
      %v1777 = vrot.slane %v1775, 6
      %v1778 = vor.u32 %v1774, %v1777
      %v1779 = vsel %vm1511, %v1770, %v1778
      %v1780 = vrot.slane %v1778, 4
      %v1782 = vshrl.u32 %v1499, 16
      %v1784 = vrot.slane %v1782, 5
      %v1785 = vshll.u32 %v1499, 16
      %v1787 = vrot.slane %v1785, 6
      %v1788 = vor.u32 %v1784, %v1787
      %v1789 = vsel %vm1511, %v1780, %v1788
      %v1790 = vrot.slane %v1788, 4
      %v1792 = vshrl.u32 %v1500, 16
      %v1794 = vrot.slane %v1792, 5
      %v1795 = vshll.u32 %v1500, 16
      %v1797 = vrot.slane %v1795, 6
      %v1798 = vor.u32 %v1794, %v1797
      %v1799 = vsel %vm1511, %v1790, %v1798
      %v1800 = vrot.slane %v1798, 4
      %v1802 = vshrl.u32 %v1501, 16
      %v1804 = vrot.slane %v1802, 5
      %v1805 = vshll.u32 %v1501, 16
      %v1807 = vrot.slane %v1805, 6
      %v1808 = vor.u32 %v1804, %v1807
      %v1809 = vsel %vm1511, %v1800, %v1808
      %v1810 = vrot.slane %v1808, 4
      %v1812 = vshrl.u32 %v1502, 16
      %v1814 = vrot.slane %v1812, 5
      %v1815 = vshll.u32 %v1502, 16
      %v1817 = vrot.slane %v1815, 6
      %v1818 = vor.u32 %v1814, %v1817
      %v1819 = vsel %vm1511, %v1810, %v1818
      %v1820 = vrot.slane %v1818, 4
      %v1822 = vshrl.u32 %v1503, 16
      %v1824 = vrot.slane %v1822, 5
      %v1825 = vshll.u32 %v1503, 16
      %v1827 = vrot.slane %v1825, 6
      %v1828 = vor.u32 %v1824, %v1827
      %v1829 = vsel %vm1511, %v1820, %v1828
      %v1830 = vrot.slane %v1828, 4
      %v1832 = vshrl.u32 %v1504, 16
      %v1834 = vrot.slane %v1832, 5
      %v1835 = vshll.u32 %v1504, 16
      %v1837 = vrot.slane %v1835, 6
      %v1838 = vor.u32 %v1834, %v1837
      %v1839 = vsel %vm1511, %v1830, %v1838
      %v1840 = vrot.slane %v1838, 4
      %v1842 = vshrl.u32 %v1505, 16
      %v1844 = vrot.slane %v1842, 5
      %v1845 = vshll.u32 %v1505, 16
      %v1847 = vrot.slane %v1845, 6
      %v1848 = vor.u32 %v1844, %v1847
      %v1849 = vsel %vm1511, %v1840, %v1848
      %v1850 = vrot.slane %v1848, 4
      %v1852 = vshrl.u32 %v1506, 16
      %v1854 = vrot.slane %v1852, 5
      %v1855 = vshll.u32 %v1506, 16
      %v1857 = vrot.slane %v1855, 6
      %v1858 = vor.u32 %v1854, %v1857
      %v1859 = vsel %vm1511, %v1850, %v1858
      %v1860 = vrot.slane %v1858, 4
      %v1862 = vshrl.u32 %v1507, 16
      %v1864 = vrot.slane %v1862, 5
      %v1865 = vshll.u32 %v1507, 16
      %v1867 = vrot.slane %v1865, 6
      %v1868 = vor.u32 %v1864, %v1867
      %v1869 = vsel %vm1511, %v1860, %v1868
      %v1870 = vrot.slane %v1868, 4
      %v1872 = vshrl.u32 %v1508, 16
      %v1874 = vrot.slane %v1872, 5
      %v1875 = vshll.u32 %v1508, 16
      %v1877 = vrot.slane %v1875, 6
      %v1878 = vor.u32 %v1874, %v1877
      %v1879 = vsel %vm1511, %v1870, %v1878
      %1880 = vrot.lane.b32.xlu0 %v1529, 4
      %v1881 = vpop.permute.xlu0 %1880
      %1882 = vrot.lane.b32.xlu0 %v1539, 4
      %v1883 = vpop.permute.xlu0 %1882
      %1884 = vrot.lane.b32.xlu0 %v1549, 4
      %v1885 = vpop.permute.xlu0 %1884
      %1886 = vrot.lane.b32.xlu0 %v1559, 4
      %v1887 = vpop.permute.xlu0 %1886
      %1888 = vrot.lane.b32.xlu0 %v1569, 4
      %v1889 = vpop.permute.xlu0 %1888
      %1890 = vrot.lane.b32.xlu0 %v1579, 4
      %v1891 = vpop.permute.xlu0 %1890
      %1892 = vrot.lane.b32.xlu0 %v1589, 4
      %v1893 = vpop.permute.xlu0 %1892
      %1894 = vrot.lane.b32.xlu0 %v1599, 4
      %v1895 = vpop.permute.xlu0 %1894
      %1896 = vrot.lane.b32.xlu0 %v1609, 4
      %v1897 = vpop.permute.xlu0 %1896
      %1898 = vrot.lane.b32.xlu0 %v1619, 4
      %v1899 = vpop.permute.xlu0 %1898
      %1900 = vrot.lane.b32.xlu0 %v1629, 4
      %v1901 = vpop.permute.xlu0 %1900
      %1902 = vrot.lane.b32.xlu0 %v1639, 4
      %v1903 = vpop.permute.xlu0 %1902
      %1904 = vrot.lane.b32.xlu0 %v1649, 4
      %v1905 = vpop.permute.xlu0 %1904
      %1906 = vrot.lane.b32.xlu0 %v1659, 4
      %v1907 = vpop.permute.xlu0 %1906
      %1908 = vrot.lane.b32.xlu0 %v1669, 4
      %v1909 = vpop.permute.xlu0 %1908
      %1910 = vrot.lane.b32.xlu0 %v1679, 4
      %v1911 = vpop.permute.xlu0 %1910
      %1912 = vrot.lane.b32.xlu0 %v1689, 4
      %v1913 = vpop.permute.xlu0 %1912
      %1914 = vrot.lane.b32.xlu0 %v1699, 4
      %v1915 = vpop.permute.xlu0 %1914
      %1916 = vrot.lane.b32.xlu0 %v1709, 4
      %v1917 = vpop.permute.xlu0 %1916
      %1918 = vrot.lane.b32.xlu0 %v1719, 4
      %v1919 = vpop.permute.xlu0 %1918
      %1920 = vrot.lane.b32.xlu0 %v1729, 4
      %v1921 = vpop.permute.xlu0 %1920
      %1922 = vrot.lane.b32.xlu0 %v1739, 4
      %v1923 = vpop.permute.xlu0 %1922
      %1924 = vrot.lane.b32.xlu0 %v1749, 4
      %v1925 = vpop.permute.xlu0 %1924
      %1926 = vrot.lane.b32.xlu0 %v1759, 4
      %v1927 = vpop.permute.xlu0 %1926
      %1928 = vrot.lane.b32.xlu0 %v1769, 4
      %v1929 = vpop.permute.xlu0 %1928
      %1930 = vrot.lane.b32.xlu0 %v1779, 4
      %v1931 = vpop.permute.xlu0 %1930
      %1932 = vrot.lane.b32.xlu0 %v1789, 4
      %v1933 = vpop.permute.xlu0 %1932
      %1934 = vrot.lane.b32.xlu0 %v1799, 4
      %v1935 = vpop.permute.xlu0 %1934
      %1936 = vrot.lane.b32.xlu0 %v1809, 4
      %v1937 = vpop.permute.xlu0 %1936
      %1938 = vrot.lane.b32.xlu0 %v1819, 4
      %v1939 = vpop.permute.xlu0 %1938
      %1940 = vrot.lane.b32.xlu0 %v1829, 4
      %v1941 = vpop.permute.xlu0 %1940
      %1942 = vrot.lane.b32.xlu0 %v1839, 4
      %v1943 = vpop.permute.xlu0 %1942
      %1944 = vrot.lane.b32.xlu0 %v1849, 4
      %v1945 = vpop.permute.xlu0 %1944
      %1946 = vrot.lane.b32.xlu0 %v1859, 4
      %v1947 = vpop.permute.xlu0 %1946
      %1948 = vrot.lane.b32.xlu0 %v1869, 4
      %v1949 = vpop.permute.xlu0 %1948
      %1950 = vrot.lane.b32.xlu0 %v1879, 4
      %v1951 = vpop.permute.xlu0 %1950
      %1988 = vst.msk [vmem:[#allocation3] sm:$0xf] %vm811, %v1881
      %1989 = vst.msk [vmem:[#allocation3 + $0x4] sm:$0xf] %vm811, %v1883
      %1990 = vst.msk [vmem:[#allocation3 + $0x8] sm:$0xf] %vm811, %v1885
      %1991 = vst.msk [vmem:[#allocation3 + $0xc] sm:$0xf] %vm811, %v1887
      %1992 = vst.msk [vmem:[#allocation3 + $0x10] sm:$0xf] %vm811, %v1889
      %1993 = vst.msk [vmem:[#allocation3 + $0x14] sm:$0xf] %vm811, %v1891
      %1994 = vst.msk [vmem:[#allocation3 + $0x18] sm:$0xf] %vm811, %v1893
      %1995 = vst.msk [vmem:[#allocation3 + $0x1c] sm:$0xf] %vm811, %v1895
      %1996 = vst.msk [vmem:[#allocation3 + $0x20] sm:$0xf] %vm811, %v1897
      %1997 = vst.msk [vmem:[#allocation3 + $0x24] sm:$0xf] %vm811, %v1899
      %1998 = vst.msk [vmem:[#allocation3 + $0x28] sm:$0xf] %vm811, %v1901
      %1999 = vst.msk [vmem:[#allocation3 + $0x2c] sm:$0xf] %vm811, %v1903
      %2000 = vst.msk [vmem:[#allocation3 + $0x30] sm:$0xf] %vm811, %v1905
      %2001 = vst.msk [vmem:[#allocation3 + $0x34] sm:$0xf] %vm811, %v1907
      %2002 = vst.msk [vmem:[#allocation3 + $0x38] sm:$0xf] %vm811, %v1909
      %2003 = vst.msk [vmem:[#allocation3 + $0x3c] sm:$0xf] %vm811, %v1911
      %2004 = vst.msk [vmem:[#allocation3 + $0x40] sm:$0xf] %vm811, %v1913
      %2005 = vst.msk [vmem:[#allocation3 + $0x44] sm:$0xf] %vm811, %v1915
      %2006 = vst.msk [vmem:[#allocation3 + $0x48] sm:$0xf] %vm811, %v1917
      %2007 = vst.msk [vmem:[#allocation3 + $0x4c] sm:$0xf] %vm811, %v1919
      %2008 = vst.msk [vmem:[#allocation3 + $0x50] sm:$0xf] %vm811, %v1921
      %2009 = vst.msk [vmem:[#allocation3 + $0x54] sm:$0xf] %vm811, %v1923
      %2010 = vst.msk [vmem:[#allocation3 + $0x58] sm:$0xf] %vm811, %v1925
      %2011 = vst.msk [vmem:[#allocation3 + $0x5c] sm:$0xf] %vm811, %v1927
      %2012 = vst.msk [vmem:[#allocation3 + $0x60] sm:$0xf] %vm811, %v1929
      %2013 = vst.msk [vmem:[#allocation3 + $0x64] sm:$0xf] %vm811, %v1931
      %2014 = vst.msk [vmem:[#allocation3 + $0x68] sm:$0xf] %vm811, %v1933
      %2015 = vst.msk [vmem:[#allocation3 + $0x6c] sm:$0xf] %vm811, %v1935
      %2016 = vst.msk [vmem:[#allocation3 + $0x70] sm:$0xf] %vm811, %v1937
      %2017 = vst.msk [vmem:[#allocation3 + $0x74] sm:$0xf] %vm811, %v1939
      %2018 = vst.msk [vmem:[#allocation3 + $0x78] sm:$0xf] %vm811, %v1941
      %2019 = vst.msk [vmem:[#allocation3 + $0x7c] sm:$0xf] %vm811, %v1943
      %2020 = vst.msk [vmem:[#allocation3 + $0x80] sm:$0xf] %vm811, %v1945
      %2021 = vst.msk [vmem:[#allocation3 + $0x84] sm:$0xf] %vm811, %v1947
      %2022 = vst.msk [vmem:[#allocation3 + $0x88] sm:$0xf] %vm811, %v1949
      %2023 = vst.msk [vmem:[#allocation3 + $0x8c] sm:$0xf] %vm811, %v1951
      %v2024 = vld [vmem:[%s219 + $0x8] sm:$0xc]
      %v2025 = vld [vmem:[%s219 + $0xc] sm:$0xf]
      %v2026 = vld [vmem:[%s219 + $0x10] sm:$0xf]
      %v2027 = vld [vmem:[%s219 + $0x14] sm:$0xf]
      %v2028 = vld [vmem:[%s219 + $0x18] sm:$0xf]
      %v2029 = vld [vmem:[%s219 + $0x1c] sm:$0xf]
      %v2030 = vld [vmem:[%s219 + $0x20] sm:$0xf]
      %v2031 = vld [vmem:[%s219 + $0x24] sm:$0xf]
      %v2032 = vld [vmem:[%s219 + $0x28] sm:$0xf]
      %v2033 = vld [vmem:[%s219 + $0x2c] sm:$0xf]
      %v2034 = vld [vmem:[%s219 + $0x30] sm:$0xf]
      %v2035 = vld [vmem:[%s219 + $0x34] sm:$0xf]
      %v2036 = vld [vmem:[%s219 + $0x38] sm:$0xf]
      %v2037 = vld [vmem:[%s219 + $0x3c] sm:$0xf]
      %v2038 = vld [vmem:[%s219 + $0x40] sm:$0xf]
      %v2039 = vld [vmem:[%s219 + $0x44] sm:$0xf]
      %v2040 = vld [vmem:[%s219 + $0x48] sm:$0xf]
      %v2041 = vld [vmem:[%s219 + $0x4c] sm:$0xf]
      %v2042 = vld [vmem:[%s219 + $0x50] sm:$0xf]
      %v2043 = vld [vmem:[%s219 + $0x54] sm:$0xf]
      %v2044 = vld [vmem:[%s219 + $0x58] sm:$0xf]
      %v2045 = vld [vmem:[%s219 + $0x5c] sm:$0xf]
      %v2046 = vld [vmem:[%s219 + $0x60] sm:$0xf]
      %v2047 = vld [vmem:[%s219 + $0x64] sm:$0xf]
      %v2048 = vld [vmem:[%s219 + $0x68] sm:$0xf]
      %v2049 = vld [vmem:[%s219 + $0x6c] sm:$0xf]
      %v2050 = vld [vmem:[%s219 + $0x70] sm:$0xf]
      %v2051 = vld [vmem:[%s219 + $0x74] sm:$0xf]
      %v2052 = vld [vmem:[%s219 + $0x78] sm:$0xf]
      %v2053 = vld [vmem:[%s219 + $0x7c] sm:$0xf]
      %v2054 = vld [vmem:[%s219 + $0x80] sm:$0xf]
      %v2055 = vld [vmem:[%s219 + $0x84] sm:$0xf]
      %v2056 = vld [vmem:[%s219 + $0x88] sm:$0xf]
      %v2057 = vld [vmem:[%s219 + $0x8c] sm:$0xf]
      %v2058 = vld [vmem:[%s219 + $0x90] sm:$0xf]
      %v2059 = vld [vmem:[%s219 + $0x94] sm:$0xf]
      %v2060 = vld [vmem:[%s219 + $0x98] sm:$0x3]
      %vm2098 = vcmask 1041408
      %vm2099 = vcmask 1045508
      %vm2100 = vmor %vm2098, %vm2099
      %v2101 = vrot.slane %v2024, 6
      %v2102 = vrot.slane %v2101, 4
      %v2103 = vrot.slane %v2025, 6
      %v2104 = vsel %vm2100, %v2102, %v2103
      %v2105 = vrot.slane %v2103, 4
      %v2106 = vrot.slane %v2026, 6
      %v2107 = vsel %vm2100, %v2105, %v2106
      %v2108 = vrot.slane %v2106, 4
      %v2109 = vrot.slane %v2027, 6
      %v2110 = vsel %vm2100, %v2108, %v2109
      %v2111 = vrot.slane %v2109, 4
      %v2112 = vrot.slane %v2028, 6
      %v2113 = vsel %vm2100, %v2111, %v2112
      %v2114 = vrot.slane %v2112, 4
      %v2115 = vrot.slane %v2029, 6
      %v2116 = vsel %vm2100, %v2114, %v2115
      %v2117 = vrot.slane %v2115, 4
      %v2118 = vrot.slane %v2030, 6
      %v2119 = vsel %vm2100, %v2117, %v2118
      %v2120 = vrot.slane %v2118, 4
      %v2121 = vrot.slane %v2031, 6
      %v2122 = vsel %vm2100, %v2120, %v2121
      %v2123 = vrot.slane %v2121, 4
      %v2124 = vrot.slane %v2032, 6
      %v2125 = vsel %vm2100, %v2123, %v2124
      %v2126 = vrot.slane %v2124, 4
      %v2127 = vrot.slane %v2033, 6
      %v2128 = vsel %vm2100, %v2126, %v2127
      %v2129 = vrot.slane %v2127, 4
      %v2130 = vrot.slane %v2034, 6
      %v2131 = vsel %vm2100, %v2129, %v2130
      %v2132 = vrot.slane %v2130, 4
      %v2133 = vrot.slane %v2035, 6
      %v2134 = vsel %vm2100, %v2132, %v2133
      %v2135 = vrot.slane %v2133, 4
      %v2136 = vrot.slane %v2036, 6
      %v2137 = vsel %vm2100, %v2135, %v2136
      %v2138 = vrot.slane %v2136, 4
      %v2139 = vrot.slane %v2037, 6
      %v2140 = vsel %vm2100, %v2138, %v2139
      %v2141 = vrot.slane %v2139, 4
      %v2142 = vrot.slane %v2038, 6
      %v2143 = vsel %vm2100, %v2141, %v2142
      %v2144 = vrot.slane %v2142, 4
      %v2145 = vrot.slane %v2039, 6
      %v2146 = vsel %vm2100, %v2144, %v2145
      %v2147 = vrot.slane %v2145, 4
      %v2148 = vrot.slane %v2040, 6
      %v2149 = vsel %vm2100, %v2147, %v2148
      %v2150 = vrot.slane %v2148, 4
      %v2151 = vrot.slane %v2041, 6
      %v2152 = vsel %vm2100, %v2150, %v2151
      %v2153 = vrot.slane %v2151, 4
      %v2154 = vrot.slane %v2042, 6
      %v2155 = vsel %vm2100, %v2153, %v2154
      %v2156 = vrot.slane %v2154, 4
      %v2157 = vrot.slane %v2043, 6
      %v2158 = vsel %vm2100, %v2156, %v2157
      %v2159 = vrot.slane %v2157, 4
      %v2160 = vrot.slane %v2044, 6
      %v2161 = vsel %vm2100, %v2159, %v2160
      %v2162 = vrot.slane %v2160, 4
      %v2163 = vrot.slane %v2045, 6
      %v2164 = vsel %vm2100, %v2162, %v2163
      %v2165 = vrot.slane %v2163, 4
      %v2166 = vrot.slane %v2046, 6
      %v2167 = vsel %vm2100, %v2165, %v2166
      %v2168 = vrot.slane %v2166, 4
      %v2169 = vrot.slane %v2047, 6
      %v2170 = vsel %vm2100, %v2168, %v2169
      %v2171 = vrot.slane %v2169, 4
      %v2172 = vrot.slane %v2048, 6
      %v2173 = vsel %vm2100, %v2171, %v2172
      %v2174 = vrot.slane %v2172, 4
      %v2175 = vrot.slane %v2049, 6
      %v2176 = vsel %vm2100, %v2174, %v2175
      %v2177 = vrot.slane %v2175, 4
      %v2178 = vrot.slane %v2050, 6
      %v2179 = vsel %vm2100, %v2177, %v2178
      %v2180 = vrot.slane %v2178, 4
      %v2181 = vrot.slane %v2051, 6
      %v2182 = vsel %vm2100, %v2180, %v2181
      %v2183 = vrot.slane %v2181, 4
      %v2184 = vrot.slane %v2052, 6
      %v2185 = vsel %vm2100, %v2183, %v2184
      %v2186 = vrot.slane %v2184, 4
      %v2187 = vrot.slane %v2053, 6
      %v2188 = vsel %vm2100, %v2186, %v2187
      %v2189 = vrot.slane %v2187, 4
      %v2190 = vrot.slane %v2054, 6
      %v2191 = vsel %vm2100, %v2189, %v2190
      %v2192 = vrot.slane %v2190, 4
      %v2193 = vrot.slane %v2055, 6
      %v2194 = vsel %vm2100, %v2192, %v2193
      %v2195 = vrot.slane %v2193, 4
      %v2196 = vrot.slane %v2056, 6
      %v2197 = vsel %vm2100, %v2195, %v2196
      %v2198 = vrot.slane %v2196, 4
      %v2199 = vrot.slane %v2057, 6
      %v2200 = vsel %vm2100, %v2198, %v2199
      %v2201 = vrot.slane %v2199, 4
      %v2202 = vrot.slane %v2058, 6
      %v2203 = vsel %vm2100, %v2201, %v2202
      %v2204 = vrot.slane %v2202, 4
      %v2205 = vrot.slane %v2059, 6
      %v2206 = vsel %vm2100, %v2204, %v2205
      %v2207 = vrot.slane %v2205, 4
      %v2208 = vrot.slane %v2060, 6
      %v2209 = vsel %vm2100, %v2207, %v2208
      %2210 = vrot.lane.b32.xlu0 %v2104, 8
      %v2211 = vpop.permute.xlu0 %2210
      %2212 = vrot.lane.b32.xlu0 %v2107, 8
      %v2213 = vpop.permute.xlu0 %2212
      %2214 = vrot.lane.b32.xlu0 %v2110, 8
      %v2215 = vpop.permute.xlu0 %2214
      %2216 = vrot.lane.b32.xlu0 %v2113, 8
      %v2217 = vpop.permute.xlu0 %2216
      %2218 = vrot.lane.b32.xlu0 %v2116, 8
      %v2219 = vpop.permute.xlu0 %2218
      %2220 = vrot.lane.b32.xlu0 %v2119, 8
      %v2221 = vpop.permute.xlu0 %2220
      %2222 = vrot.lane.b32.xlu0 %v2122, 8
      %v2223 = vpop.permute.xlu0 %2222
      %2224 = vrot.lane.b32.xlu0 %v2125, 8
      %v2225 = vpop.permute.xlu0 %2224
      %2226 = vrot.lane.b32.xlu0 %v2128, 8
      %v2227 = vpop.permute.xlu0 %2226
      %2228 = vrot.lane.b32.xlu0 %v2131, 8
      %v2229 = vpop.permute.xlu0 %2228
      %2230 = vrot.lane.b32.xlu0 %v2134, 8
      %v2231 = vpop.permute.xlu0 %2230
      %2232 = vrot.lane.b32.xlu0 %v2137, 8
      %v2233 = vpop.permute.xlu0 %2232
      %2234 = vrot.lane.b32.xlu0 %v2140, 8
      %v2235 = vpop.permute.xlu0 %2234
      %2236 = vrot.lane.b32.xlu0 %v2143, 8
      %v2237 = vpop.permute.xlu0 %2236
      %2238 = vrot.lane.b32.xlu0 %v2146, 8
      %v2239 = vpop.permute.xlu0 %2238
      %2240 = vrot.lane.b32.xlu0 %v2149, 8
      %v2241 = vpop.permute.xlu0 %2240
      %2242 = vrot.lane.b32.xlu0 %v2152, 8
      %v2243 = vpop.permute.xlu0 %2242
      %2244 = vrot.lane.b32.xlu0 %v2155, 8
      %v2245 = vpop.permute.xlu0 %2244
      %2246 = vrot.lane.b32.xlu0 %v2158, 8
      %v2247 = vpop.permute.xlu0 %2246
      %2248 = vrot.lane.b32.xlu0 %v2161, 8
      %v2249 = vpop.permute.xlu0 %2248
      %2250 = vrot.lane.b32.xlu0 %v2164, 8
      %v2251 = vpop.permute.xlu0 %2250
      %2252 = vrot.lane.b32.xlu0 %v2167, 8
      %v2253 = vpop.permute.xlu0 %2252
      %2254 = vrot.lane.b32.xlu0 %v2170, 8
      %v2255 = vpop.permute.xlu0 %2254
      %2256 = vrot.lane.b32.xlu0 %v2173, 8
      %v2257 = vpop.permute.xlu0 %2256
      %2258 = vrot.lane.b32.xlu0 %v2176, 8
      %v2259 = vpop.permute.xlu0 %2258
      %2260 = vrot.lane.b32.xlu0 %v2179, 8
      %v2261 = vpop.permute.xlu0 %2260
      %2262 = vrot.lane.b32.xlu0 %v2182, 8
      %v2263 = vpop.permute.xlu0 %2262
      %2264 = vrot.lane.b32.xlu0 %v2185, 8
      %v2265 = vpop.permute.xlu0 %2264
      %2266 = vrot.lane.b32.xlu0 %v2188, 8
      %v2267 = vpop.permute.xlu0 %2266
      %2268 = vrot.lane.b32.xlu0 %v2191, 8
      %v2269 = vpop.permute.xlu0 %2268
      %2270 = vrot.lane.b32.xlu0 %v2194, 8
      %v2271 = vpop.permute.xlu0 %2270
      %2272 = vrot.lane.b32.xlu0 %v2197, 8
      %v2273 = vpop.permute.xlu0 %2272
      %2274 = vrot.lane.b32.xlu0 %v2200, 8
      %v2275 = vpop.permute.xlu0 %2274
      %2276 = vrot.lane.b32.xlu0 %v2203, 8
      %v2277 = vpop.permute.xlu0 %2276
      %2278 = vrot.lane.b32.xlu0 %v2206, 8
      %v2279 = vpop.permute.xlu0 %2278
      %2280 = vrot.lane.b32.xlu0 %v2209, 8
      %v2281 = vpop.permute.xlu0 %2280
      %2318 = vst.msk [vmem:[#allocation3] sm:$0xf] %vm1142, %v2211
      %2319 = vst.msk [vmem:[#allocation3 + $0x4] sm:$0xf] %vm1142, %v2213
      %2320 = vst.msk [vmem:[#allocation3 + $0x8] sm:$0xf] %vm1142, %v2215
      %2321 = vst.msk [vmem:[#allocation3 + $0xc] sm:$0xf] %vm1142, %v2217
      %2322 = vst.msk [vmem:[#allocation3 + $0x10] sm:$0xf] %vm1142, %v2219
      %2323 = vst.msk [vmem:[#allocation3 + $0x14] sm:$0xf] %vm1142, %v2221
      %2324 = vst.msk [vmem:[#allocation3 + $0x18] sm:$0xf] %vm1142, %v2223
      %2325 = vst.msk [vmem:[#allocation3 + $0x1c] sm:$0xf] %vm1142, %v2225
      %2326 = vst.msk [vmem:[#allocation3 + $0x20] sm:$0xf] %vm1142, %v2227
      %2327 = vst.msk [vmem:[#allocation3 + $0x24] sm:$0xf] %vm1142, %v2229
      %2328 = vst.msk [vmem:[#allocation3 + $0x28] sm:$0xf] %vm1142, %v2231
      %2329 = vst.msk [vmem:[#allocation3 + $0x2c] sm:$0xf] %vm1142, %v2233
      %2330 = vst.msk [vmem:[#allocation3 + $0x30] sm:$0xf] %vm1142, %v2235
      %2331 = vst.msk [vmem:[#allocation3 + $0x34] sm:$0xf] %vm1142, %v2237
      %2332 = vst.msk [vmem:[#allocation3 + $0x38] sm:$0xf] %vm1142, %v2239
      %2333 = vst.msk [vmem:[#allocation3 + $0x3c] sm:$0xf] %vm1142, %v2241
      %2334 = vst.msk [vmem:[#allocation3 + $0x40] sm:$0xf] %vm1142, %v2243
      %2335 = vst.msk [vmem:[#allocation3 + $0x44] sm:$0xf] %vm1142, %v2245
      %2336 = vst.msk [vmem:[#allocation3 + $0x48] sm:$0xf] %vm1142, %v2247
      %2337 = vst.msk [vmem:[#allocation3 + $0x4c] sm:$0xf] %vm1142, %v2249
      %2338 = vst.msk [vmem:[#allocation3 + $0x50] sm:$0xf] %vm1142, %v2251
      %2339 = vst.msk [vmem:[#allocation3 + $0x54] sm:$0xf] %vm1142, %v2253
      %2340 = vst.msk [vmem:[#allocation3 + $0x58] sm:$0xf] %vm1142, %v2255
      %2341 = vst.msk [vmem:[#allocation3 + $0x5c] sm:$0xf] %vm1142, %v2257
      %2342 = vst.msk [vmem:[#allocation3 + $0x60] sm:$0xf] %vm1142, %v2259
      %2343 = vst.msk [vmem:[#allocation3 + $0x64] sm:$0xf] %vm1142, %v2261
      %2344 = vst.msk [vmem:[#allocation3 + $0x68] sm:$0xf] %vm1142, %v2263
      %2345 = vst.msk [vmem:[#allocation3 + $0x6c] sm:$0xf] %vm1142, %v2265
      %2346 = vst.msk [vmem:[#allocation3 + $0x70] sm:$0xf] %vm1142, %v2267
      %2347 = vst.msk [vmem:[#allocation3 + $0x74] sm:$0xf] %vm1142, %v2269
      %2348 = vst.msk [vmem:[#allocation3 + $0x78] sm:$0xf] %vm1142, %v2271
      %2349 = vst.msk [vmem:[#allocation3 + $0x7c] sm:$0xf] %vm1142, %v2273
      %2350 = vst.msk [vmem:[#allocation3 + $0x80] sm:$0xf] %vm1142, %v2275
      %2351 = vst.msk [vmem:[#allocation3 + $0x84] sm:$0xf] %vm1142, %v2277
      %2352 = vst.msk [vmem:[#allocation3 + $0x88] sm:$0xf] %vm1142, %v2279
      %2353 = vst.msk [vmem:[#allocation3 + $0x8c] sm:$0xf] %vm1142, %v2281
      %v2354 = vld [vmem:[#allocation3] sm:$0xf]
      %v2355 = vld [vmem:[#allocation3 + $0x4] sm:$0xf]
      %v2356 = vld [vmem:[#allocation3 + $0x8] sm:$0xf]
      %v2357 = vld [vmem:[#allocation3 + $0xc] sm:$0xf]
      %v2358 = vld [vmem:[#allocation3 + $0x10] sm:$0xf]
      %v2359 = vld [vmem:[#allocation3 + $0x14] sm:$0xf]
      %v2360 = vld [vmem:[#allocation3 + $0x18] sm:$0xf]
      %v2361 = vld [vmem:[#allocation3 + $0x1c] sm:$0xf]
      %v2362 = vld [vmem:[#allocation3 + $0x20] sm:$0xf]
      %v2363 = vld [vmem:[#allocation3 + $0x24] sm:$0xf]
      %v2364 = vld [vmem:[#allocation3 + $0x28] sm:$0xf]
      %v2365 = vld [vmem:[#allocation3 + $0x2c] sm:$0xf]
      %v2366 = vld [vmem:[#allocation3 + $0x30] sm:$0xf]
      %v2367 = vld [vmem:[#allocation3 + $0x34] sm:$0xf]
      %v2368 = vld [vmem:[#allocation3 + $0x38] sm:$0xf]
      %v2369 = vld [vmem:[#allocation3 + $0x3c] sm:$0xf]
      %v2370 = vld [vmem:[#allocation3 + $0x40] sm:$0xf]
      %v2371 = vld [vmem:[#allocation3 + $0x44] sm:$0xf]
      %v2372 = vld [vmem:[#allocation3 + $0x48] sm:$0xf]
      %v2373 = vld [vmem:[#allocation3 + $0x4c] sm:$0xf]
      %v2374 = vld [vmem:[#allocation3 + $0x50] sm:$0xf]
      %v2375 = vld [vmem:[#allocation3 + $0x54] sm:$0xf]
      %v2376 = vld [vmem:[#allocation3 + $0x58] sm:$0xf]
      %v2377 = vld [vmem:[#allocation3 + $0x5c] sm:$0xf]
      %v2378 = vld [vmem:[#allocation3 + $0x60] sm:$0xf]
      %v2379 = vld [vmem:[#allocation3 + $0x64] sm:$0xf]
      %v2380 = vld [vmem:[#allocation3 + $0x68] sm:$0xf]
      %v2381 = vld [vmem:[#allocation3 + $0x6c] sm:$0xf]
      %v2382 = vld [vmem:[#allocation3 + $0x70] sm:$0xf]
      %v2383 = vld [vmem:[#allocation3 + $0x74] sm:$0xf]
      %v2384 = vld [vmem:[#allocation3 + $0x78] sm:$0xf]
      %v2385 = vld [vmem:[#allocation3 + $0x7c] sm:$0xf]
      %v2386 = vld [vmem:[#allocation3 + $0x80] sm:$0xf]
      %v2387 = vld [vmem:[#allocation3 + $0x84] sm:$0xf]
      %v2388 = vld [vmem:[#allocation3 + $0x88] sm:$0xf]
      %v2389 = vld [vmem:[#allocation3 + $0x8c] sm:$0xf]
      %s2390 = scalar_lea.vmem %s1, 8
      %v2391 = vld [vmem:[%s2390] sm:$0xf]
      %v2392 = vld [vmem:[%s2390 + $0x4] sm:$0x3]
      %v2429 = vunpack.c.l.b16 %v2354
      %v2430 = vunpack.c.l.b16 %v2355
      %v2431 = vunpack.c.l.b16 %v2356
      %v2432 = vunpack.c.l.b16 %v2357
      %v2433 = vunpack.c.l.b16 %v2358
      %v2434 = vunpack.c.l.b16 %v2359
      %v2435 = vunpack.c.l.b16 %v2360
      %v2436 = vunpack.c.l.b16 %v2361
      %v2437 = vunpack.c.l.b16 %v2362
      %v2438 = vunpack.c.l.b16 %v2363
      %v2439 = vunpack.c.l.b16 %v2364
      %v2440 = vunpack.c.l.b16 %v2365
      %v2441 = vunpack.c.l.b16 %v2366
      %v2442 = vunpack.c.l.b16 %v2367
      %v2443 = vunpack.c.l.b16 %v2368
      %v2444 = vunpack.c.l.b16 %v2369
      %v2445 = vunpack.c.l.b16 %v2370
      %v2446 = vunpack.c.l.b16 %v2371
      %v2447 = vunpack.c.l.b16 %v2372
      %v2448 = vunpack.c.l.b16 %v2373
      %v2449 = vunpack.c.l.b16 %v2374
      %v2450 = vunpack.c.l.b16 %v2375
      %v2451 = vunpack.c.l.b16 %v2376
      %v2452 = vunpack.c.l.b16 %v2377
      %v2453 = vunpack.c.l.b16 %v2378
      %v2454 = vunpack.c.l.b16 %v2379
      %v2455 = vunpack.c.l.b16 %v2380
      %v2456 = vunpack.c.l.b16 %v2381
      %v2457 = vunpack.c.l.b16 %v2382
      %v2458 = vunpack.c.l.b16 %v2383
      %v2459 = vunpack.c.l.b16 %v2384
      %v2460 = vunpack.c.l.b16 %v2385
      %v2461 = vunpack.c.l.b16 %v2386
      %v2462 = vunpack.c.l.b16 %v2387
      %v2463 = vunpack.c.l.b16 %v2388
      %v2464 = vunpack.c.l.b16 %v2389
      %v2465 = vpack.c.b16 %v2430, %v2429
      %v2466 = vpack.c.b16 %v2432, %v2431
      %v2467 = vpack.c.b16 %v2434, %v2433
      %v2468 = vpack.c.b16 %v2436, %v2435
      %v2469 = vpack.c.b16 %v2438, %v2437
      %v2470 = vpack.c.b16 %v2440, %v2439
      %v2471 = vpack.c.b16 %v2442, %v2441
      %v2472 = vpack.c.b16 %v2444, %v2443
      %v2473 = vpack.c.b16 %v2446, %v2445
      %v2474 = vpack.c.b16 %v2448, %v2447
      %v2475 = vpack.c.b16 %v2450, %v2449
      %v2476 = vpack.c.b16 %v2452, %v2451
      %v2477 = vpack.c.b16 %v2454, %v2453
      %v2478 = vpack.c.b16 %v2456, %v2455
      %v2479 = vpack.c.b16 %v2458, %v2457
      %v2480 = vpack.c.b16 %v2460, %v2459
      %v2481 = vpack.c.b16 %v2462, %v2461
      %v2482 = vpack.c.b16 %v2464, %v2463
      %v2485 = vunpack.c.l.b16 %v2391
      %v2486 = vunpack.c.l.b16 %v2392
      %v2487 = vpack.c.b16 %v2486, %v2485
      %vm2488 = vcmask 97280
      %v2490 = vsel %vm2488, %v2465, 0
      %v2493 = vsel %vm2488, %v2466, 0
      %v2496 = vsel %vm2488, %v2467, 0
      %v2499 = vsel %vm2488, %v2468, 0
      %v2502 = vsel %vm2488, %v2469, 0
      %v2505 = vsel %vm2488, %v2470, 0
      %v2508 = vsel %vm2488, %v2471, 0
      %v2511 = vsel %vm2488, %v2472, 0
      %v2514 = vsel %vm2488, %v2473, 0
      %v2517 = vsel %vm2488, %v2474, 0
      %v2520 = vsel %vm2488, %v2475, 0
      %v2523 = vsel %vm2488, %v2476, 0
      %v2526 = vsel %vm2488, %v2477, 0
      %v2529 = vsel %vm2488, %v2478, 0
      %v2532 = vsel %vm2488, %v2479, 0
      %v2535 = vsel %vm2488, %v2480, 0
      %v2538 = vsel %vm2488, %v2481, 0
      %v2541 = vsel %vm2488, %v2482, 0
      %vm2543 = vcmask 1045504
      %v2545 = vsel %vm2543, %v2487, 0
      %2547 = vmatprep.subr.bf16.mxu0 0
      %2548 = vmatpush1.bf16.msra.mxu0 0
      %2549 = vmatprep.subr.bf16.mxu0 0
      %2550 = vmatpush1.bf16.msra.mxu0 0
      %2551 = vmatprep.subr.bf16.mxu0 0
      %2552 = vmatpush1.bf16.msra.mxu0 0
      %2553 = vmatprep.subr.bf16.mxu0 0
      %2554 = vmatpush1.bf16.msra.mxu0 0
      %2555 = vmatprep.subr.bf16.mxu0 0
      %2556 = vmatpush1.bf16.msra.mxu0 0
      %2557 = vmatprep.subr.bf16.mxu0 0
      %2558 = vmatpush1.bf16.msra.mxu0 0
      %2559 = vmatprep.subr.bf16.mxu0 0
      %2560 = vmatpush1.bf16.msra.mxu0 0
      %2561 = vmatprep.subr.bf16.mxu0 0
      %2562 = vmatpush1.bf16.msra.mxu0 %v2545
      %2563 = vmatprep.subr.bf16.mxu0 0
      %2564 = vmatpush2.bf16.msra.mxu0 0
      %2565 = vmatprep.subr.bf16.mxu0 0
      %2566 = vmatpush2.bf16.msra.mxu0 0
      %2567 = vmatprep.subr.bf16.mxu0 0
      %2568 = vmatpush2.bf16.msra.mxu0 0
      %2569 = vmatprep.subr.bf16.mxu0 0
      %2570 = vmatpush2.bf16.msra.mxu0 0
      %2571 = vmatprep.subr.bf16.mxu0 0
      %2572 = vmatpush2.bf16.msra.mxu0 0
      %2573 = vmatprep.subr.bf16.mxu0 0
      %2574 = vmatpush2.bf16.msra.mxu0 0
      %2575 = vmatprep.subr.bf16.mxu0 0
      %2576 = vmatpush2.bf16.msra.mxu0 0
      %2577 = vmatprep.subr.bf16.mxu0 0
      %2578 = vmatpush2.bf16.msra.mxu0 0
      %2579 = vmatprep.mubr.bf16.mxu0 0
      %2580 = vmatmul.mubr.bf16.gmra.mxu0 %v2490
      %v2581 = vpop.f32.mrf.mxu0
      %v2582 = vadd.f32 0.0, %v2581
      %v2583 = vpop.f32.mrf.mxu0
      %v2584 = vpop.f32.mrf.mxu0
      %v2585 = vadd.f32 0.0, %v2584
      %v2586 = vpop.f32.mrf.mxu0
      %2587 = vmatprep.mubr.bf16.mxu0 0
      %2588 = vmatmul.mubr.bf16.gmra.mxu0 %v2493
      %v2589 = vpop.f32.mrf.mxu0
      %v2590 = vadd.f32 0.0, %v2589
      %v2591 = vpop.f32.mrf.mxu0
      %v2592 = vpop.f32.mrf.mxu0
      %v2593 = vadd.f32 0.0, %v2592
      %v2594 = vpop.f32.mrf.mxu0
      %2595 = vmatprep.mubr.bf16.mxu0 0
      %2596 = vmatmul.mubr.bf16.gmra.mxu0 %v2496
      %v2597 = vpop.f32.mrf.mxu0
      %v2598 = vadd.f32 0.0, %v2597
      %v2599 = vpop.f32.mrf.mxu0
      %v2600 = vpop.f32.mrf.mxu0
      %v2601 = vadd.f32 0.0, %v2600
      %v2602 = vpop.f32.mrf.mxu0
      %2603 = vmatprep.mubr.bf16.mxu0 0
      %2604 = vmatmul.mubr.bf16.gmra.mxu0 %v2499
      %v2605 = vpop.f32.mrf.mxu0
      %v2606 = vadd.f32 0.0, %v2605
      %v2607 = vpop.f32.mrf.mxu0
      %v2608 = vpop.f32.mrf.mxu0
      %v2609 = vadd.f32 0.0, %v2608
      %v2610 = vpop.f32.mrf.mxu0
      %2611 = vmatprep.mubr.bf16.mxu0 0
      %2612 = vmatmul.mubr.bf16.gmra.mxu0 %v2502
      %v2613 = vpop.f32.mrf.mxu0
      %v2614 = vadd.f32 0.0, %v2613
      %v2615 = vpop.f32.mrf.mxu0
      %v2616 = vpop.f32.mrf.mxu0
      %v2617 = vadd.f32 0.0, %v2616
      %v2618 = vpop.f32.mrf.mxu0
      %2619 = vmatprep.mubr.bf16.mxu0 0
      %2620 = vmatmul.mubr.bf16.gmra.mxu0 %v2505
      %v2621 = vpop.f32.mrf.mxu0
      %v2622 = vadd.f32 0.0, %v2621
      %v2623 = vpop.f32.mrf.mxu0
      %v2624 = vpop.f32.mrf.mxu0
      %v2625 = vadd.f32 0.0, %v2624
      %v2626 = vpop.f32.mrf.mxu0
      %2627 = vmatprep.mubr.bf16.mxu0 0
      %2628 = vmatmul.mubr.bf16.gmra.mxu0 %v2508
      %v2629 = vpop.f32.mrf.mxu0
      %v2630 = vadd.f32 0.0, %v2629
      %v2631 = vpop.f32.mrf.mxu0
      %v2632 = vpop.f32.mrf.mxu0
      %v2633 = vadd.f32 0.0, %v2632
      %v2634 = vpop.f32.mrf.mxu0
      %2635 = vmatprep.mubr.bf16.mxu0 0
      %2636 = vmatmul.mubr.bf16.gmra.mxu0 %v2511
      %v2637 = vpop.f32.mrf.mxu0
      %v2638 = vadd.f32 0.0, %v2637
      %v2639 = vpop.f32.mrf.mxu0
      %v2640 = vpop.f32.mrf.mxu0
      %v2641 = vadd.f32 0.0, %v2640
      %v2642 = vpop.f32.mrf.mxu0
      %2643 = vmatprep.mubr.bf16.mxu0 0
      %2644 = vmatmul.mubr.bf16.gmra.mxu0 %v2514
      %v2645 = vpop.f32.mrf.mxu0
      %v2646 = vadd.f32 0.0, %v2645
      %v2647 = vpop.f32.mrf.mxu0
      %v2648 = vpop.f32.mrf.mxu0
      %v2649 = vadd.f32 0.0, %v2648
      %v2650 = vpop.f32.mrf.mxu0
      %2651 = vmatprep.mubr.bf16.mxu0 0
      %2652 = vmatmul.mubr.bf16.gmra.mxu0 %v2517
      %v2653 = vpop.f32.mrf.mxu0
      %v2654 = vadd.f32 0.0, %v2653
      %v2655 = vpop.f32.mrf.mxu0
      %v2656 = vpop.f32.mrf.mxu0
      %v2657 = vadd.f32 0.0, %v2656
      %v2658 = vpop.f32.mrf.mxu0
      %2659 = vmatprep.mubr.bf16.mxu0 0
      %2660 = vmatmul.mubr.bf16.gmra.mxu0 %v2520
      %v2661 = vpop.f32.mrf.mxu0
      %v2662 = vadd.f32 0.0, %v2661
      %v2663 = vpop.f32.mrf.mxu0
      %v2664 = vpop.f32.mrf.mxu0
      %v2665 = vadd.f32 0.0, %v2664
      %v2666 = vpop.f32.mrf.mxu0
      %2667 = vmatprep.mubr.bf16.mxu0 0
      %2668 = vmatmul.mubr.bf16.gmra.mxu0 %v2523
      %v2669 = vpop.f32.mrf.mxu0
      %v2670 = vadd.f32 0.0, %v2669
      %v2671 = vpop.f32.mrf.mxu0
      %v2672 = vpop.f32.mrf.mxu0
      %v2673 = vadd.f32 0.0, %v2672
      %v2674 = vpop.f32.mrf.mxu0
      %2675 = vmatprep.mubr.bf16.mxu0 0
      %2676 = vmatmul.mubr.bf16.gmra.mxu0 %v2526
      %v2677 = vpop.f32.mrf.mxu0
      %v2678 = vadd.f32 0.0, %v2677
      %v2679 = vpop.f32.mrf.mxu0
      %v2680 = vpop.f32.mrf.mxu0
      %v2681 = vadd.f32 0.0, %v2680
      %v2682 = vpop.f32.mrf.mxu0
      %2683 = vmatprep.mubr.bf16.mxu0 0
      %2684 = vmatmul.mubr.bf16.gmra.mxu0 %v2529
      %v2685 = vpop.f32.mrf.mxu0
      %v2686 = vadd.f32 0.0, %v2685
      %v2687 = vpop.f32.mrf.mxu0
      %v2688 = vpop.f32.mrf.mxu0
      %v2689 = vadd.f32 0.0, %v2688
      %v2690 = vpop.f32.mrf.mxu0
      %2691 = vmatprep.mubr.bf16.mxu0 0
      %2692 = vmatmul.mubr.bf16.gmra.mxu0 %v2532
      %v2693 = vpop.f32.mrf.mxu0
      %v2694 = vadd.f32 0.0, %v2693
      %v2695 = vpop.f32.mrf.mxu0
      %v2696 = vpop.f32.mrf.mxu0
      %v2697 = vadd.f32 0.0, %v2696
      %v2698 = vpop.f32.mrf.mxu0
      %2699 = vmatprep.mubr.bf16.mxu0 0
      %2700 = vmatmul.mubr.bf16.gmra.mxu0 %v2535
      %v2701 = vpop.f32.mrf.mxu0
      %v2702 = vadd.f32 0.0, %v2701
      %v2703 = vpop.f32.mrf.mxu0
      %v2704 = vpop.f32.mrf.mxu0
      %v2705 = vadd.f32 0.0, %v2704
      %v2706 = vpop.f32.mrf.mxu0
      %2707 = vmatprep.mubr.bf16.mxu0 0
      %2708 = vmatmul.mubr.bf16.gmra.mxu0 %v2538
      %v2709 = vpop.f32.mrf.mxu0
      %v2710 = vadd.f32 0.0, %v2709
      %v2711 = vpop.f32.mrf.mxu0
      %v2712 = vpop.f32.mrf.mxu0
      %v2713 = vadd.f32 0.0, %v2712
      %v2714 = vpop.f32.mrf.mxu0
      %2715 = vmatprep.mubr.bf16.mxu0 0
      %2716 = vmatmul.mubr.bf16.gmra.mxu0 %v2541
      %v2717 = vpop.f32.mrf.mxu0
      %v2718 = vadd.f32 0.0, %v2717
      %v2719 = vpop.f32.mrf.mxu0
      %v2720 = vpop.f32.mrf.mxu0
      %v2721 = vadd.f32 0.0, %v2720
      %v2722 = vpop.f32.mrf.mxu0
      %2723 = vdwg.mxu0
      %v2760 = vunpack.c.l.b16 %v1179
      %v2761 = vunpack.c.l.b16 %v1180
      %v2762 = vunpack.c.l.b16 %v1181
      %v2763 = vunpack.c.l.b16 %v1182
      %v2764 = vunpack.c.l.b16 %v1183
      %v2765 = vunpack.c.l.b16 %v1184
      %v2766 = vunpack.c.l.b16 %v1185
      %v2767 = vunpack.c.l.b16 %v1186
      %v2768 = vunpack.c.l.b16 %v1187
      %v2769 = vunpack.c.l.b16 %v1188
      %v2770 = vunpack.c.l.b16 %v1189
      %v2771 = vunpack.c.l.b16 %v1190
      %v2772 = vunpack.c.l.b16 %v1191
      %v2773 = vunpack.c.l.b16 %v1192
      %v2774 = vunpack.c.l.b16 %v1193
      %v2775 = vunpack.c.l.b16 %v1194
      %v2776 = vunpack.c.l.b16 %v1195
      %v2777 = vunpack.c.l.b16 %v1196
      %v2778 = vunpack.c.l.b16 %v1197
      %v2779 = vunpack.c.l.b16 %v1198
      %v2780 = vunpack.c.l.b16 %v1199
      %v2781 = vunpack.c.l.b16 %v1200
      %v2782 = vunpack.c.l.b16 %v1201
      %v2783 = vunpack.c.l.b16 %v1202
      %v2784 = vunpack.c.l.b16 %v1203
      %v2785 = vunpack.c.l.b16 %v1204
      %v2786 = vunpack.c.l.b16 %v1205
      %v2787 = vunpack.c.l.b16 %v1206
      %v2788 = vunpack.c.l.b16 %v1207
      %v2789 = vunpack.c.l.b16 %v1208
      %v2790 = vunpack.c.l.b16 %v1209
      %v2791 = vunpack.c.l.b16 %v1210
      %v2792 = vunpack.c.l.b16 %v1211
      %v2793 = vunpack.c.l.b16 %v1212
      %v2794 = vunpack.c.l.b16 %v1213
      %v2795 = vunpack.c.l.b16 %v1214
      %v2796 = vpack.c.b16 %v2761, %v2760
      %v2797 = vpack.c.b16 %v2763, %v2762
      %v2798 = vpack.c.b16 %v2765, %v2764
      %v2799 = vpack.c.b16 %v2767, %v2766
      %v2800 = vpack.c.b16 %v2769, %v2768
      %v2801 = vpack.c.b16 %v2771, %v2770
      %v2802 = vpack.c.b16 %v2773, %v2772
      %v2803 = vpack.c.b16 %v2775, %v2774
      %v2804 = vpack.c.b16 %v2777, %v2776
      %v2805 = vpack.c.b16 %v2779, %v2778
      %v2806 = vpack.c.b16 %v2781, %v2780
      %v2807 = vpack.c.b16 %v2783, %v2782
      %v2808 = vpack.c.b16 %v2785, %v2784
      %v2809 = vpack.c.b16 %v2787, %v2786
      %v2810 = vpack.c.b16 %v2789, %v2788
      %v2811 = vpack.c.b16 %v2791, %v2790
      %v2812 = vpack.c.b16 %v2793, %v2792
      %v2813 = vpack.c.b16 %v2795, %v2794
      %v2816 = vunpack.c.l.b16 %v1215
      %v2817 = vunpack.c.l.b16 %v1216
      %v2818 = vpack.c.b16 %v2817, %v2816
      %v2820 = vsel %vm2488, %v2796, 0
      %v2823 = vsel %vm2488, %v2797, 0
      %v2826 = vsel %vm2488, %v2798, 0
      %v2829 = vsel %vm2488, %v2799, 0
      %v2832 = vsel %vm2488, %v2800, 0
      %v2835 = vsel %vm2488, %v2801, 0
      %v2838 = vsel %vm2488, %v2802, 0
      %v2841 = vsel %vm2488, %v2803, 0
      %v2844 = vsel %vm2488, %v2804, 0
      %v2847 = vsel %vm2488, %v2805, 0
      %v2850 = vsel %vm2488, %v2806, 0
      %v2853 = vsel %vm2488, %v2807, 0
      %v2856 = vsel %vm2488, %v2808, 0
      %v2859 = vsel %vm2488, %v2809, 0
      %v2862 = vsel %vm2488, %v2810, 0
      %v2865 = vsel %vm2488, %v2811, 0
      %v2868 = vsel %vm2488, %v2812, 0
      %v2871 = vsel %vm2488, %v2813, 0
      %v2874 = vsel %vm2543, %v2818, 0
      %2876 = vmatprep.subr.bf16.mxu0 0
      %2877 = vmatpush1.bf16.msra.mxu0 0
      %2878 = vmatprep.subr.bf16.mxu0 0
      %2879 = vmatpush1.bf16.msra.mxu0 0
      %2880 = vmatprep.subr.bf16.mxu0 0
      %2881 = vmatpush1.bf16.msra.mxu0 0
      %2882 = vmatprep.subr.bf16.mxu0 0
      %2883 = vmatpush1.bf16.msra.mxu0 0
      %2884 = vmatprep.subr.bf16.mxu0 0
      %2885 = vmatpush1.bf16.msra.mxu0 0
      %2886 = vmatprep.subr.bf16.mxu0 0
      %2887 = vmatpush1.bf16.msra.mxu0 0
      %2888 = vmatprep.subr.bf16.mxu0 0
      %2889 = vmatpush1.bf16.msra.mxu0 0
      %2890 = vmatprep.subr.bf16.mxu0 0
      %2891 = vmatpush1.bf16.msra.mxu0 %v2874
      %2892 = vmatprep.subr.bf16.mxu0 0
      %2893 = vmatpush2.bf16.msra.mxu0 0
      %2894 = vmatprep.subr.bf16.mxu0 0
      %2895 = vmatpush2.bf16.msra.mxu0 0
      %2896 = vmatprep.subr.bf16.mxu0 0
      %2897 = vmatpush2.bf16.msra.mxu0 0
      %2898 = vmatprep.subr.bf16.mxu0 0
      %2899 = vmatpush2.bf16.msra.mxu0 0
      %2900 = vmatprep.subr.bf16.mxu0 0
      %2901 = vmatpush2.bf16.msra.mxu0 0
      %2902 = vmatprep.subr.bf16.mxu0 0
      %2903 = vmatpush2.bf16.msra.mxu0 0
      %2904 = vmatprep.subr.bf16.mxu0 0
      %2905 = vmatpush2.bf16.msra.mxu0 0
      %2906 = vmatprep.subr.bf16.mxu0 0
      %2907 = vmatpush2.bf16.msra.mxu0 0
      %2908 = vmatprep.mubr.bf16.mxu0 0
      %2909 = vmatmul.mubr.bf16.gmra.mxu0 %v2820
      %v2910 = vpop.f32.mrf.mxu0
      %v2911 = vadd.f32 %v2582, %v2910
      %v2912 = vpop.f32.mrf.mxu0
      %v2913 = vpop.f32.mrf.mxu0
      %v2914 = vadd.f32 %v2585, %v2913
      %v2915 = vpop.f32.mrf.mxu0
      %2916 = vmatprep.mubr.bf16.mxu0 0
      %2917 = vmatmul.mubr.bf16.gmra.mxu0 %v2823
      %v2918 = vpop.f32.mrf.mxu0
      %v2919 = vadd.f32 %v2590, %v2918
      %v2920 = vpop.f32.mrf.mxu0
      %v2921 = vpop.f32.mrf.mxu0
      %v2922 = vadd.f32 %v2593, %v2921
      %v2923 = vpop.f32.mrf.mxu0
      %2924 = vmatprep.mubr.bf16.mxu0 0
      %2925 = vmatmul.mubr.bf16.gmra.mxu0 %v2826
      %v2926 = vpop.f32.mrf.mxu0
      %v2927 = vadd.f32 %v2598, %v2926
      %v2928 = vpop.f32.mrf.mxu0
      %v2929 = vpop.f32.mrf.mxu0
      %v2930 = vadd.f32 %v2601, %v2929
      %v2931 = vpop.f32.mrf.mxu0
      %2932 = vmatprep.mubr.bf16.mxu0 0
      %2933 = vmatmul.mubr.bf16.gmra.mxu0 %v2829
      %v2934 = vpop.f32.mrf.mxu0
      %v2935 = vadd.f32 %v2606, %v2934
      %v2936 = vpop.f32.mrf.mxu0
      %v2937 = vpop.f32.mrf.mxu0
      %v2938 = vadd.f32 %v2609, %v2937
      %v2939 = vpop.f32.mrf.mxu0
      %2940 = vmatprep.mubr.bf16.mxu0 0
      %2941 = vmatmul.mubr.bf16.gmra.mxu0 %v2832
      %v2942 = vpop.f32.mrf.mxu0
      %v2943 = vadd.f32 %v2614, %v2942
      %v2944 = vpop.f32.mrf.mxu0
      %v2945 = vpop.f32.mrf.mxu0
      %v2946 = vadd.f32 %v2617, %v2945
      %v2947 = vpop.f32.mrf.mxu0
      %2948 = vmatprep.mubr.bf16.mxu0 0
      %2949 = vmatmul.mubr.bf16.gmra.mxu0 %v2835
      %v2950 = vpop.f32.mrf.mxu0
      %v2951 = vadd.f32 %v2622, %v2950
      %v2952 = vpop.f32.mrf.mxu0
      %v2953 = vpop.f32.mrf.mxu0
      %v2954 = vadd.f32 %v2625, %v2953
      %v2955 = vpop.f32.mrf.mxu0
      %2956 = vmatprep.mubr.bf16.mxu0 0
      %2957 = vmatmul.mubr.bf16.gmra.mxu0 %v2838
      %v2958 = vpop.f32.mrf.mxu0
      %v2959 = vadd.f32 %v2630, %v2958
      %v2960 = vpop.f32.mrf.mxu0
      %v2961 = vpop.f32.mrf.mxu0
      %v2962 = vadd.f32 %v2633, %v2961
      %v2963 = vpop.f32.mrf.mxu0
      %2964 = vmatprep.mubr.bf16.mxu0 0
      %2965 = vmatmul.mubr.bf16.gmra.mxu0 %v2841
      %v2966 = vpop.f32.mrf.mxu0
      %v2967 = vadd.f32 %v2638, %v2966
      %v2968 = vpop.f32.mrf.mxu0
      %v2969 = vpop.f32.mrf.mxu0
      %v2970 = vadd.f32 %v2641, %v2969
      %v2971 = vpop.f32.mrf.mxu0
      %2972 = vmatprep.mubr.bf16.mxu0 0
      %2973 = vmatmul.mubr.bf16.gmra.mxu0 %v2844
      %v2974 = vpop.f32.mrf.mxu0
      %v2975 = vadd.f32 %v2646, %v2974
      %v2976 = vpop.f32.mrf.mxu0
      %v2977 = vpop.f32.mrf.mxu0
      %v2978 = vadd.f32 %v2649, %v2977
      %v2979 = vpop.f32.mrf.mxu0
      %2980 = vmatprep.mubr.bf16.mxu0 0
      %2981 = vmatmul.mubr.bf16.gmra.mxu0 %v2847
      %v2982 = vpop.f32.mrf.mxu0
      %v2983 = vadd.f32 %v2654, %v2982
      %v2984 = vpop.f32.mrf.mxu0
      %v2985 = vpop.f32.mrf.mxu0
      %v2986 = vadd.f32 %v2657, %v2985
      %v2987 = vpop.f32.mrf.mxu0
      %2988 = vmatprep.mubr.bf16.mxu0 0
      %2989 = vmatmul.mubr.bf16.gmra.mxu0 %v2850
      %v2990 = vpop.f32.mrf.mxu0
      %v2991 = vadd.f32 %v2662, %v2990
      %v2992 = vpop.f32.mrf.mxu0
      %v2993 = vpop.f32.mrf.mxu0
      %v2994 = vadd.f32 %v2665, %v2993
      %v2995 = vpop.f32.mrf.mxu0
      %2996 = vmatprep.mubr.bf16.mxu0 0
      %2997 = vmatmul.mubr.bf16.gmra.mxu0 %v2853
      %v2998 = vpop.f32.mrf.mxu0
      %v2999 = vadd.f32 %v2670, %v2998
      %v3000 = vpop.f32.mrf.mxu0
      %v3001 = vpop.f32.mrf.mxu0
      %v3002 = vadd.f32 %v2673, %v3001
      %v3003 = vpop.f32.mrf.mxu0
      %3004 = vmatprep.mubr.bf16.mxu0 0
      %3005 = vmatmul.mubr.bf16.gmra.mxu0 %v2856
      %v3006 = vpop.f32.mrf.mxu0
      %v3007 = vadd.f32 %v2678, %v3006
      %v3008 = vpop.f32.mrf.mxu0
      %v3009 = vpop.f32.mrf.mxu0
      %v3010 = vadd.f32 %v2681, %v3009
      %v3011 = vpop.f32.mrf.mxu0
      %3012 = vmatprep.mubr.bf16.mxu0 0
      %3013 = vmatmul.mubr.bf16.gmra.mxu0 %v2859
      %v3014 = vpop.f32.mrf.mxu0
      %v3015 = vadd.f32 %v2686, %v3014
      %v3016 = vpop.f32.mrf.mxu0
      %v3017 = vpop.f32.mrf.mxu0
      %v3018 = vadd.f32 %v2689, %v3017
      %v3019 = vpop.f32.mrf.mxu0
      %3020 = vmatprep.mubr.bf16.mxu0 0
      %3021 = vmatmul.mubr.bf16.gmra.mxu0 %v2862
      %v3022 = vpop.f32.mrf.mxu0
      %v3023 = vadd.f32 %v2694, %v3022
      %v3024 = vpop.f32.mrf.mxu0
      %v3025 = vpop.f32.mrf.mxu0
      %v3026 = vadd.f32 %v2697, %v3025
      %v3027 = vpop.f32.mrf.mxu0
      %3028 = vmatprep.mubr.bf16.mxu0 0
      %3029 = vmatmul.mubr.bf16.gmra.mxu0 %v2865
      %v3030 = vpop.f32.mrf.mxu0
      %v3031 = vadd.f32 %v2702, %v3030
      %v3032 = vpop.f32.mrf.mxu0
      %v3033 = vpop.f32.mrf.mxu0
      %v3034 = vadd.f32 %v2705, %v3033
      %v3035 = vpop.f32.mrf.mxu0
      %3036 = vmatprep.mubr.bf16.mxu0 0
      %3037 = vmatmul.mubr.bf16.gmra.mxu0 %v2868
      %v3038 = vpop.f32.mrf.mxu0
      %v3039 = vadd.f32 %v2710, %v3038
      %v3040 = vpop.f32.mrf.mxu0
      %v3041 = vpop.f32.mrf.mxu0
      %v3042 = vadd.f32 %v2713, %v3041
      %v3043 = vpop.f32.mrf.mxu0
      %3044 = vmatprep.mubr.bf16.mxu0 0
      %3045 = vmatmul.mubr.bf16.gmra.mxu0 %v2871
      %v3046 = vpop.f32.mrf.mxu0
      %v3047 = vadd.f32 %v2718, %v3046
      %v3048 = vpop.f32.mrf.mxu0
      %v3049 = vpop.f32.mrf.mxu0
      %v3050 = vadd.f32 %v2721, %v3049
      %v3051 = vpop.f32.mrf.mxu0
      %3052 = vdwg.mxu0
      %v3053 = vld [vmem:[%s219 + $0x10] sm:$0xc]
      %v3054 = vld [vmem:[%s219 + $0x14] sm:$0xf]
      %v3055 = vld [vmem:[%s219 + $0x18] sm:$0xf]
      %v3056 = vld [vmem:[%s219 + $0x1c] sm:$0xf]
      %v3057 = vld [vmem:[%s219 + $0x20] sm:$0xf]
      %v3058 = vld [vmem:[%s219 + $0x24] sm:$0xf]
      %v3059 = vld [vmem:[%s219 + $0x28] sm:$0xf]
      %v3060 = vld [vmem:[%s219 + $0x2c] sm:$0xf]
      %v3061 = vld [vmem:[%s219 + $0x30] sm:$0xf]
      %v3062 = vld [vmem:[%s219 + $0x34] sm:$0xf]
      %v3063 = vld [vmem:[%s219 + $0x38] sm:$0xf]
      %v3064 = vld [vmem:[%s219 + $0x3c] sm:$0xf]
      %v3065 = vld [vmem:[%s219 + $0x40] sm:$0xf]
      %v3066 = vld [vmem:[%s219 + $0x44] sm:$0xf]
      %v3067 = vld [vmem:[%s219 + $0x48] sm:$0xf]
      %v3068 = vld [vmem:[%s219 + $0x4c] sm:$0xf]
      %v3069 = vld [vmem:[%s219 + $0x50] sm:$0xf]
      %v3070 = vld [vmem:[%s219 + $0x54] sm:$0xf]
      %v3071 = vld [vmem:[%s219 + $0x58] sm:$0xf]
      %v3072 = vld [vmem:[%s219 + $0x5c] sm:$0xf]
      %v3073 = vld [vmem:[%s219 + $0x60] sm:$0xf]
      %v3074 = vld [vmem:[%s219 + $0x64] sm:$0xf]
      %v3075 = vld [vmem:[%s219 + $0x68] sm:$0xf]
      %v3076 = vld [vmem:[%s219 + $0x6c] sm:$0xf]
      %v3077 = vld [vmem:[%s219 + $0x70] sm:$0xf]
      %v3078 = vld [vmem:[%s219 + $0x74] sm:$0xf]
      %v3079 = vld [vmem:[%s219 + $0x78] sm:$0xf]
      %v3080 = vld [vmem:[%s219 + $0x7c] sm:$0xf]
      %v3081 = vld [vmem:[%s219 + $0x80] sm:$0xf]
      %v3082 = vld [vmem:[%s219 + $0x84] sm:$0xf]
      %v3083 = vld [vmem:[%s219 + $0x88] sm:$0xf]
      %v3084 = vld [vmem:[%s219 + $0x8c] sm:$0xf]
      %v3085 = vld [vmem:[%s219 + $0x90] sm:$0xf]
      %v3086 = vld [vmem:[%s219 + $0x94] sm:$0xf]
      %v3087 = vld [vmem:[%s219 + $0x98] sm:$0xf]
      %v3088 = vld [vmem:[%s219 + $0x9c] sm:$0xf]
      %v3089 = vld [vmem:[%s219 + $0xa0] sm:$0x3]
      %v3127 = vrot.slane %v3053, 6
      %v3128 = vrot.slane %v3127, 4
      %v3129 = vrot.slane %v3054, 6
      %v3130 = vsel %vm2100, %v3128, %v3129
      %v3131 = vrot.slane %v3129, 4
      %v3132 = vrot.slane %v3055, 6
      %v3133 = vsel %vm2100, %v3131, %v3132
      %v3134 = vrot.slane %v3132, 4
      %v3135 = vrot.slane %v3056, 6
      %v3136 = vsel %vm2100, %v3134, %v3135
      %v3137 = vrot.slane %v3135, 4
      %v3138 = vrot.slane %v3057, 6
      %v3139 = vsel %vm2100, %v3137, %v3138
      %v3140 = vrot.slane %v3138, 4
      %v3141 = vrot.slane %v3058, 6
      %v3142 = vsel %vm2100, %v3140, %v3141
      %v3143 = vrot.slane %v3141, 4
      %v3144 = vrot.slane %v3059, 6
      %v3145 = vsel %vm2100, %v3143, %v3144
      %v3146 = vrot.slane %v3144, 4
      %v3147 = vrot.slane %v3060, 6
      %v3148 = vsel %vm2100, %v3146, %v3147
      %v3149 = vrot.slane %v3147, 4
      %v3150 = vrot.slane %v3061, 6
      %v3151 = vsel %vm2100, %v3149, %v3150
      %v3152 = vrot.slane %v3150, 4
      %v3153 = vrot.slane %v3062, 6
      %v3154 = vsel %vm2100, %v3152, %v3153
      %v3155 = vrot.slane %v3153, 4
      %v3156 = vrot.slane %v3063, 6
      %v3157 = vsel %vm2100, %v3155, %v3156
      %v3158 = vrot.slane %v3156, 4
      %v3159 = vrot.slane %v3064, 6
      %v3160 = vsel %vm2100, %v3158, %v3159
      %v3161 = vrot.slane %v3159, 4
      %v3162 = vrot.slane %v3065, 6
      %v3163 = vsel %vm2100, %v3161, %v3162
      %v3164 = vrot.slane %v3162, 4
      %v3165 = vrot.slane %v3066, 6
      %v3166 = vsel %vm2100, %v3164, %v3165
      %v3167 = vrot.slane %v3165, 4
      %v3168 = vrot.slane %v3067, 6
      %v3169 = vsel %vm2100, %v3167, %v3168
      %v3170 = vrot.slane %v3168, 4
      %v3171 = vrot.slane %v3068, 6
      %v3172 = vsel %vm2100, %v3170, %v3171
      %v3173 = vrot.slane %v3171, 4
      %v3174 = vrot.slane %v3069, 6
      %v3175 = vsel %vm2100, %v3173, %v3174
      %v3176 = vrot.slane %v3174, 4
      %v3177 = vrot.slane %v3070, 6
      %v3178 = vsel %vm2100, %v3176, %v3177
      %v3179 = vrot.slane %v3177, 4
      %v3180 = vrot.slane %v3071, 6
      %v3181 = vsel %vm2100, %v3179, %v3180
      %v3182 = vrot.slane %v3180, 4
      %v3183 = vrot.slane %v3072, 6
      %v3184 = vsel %vm2100, %v3182, %v3183
      %v3185 = vrot.slane %v3183, 4
      %v3186 = vrot.slane %v3073, 6
      %v3187 = vsel %vm2100, %v3185, %v3186
      %v3188 = vrot.slane %v3186, 4
      %v3189 = vrot.slane %v3074, 6
      %v3190 = vsel %vm2100, %v3188, %v3189
      %v3191 = vrot.slane %v3189, 4
      %v3192 = vrot.slane %v3075, 6
      %v3193 = vsel %vm2100, %v3191, %v3192
      %v3194 = vrot.slane %v3192, 4
      %v3195 = vrot.slane %v3076, 6
      %v3196 = vsel %vm2100, %v3194, %v3195
      %v3197 = vrot.slane %v3195, 4
      %v3198 = vrot.slane %v3077, 6
      %v3199 = vsel %vm2100, %v3197, %v3198
      %v3200 = vrot.slane %v3198, 4
      %v3201 = vrot.slane %v3078, 6
      %v3202 = vsel %vm2100, %v3200, %v3201
      %v3203 = vrot.slane %v3201, 4
      %v3204 = vrot.slane %v3079, 6
      %v3205 = vsel %vm2100, %v3203, %v3204
      %v3206 = vrot.slane %v3204, 4
      %v3207 = vrot.slane %v3080, 6
      %v3208 = vsel %vm2100, %v3206, %v3207
      %v3209 = vrot.slane %v3207, 4
      %v3210 = vrot.slane %v3081, 6
      %v3211 = vsel %vm2100, %v3209, %v3210
      %v3212 = vrot.slane %v3210, 4
      %v3213 = vrot.slane %v3082, 6
      %v3214 = vsel %vm2100, %v3212, %v3213
      %v3215 = vrot.slane %v3213, 4
      %v3216 = vrot.slane %v3083, 6
      %v3217 = vsel %vm2100, %v3215, %v3216
      %v3218 = vrot.slane %v3216, 4
      %v3219 = vrot.slane %v3084, 6
      %v3220 = vsel %vm2100, %v3218, %v3219
      %v3221 = vrot.slane %v3219, 4
      %v3222 = vrot.slane %v3085, 6
      %v3223 = vsel %vm2100, %v3221, %v3222
      %v3224 = vrot.slane %v3222, 4
      %v3225 = vrot.slane %v3086, 6
      %v3226 = vsel %vm2100, %v3224, %v3225
      %v3227 = vrot.slane %v3225, 4
      %v3228 = vrot.slane %v3087, 6
      %v3229 = vsel %vm2100, %v3227, %v3228
      %v3230 = vrot.slane %v3228, 4
      %v3231 = vrot.slane %v3088, 6
      %v3232 = vsel %vm2100, %v3230, %v3231
      %v3233 = vrot.slane %v3231, 4
      %v3234 = vrot.slane %v3089, 6
      %v3235 = vsel %vm2100, %v3233, %v3234
      %3272 = vst.msk [vmem:[#allocation3] sm:$0xf] %vm262, %v3130
      %3273 = vst.msk [vmem:[#allocation3 + $0x4] sm:$0xf] %vm262, %v3133
      %3274 = vst.msk [vmem:[#allocation3 + $0x8] sm:$0xf] %vm262, %v3136
      %3275 = vst.msk [vmem:[#allocation3 + $0xc] sm:$0xf] %vm262, %v3139
      %3276 = vst.msk [vmem:[#allocation3 + $0x10] sm:$0xf] %vm262, %v3142
      %3277 = vst.msk [vmem:[#allocation3 + $0x14] sm:$0xf] %vm262, %v3145
      %3278 = vst.msk [vmem:[#allocation3 + $0x18] sm:$0xf] %vm262, %v3148
      %3279 = vst.msk [vmem:[#allocation3 + $0x1c] sm:$0xf] %vm262, %v3151
      %3280 = vst.msk [vmem:[#allocation3 + $0x20] sm:$0xf] %vm262, %v3154
      %3281 = vst.msk [vmem:[#allocation3 + $0x24] sm:$0xf] %vm262, %v3157
      %3282 = vst.msk [vmem:[#allocation3 + $0x28] sm:$0xf] %vm262, %v3160
      %3283 = vst.msk [vmem:[#allocation3 + $0x2c] sm:$0xf] %vm262, %v3163
      %3284 = vst.msk [vmem:[#allocation3 + $0x30] sm:$0xf] %vm262, %v3166
      %3285 = vst.msk [vmem:[#allocation3 + $0x34] sm:$0xf] %vm262, %v3169
      %3286 = vst.msk [vmem:[#allocation3 + $0x38] sm:$0xf] %vm262, %v3172
      %3287 = vst.msk [vmem:[#allocation3 + $0x3c] sm:$0xf] %vm262, %v3175
      %3288 = vst.msk [vmem:[#allocation3 + $0x40] sm:$0xf] %vm262, %v3178
      %3289 = vst.msk [vmem:[#allocation3 + $0x44] sm:$0xf] %vm262, %v3181
      %3290 = vst.msk [vmem:[#allocation3 + $0x48] sm:$0xf] %vm262, %v3184
      %3291 = vst.msk [vmem:[#allocation3 + $0x4c] sm:$0xf] %vm262, %v3187
      %3292 = vst.msk [vmem:[#allocation3 + $0x50] sm:$0xf] %vm262, %v3190
      %3293 = vst.msk [vmem:[#allocation3 + $0x54] sm:$0xf] %vm262, %v3193
      %3294 = vst.msk [vmem:[#allocation3 + $0x58] sm:$0xf] %vm262, %v3196
      %3295 = vst.msk [vmem:[#allocation3 + $0x5c] sm:$0xf] %vm262, %v3199
      %3296 = vst.msk [vmem:[#allocation3 + $0x60] sm:$0xf] %vm262, %v3202
      %3297 = vst.msk [vmem:[#allocation3 + $0x64] sm:$0xf] %vm262, %v3205
      %3298 = vst.msk [vmem:[#allocation3 + $0x68] sm:$0xf] %vm262, %v3208
      %3299 = vst.msk [vmem:[#allocation3 + $0x6c] sm:$0xf] %vm262, %v3211
      %3300 = vst.msk [vmem:[#allocation3 + $0x70] sm:$0xf] %vm262, %v3214
      %3301 = vst.msk [vmem:[#allocation3 + $0x74] sm:$0xf] %vm262, %v3217
      %3302 = vst.msk [vmem:[#allocation3 + $0x78] sm:$0xf] %vm262, %v3220
      %3303 = vst.msk [vmem:[#allocation3 + $0x7c] sm:$0xf] %vm262, %v3223
      %3304 = vst.msk [vmem:[#allocation3 + $0x80] sm:$0xf] %vm262, %v3226
      %3305 = vst.msk [vmem:[#allocation3 + $0x84] sm:$0xf] %vm262, %v3229
      %3306 = vst.msk [vmem:[#allocation3 + $0x88] sm:$0xf] %vm262, %v3232
      %3307 = vst.msk [vmem:[#allocation3 + $0x8c] sm:$0xf] %vm262, %v3235
      %v3308 = vld [vmem:[%s219 + $0x10] sm:$0xc]
      %v3309 = vld [vmem:[%s219 + $0x14] sm:$0xf]
      %v3310 = vld [vmem:[%s219 + $0x18] sm:$0xf]
      %v3311 = vld [vmem:[%s219 + $0x1c] sm:$0xf]
      %v3312 = vld [vmem:[%s219 + $0x20] sm:$0xf]
      %v3313 = vld [vmem:[%s219 + $0x24] sm:$0xf]
      %v3314 = vld [vmem:[%s219 + $0x28] sm:$0xf]
      %v3315 = vld [vmem:[%s219 + $0x2c] sm:$0xf]
      %v3316 = vld [vmem:[%s219 + $0x30] sm:$0xf]
      %v3317 = vld [vmem:[%s219 + $0x34] sm:$0xf]
      %v3318 = vld [vmem:[%s219 + $0x38] sm:$0xf]
      %v3319 = vld [vmem:[%s219 + $0x3c] sm:$0xf]
      %v3320 = vld [vmem:[%s219 + $0x40] sm:$0xf]
      %v3321 = vld [vmem:[%s219 + $0x44] sm:$0xf]
      %v3322 = vld [vmem:[%s219 + $0x48] sm:$0xf]
      %v3323 = vld [vmem:[%s219 + $0x4c] sm:$0xf]
      %v3324 = vld [vmem:[%s219 + $0x50] sm:$0xf]
      %v3325 = vld [vmem:[%s219 + $0x54] sm:$0xf]
      %v3326 = vld [vmem:[%s219 + $0x58] sm:$0xf]
      %v3327 = vld [vmem:[%s219 + $0x5c] sm:$0xf]
      %v3328 = vld [vmem:[%s219 + $0x60] sm:$0xf]
      %v3329 = vld [vmem:[%s219 + $0x64] sm:$0xf]
      %v3330 = vld [vmem:[%s219 + $0x68] sm:$0xf]
      %v3331 = vld [vmem:[%s219 + $0x6c] sm:$0xf]
      %v3332 = vld [vmem:[%s219 + $0x70] sm:$0xf]
      %v3333 = vld [vmem:[%s219 + $0x74] sm:$0xf]
      %v3334 = vld [vmem:[%s219 + $0x78] sm:$0xf]
      %v3335 = vld [vmem:[%s219 + $0x7c] sm:$0xf]
      %v3336 = vld [vmem:[%s219 + $0x80] sm:$0xf]
      %v3337 = vld [vmem:[%s219 + $0x84] sm:$0xf]
      %v3338 = vld [vmem:[%s219 + $0x88] sm:$0xf]
      %v3339 = vld [vmem:[%s219 + $0x8c] sm:$0xf]
      %v3340 = vld [vmem:[%s219 + $0x90] sm:$0xf]
      %v3341 = vld [vmem:[%s219 + $0x94] sm:$0xf]
      %v3342 = vld [vmem:[%s219 + $0x98] sm:$0xf]
      %v3343 = vld [vmem:[%s219 + $0x9c] sm:$0xf]
      %v3344 = vld [vmem:[%s219 + $0xa0] sm:$0x7]
      %vm3345 = vsmask.f32 1280
      %vm3346 = vsmask.f32 5392
      %vm3347 = vmor %vm3345, %vm3346
      %v3349 = vshrl.u32 %v3308, 16
      %v3351 = vrot.slane %v3349, 6
      %v3352 = vshll.u32 %v3308, 16
      %v3354 = vrot.slane %v3352, 7
      %v3355 = vor.u32 %v3351, %v3354
      %v3356 = vrot.slane %v3355, 4
      %v3358 = vshrl.u32 %v3309, 16
      %v3360 = vrot.slane %v3358, 6
      %v3361 = vshll.u32 %v3309, 16
      %v3363 = vrot.slane %v3361, 7
      %v3364 = vor.u32 %v3360, %v3363
      %v3365 = vsel %vm3347, %v3356, %v3364
      %v3366 = vrot.slane %v3364, 4
      %v3368 = vshrl.u32 %v3310, 16
      %v3370 = vrot.slane %v3368, 6
      %v3371 = vshll.u32 %v3310, 16
      %v3373 = vrot.slane %v3371, 7
      %v3374 = vor.u32 %v3370, %v3373
      %v3375 = vsel %vm3347, %v3366, %v3374
      %v3376 = vrot.slane %v3374, 4
      %v3378 = vshrl.u32 %v3311, 16
      %v3380 = vrot.slane %v3378, 6
      %v3381 = vshll.u32 %v3311, 16
      %v3383 = vrot.slane %v3381, 7
      %v3384 = vor.u32 %v3380, %v3383
      %v3385 = vsel %vm3347, %v3376, %v3384
      %v3386 = vrot.slane %v3384, 4
      %v3388 = vshrl.u32 %v3312, 16
      %v3390 = vrot.slane %v3388, 6
      %v3391 = vshll.u32 %v3312, 16
      %v3393 = vrot.slane %v3391, 7
      %v3394 = vor.u32 %v3390, %v3393
      %v3395 = vsel %vm3347, %v3386, %v3394
      %v3396 = vrot.slane %v3394, 4
      %v3398 = vshrl.u32 %v3313, 16
      %v3400 = vrot.slane %v3398, 6
      %v3401 = vshll.u32 %v3313, 16
      %v3403 = vrot.slane %v3401, 7
      %v3404 = vor.u32 %v3400, %v3403
      %v3405 = vsel %vm3347, %v3396, %v3404
      %v3406 = vrot.slane %v3404, 4
      %v3408 = vshrl.u32 %v3314, 16
      %v3410 = vrot.slane %v3408, 6
      %v3411 = vshll.u32 %v3314, 16
      %v3413 = vrot.slane %v3411, 7
      %v3414 = vor.u32 %v3410, %v3413
      %v3415 = vsel %vm3347, %v3406, %v3414
      %v3416 = vrot.slane %v3414, 4
      %v3418 = vshrl.u32 %v3315, 16
      %v3420 = vrot.slane %v3418, 6
      %v3421 = vshll.u32 %v3315, 16
      %v3423 = vrot.slane %v3421, 7
      %v3424 = vor.u32 %v3420, %v3423
      %v3425 = vsel %vm3347, %v3416, %v3424
      %v3426 = vrot.slane %v3424, 4
      %v3428 = vshrl.u32 %v3316, 16
      %v3430 = vrot.slane %v3428, 6
      %v3431 = vshll.u32 %v3316, 16
      %v3433 = vrot.slane %v3431, 7
      %v3434 = vor.u32 %v3430, %v3433
      %v3435 = vsel %vm3347, %v3426, %v3434
      %v3436 = vrot.slane %v3434, 4
      %v3438 = vshrl.u32 %v3317, 16
      %v3440 = vrot.slane %v3438, 6
      %v3441 = vshll.u32 %v3317, 16
      %v3443 = vrot.slane %v3441, 7
      %v3444 = vor.u32 %v3440, %v3443
      %v3445 = vsel %vm3347, %v3436, %v3444
      %v3446 = vrot.slane %v3444, 4
      %v3448 = vshrl.u32 %v3318, 16
      %v3450 = vrot.slane %v3448, 6
      %v3451 = vshll.u32 %v3318, 16
      %v3453 = vrot.slane %v3451, 7
      %v3454 = vor.u32 %v3450, %v3453
      %v3455 = vsel %vm3347, %v3446, %v3454
      %v3456 = vrot.slane %v3454, 4
      %v3458 = vshrl.u32 %v3319, 16
      %v3460 = vrot.slane %v3458, 6
      %v3461 = vshll.u32 %v3319, 16
      %v3463 = vrot.slane %v3461, 7
      %v3464 = vor.u32 %v3460, %v3463
      %v3465 = vsel %vm3347, %v3456, %v3464
      %v3466 = vrot.slane %v3464, 4
      %v3468 = vshrl.u32 %v3320, 16
      %v3470 = vrot.slane %v3468, 6
      %v3471 = vshll.u32 %v3320, 16
      %v3473 = vrot.slane %v3471, 7
      %v3474 = vor.u32 %v3470, %v3473
      %v3475 = vsel %vm3347, %v3466, %v3474
      %v3476 = vrot.slane %v3474, 4
      %v3478 = vshrl.u32 %v3321, 16
      %v3480 = vrot.slane %v3478, 6
      %v3481 = vshll.u32 %v3321, 16
      %v3483 = vrot.slane %v3481, 7
      %v3484 = vor.u32 %v3480, %v3483
      %v3485 = vsel %vm3347, %v3476, %v3484
      %v3486 = vrot.slane %v3484, 4
      %v3488 = vshrl.u32 %v3322, 16
      %v3490 = vrot.slane %v3488, 6
      %v3491 = vshll.u32 %v3322, 16
      %v3493 = vrot.slane %v3491, 7
      %v3494 = vor.u32 %v3490, %v3493
      %v3495 = vsel %vm3347, %v3486, %v3494
      %v3496 = vrot.slane %v3494, 4
      %v3498 = vshrl.u32 %v3323, 16
      %v3500 = vrot.slane %v3498, 6
      %v3501 = vshll.u32 %v3323, 16
      %v3503 = vrot.slane %v3501, 7
      %v3504 = vor.u32 %v3500, %v3503
      %v3505 = vsel %vm3347, %v3496, %v3504
      %v3506 = vrot.slane %v3504, 4
      %v3508 = vshrl.u32 %v3324, 16
      %v3510 = vrot.slane %v3508, 6
      %v3511 = vshll.u32 %v3324, 16
      %v3513 = vrot.slane %v3511, 7
      %v3514 = vor.u32 %v3510, %v3513
      %v3515 = vsel %vm3347, %v3506, %v3514
      %v3516 = vrot.slane %v3514, 4
      %v3518 = vshrl.u32 %v3325, 16
      %v3520 = vrot.slane %v3518, 6
      %v3521 = vshll.u32 %v3325, 16
      %v3523 = vrot.slane %v3521, 7
      %v3524 = vor.u32 %v3520, %v3523
      %v3525 = vsel %vm3347, %v3516, %v3524
      %v3526 = vrot.slane %v3524, 4
      %v3528 = vshrl.u32 %v3326, 16
      %v3530 = vrot.slane %v3528, 6
      %v3531 = vshll.u32 %v3326, 16
      %v3533 = vrot.slane %v3531, 7
      %v3534 = vor.u32 %v3530, %v3533
      %v3535 = vsel %vm3347, %v3526, %v3534
      %v3536 = vrot.slane %v3534, 4
      %v3538 = vshrl.u32 %v3327, 16
      %v3540 = vrot.slane %v3538, 6
      %v3541 = vshll.u32 %v3327, 16
      %v3543 = vrot.slane %v3541, 7
      %v3544 = vor.u32 %v3540, %v3543
      %v3545 = vsel %vm3347, %v3536, %v3544
      %v3546 = vrot.slane %v3544, 4
      %v3548 = vshrl.u32 %v3328, 16
      %v3550 = vrot.slane %v3548, 6
      %v3551 = vshll.u32 %v3328, 16
      %v3553 = vrot.slane %v3551, 7
      %v3554 = vor.u32 %v3550, %v3553
      %v3555 = vsel %vm3347, %v3546, %v3554
      %v3556 = vrot.slane %v3554, 4
      %v3558 = vshrl.u32 %v3329, 16
      %v3560 = vrot.slane %v3558, 6
      %v3561 = vshll.u32 %v3329, 16
      %v3563 = vrot.slane %v3561, 7
      %v3564 = vor.u32 %v3560, %v3563
      %v3565 = vsel %vm3347, %v3556, %v3564
      %v3566 = vrot.slane %v3564, 4
      %v3568 = vshrl.u32 %v3330, 16
      %v3570 = vrot.slane %v3568, 6
      %v3571 = vshll.u32 %v3330, 16
      %v3573 = vrot.slane %v3571, 7
      %v3574 = vor.u32 %v3570, %v3573
      %v3575 = vsel %vm3347, %v3566, %v3574
      %v3576 = vrot.slane %v3574, 4
      %v3578 = vshrl.u32 %v3331, 16
      %v3580 = vrot.slane %v3578, 6
      %v3581 = vshll.u32 %v3331, 16
      %v3583 = vrot.slane %v3581, 7
      %v3584 = vor.u32 %v3580, %v3583
      %v3585 = vsel %vm3347, %v3576, %v3584
      %v3586 = vrot.slane %v3584, 4
      %v3588 = vshrl.u32 %v3332, 16
      %v3590 = vrot.slane %v3588, 6
      %v3591 = vshll.u32 %v3332, 16
      %v3593 = vrot.slane %v3591, 7
      %v3594 = vor.u32 %v3590, %v3593
      %v3595 = vsel %vm3347, %v3586, %v3594
      %v3596 = vrot.slane %v3594, 4
      %v3598 = vshrl.u32 %v3333, 16
      %v3600 = vrot.slane %v3598, 6
      %v3601 = vshll.u32 %v3333, 16
      %v3603 = vrot.slane %v3601, 7
      %v3604 = vor.u32 %v3600, %v3603
      %v3605 = vsel %vm3347, %v3596, %v3604
      %v3606 = vrot.slane %v3604, 4
      %v3608 = vshrl.u32 %v3334, 16
      %v3610 = vrot.slane %v3608, 6
      %v3611 = vshll.u32 %v3334, 16
      %v3613 = vrot.slane %v3611, 7
      %v3614 = vor.u32 %v3610, %v3613
      %v3615 = vsel %vm3347, %v3606, %v3614
      %v3616 = vrot.slane %v3614, 4
      %v3618 = vshrl.u32 %v3335, 16
      %v3620 = vrot.slane %v3618, 6
      %v3621 = vshll.u32 %v3335, 16
      %v3623 = vrot.slane %v3621, 7
      %v3624 = vor.u32 %v3620, %v3623
      %v3625 = vsel %vm3347, %v3616, %v3624
      %v3626 = vrot.slane %v3624, 4
      %v3628 = vshrl.u32 %v3336, 16
      %v3630 = vrot.slane %v3628, 6
      %v3631 = vshll.u32 %v3336, 16
      %v3633 = vrot.slane %v3631, 7
      %v3634 = vor.u32 %v3630, %v3633
      %v3635 = vsel %vm3347, %v3626, %v3634
      %v3636 = vrot.slane %v3634, 4
      %v3638 = vshrl.u32 %v3337, 16
      %v3640 = vrot.slane %v3638, 6
      %v3641 = vshll.u32 %v3337, 16
      %v3643 = vrot.slane %v3641, 7
      %v3644 = vor.u32 %v3640, %v3643
      %v3645 = vsel %vm3347, %v3636, %v3644
      %v3646 = vrot.slane %v3644, 4
      %v3648 = vshrl.u32 %v3338, 16
      %v3650 = vrot.slane %v3648, 6
      %v3651 = vshll.u32 %v3338, 16
      %v3653 = vrot.slane %v3651, 7
      %v3654 = vor.u32 %v3650, %v3653
      %v3655 = vsel %vm3347, %v3646, %v3654
      %v3656 = vrot.slane %v3654, 4
      %v3658 = vshrl.u32 %v3339, 16
      %v3660 = vrot.slane %v3658, 6
      %v3661 = vshll.u32 %v3339, 16
      %v3663 = vrot.slane %v3661, 7
      %v3664 = vor.u32 %v3660, %v3663
      %v3665 = vsel %vm3347, %v3656, %v3664
      %v3666 = vrot.slane %v3664, 4
      %v3668 = vshrl.u32 %v3340, 16
      %v3670 = vrot.slane %v3668, 6
      %v3671 = vshll.u32 %v3340, 16
      %v3673 = vrot.slane %v3671, 7
      %v3674 = vor.u32 %v3670, %v3673
      %v3675 = vsel %vm3347, %v3666, %v3674
      %v3676 = vrot.slane %v3674, 4
      %v3678 = vshrl.u32 %v3341, 16
      %v3680 = vrot.slane %v3678, 6
      %v3681 = vshll.u32 %v3341, 16
      %v3683 = vrot.slane %v3681, 7
      %v3684 = vor.u32 %v3680, %v3683
      %v3685 = vsel %vm3347, %v3676, %v3684
      %v3686 = vrot.slane %v3684, 4
      %v3688 = vshrl.u32 %v3342, 16
      %v3690 = vrot.slane %v3688, 6
      %v3691 = vshll.u32 %v3342, 16
      %v3693 = vrot.slane %v3691, 7
      %v3694 = vor.u32 %v3690, %v3693
      %v3695 = vsel %vm3347, %v3686, %v3694
      %v3696 = vrot.slane %v3694, 4
      %v3698 = vshrl.u32 %v3343, 16
      %v3700 = vrot.slane %v3698, 6
      %v3701 = vshll.u32 %v3343, 16
      %v3703 = vrot.slane %v3701, 7
      %v3704 = vor.u32 %v3700, %v3703
      %v3705 = vsel %vm3347, %v3696, %v3704
      %v3706 = vrot.slane %v3704, 4
      %v3708 = vshrl.u32 %v3344, 16
      %v3710 = vrot.slane %v3708, 6
      %v3711 = vshll.u32 %v3344, 16
      %v3713 = vrot.slane %v3711, 7
      %v3714 = vor.u32 %v3710, %v3713
      %v3715 = vsel %vm3347, %v3706, %v3714
      %3716 = vrot.lane.b32.xlu0 %v3365, 4
      %v3717 = vpop.permute.xlu0 %3716
      %3718 = vrot.lane.b32.xlu0 %v3375, 4
      %v3719 = vpop.permute.xlu0 %3718
      %3720 = vrot.lane.b32.xlu0 %v3385, 4
      %v3721 = vpop.permute.xlu0 %3720
      %3722 = vrot.lane.b32.xlu0 %v3395, 4
      %v3723 = vpop.permute.xlu0 %3722
      %3724 = vrot.lane.b32.xlu0 %v3405, 4
      %v3725 = vpop.permute.xlu0 %3724
      %3726 = vrot.lane.b32.xlu0 %v3415, 4
      %v3727 = vpop.permute.xlu0 %3726
      %3728 = vrot.lane.b32.xlu0 %v3425, 4
      %v3729 = vpop.permute.xlu0 %3728
      %3730 = vrot.lane.b32.xlu0 %v3435, 4
      %v3731 = vpop.permute.xlu0 %3730
      %3732 = vrot.lane.b32.xlu0 %v3445, 4
      %v3733 = vpop.permute.xlu0 %3732
      %3734 = vrot.lane.b32.xlu0 %v3455, 4
      %v3735 = vpop.permute.xlu0 %3734
      %3736 = vrot.lane.b32.xlu0 %v3465, 4
      %v3737 = vpop.permute.xlu0 %3736
      %3738 = vrot.lane.b32.xlu0 %v3475, 4
      %v3739 = vpop.permute.xlu0 %3738
      %3740 = vrot.lane.b32.xlu0 %v3485, 4
      %v3741 = vpop.permute.xlu0 %3740
      %3742 = vrot.lane.b32.xlu0 %v3495, 4
      %v3743 = vpop.permute.xlu0 %3742
      %3744 = vrot.lane.b32.xlu0 %v3505, 4
      %v3745 = vpop.permute.xlu0 %3744
      %3746 = vrot.lane.b32.xlu0 %v3515, 4
      %v3747 = vpop.permute.xlu0 %3746
      %3748 = vrot.lane.b32.xlu0 %v3525, 4
      %v3749 = vpop.permute.xlu0 %3748
      %3750 = vrot.lane.b32.xlu0 %v3535, 4
      %v3751 = vpop.permute.xlu0 %3750
      %3752 = vrot.lane.b32.xlu0 %v3545, 4
      %v3753 = vpop.permute.xlu0 %3752
      %3754 = vrot.lane.b32.xlu0 %v3555, 4
      %v3755 = vpop.permute.xlu0 %3754
      %3756 = vrot.lane.b32.xlu0 %v3565, 4
      %v3757 = vpop.permute.xlu0 %3756
      %3758 = vrot.lane.b32.xlu0 %v3575, 4
      %v3759 = vpop.permute.xlu0 %3758
      %3760 = vrot.lane.b32.xlu0 %v3585, 4
      %v3761 = vpop.permute.xlu0 %3760
      %3762 = vrot.lane.b32.xlu0 %v3595, 4
      %v3763 = vpop.permute.xlu0 %3762
      %3764 = vrot.lane.b32.xlu0 %v3605, 4
      %v3765 = vpop.permute.xlu0 %3764
      %3766 = vrot.lane.b32.xlu0 %v3615, 4
      %v3767 = vpop.permute.xlu0 %3766
      %3768 = vrot.lane.b32.xlu0 %v3625, 4
      %v3769 = vpop.permute.xlu0 %3768
      %3770 = vrot.lane.b32.xlu0 %v3635, 4
      %v3771 = vpop.permute.xlu0 %3770
      %3772 = vrot.lane.b32.xlu0 %v3645, 4
      %v3773 = vpop.permute.xlu0 %3772
      %3774 = vrot.lane.b32.xlu0 %v3655, 4
      %v3775 = vpop.permute.xlu0 %3774
      %3776 = vrot.lane.b32.xlu0 %v3665, 4
      %v3777 = vpop.permute.xlu0 %3776
      %3778 = vrot.lane.b32.xlu0 %v3675, 4
      %v3779 = vpop.permute.xlu0 %3778
      %3780 = vrot.lane.b32.xlu0 %v3685, 4
      %v3781 = vpop.permute.xlu0 %3780
      %3782 = vrot.lane.b32.xlu0 %v3695, 4
      %v3783 = vpop.permute.xlu0 %3782
      %3784 = vrot.lane.b32.xlu0 %v3705, 4
      %v3785 = vpop.permute.xlu0 %3784
      %3786 = vrot.lane.b32.xlu0 %v3715, 4
      %v3787 = vpop.permute.xlu0 %3786
      %3824 = vst.msk [vmem:[#allocation3] sm:$0xf] %vm811, %v3717
      %3825 = vst.msk [vmem:[#allocation3 + $0x4] sm:$0xf] %vm811, %v3719
      %3826 = vst.msk [vmem:[#allocation3 + $0x8] sm:$0xf] %vm811, %v3721
      %3827 = vst.msk [vmem:[#allocation3 + $0xc] sm:$0xf] %vm811, %v3723
      %3828 = vst.msk [vmem:[#allocation3 + $0x10] sm:$0xf] %vm811, %v3725
      %3829 = vst.msk [vmem:[#allocation3 + $0x14] sm:$0xf] %vm811, %v3727
      %3830 = vst.msk [vmem:[#allocation3 + $0x18] sm:$0xf] %vm811, %v3729
      %3831 = vst.msk [vmem:[#allocation3 + $0x1c] sm:$0xf] %vm811, %v3731
      %3832 = vst.msk [vmem:[#allocation3 + $0x20] sm:$0xf] %vm811, %v3733
      %3833 = vst.msk [vmem:[#allocation3 + $0x24] sm:$0xf] %vm811, %v3735
      %3834 = vst.msk [vmem:[#allocation3 + $0x28] sm:$0xf] %vm811, %v3737
      %3835 = vst.msk [vmem:[#allocation3 + $0x2c] sm:$0xf] %vm811, %v3739
      %3836 = vst.msk [vmem:[#allocation3 + $0x30] sm:$0xf] %vm811, %v3741
      %3837 = vst.msk [vmem:[#allocation3 + $0x34] sm:$0xf] %vm811, %v3743
      %3838 = vst.msk [vmem:[#allocation3 + $0x38] sm:$0xf] %vm811, %v3745
      %3839 = vst.msk [vmem:[#allocation3 + $0x3c] sm:$0xf] %vm811, %v3747
      %3840 = vst.msk [vmem:[#allocation3 + $0x40] sm:$0xf] %vm811, %v3749
      %3841 = vst.msk [vmem:[#allocation3 + $0x44] sm:$0xf] %vm811, %v3751
      %3842 = vst.msk [vmem:[#allocation3 + $0x48] sm:$0xf] %vm811, %v3753
      %3843 = vst.msk [vmem:[#allocation3 + $0x4c] sm:$0xf] %vm811, %v3755
      %3844 = vst.msk [vmem:[#allocation3 + $0x50] sm:$0xf] %vm811, %v3757
      %3845 = vst.msk [vmem:[#allocation3 + $0x54] sm:$0xf] %vm811, %v3759
      %3846 = vst.msk [vmem:[#allocation3 + $0x58] sm:$0xf] %vm811, %v3761
      %3847 = vst.msk [vmem:[#allocation3 + $0x5c] sm:$0xf] %vm811, %v3763
      %3848 = vst.msk [vmem:[#allocation3 + $0x60] sm:$0xf] %vm811, %v3765
      %3849 = vst.msk [vmem:[#allocation3 + $0x64] sm:$0xf] %vm811, %v3767
      %3850 = vst.msk [vmem:[#allocation3 + $0x68] sm:$0xf] %vm811, %v3769
      %3851 = vst.msk [vmem:[#allocation3 + $0x6c] sm:$0xf] %vm811, %v3771
      %3852 = vst.msk [vmem:[#allocation3 + $0x70] sm:$0xf] %vm811, %v3773
      %3853 = vst.msk [vmem:[#allocation3 + $0x74] sm:$0xf] %vm811, %v3775
      %3854 = vst.msk [vmem:[#allocation3 + $0x78] sm:$0xf] %vm811, %v3777
      %3855 = vst.msk [vmem:[#allocation3 + $0x7c] sm:$0xf] %vm811, %v3779
      %3856 = vst.msk [vmem:[#allocation3 + $0x80] sm:$0xf] %vm811, %v3781
      %3857 = vst.msk [vmem:[#allocation3 + $0x84] sm:$0xf] %vm811, %v3783
      %3858 = vst.msk [vmem:[#allocation3 + $0x88] sm:$0xf] %vm811, %v3785
      %3859 = vst.msk [vmem:[#allocation3 + $0x8c] sm:$0xf] %vm811, %v3787
      %v3860 = vld [vmem:[%s219 + $0x10] sm:$0x8]
      %v3861 = vld [vmem:[%s219 + $0x14] sm:$0xf]
      %v3862 = vld [vmem:[%s219 + $0x18] sm:$0xf]
      %v3863 = vld [vmem:[%s219 + $0x1c] sm:$0xf]
      %v3864 = vld [vmem:[%s219 + $0x20] sm:$0xf]
      %v3865 = vld [vmem:[%s219 + $0x24] sm:$0xf]
      %v3866 = vld [vmem:[%s219 + $0x28] sm:$0xf]
      %v3867 = vld [vmem:[%s219 + $0x2c] sm:$0xf]
      %v3868 = vld [vmem:[%s219 + $0x30] sm:$0xf]
      %v3869 = vld [vmem:[%s219 + $0x34] sm:$0xf]
      %v3870 = vld [vmem:[%s219 + $0x38] sm:$0xf]
      %v3871 = vld [vmem:[%s219 + $0x3c] sm:$0xf]
      %v3872 = vld [vmem:[%s219 + $0x40] sm:$0xf]
      %v3873 = vld [vmem:[%s219 + $0x44] sm:$0xf]
      %v3874 = vld [vmem:[%s219 + $0x48] sm:$0xf]
      %v3875 = vld [vmem:[%s219 + $0x4c] sm:$0xf]
      %v3876 = vld [vmem:[%s219 + $0x50] sm:$0xf]
      %v3877 = vld [vmem:[%s219 + $0x54] sm:$0xf]
      %v3878 = vld [vmem:[%s219 + $0x58] sm:$0xf]
      %v3879 = vld [vmem:[%s219 + $0x5c] sm:$0xf]
      %v3880 = vld [vmem:[%s219 + $0x60] sm:$0xf]
      %v3881 = vld [vmem:[%s219 + $0x64] sm:$0xf]
      %v3882 = vld [vmem:[%s219 + $0x68] sm:$0xf]
      %v3883 = vld [vmem:[%s219 + $0x6c] sm:$0xf]
      %v3884 = vld [vmem:[%s219 + $0x70] sm:$0xf]
      %v3885 = vld [vmem:[%s219 + $0x74] sm:$0xf]
      %v3886 = vld [vmem:[%s219 + $0x78] sm:$0xf]
      %v3887 = vld [vmem:[%s219 + $0x7c] sm:$0xf]
      %v3888 = vld [vmem:[%s219 + $0x80] sm:$0xf]
      %v3889 = vld [vmem:[%s219 + $0x84] sm:$0xf]
      %v3890 = vld [vmem:[%s219 + $0x88] sm:$0xf]
      %v3891 = vld [vmem:[%s219 + $0x8c] sm:$0xf]
      %v3892 = vld [vmem:[%s219 + $0x90] sm:$0xf]
      %v3893 = vld [vmem:[%s219 + $0x94] sm:$0xf]
      %v3894 = vld [vmem:[%s219 + $0x98] sm:$0xf]
      %v3895 = vld [vmem:[%s219 + $0x9c] sm:$0xf]
      %v3896 = vld [vmem:[%s219 + $0xa0] sm:$0x7]
      %vm3934 = vcmask 1040384
      %vm3935 = vcmask 1044484
      %vm3936 = vmor %vm3934, %vm3935
      %v3937 = vrot.slane %v3860, 7
      %v3938 = vrot.slane %v3937, 4
      %v3939 = vrot.slane %v3861, 7
      %v3940 = vsel %vm3936, %v3938, %v3939
      %v3941 = vrot.slane %v3939, 4
      %v3942 = vrot.slane %v3862, 7
      %v3943 = vsel %vm3936, %v3941, %v3942
      %v3944 = vrot.slane %v3942, 4
      %v3945 = vrot.slane %v3863, 7
      %v3946 = vsel %vm3936, %v3944, %v3945
      %v3947 = vrot.slane %v3945, 4
      %v3948 = vrot.slane %v3864, 7
      %v3949 = vsel %vm3936, %v3947, %v3948
      %v3950 = vrot.slane %v3948, 4
      %v3951 = vrot.slane %v3865, 7
      %v3952 = vsel %vm3936, %v3950, %v3951
      %v3953 = vrot.slane %v3951, 4
      %v3954 = vrot.slane %v3866, 7
      %v3955 = vsel %vm3936, %v3953, %v3954
      %v3956 = vrot.slane %v3954, 4
      %v3957 = vrot.slane %v3867, 7
      %v3958 = vsel %vm3936, %v3956, %v3957
      %v3959 = vrot.slane %v3957, 4
      %v3960 = vrot.slane %v3868, 7
      %v3961 = vsel %vm3936, %v3959, %v3960
      %v3962 = vrot.slane %v3960, 4
      %v3963 = vrot.slane %v3869, 7
      %v3964 = vsel %vm3936, %v3962, %v3963
      %v3965 = vrot.slane %v3963, 4
      %v3966 = vrot.slane %v3870, 7
      %v3967 = vsel %vm3936, %v3965, %v3966
      %v3968 = vrot.slane %v3966, 4
      %v3969 = vrot.slane %v3871, 7
      %v3970 = vsel %vm3936, %v3968, %v3969
      %v3971 = vrot.slane %v3969, 4
      %v3972 = vrot.slane %v3872, 7
      %v3973 = vsel %vm3936, %v3971, %v3972
      %v3974 = vrot.slane %v3972, 4
      %v3975 = vrot.slane %v3873, 7
      %v3976 = vsel %vm3936, %v3974, %v3975
      %v3977 = vrot.slane %v3975, 4
      %v3978 = vrot.slane %v3874, 7
      %v3979 = vsel %vm3936, %v3977, %v3978
      %v3980 = vrot.slane %v3978, 4
      %v3981 = vrot.slane %v3875, 7
      %v3982 = vsel %vm3936, %v3980, %v3981
      %v3983 = vrot.slane %v3981, 4
      %v3984 = vrot.slane %v3876, 7
      %v3985 = vsel %vm3936, %v3983, %v3984
      %v3986 = vrot.slane %v3984, 4
      %v3987 = vrot.slane %v3877, 7
      %v3988 = vsel %vm3936, %v3986, %v3987
      %v3989 = vrot.slane %v3987, 4
      %v3990 = vrot.slane %v3878, 7
      %v3991 = vsel %vm3936, %v3989, %v3990
      %v3992 = vrot.slane %v3990, 4
      %v3993 = vrot.slane %v3879, 7
      %v3994 = vsel %vm3936, %v3992, %v3993
      %v3995 = vrot.slane %v3993, 4
      %v3996 = vrot.slane %v3880, 7
      %v3997 = vsel %vm3936, %v3995, %v3996
      %v3998 = vrot.slane %v3996, 4
      %v3999 = vrot.slane %v3881, 7
      %v4000 = vsel %vm3936, %v3998, %v3999
      %v4001 = vrot.slane %v3999, 4
      %v4002 = vrot.slane %v3882, 7
      %v4003 = vsel %vm3936, %v4001, %v4002
      %v4004 = vrot.slane %v4002, 4
      %v4005 = vrot.slane %v3883, 7
      %v4006 = vsel %vm3936, %v4004, %v4005
      %v4007 = vrot.slane %v4005, 4
      %v4008 = vrot.slane %v3884, 7
      %v4009 = vsel %vm3936, %v4007, %v4008
      %v4010 = vrot.slane %v4008, 4
      %v4011 = vrot.slane %v3885, 7
      %v4012 = vsel %vm3936, %v4010, %v4011
      %v4013 = vrot.slane %v4011, 4
      %v4014 = vrot.slane %v3886, 7
      %v4015 = vsel %vm3936, %v4013, %v4014
      %v4016 = vrot.slane %v4014, 4
      %v4017 = vrot.slane %v3887, 7
      %v4018 = vsel %vm3936, %v4016, %v4017
      %v4019 = vrot.slane %v4017, 4
      %v4020 = vrot.slane %v3888, 7
      %v4021 = vsel %vm3936, %v4019, %v4020
      %v4022 = vrot.slane %v4020, 4
      %v4023 = vrot.slane %v3889, 7
      %v4024 = vsel %vm3936, %v4022, %v4023
      %v4025 = vrot.slane %v4023, 4
      %v4026 = vrot.slane %v3890, 7
      %v4027 = vsel %vm3936, %v4025, %v4026
      %v4028 = vrot.slane %v4026, 4
      %v4029 = vrot.slane %v3891, 7
      %v4030 = vsel %vm3936, %v4028, %v4029
      %v4031 = vrot.slane %v4029, 4
      %v4032 = vrot.slane %v3892, 7
      %v4033 = vsel %vm3936, %v4031, %v4032
      %v4034 = vrot.slane %v4032, 4
      %v4035 = vrot.slane %v3893, 7
      %v4036 = vsel %vm3936, %v4034, %v4035
      %v4037 = vrot.slane %v4035, 4
      %v4038 = vrot.slane %v3894, 7
      %v4039 = vsel %vm3936, %v4037, %v4038
      %v4040 = vrot.slane %v4038, 4
      %v4041 = vrot.slane %v3895, 7
      %v4042 = vsel %vm3936, %v4040, %v4041
      %v4043 = vrot.slane %v4041, 4
      %v4044 = vrot.slane %v3896, 7
      %v4045 = vsel %vm3936, %v4043, %v4044
      %4046 = vrot.lane.b32.xlu0 %v3940, 8
      %v4047 = vpop.permute.xlu0 %4046
      %4048 = vrot.lane.b32.xlu0 %v3943, 8
      %v4049 = vpop.permute.xlu0 %4048
      %4050 = vrot.lane.b32.xlu0 %v3946, 8
      %v4051 = vpop.permute.xlu0 %4050
      %4052 = vrot.lane.b32.xlu0 %v3949, 8
      %v4053 = vpop.permute.xlu0 %4052
      %4054 = vrot.lane.b32.xlu0 %v3952, 8
      %v4055 = vpop.permute.xlu0 %4054
      %4056 = vrot.lane.b32.xlu0 %v3955, 8
      %v4057 = vpop.permute.xlu0 %4056
      %4058 = vrot.lane.b32.xlu0 %v3958, 8
      %v4059 = vpop.permute.xlu0 %4058
      %4060 = vrot.lane.b32.xlu0 %v3961, 8
      %v4061 = vpop.permute.xlu0 %4060
      %4062 = vrot.lane.b32.xlu0 %v3964, 8
      %v4063 = vpop.permute.xlu0 %4062
      %4064 = vrot.lane.b32.xlu0 %v3967, 8
      %v4065 = vpop.permute.xlu0 %4064
      %4066 = vrot.lane.b32.xlu0 %v3970, 8
      %v4067 = vpop.permute.xlu0 %4066
      %4068 = vrot.lane.b32.xlu0 %v3973, 8
      %v4069 = vpop.permute.xlu0 %4068
      %4070 = vrot.lane.b32.xlu0 %v3976, 8
      %v4071 = vpop.permute.xlu0 %4070
      %4072 = vrot.lane.b32.xlu0 %v3979, 8
      %v4073 = vpop.permute.xlu0 %4072
      %4074 = vrot.lane.b32.xlu0 %v3982, 8
      %v4075 = vpop.permute.xlu0 %4074
      %4076 = vrot.lane.b32.xlu0 %v3985, 8
      %v4077 = vpop.permute.xlu0 %4076
      %4078 = vrot.lane.b32.xlu0 %v3988, 8
      %v4079 = vpop.permute.xlu0 %4078
      %4080 = vrot.lane.b32.xlu0 %v3991, 8
      %v4081 = vpop.permute.xlu0 %4080
      %4082 = vrot.lane.b32.xlu0 %v3994, 8
      %v4083 = vpop.permute.xlu0 %4082
      %4084 = vrot.lane.b32.xlu0 %v3997, 8
      %v4085 = vpop.permute.xlu0 %4084
      %4086 = vrot.lane.b32.xlu0 %v4000, 8
      %v4087 = vpop.permute.xlu0 %4086
      %4088 = vrot.lane.b32.xlu0 %v4003, 8
      %v4089 = vpop.permute.xlu0 %4088
      %4090 = vrot.lane.b32.xlu0 %v4006, 8
      %v4091 = vpop.permute.xlu0 %4090
      %4092 = vrot.lane.b32.xlu0 %v4009, 8
      %v4093 = vpop.permute.xlu0 %4092
      %4094 = vrot.lane.b32.xlu0 %v4012, 8
      %v4095 = vpop.permute.xlu0 %4094
      %4096 = vrot.lane.b32.xlu0 %v4015, 8
      %v4097 = vpop.permute.xlu0 %4096
      %4098 = vrot.lane.b32.xlu0 %v4018, 8
      %v4099 = vpop.permute.xlu0 %4098
      %4100 = vrot.lane.b32.xlu0 %v4021, 8
      %v4101 = vpop.permute.xlu0 %4100
      %4102 = vrot.lane.b32.xlu0 %v4024, 8
      %v4103 = vpop.permute.xlu0 %4102
      %4104 = vrot.lane.b32.xlu0 %v4027, 8
      %v4105 = vpop.permute.xlu0 %4104
      %4106 = vrot.lane.b32.xlu0 %v4030, 8
      %v4107 = vpop.permute.xlu0 %4106
      %4108 = vrot.lane.b32.xlu0 %v4033, 8
      %v4109 = vpop.permute.xlu0 %4108
      %4110 = vrot.lane.b32.xlu0 %v4036, 8
      %v4111 = vpop.permute.xlu0 %4110
      %4112 = vrot.lane.b32.xlu0 %v4039, 8
      %v4113 = vpop.permute.xlu0 %4112
      %4114 = vrot.lane.b32.xlu0 %v4042, 8
      %v4115 = vpop.permute.xlu0 %4114
      %4116 = vrot.lane.b32.xlu0 %v4045, 8
      %v4117 = vpop.permute.xlu0 %4116
      %4154 = vst.msk [vmem:[#allocation3] sm:$0xf] %vm1142, %v4047
      %4155 = vst.msk [vmem:[#allocation3 + $0x4] sm:$0xf] %vm1142, %v4049
      %4156 = vst.msk [vmem:[#allocation3 + $0x8] sm:$0xf] %vm1142, %v4051
      %4157 = vst.msk [vmem:[#allocation3 + $0xc] sm:$0xf] %vm1142, %v4053
      %4158 = vst.msk [vmem:[#allocation3 + $0x10] sm:$0xf] %vm1142, %v4055
      %4159 = vst.msk [vmem:[#allocation3 + $0x14] sm:$0xf] %vm1142, %v4057
      %4160 = vst.msk [vmem:[#allocation3 + $0x18] sm:$0xf] %vm1142, %v4059
      %4161 = vst.msk [vmem:[#allocation3 + $0x1c] sm:$0xf] %vm1142, %v4061
      %4162 = vst.msk [vmem:[#allocation3 + $0x20] sm:$0xf] %vm1142, %v4063
      %4163 = vst.msk [vmem:[#allocation3 + $0x24] sm:$0xf] %vm1142, %v4065
      %4164 = vst.msk [vmem:[#allocation3 + $0x28] sm:$0xf] %vm1142, %v4067
      %4165 = vst.msk [vmem:[#allocation3 + $0x2c] sm:$0xf] %vm1142, %v4069
      %4166 = vst.msk [vmem:[#allocation3 + $0x30] sm:$0xf] %vm1142, %v4071
      %4167 = vst.msk [vmem:[#allocation3 + $0x34] sm:$0xf] %vm1142, %v4073
      %4168 = vst.msk [vmem:[#allocation3 + $0x38] sm:$0xf] %vm1142, %v4075
      %4169 = vst.msk [vmem:[#allocation3 + $0x3c] sm:$0xf] %vm1142, %v4077
      %4170 = vst.msk [vmem:[#allocation3 + $0x40] sm:$0xf] %vm1142, %v4079
      %4171 = vst.msk [vmem:[#allocation3 + $0x44] sm:$0xf] %vm1142, %v4081
      %4172 = vst.msk [vmem:[#allocation3 + $0x48] sm:$0xf] %vm1142, %v4083
      %4173 = vst.msk [vmem:[#allocation3 + $0x4c] sm:$0xf] %vm1142, %v4085
      %4174 = vst.msk [vmem:[#allocation3 + $0x50] sm:$0xf] %vm1142, %v4087
      %4175 = vst.msk [vmem:[#allocation3 + $0x54] sm:$0xf] %vm1142, %v4089
      %4176 = vst.msk [vmem:[#allocation3 + $0x58] sm:$0xf] %vm1142, %v4091
      %4177 = vst.msk [vmem:[#allocation3 + $0x5c] sm:$0xf] %vm1142, %v4093
      %4178 = vst.msk [vmem:[#allocation3 + $0x60] sm:$0xf] %vm1142, %v4095
      %4179 = vst.msk [vmem:[#allocation3 + $0x64] sm:$0xf] %vm1142, %v4097
      %4180 = vst.msk [vmem:[#allocation3 + $0x68] sm:$0xf] %vm1142, %v4099
      %4181 = vst.msk [vmem:[#allocation3 + $0x6c] sm:$0xf] %vm1142, %v4101
      %4182 = vst.msk [vmem:[#allocation3 + $0x70] sm:$0xf] %vm1142, %v4103
      %4183 = vst.msk [vmem:[#allocation3 + $0x74] sm:$0xf] %vm1142, %v4105
      %4184 = vst.msk [vmem:[#allocation3 + $0x78] sm:$0xf] %vm1142, %v4107
      %4185 = vst.msk [vmem:[#allocation3 + $0x7c] sm:$0xf] %vm1142, %v4109
      %4186 = vst.msk [vmem:[#allocation3 + $0x80] sm:$0xf] %vm1142, %v4111
      %4187 = vst.msk [vmem:[#allocation3 + $0x84] sm:$0xf] %vm1142, %v4113
      %4188 = vst.msk [vmem:[#allocation3 + $0x88] sm:$0xf] %vm1142, %v4115
      %4189 = vst.msk [vmem:[#allocation3 + $0x8c] sm:$0xf] %vm1142, %v4117
      %v4190 = vld [vmem:[#allocation3] sm:$0xf]
      %v4191 = vld [vmem:[#allocation3 + $0x4] sm:$0xf]
      %v4192 = vld [vmem:[#allocation3 + $0x8] sm:$0xf]
      %v4193 = vld [vmem:[#allocation3 + $0xc] sm:$0xf]
      %v4194 = vld [vmem:[#allocation3 + $0x10] sm:$0xf]
      %v4195 = vld [vmem:[#allocation3 + $0x14] sm:$0xf]
      %v4196 = vld [vmem:[#allocation3 + $0x18] sm:$0xf]
      %v4197 = vld [vmem:[#allocation3 + $0x1c] sm:$0xf]
      %v4198 = vld [vmem:[#allocation3 + $0x20] sm:$0xf]
      %v4199 = vld [vmem:[#allocation3 + $0x24] sm:$0xf]
      %v4200 = vld [vmem:[#allocation3 + $0x28] sm:$0xf]
      %v4201 = vld [vmem:[#allocation3 + $0x2c] sm:$0xf]
      %v4202 = vld [vmem:[#allocation3 + $0x30] sm:$0xf]
      %v4203 = vld [vmem:[#allocation3 + $0x34] sm:$0xf]
      %v4204 = vld [vmem:[#allocation3 + $0x38] sm:$0xf]
      %v4205 = vld [vmem:[#allocation3 + $0x3c] sm:$0xf]
      %v4206 = vld [vmem:[#allocation3 + $0x40] sm:$0xf]
      %v4207 = vld [vmem:[#allocation3 + $0x44] sm:$0xf]
      %v4208 = vld [vmem:[#allocation3 + $0x48] sm:$0xf]
      %v4209 = vld [vmem:[#allocation3 + $0x4c] sm:$0xf]
      %v4210 = vld [vmem:[#allocation3 + $0x50] sm:$0xf]
      %v4211 = vld [vmem:[#allocation3 + $0x54] sm:$0xf]
      %v4212 = vld [vmem:[#allocation3 + $0x58] sm:$0xf]
      %v4213 = vld [vmem:[#allocation3 + $0x5c] sm:$0xf]
      %v4214 = vld [vmem:[#allocation3 + $0x60] sm:$0xf]
      %v4215 = vld [vmem:[#allocation3 + $0x64] sm:$0xf]
      %v4216 = vld [vmem:[#allocation3 + $0x68] sm:$0xf]
      %v4217 = vld [vmem:[#allocation3 + $0x6c] sm:$0xf]
      %v4218 = vld [vmem:[#allocation3 + $0x70] sm:$0xf]
      %v4219 = vld [vmem:[#allocation3 + $0x74] sm:$0xf]
      %v4220 = vld [vmem:[#allocation3 + $0x78] sm:$0xf]
      %v4221 = vld [vmem:[#allocation3 + $0x7c] sm:$0xf]
      %v4222 = vld [vmem:[#allocation3 + $0x80] sm:$0xf]
      %v4223 = vld [vmem:[#allocation3 + $0x84] sm:$0xf]
      %v4224 = vld [vmem:[#allocation3 + $0x88] sm:$0xf]
      %v4225 = vld [vmem:[#allocation3 + $0x8c] sm:$0xf]
      %s4226 = scalar_lea.vmem %s1, 16
      %v4227 = vld [vmem:[%s4226] sm:$0xf]
      %v4228 = vld [vmem:[%s4226 + $0x4] sm:$0x3]
      %v4265 = vunpack.c.l.b16 %v4190
      %v4266 = vunpack.c.l.b16 %v4191
      %v4267 = vunpack.c.l.b16 %v4192
      %v4268 = vunpack.c.l.b16 %v4193
      %v4269 = vunpack.c.l.b16 %v4194
      %v4270 = vunpack.c.l.b16 %v4195
      %v4271 = vunpack.c.l.b16 %v4196
      %v4272 = vunpack.c.l.b16 %v4197
      %v4273 = vunpack.c.l.b16 %v4198
      %v4274 = vunpack.c.l.b16 %v4199
      %v4275 = vunpack.c.l.b16 %v4200
      %v4276 = vunpack.c.l.b16 %v4201
      %v4277 = vunpack.c.l.b16 %v4202
      %v4278 = vunpack.c.l.b16 %v4203
      %v4279 = vunpack.c.l.b16 %v4204
      %v4280 = vunpack.c.l.b16 %v4205
      %v4281 = vunpack.c.l.b16 %v4206
      %v4282 = vunpack.c.l.b16 %v4207
      %v4283 = vunpack.c.l.b16 %v4208
      %v4284 = vunpack.c.l.b16 %v4209
      %v4285 = vunpack.c.l.b16 %v4210
      %v4286 = vunpack.c.l.b16 %v4211
      %v4287 = vunpack.c.l.b16 %v4212
      %v4288 = vunpack.c.l.b16 %v4213
      %v4289 = vunpack.c.l.b16 %v4214
      %v4290 = vunpack.c.l.b16 %v4215
      %v4291 = vunpack.c.l.b16 %v4216
      %v4292 = vunpack.c.l.b16 %v4217
      %v4293 = vunpack.c.l.b16 %v4218
      %v4294 = vunpack.c.l.b16 %v4219
      %v4295 = vunpack.c.l.b16 %v4220
      %v4296 = vunpack.c.l.b16 %v4221
      %v4297 = vunpack.c.l.b16 %v4222
      %v4298 = vunpack.c.l.b16 %v4223
      %v4299 = vunpack.c.l.b16 %v4224
      %v4300 = vunpack.c.l.b16 %v4225
      %v4301 = vpack.c.b16 %v4266, %v4265
      %v4302 = vpack.c.b16 %v4268, %v4267
      %v4303 = vpack.c.b16 %v4270, %v4269
      %v4304 = vpack.c.b16 %v4272, %v4271
      %v4305 = vpack.c.b16 %v4274, %v4273
      %v4306 = vpack.c.b16 %v4276, %v4275
      %v4307 = vpack.c.b16 %v4278, %v4277
      %v4308 = vpack.c.b16 %v4280, %v4279
      %v4309 = vpack.c.b16 %v4282, %v4281
      %v4310 = vpack.c.b16 %v4284, %v4283
      %v4311 = vpack.c.b16 %v4286, %v4285
      %v4312 = vpack.c.b16 %v4288, %v4287
      %v4313 = vpack.c.b16 %v4290, %v4289
      %v4314 = vpack.c.b16 %v4292, %v4291
      %v4315 = vpack.c.b16 %v4294, %v4293
      %v4316 = vpack.c.b16 %v4296, %v4295
      %v4317 = vpack.c.b16 %v4298, %v4297
      %v4318 = vpack.c.b16 %v4300, %v4299
      %v4321 = vunpack.c.l.b16 %v4227
      %v4322 = vunpack.c.l.b16 %v4228
      %v4323 = vpack.c.b16 %v4322, %v4321
      %v4325 = vsel %vm2488, %v4301, 0
      %v4328 = vsel %vm2488, %v4302, 0
      %v4331 = vsel %vm2488, %v4303, 0
      %v4334 = vsel %vm2488, %v4304, 0
      %v4337 = vsel %vm2488, %v4305, 0
      %v4340 = vsel %vm2488, %v4306, 0
      %v4343 = vsel %vm2488, %v4307, 0
      %v4346 = vsel %vm2488, %v4308, 0
      %v4349 = vsel %vm2488, %v4309, 0
      %v4352 = vsel %vm2488, %v4310, 0
      %v4355 = vsel %vm2488, %v4311, 0
      %v4358 = vsel %vm2488, %v4312, 0
      %v4361 = vsel %vm2488, %v4313, 0
      %v4364 = vsel %vm2488, %v4314, 0
      %v4367 = vsel %vm2488, %v4315, 0
      %v4370 = vsel %vm2488, %v4316, 0
      %v4373 = vsel %vm2488, %v4317, 0
      %v4376 = vsel %vm2488, %v4318, 0
      %v4379 = vsel %vm2543, %v4323, 0
      %4381 = vmatprep.subr.bf16.mxu0 0
      %4382 = vmatpush1.bf16.msra.mxu0 0
      %4383 = vmatprep.subr.bf16.mxu0 0
      %4384 = vmatpush1.bf16.msra.mxu0 0
      %4385 = vmatprep.subr.bf16.mxu0 0
      %4386 = vmatpush1.bf16.msra.mxu0 0
      %4387 = vmatprep.subr.bf16.mxu0 0
      %4388 = vmatpush1.bf16.msra.mxu0 0
      %4389 = vmatprep.subr.bf16.mxu0 0
      %4390 = vmatpush1.bf16.msra.mxu0 0
      %4391 = vmatprep.subr.bf16.mxu0 0
      %4392 = vmatpush1.bf16.msra.mxu0 0
      %4393 = vmatprep.subr.bf16.mxu0 0
      %4394 = vmatpush1.bf16.msra.mxu0 0
      %4395 = vmatprep.subr.bf16.mxu0 0
      %4396 = vmatpush1.bf16.msra.mxu0 %v4379
      %4397 = vmatprep.subr.bf16.mxu0 0
      %4398 = vmatpush2.bf16.msra.mxu0 0
      %4399 = vmatprep.subr.bf16.mxu0 0
      %4400 = vmatpush2.bf16.msra.mxu0 0
      %4401 = vmatprep.subr.bf16.mxu0 0
      %4402 = vmatpush2.bf16.msra.mxu0 0
      %4403 = vmatprep.subr.bf16.mxu0 0
      %4404 = vmatpush2.bf16.msra.mxu0 0
      %4405 = vmatprep.subr.bf16.mxu0 0
      %4406 = vmatpush2.bf16.msra.mxu0 0
      %4407 = vmatprep.subr.bf16.mxu0 0
      %4408 = vmatpush2.bf16.msra.mxu0 0
      %4409 = vmatprep.subr.bf16.mxu0 0
      %4410 = vmatpush2.bf16.msra.mxu0 0
      %4411 = vmatprep.subr.bf16.mxu0 0
      %4412 = vmatpush2.bf16.msra.mxu0 0
      %4413 = vmatprep.mubr.bf16.mxu0 0
      %4414 = vmatmul.mubr.bf16.gmra.mxu0 %v4325
      %v4415 = vpop.f32.mrf.mxu0
      %v4416 = vadd.f32 0.0, %v4415
      %v4417 = vpop.f32.mrf.mxu0
      %v4418 = vpop.f32.mrf.mxu0
      %v4419 = vadd.f32 0.0, %v4418
      %v4420 = vpop.f32.mrf.mxu0
      %4421 = vmatprep.mubr.bf16.mxu0 0
      %4422 = vmatmul.mubr.bf16.gmra.mxu0 %v4328
      %v4423 = vpop.f32.mrf.mxu0
      %v4424 = vadd.f32 0.0, %v4423
      %v4425 = vpop.f32.mrf.mxu0
      %v4426 = vpop.f32.mrf.mxu0
      %v4427 = vadd.f32 0.0, %v4426
      %v4428 = vpop.f32.mrf.mxu0
      %4429 = vmatprep.mubr.bf16.mxu0 0
      %4430 = vmatmul.mubr.bf16.gmra.mxu0 %v4331
      %v4431 = vpop.f32.mrf.mxu0
      %v4432 = vadd.f32 0.0, %v4431
      %v4433 = vpop.f32.mrf.mxu0
      %v4434 = vpop.f32.mrf.mxu0
      %v4435 = vadd.f32 0.0, %v4434
      %v4436 = vpop.f32.mrf.mxu0
      %4437 = vmatprep.mubr.bf16.mxu0 0
      %4438 = vmatmul.mubr.bf16.gmra.mxu0 %v4334
      %v4439 = vpop.f32.mrf.mxu0
      %v4440 = vadd.f32 0.0, %v4439
      %v4441 = vpop.f32.mrf.mxu0
      %v4442 = vpop.f32.mrf.mxu0
      %v4443 = vadd.f32 0.0, %v4442
      %v4444 = vpop.f32.mrf.mxu0
      %4445 = vmatprep.mubr.bf16.mxu0 0
      %4446 = vmatmul.mubr.bf16.gmra.mxu0 %v4337
      %v4447 = vpop.f32.mrf.mxu0
      %v4448 = vadd.f32 0.0, %v4447
      %v4449 = vpop.f32.mrf.mxu0
      %v4450 = vpop.f32.mrf.mxu0
      %v4451 = vadd.f32 0.0, %v4450
      %v4452 = vpop.f32.mrf.mxu0
      %4453 = vmatprep.mubr.bf16.mxu0 0
      %4454 = vmatmul.mubr.bf16.gmra.mxu0 %v4340
      %v4455 = vpop.f32.mrf.mxu0
      %v4456 = vadd.f32 0.0, %v4455
      %v4457 = vpop.f32.mrf.mxu0
      %v4458 = vpop.f32.mrf.mxu0
      %v4459 = vadd.f32 0.0, %v4458
      %v4460 = vpop.f32.mrf.mxu0
      %4461 = vmatprep.mubr.bf16.mxu0 0
      %4462 = vmatmul.mubr.bf16.gmra.mxu0 %v4343
      %v4463 = vpop.f32.mrf.mxu0
      %v4464 = vadd.f32 0.0, %v4463
      %v4465 = vpop.f32.mrf.mxu0
      %v4466 = vpop.f32.mrf.mxu0
      %v4467 = vadd.f32 0.0, %v4466
      %v4468 = vpop.f32.mrf.mxu0
      %4469 = vmatprep.mubr.bf16.mxu0 0
      %4470 = vmatmul.mubr.bf16.gmra.mxu0 %v4346
      %v4471 = vpop.f32.mrf.mxu0
      %v4472 = vadd.f32 0.0, %v4471
      %v4473 = vpop.f32.mrf.mxu0
      %v4474 = vpop.f32.mrf.mxu0
      %v4475 = vadd.f32 0.0, %v4474
      %v4476 = vpop.f32.mrf.mxu0
      %4477 = vmatprep.mubr.bf16.mxu0 0
      %4478 = vmatmul.mubr.bf16.gmra.mxu0 %v4349
      %v4479 = vpop.f32.mrf.mxu0
      %v4480 = vadd.f32 0.0, %v4479
      %v4481 = vpop.f32.mrf.mxu0
      %v4482 = vpop.f32.mrf.mxu0
      %v4483 = vadd.f32 0.0, %v4482
      %v4484 = vpop.f32.mrf.mxu0
      %4485 = vmatprep.mubr.bf16.mxu0 0
      %4486 = vmatmul.mubr.bf16.gmra.mxu0 %v4352
      %v4487 = vpop.f32.mrf.mxu0
      %v4488 = vadd.f32 0.0, %v4487
      %v4489 = vpop.f32.mrf.mxu0
      %v4490 = vpop.f32.mrf.mxu0
      %v4491 = vadd.f32 0.0, %v4490
      %v4492 = vpop.f32.mrf.mxu0
      %4493 = vmatprep.mubr.bf16.mxu0 0
      %4494 = vmatmul.mubr.bf16.gmra.mxu0 %v4355
      %v4495 = vpop.f32.mrf.mxu0
      %v4496 = vadd.f32 0.0, %v4495
      %v4497 = vpop.f32.mrf.mxu0
      %v4498 = vpop.f32.mrf.mxu0
      %v4499 = vadd.f32 0.0, %v4498
      %v4500 = vpop.f32.mrf.mxu0
      %4501 = vmatprep.mubr.bf16.mxu0 0
      %4502 = vmatmul.mubr.bf16.gmra.mxu0 %v4358
      %v4503 = vpop.f32.mrf.mxu0
      %v4504 = vadd.f32 0.0, %v4503
      %v4505 = vpop.f32.mrf.mxu0
      %v4506 = vpop.f32.mrf.mxu0
      %v4507 = vadd.f32 0.0, %v4506
      %v4508 = vpop.f32.mrf.mxu0
      %4509 = vmatprep.mubr.bf16.mxu0 0
      %4510 = vmatmul.mubr.bf16.gmra.mxu0 %v4361
      %v4511 = vpop.f32.mrf.mxu0
      %v4512 = vadd.f32 0.0, %v4511
      %v4513 = vpop.f32.mrf.mxu0
      %v4514 = vpop.f32.mrf.mxu0
      %v4515 = vadd.f32 0.0, %v4514
      %v4516 = vpop.f32.mrf.mxu0
      %4517 = vmatprep.mubr.bf16.mxu0 0
      %4518 = vmatmul.mubr.bf16.gmra.mxu0 %v4364
      %v4519 = vpop.f32.mrf.mxu0
      %v4520 = vadd.f32 0.0, %v4519
      %v4521 = vpop.f32.mrf.mxu0
      %v4522 = vpop.f32.mrf.mxu0
      %v4523 = vadd.f32 0.0, %v4522
      %v4524 = vpop.f32.mrf.mxu0
      %4525 = vmatprep.mubr.bf16.mxu0 0
      %4526 = vmatmul.mubr.bf16.gmra.mxu0 %v4367
      %v4527 = vpop.f32.mrf.mxu0
      %v4528 = vadd.f32 0.0, %v4527
      %v4529 = vpop.f32.mrf.mxu0
      %v4530 = vpop.f32.mrf.mxu0
      %v4531 = vadd.f32 0.0, %v4530
      %v4532 = vpop.f32.mrf.mxu0
      %4533 = vmatprep.mubr.bf16.mxu0 0
      %4534 = vmatmul.mubr.bf16.gmra.mxu0 %v4370
      %v4535 = vpop.f32.mrf.mxu0
      %v4536 = vadd.f32 0.0, %v4535
      %v4537 = vpop.f32.mrf.mxu0
      %v4538 = vpop.f32.mrf.mxu0
      %v4539 = vadd.f32 0.0, %v4538
      %v4540 = vpop.f32.mrf.mxu0
      %4541 = vmatprep.mubr.bf16.mxu0 0
      %4542 = vmatmul.mubr.bf16.gmra.mxu0 %v4373
      %v4543 = vpop.f32.mrf.mxu0
      %v4544 = vadd.f32 0.0, %v4543
      %v4545 = vpop.f32.mrf.mxu0
      %v4546 = vpop.f32.mrf.mxu0
      %v4547 = vadd.f32 0.0, %v4546
      %v4548 = vpop.f32.mrf.mxu0
      %4549 = vmatprep.mubr.bf16.mxu0 0
      %4550 = vmatmul.mubr.bf16.gmra.mxu0 %v4376
      %v4551 = vpop.f32.mrf.mxu0
      %v4552 = vadd.f32 0.0, %v4551
      %v4553 = vpop.f32.mrf.mxu0
      %v4554 = vpop.f32.mrf.mxu0
      %v4555 = vadd.f32 0.0, %v4554
      %v4556 = vpop.f32.mrf.mxu0
      %4557 = vdwg.mxu0
      %v4558 = vadd.f32 %v2911, %v4416
      %v4559 = vadd.f32 %v2914, %v4419
      %v4560 = vadd.f32 %v2919, %v4424
      %v4561 = vadd.f32 %v2922, %v4427
      %v4562 = vadd.f32 %v2927, %v4432
      %v4563 = vadd.f32 %v2930, %v4435
      %v4564 = vadd.f32 %v2935, %v4440
      %v4565 = vadd.f32 %v2938, %v4443
      %v4566 = vadd.f32 %v2943, %v4448
      %v4567 = vadd.f32 %v2946, %v4451
      %v4568 = vadd.f32 %v2951, %v4456
      %v4569 = vadd.f32 %v2954, %v4459
      %v4570 = vadd.f32 %v2959, %v4464
      %v4571 = vadd.f32 %v2962, %v4467
      %v4572 = vadd.f32 %v2967, %v4472
      %v4573 = vadd.f32 %v2970, %v4475
      %v4574 = vadd.f32 %v2975, %v4480
      %v4575 = vadd.f32 %v2978, %v4483
      %v4576 = vadd.f32 %v2983, %v4488
      %v4577 = vadd.f32 %v2986, %v4491
      %v4578 = vadd.f32 %v2991, %v4496
      %v4579 = vadd.f32 %v2994, %v4499
      %v4580 = vadd.f32 %v2999, %v4504
      %v4581 = vadd.f32 %v3002, %v4507
      %v4582 = vadd.f32 %v3007, %v4512
      %v4583 = vadd.f32 %v3010, %v4515
      %v4584 = vadd.f32 %v3015, %v4520
      %v4585 = vadd.f32 %v3018, %v4523
      %v4586 = vadd.f32 %v3023, %v4528
      %v4587 = vadd.f32 %v3026, %v4531
      %v4588 = vadd.f32 %v3031, %v4536
      %v4589 = vadd.f32 %v3034, %v4539
      %v4590 = vadd.f32 %v3039, %v4544
      %v4591 = vadd.f32 %v3042, %v4547
      %v4592 = vadd.f32 %v3047, %v4552
      %v4593 = vadd.f32 %v3050, %v4555
      %v4594 = vld [vmem:[%s3] sm:$0x1]
      %v4595 = vlaneseq
      %v4596 = vshrl.u32 %v4595, 7
      %v4597 = vsub.s32 0, %v4596
      %v4598 = vrot.slane %v4594, %v4597
      %v4599 = vmul.f32 %v4558, %v4598
      %v4600 = vmul.f32 %v4559, %v4598
      %v4601 = vmul.f32 %v4560, %v4598
      %v4602 = vmul.f32 %v4561, %v4598
      %v4603 = vmul.f32 %v4562, %v4598
      %v4604 = vmul.f32 %v4563, %v4598
      %v4605 = vmul.f32 %v4564, %v4598
      %v4606 = vmul.f32 %v4565, %v4598
      %v4607 = vmul.f32 %v4566, %v4598
      %v4608 = vmul.f32 %v4567, %v4598
      %v4609 = vmul.f32 %v4568, %v4598
      %v4610 = vmul.f32 %v4569, %v4598
      %v4611 = vmul.f32 %v4570, %v4598
      %v4612 = vmul.f32 %v4571, %v4598
      %v4613 = vmul.f32 %v4572, %v4598
      %v4614 = vmul.f32 %v4573, %v4598
      %v4615 = vmul.f32 %v4574, %v4598
      %v4616 = vmul.f32 %v4575, %v4598
      %v4617 = vmul.f32 %v4576, %v4598
      %v4618 = vmul.f32 %v4577, %v4598
      %v4619 = vmul.f32 %v4578, %v4598
      %v4620 = vmul.f32 %v4579, %v4598
      %v4621 = vmul.f32 %v4580, %v4598
      %v4622 = vmul.f32 %v4581, %v4598
      %v4623 = vmul.f32 %v4582, %v4598
      %v4624 = vmul.f32 %v4583, %v4598
      %v4625 = vmul.f32 %v4584, %v4598
      %v4626 = vmul.f32 %v4585, %v4598
      %v4627 = vmul.f32 %v4586, %v4598
      %v4628 = vmul.f32 %v4587, %v4598
      %v4629 = vmul.f32 %v4588, %v4598
      %v4630 = vmul.f32 %v4589, %v4598
      %v4631 = vmul.f32 %v4590, %v4598
      %v4632 = vmul.f32 %v4591, %v4598
      %v4633 = vmul.f32 %v4592, %v4598
      %v4634 = vmul.f32 %v4593, %v4598
      %v4635 = vld [vmem:[%s3 + $0x1] sm:$0x1]
      %v4636 = vlaneseq
      %v4637 = vshrl.u32 %v4636, 7
      %v4638 = vsub.s32 0, %v4637
      %v4639 = vrot.slane %v4635, %v4638
      %v4640 = vadd.f32 %v4599, %v4639
      %v4641 = vadd.f32 %v4600, %v4639
      %v4642 = vadd.f32 %v4601, %v4639
      %v4643 = vadd.f32 %v4602, %v4639
      %v4644 = vadd.f32 %v4603, %v4639
      %v4645 = vadd.f32 %v4604, %v4639
      %v4646 = vadd.f32 %v4605, %v4639
      %v4647 = vadd.f32 %v4606, %v4639
      %v4648 = vadd.f32 %v4607, %v4639
      %v4649 = vadd.f32 %v4608, %v4639
      %v4650 = vadd.f32 %v4609, %v4639
      %v4651 = vadd.f32 %v4610, %v4639
      %v4652 = vadd.f32 %v4611, %v4639
      %v4653 = vadd.f32 %v4612, %v4639
      %v4654 = vadd.f32 %v4613, %v4639
      %v4655 = vadd.f32 %v4614, %v4639
      %v4656 = vadd.f32 %v4615, %v4639
      %v4657 = vadd.f32 %v4616, %v4639
      %v4658 = vadd.f32 %v4617, %v4639
      %v4659 = vadd.f32 %v4618, %v4639
      %v4660 = vadd.f32 %v4619, %v4639
      %v4661 = vadd.f32 %v4620, %v4639
      %v4662 = vadd.f32 %v4621, %v4639
      %v4663 = vadd.f32 %v4622, %v4639
      %v4664 = vadd.f32 %v4623, %v4639
      %v4665 = vadd.f32 %v4624, %v4639
      %v4666 = vadd.f32 %v4625, %v4639
      %v4667 = vadd.f32 %v4626, %v4639
      %v4668 = vadd.f32 %v4627, %v4639
      %v4669 = vadd.f32 %v4628, %v4639
      %v4670 = vadd.f32 %v4629, %v4639
      %v4671 = vadd.f32 %v4630, %v4639
      %v4672 = vadd.f32 %v4631, %v4639
      %v4673 = vadd.f32 %v4632, %v4639
      %v4674 = vadd.f32 %v4633, %v4639
      %v4675 = vadd.f32 %v4634, %v4639
      %v4676 = vmax.f32 %v4640, 0.0
      %v4677 = vmax.f32 %v4641, 0.0
      %v4678 = vmax.f32 %v4642, 0.0
      %v4679 = vmax.f32 %v4643, 0.0
      %v4680 = vmax.f32 %v4644, 0.0
      %v4681 = vmax.f32 %v4645, 0.0
      %v4682 = vmax.f32 %v4646, 0.0
      %v4683 = vmax.f32 %v4647, 0.0
      %v4684 = vmax.f32 %v4648, 0.0
      %v4685 = vmax.f32 %v4649, 0.0
      %v4686 = vmax.f32 %v4650, 0.0
      %v4687 = vmax.f32 %v4651, 0.0
      %v4688 = vmax.f32 %v4652, 0.0
      %v4689 = vmax.f32 %v4653, 0.0
      %v4690 = vmax.f32 %v4654, 0.0
      %v4691 = vmax.f32 %v4655, 0.0
      %v4692 = vmax.f32 %v4656, 0.0
      %v4693 = vmax.f32 %v4657, 0.0
      %v4694 = vmax.f32 %v4658, 0.0
      %v4695 = vmax.f32 %v4659, 0.0
      %v4696 = vmax.f32 %v4660, 0.0
      %v4697 = vmax.f32 %v4661, 0.0
      %v4698 = vmax.f32 %v4662, 0.0
      %v4699 = vmax.f32 %v4663, 0.0
      %v4700 = vmax.f32 %v4664, 0.0
      %v4701 = vmax.f32 %v4665, 0.0
      %v4702 = vmax.f32 %v4666, 0.0
      %v4703 = vmax.f32 %v4667, 0.0
      %v4704 = vmax.f32 %v4668, 0.0
      %v4705 = vmax.f32 %v4669, 0.0
      %v4706 = vmax.f32 %v4670, 0.0
      %v4707 = vmax.f32 %v4671, 0.0
      %v4708 = vmax.f32 %v4672, 0.0
      %v4709 = vmax.f32 %v4673, 0.0
      %v4710 = vmax.f32 %v4674, 0.0
      %v4711 = vmax.f32 %v4675, 0.0
      %v4712 = vld [vmem:[%s4] sm:$0xff]
      %v4713 = vld [vmem:[%s4 + $0x8] sm:$0xff]
      %v4714 = vld [vmem:[%s4 + $0x10] sm:$0xff]
      %v4715 = vld [vmem:[%s4 + $0x18] sm:$0xff]
      %v4716 = vld [vmem:[%s4 + $0x20] sm:$0xff]
      %v4717 = vld [vmem:[%s4 + $0x28] sm:$0xff]
      %v4718 = vld [vmem:[%s4 + $0x30] sm:$0xff]
      %v4719 = vld [vmem:[%s4 + $0x38] sm:$0xff]
      %v4720 = vld [vmem:[%s4 + $0x40] sm:$0xff]
      %v4721 = vld [vmem:[%s4 + $0x48] sm:$0xff]
      %v4722 = vld [vmem:[%s4 + $0x50] sm:$0xff]
      %v4723 = vld [vmem:[%s4 + $0x58] sm:$0xff]
      %v4724 = vld [vmem:[%s4 + $0x60] sm:$0xff]
      %v4725 = vld [vmem:[%s4 + $0x68] sm:$0xff]
      %v4726 = vld [vmem:[%s4 + $0x70] sm:$0xff]
      %v4727 = vld [vmem:[%s4 + $0x78] sm:$0xff]
      %v4728 = vld [vmem:[%s4 + $0x80] sm:$0xff]
      %v4729 = vld [vmem:[%s4 + $0x88] sm:$0xff]
      %v4730 = vld [vmem:[%s4 + $0x90] sm:$0xff]
      %v4731 = vld [vmem:[%s4 + $0x98] sm:$0xff]
      %v4732 = vld [vmem:[%s4 + $0xa0] sm:$0xff]
      %v4733 = vld [vmem:[%s4 + $0xa8] sm:$0xff]
      %v4734 = vld [vmem:[%s4 + $0xb0] sm:$0xff]
      %v4735 = vld [vmem:[%s4 + $0xb8] sm:$0xff]
      %v4736 = vld [vmem:[%s4 + $0xc0] sm:$0xff]
      %v4737 = vld [vmem:[%s4 + $0xc8] sm:$0xff]
      %v4738 = vld [vmem:[%s4 + $0xd0] sm:$0xff]
      %v4739 = vld [vmem:[%s4 + $0xd8] sm:$0xff]
      %v4740 = vld [vmem:[%s4 + $0xe0] sm:$0xff]
      %v4741 = vld [vmem:[%s4 + $0xe8] sm:$0xff]
      %v4742 = vld [vmem:[%s4 + $0xf0] sm:$0xff]
      %v4743 = vld [vmem:[%s4 + $0xf8] sm:$0xff]
      %v4744 = vld [vmem:[%s4 + $0x100] sm:$0xff]
      %v4745 = vld [vmem:[%s4 + $0x108] sm:$0xff]
      %v4746 = vld [vmem:[%s4 + $0x110] sm:$0xff]
      %v4747 = vld [vmem:[%s4 + $0x118] sm:$0xff]
      %4749 = vset.pattern.permute.xlu0 0
      %4750 = vperm.xlu0 %4749, %v4712
      %v4751 = vpop.permute.xlu0 %4750
      %4754 = vset.pattern.permute.xlu0 0
      %4755 = vperm.xlu0 %4754, %v4713
      %v4756 = vpop.permute.xlu0 %4755
      %4759 = vset.pattern.permute.xlu0 0
      %4760 = vperm.xlu0 %4759, %v4714
      %v4761 = vpop.permute.xlu0 %4760
      %4764 = vset.pattern.permute.xlu0 0
      %4765 = vperm.xlu0 %4764, %v4715
      %v4766 = vpop.permute.xlu0 %4765
      %4769 = vset.pattern.permute.xlu0 0
      %4770 = vperm.xlu0 %4769, %v4716
      %v4771 = vpop.permute.xlu0 %4770
      %4774 = vset.pattern.permute.xlu0 0
      %4775 = vperm.xlu0 %4774, %v4717
      %v4776 = vpop.permute.xlu0 %4775
      %4779 = vset.pattern.permute.xlu0 0
      %4780 = vperm.xlu0 %4779, %v4718
      %v4781 = vpop.permute.xlu0 %4780
      %4784 = vset.pattern.permute.xlu0 0
      %4785 = vperm.xlu0 %4784, %v4719
      %v4786 = vpop.permute.xlu0 %4785
      %4789 = vset.pattern.permute.xlu0 0
      %4790 = vperm.xlu0 %4789, %v4720
      %v4791 = vpop.permute.xlu0 %4790
      %4794 = vset.pattern.permute.xlu0 0
      %4795 = vperm.xlu0 %4794, %v4721
      %v4796 = vpop.permute.xlu0 %4795
      %4799 = vset.pattern.permute.xlu0 0
      %4800 = vperm.xlu0 %4799, %v4722
      %v4801 = vpop.permute.xlu0 %4800
      %4804 = vset.pattern.permute.xlu0 0
      %4805 = vperm.xlu0 %4804, %v4723
      %v4806 = vpop.permute.xlu0 %4805
      %4809 = vset.pattern.permute.xlu0 0
      %4810 = vperm.xlu0 %4809, %v4724
      %v4811 = vpop.permute.xlu0 %4810
      %4814 = vset.pattern.permute.xlu0 0
      %4815 = vperm.xlu0 %4814, %v4725
      %v4816 = vpop.permute.xlu0 %4815
      %4819 = vset.pattern.permute.xlu0 0
      %4820 = vperm.xlu0 %4819, %v4726
      %v4821 = vpop.permute.xlu0 %4820
      %4824 = vset.pattern.permute.xlu0 0
      %4825 = vperm.xlu0 %4824, %v4727
      %v4826 = vpop.permute.xlu0 %4825
      %4829 = vset.pattern.permute.xlu0 0
      %4830 = vperm.xlu0 %4829, %v4728
      %v4831 = vpop.permute.xlu0 %4830
      %4834 = vset.pattern.permute.xlu0 0
      %4835 = vperm.xlu0 %4834, %v4729
      %v4836 = vpop.permute.xlu0 %4835
      %4839 = vset.pattern.permute.xlu0 0
      %4840 = vperm.xlu0 %4839, %v4730
      %v4841 = vpop.permute.xlu0 %4840
      %4844 = vset.pattern.permute.xlu0 0
      %4845 = vperm.xlu0 %4844, %v4731
      %v4846 = vpop.permute.xlu0 %4845
      %4849 = vset.pattern.permute.xlu0 0
      %4850 = vperm.xlu0 %4849, %v4732
      %v4851 = vpop.permute.xlu0 %4850
      %4854 = vset.pattern.permute.xlu0 0
      %4855 = vperm.xlu0 %4854, %v4733
      %v4856 = vpop.permute.xlu0 %4855
      %4859 = vset.pattern.permute.xlu0 0
      %4860 = vperm.xlu0 %4859, %v4734
      %v4861 = vpop.permute.xlu0 %4860
      %4864 = vset.pattern.permute.xlu0 0
      %4865 = vperm.xlu0 %4864, %v4735
      %v4866 = vpop.permute.xlu0 %4865
      %4869 = vset.pattern.permute.xlu0 0
      %4870 = vperm.xlu0 %4869, %v4736
      %v4871 = vpop.permute.xlu0 %4870
      %4874 = vset.pattern.permute.xlu0 0
      %4875 = vperm.xlu0 %4874, %v4737
      %v4876 = vpop.permute.xlu0 %4875
      %4879 = vset.pattern.permute.xlu0 0
      %4880 = vperm.xlu0 %4879, %v4738
      %v4881 = vpop.permute.xlu0 %4880
      %4884 = vset.pattern.permute.xlu0 0
      %4885 = vperm.xlu0 %4884, %v4739
      %v4886 = vpop.permute.xlu0 %4885
      %4889 = vset.pattern.permute.xlu0 0
      %4890 = vperm.xlu0 %4889, %v4740
      %v4891 = vpop.permute.xlu0 %4890
      %4894 = vset.pattern.permute.xlu0 0
      %4895 = vperm.xlu0 %4894, %v4741
      %v4896 = vpop.permute.xlu0 %4895
      %4899 = vset.pattern.permute.xlu0 0
      %4900 = vperm.xlu0 %4899, %v4742
      %v4901 = vpop.permute.xlu0 %4900
      %4904 = vset.pattern.permute.xlu0 0
      %4905 = vperm.xlu0 %4904, %v4743
      %v4906 = vpop.permute.xlu0 %4905
      %4909 = vset.pattern.permute.xlu0 0
      %4910 = vperm.xlu0 %4909, %v4744
      %v4911 = vpop.permute.xlu0 %4910
      %4914 = vset.pattern.permute.xlu0 0
      %4915 = vperm.xlu0 %4914, %v4745
      %v4916 = vpop.permute.xlu0 %4915
      %4919 = vset.pattern.permute.xlu0 0
      %4920 = vperm.xlu0 %4919, %v4746
      %v4921 = vpop.permute.xlu0 %4920
      %4924 = vset.pattern.permute.xlu0 0
      %4925 = vperm.xlu0 %4924, %v4747
      %v4926 = vpop.permute.xlu0 %4925
      %v4928 = vmul.f32 %v4676, %v4751
      %v4929 = vmul.f32 %v4677, %v4756
      %v4930 = vmul.f32 %v4678, %v4761
      %v4931 = vmul.f32 %v4679, %v4766
      %v4932 = vmul.f32 %v4680, %v4771
      %v4933 = vmul.f32 %v4681, %v4776
      %v4934 = vmul.f32 %v4682, %v4781
      %v4935 = vmul.f32 %v4683, %v4786
      %v4936 = vmul.f32 %v4684, %v4791
      %v4937 = vmul.f32 %v4685, %v4796
      %v4938 = vmul.f32 %v4686, %v4801
      %v4939 = vmul.f32 %v4687, %v4806
      %v4940 = vmul.f32 %v4688, %v4811
      %v4941 = vmul.f32 %v4689, %v4816
      %v4942 = vmul.f32 %v4690, %v4821
      %v4943 = vmul.f32 %v4691, %v4826
      %v4944 = vmul.f32 %v4692, %v4831
      %v4945 = vmul.f32 %v4693, %v4836
      %v4946 = vmul.f32 %v4694, %v4841
      %v4947 = vmul.f32 %v4695, %v4846
      %v4948 = vmul.f32 %v4696, %v4851
      %v4949 = vmul.f32 %v4697, %v4856
      %v4950 = vmul.f32 %v4698, %v4861
      %v4951 = vmul.f32 %v4699, %v4866
      %v4952 = vmul.f32 %v4700, %v4871
      %v4953 = vmul.f32 %v4701, %v4876
      %v4954 = vmul.f32 %v4702, %v4881
      %v4955 = vmul.f32 %v4703, %v4886
      %v4956 = vmul.f32 %v4704, %v4891
      %v4957 = vmul.f32 %v4705, %v4896
      %v4958 = vmul.f32 %v4706, %v4901
      %v4959 = vmul.f32 %v4707, %v4906
      %v4960 = vmul.f32 %v4708, %v4911
      %v4961 = vmul.f32 %v4709, %v4916
      %v4962 = vmul.f32 %v4710, %v4921
      %v4963 = vmul.f32 %v4711, %v4926
      %vm4964 = vcmask 31744
      %4965 = vst.msk [vmem:[#allocation2] sm:$0xff] %vm4964, 0.0
      %4966 = vst.msk [vmem:[#allocation2 + $0x8] sm:$0xff] %vm4964, 0.0
      %vm4967 = vcmask 26624
      %4968 = vst.msk [vmem:[#allocation2 + $0x10] sm:$0x7] %vm4967, 0.0
      %4969 = vst.msk [vmem:[#allocation2 + $0x133] sm:$0xff] %vm4964, 0.0
      %4970 = vst.msk [vmem:[#allocation2 + $0x13b] sm:$0xff] %vm4964, 0.0
      %4971 = vst.msk [vmem:[#allocation2 + $0x143] sm:$0xff] %vm4964, 0.0
      %4972 = vst.msk [vmem:[#allocation2 + $0x14b] sm:$0xff] %vm4964, 0.0
      %4973 = vst.msk [vmem:[#allocation2 + $0x153] sm:$0x7] %vm4967, 0.0
      %4974 = vst.msk [vmem:[#allocation2 + $0x13] sm:$0xff] %vm4964, %v4928
      %4975 = vst.msk [vmem:[#allocation2 + $0x1b] sm:$0xff] %vm4964, %v4929
      %4976 = vst.msk [vmem:[#allocation2 + $0x23] sm:$0xff] %vm4964, %v4930
      %4977 = vst.msk [vmem:[#allocation2 + $0x2b] sm:$0xff] %vm4964, %v4931
      %4978 = vst.msk [vmem:[#allocation2 + $0x33] sm:$0xff] %vm4964, %v4932
      %4979 = vst.msk [vmem:[#allocation2 + $0x3b] sm:$0xff] %vm4964, %v4933
      %4980 = vst.msk [vmem:[#allocation2 + $0x43] sm:$0xff] %vm4964, %v4934
      %4981 = vst.msk [vmem:[#allocation2 + $0x4b] sm:$0xff] %vm4964, %v4935
      %4982 = vst.msk [vmem:[#allocation2 + $0x53] sm:$0xff] %vm4964, %v4936
      %4983 = vst.msk [vmem:[#allocation2 + $0x5b] sm:$0xff] %vm4964, %v4937
      %4984 = vst.msk [vmem:[#allocation2 + $0x63] sm:$0xff] %vm4964, %v4938
      %4985 = vst.msk [vmem:[#allocation2 + $0x6b] sm:$0xff] %vm4964, %v4939
      %4986 = vst.msk [vmem:[#allocation2 + $0x73] sm:$0xff] %vm4964, %v4940
      %4987 = vst.msk [vmem:[#allocation2 + $0x7b] sm:$0xff] %vm4964, %v4941
      %4988 = vst.msk [vmem:[#allocation2 + $0x83] sm:$0xff] %vm4964, %v4942
      %4989 = vst.msk [vmem:[#allocation2 + $0x8b] sm:$0xff] %vm4964, %v4943
      %4990 = vst.msk [vmem:[#allocation2 + $0x93] sm:$0xff] %vm4964, %v4944
      %4991 = vst.msk [vmem:[#allocation2 + $0x9b] sm:$0xff] %vm4964, %v4945
      %4992 = vst.msk [vmem:[#allocation2 + $0xa3] sm:$0xff] %vm4964, %v4946
      %4993 = vst.msk [vmem:[#allocation2 + $0xab] sm:$0xff] %vm4964, %v4947
      %4994 = vst.msk [vmem:[#allocation2 + $0xb3] sm:$0xff] %vm4964, %v4948
      %4995 = vst.msk [vmem:[#allocation2 + $0xbb] sm:$0xff] %vm4964, %v4949
      %4996 = vst.msk [vmem:[#allocation2 + $0xc3] sm:$0xff] %vm4964, %v4950
      %4997 = vst.msk [vmem:[#allocation2 + $0xcb] sm:$0xff] %vm4964, %v4951
      %4998 = vst.msk [vmem:[#allocation2 + $0xd3] sm:$0xff] %vm4964, %v4952
      %4999 = vst.msk [vmem:[#allocation2 + $0xdb] sm:$0xff] %vm4964, %v4953
      %5000 = vst.msk [vmem:[#allocation2 + $0xe3] sm:$0xff] %vm4964, %v4954
      %5001 = vst.msk [vmem:[#allocation2 + $0xeb] sm:$0xff] %vm4964, %v4955
      %5002 = vst.msk [vmem:[#allocation2 + $0xf3] sm:$0xff] %vm4964, %v4956
      %5003 = vst.msk [vmem:[#allocation2 + $0xfb] sm:$0xff] %vm4964, %v4957
      %5004 = vst.msk [vmem:[#allocation2 + $0x103] sm:$0xff] %vm4964, %v4958
      %5005 = vst.msk [vmem:[#allocation2 + $0x10b] sm:$0xff] %vm4964, %v4959
      %5006 = vst.msk [vmem:[#allocation2 + $0x113] sm:$0xff] %vm4964, %v4960
      %5007 = vst.msk [vmem:[#allocation2 + $0x11b] sm:$0xff] %vm4964, %v4961
      %5008 = vst.msk [vmem:[#allocation2 + $0x123] sm:$0xff] %vm4964, %v4962
      %5009 = vst.msk [vmem:[#allocation2 + $0x12b] sm:$0xff] %vm4964, %v4963
      %v5010 = vld [vmem:[#allocation2] sm:$0xff]
      %v5011 = vld [vmem:[#allocation2 + $0x8] sm:$0xff]
      %v5012 = vld [vmem:[#allocation2 + $0x10] sm:$0xff]
      %v5013 = vld [vmem:[#allocation2 + $0x18] sm:$0xff]
      %v5014 = vld [vmem:[#allocation2 + $0x20] sm:$0xff]
      %v5015 = vld [vmem:[#allocation2 + $0x28] sm:$0xff]
      %v5016 = vld [vmem:[#allocation2 + $0x30] sm:$0xff]
      %v5017 = vld [vmem:[#allocation2 + $0x38] sm:$0xff]
      %v5018 = vld [vmem:[#allocation2 + $0x40] sm:$0xff]
      %v5019 = vld [vmem:[#allocation2 + $0x48] sm:$0xff]
      %v5020 = vld [vmem:[#allocation2 + $0x50] sm:$0xff]
      %v5021 = vld [vmem:[#allocation2 + $0x58] sm:$0xff]
      %v5022 = vld [vmem:[#allocation2 + $0x60] sm:$0xff]
      %v5023 = vld [vmem:[#allocation2 + $0x68] sm:$0xff]
      %v5024 = vld [vmem:[#allocation2 + $0x70] sm:$0xff]
      %v5025 = vld [vmem:[#allocation2 + $0x78] sm:$0xff]
      %v5026 = vld [vmem:[#allocation2 + $0x80] sm:$0xff]
      %v5027 = vld [vmem:[#allocation2 + $0x88] sm:$0xff]
      %v5028 = vld [vmem:[#allocation2 + $0x90] sm:$0xff]
      %v5029 = vld [vmem:[#allocation2 + $0x98] sm:$0xff]
      %v5030 = vld [vmem:[#allocation2 + $0xa0] sm:$0xff]
      %v5031 = vld [vmem:[#allocation2 + $0xa8] sm:$0xff]
      %v5032 = vld [vmem:[#allocation2 + $0xb0] sm:$0xff]
      %v5033 = vld [vmem:[#allocation2 + $0xb8] sm:$0xff]
      %v5034 = vld [vmem:[#allocation2 + $0xc0] sm:$0xff]
      %v5035 = vld [vmem:[#allocation2 + $0xc8] sm:$0xff]
      %v5036 = vld [vmem:[#allocation2 + $0xd0] sm:$0xff]
      %v5037 = vld [vmem:[#allocation2 + $0xd8] sm:$0xff]
      %v5038 = vld [vmem:[#allocation2 + $0xe0] sm:$0xff]
      %v5039 = vld [vmem:[#allocation2 + $0xe8] sm:$0xff]
      %v5040 = vld [vmem:[#allocation2 + $0xf0] sm:$0xff]
      %v5041 = vld [vmem:[#allocation2 + $0xf8] sm:$0xff]
      %v5042 = vld [vmem:[#allocation2 + $0x100] sm:$0xff]
      %v5043 = vld [vmem:[#allocation2 + $0x108] sm:$0xff]
      %v5044 = vld [vmem:[#allocation2 + $0x110] sm:$0xff]
      %v5045 = vld [vmem:[#allocation2 + $0x118] sm:$0xff]
      %v5046 = vpack.c.bf16 %v5011, %v5010
      %v5047 = vpack.c.bf16 %v5013, %v5012
      %v5048 = vpack.c.bf16 %v5015, %v5014
      %v5049 = vpack.c.bf16 %v5017, %v5016
      %v5050 = vpack.c.bf16 %v5019, %v5018
      %v5051 = vpack.c.bf16 %v5021, %v5020
      %v5052 = vpack.c.bf16 %v5023, %v5022
      %v5053 = vpack.c.bf16 %v5025, %v5024
      %v5054 = vpack.c.bf16 %v5027, %v5026
      %v5055 = vpack.c.bf16 %v5029, %v5028
      %v5056 = vpack.c.bf16 %v5031, %v5030
      %v5057 = vpack.c.bf16 %v5033, %v5032
      %v5058 = vpack.c.bf16 %v5035, %v5034
      %v5059 = vpack.c.bf16 %v5037, %v5036
      %v5060 = vpack.c.bf16 %v5039, %v5038
      %v5061 = vpack.c.bf16 %v5041, %v5040
      %v5062 = vpack.c.bf16 %v5043, %v5042
      %v5063 = vpack.c.bf16 %v5045, %v5044
      %v5082 = vunpack.c.l.b16 %v5046
      %v5083 = vunpack.c.h.b16 %v5046
      %v5084 = vunpack.c.l.b16 %v5047
      %v5085 = vunpack.c.h.b16 %v5047
      %v5086 = vunpack.c.l.b16 %v5048
      %v5087 = vunpack.c.h.b16 %v5048
      %v5088 = vunpack.c.l.b16 %v5049
      %v5089 = vunpack.c.h.b16 %v5049
      %v5090 = vunpack.c.l.b16 %v5050
      %v5091 = vunpack.c.h.b16 %v5050
      %v5092 = vunpack.c.l.b16 %v5051
      %v5093 = vunpack.c.h.b16 %v5051
      %v5094 = vunpack.c.l.b16 %v5052
      %v5095 = vunpack.c.h.b16 %v5052
      %v5096 = vunpack.c.l.b16 %v5053
      %v5097 = vunpack.c.h.b16 %v5053
      %v5098 = vunpack.c.l.b16 %v5054
      %v5099 = vunpack.c.h.b16 %v5054
      %v5100 = vunpack.c.l.b16 %v5055
      %v5101 = vunpack.c.h.b16 %v5055
      %v5102 = vunpack.c.l.b16 %v5056
      %v5103 = vunpack.c.h.b16 %v5056
      %v5104 = vunpack.c.l.b16 %v5057
      %v5105 = vunpack.c.h.b16 %v5057
      %v5106 = vunpack.c.l.b16 %v5058
      %v5107 = vunpack.c.h.b16 %v5058
      %v5108 = vunpack.c.l.b16 %v5059
      %v5109 = vunpack.c.h.b16 %v5059
      %v5110 = vunpack.c.l.b16 %v5060
      %v5111 = vunpack.c.h.b16 %v5060
      %v5112 = vunpack.c.l.b16 %v5061
      %v5113 = vunpack.c.h.b16 %v5061
      %v5114 = vunpack.c.l.b16 %v5062
      %v5115 = vunpack.c.h.b16 %v5062
      %v5116 = vunpack.c.l.b16 %v5063
      %v5117 = vunpack.c.h.b16 %v5063
      %v5118 = vpack.c.b16 %v5082, %v5082
      %v5119 = vpack.c.b16 %v5083, %v5083
      %v5120 = vpack.c.b16 %v5084, %v5084
      %v5121 = vpack.c.b16 %v5085, %v5085
      %v5122 = vpack.c.b16 %v5086, %v5086
      %v5123 = vpack.c.b16 %v5087, %v5087
      %v5124 = vpack.c.b16 %v5088, %v5088
      %v5125 = vpack.c.b16 %v5089, %v5089
      %v5126 = vpack.c.b16 %v5090, %v5090
      %v5127 = vpack.c.b16 %v5091, %v5091
      %v5128 = vpack.c.b16 %v5092, %v5092
      %v5129 = vpack.c.b16 %v5093, %v5093
      %v5130 = vpack.c.b16 %v5094, %v5094
      %v5131 = vpack.c.b16 %v5095, %v5095
      %v5132 = vpack.c.b16 %v5096, %v5096
      %v5133 = vpack.c.b16 %v5097, %v5097
      %v5134 = vpack.c.b16 %v5098, %v5098
      %v5135 = vpack.c.b16 %v5099, %v5099
      %v5136 = vpack.c.b16 %v5100, %v5100
      %v5137 = vpack.c.b16 %v5101, %v5101
      %v5138 = vpack.c.b16 %v5102, %v5102
      %v5139 = vpack.c.b16 %v5103, %v5103
      %v5140 = vpack.c.b16 %v5104, %v5104
      %v5141 = vpack.c.b16 %v5105, %v5105
      %v5142 = vpack.c.b16 %v5106, %v5106
      %v5143 = vpack.c.b16 %v5107, %v5107
      %v5144 = vpack.c.b16 %v5108, %v5108
      %v5145 = vpack.c.b16 %v5109, %v5109
      %v5146 = vpack.c.b16 %v5110, %v5110
      %v5147 = vpack.c.b16 %v5111, %v5111
      %v5148 = vpack.c.b16 %v5112, %v5112
      %v5149 = vpack.c.b16 %v5113, %v5113
      %v5150 = vpack.c.b16 %v5114, %v5114
      %v5151 = vpack.c.b16 %v5115, %v5115
      %v5152 = vpack.c.b16 %v5116, %v5116
      %v5153 = vpack.c.b16 %v5117, %v5117
      %5190 = vst.msk [vmem:[#allocation3] sm:$0xf] %vm262, %v5118
      %5191 = vst.msk [vmem:[#allocation3 + $0x4] sm:$0xf] %vm262, %v5119
      %5192 = vst.msk [vmem:[#allocation3 + $0x8] sm:$0xf] %vm262, %v5120
      %5193 = vst.msk [vmem:[#allocation3 + $0xc] sm:$0xf] %vm262, %v5121
      %5194 = vst.msk [vmem:[#allocation3 + $0x10] sm:$0xf] %vm262, %v5122
      %5195 = vst.msk [vmem:[#allocation3 + $0x14] sm:$0xf] %vm262, %v5123
      %5196 = vst.msk [vmem:[#allocation3 + $0x18] sm:$0xf] %vm262, %v5124
      %5197 = vst.msk [vmem:[#allocation3 + $0x1c] sm:$0xf] %vm262, %v5125
      %5198 = vst.msk [vmem:[#allocation3 + $0x20] sm:$0xf] %vm262, %v5126
      %5199 = vst.msk [vmem:[#allocation3 + $0x24] sm:$0xf] %vm262, %v5127
      %5200 = vst.msk [vmem:[#allocation3 + $0x28] sm:$0xf] %vm262, %v5128
      %5201 = vst.msk [vmem:[#allocation3 + $0x2c] sm:$0xf] %vm262, %v5129
      %5202 = vst.msk [vmem:[#allocation3 + $0x30] sm:$0xf] %vm262, %v5130
      %5203 = vst.msk [vmem:[#allocation3 + $0x34] sm:$0xf] %vm262, %v5131
      %5204 = vst.msk [vmem:[#allocation3 + $0x38] sm:$0xf] %vm262, %v5132
      %5205 = vst.msk [vmem:[#allocation3 + $0x3c] sm:$0xf] %vm262, %v5133
      %5206 = vst.msk [vmem:[#allocation3 + $0x40] sm:$0xf] %vm262, %v5134
      %5207 = vst.msk [vmem:[#allocation3 + $0x44] sm:$0xf] %vm262, %v5135
      %5208 = vst.msk [vmem:[#allocation3 + $0x48] sm:$0xf] %vm262, %v5136
      %5209 = vst.msk [vmem:[#allocation3 + $0x4c] sm:$0xf] %vm262, %v5137
      %5210 = vst.msk [vmem:[#allocation3 + $0x50] sm:$0xf] %vm262, %v5138
      %5211 = vst.msk [vmem:[#allocation3 + $0x54] sm:$0xf] %vm262, %v5139
      %5212 = vst.msk [vmem:[#allocation3 + $0x58] sm:$0xf] %vm262, %v5140
      %5213 = vst.msk [vmem:[#allocation3 + $0x5c] sm:$0xf] %vm262, %v5141
      %5214 = vst.msk [vmem:[#allocation3 + $0x60] sm:$0xf] %vm262, %v5142
      %5215 = vst.msk [vmem:[#allocation3 + $0x64] sm:$0xf] %vm262, %v5143
      %5216 = vst.msk [vmem:[#allocation3 + $0x68] sm:$0xf] %vm262, %v5144
      %5217 = vst.msk [vmem:[#allocation3 + $0x6c] sm:$0xf] %vm262, %v5145
      %5218 = vst.msk [vmem:[#allocation3 + $0x70] sm:$0xf] %vm262, %v5146
      %5219 = vst.msk [vmem:[#allocation3 + $0x74] sm:$0xf] %vm262, %v5147
      %5220 = vst.msk [vmem:[#allocation3 + $0x78] sm:$0xf] %vm262, %v5148
      %5221 = vst.msk [vmem:[#allocation3 + $0x7c] sm:$0xf] %vm262, %v5149
      %5222 = vst.msk [vmem:[#allocation3 + $0x80] sm:$0xf] %vm262, %v5150
      %5223 = vst.msk [vmem:[#allocation3 + $0x84] sm:$0xf] %vm262, %v5151
      %5224 = vst.msk [vmem:[#allocation3 + $0x88] sm:$0xf] %vm262, %v5152
      %5225 = vst.msk [vmem:[#allocation3 + $0x8c] sm:$0xf] %vm262, %v5153
      %v5226 = vld [vmem:[#allocation2 + $0x1] sm:$0xff]
      %v5227 = vld [vmem:[#allocation2 + $0x9] sm:$0xff]
      %v5228 = vld [vmem:[#allocation2 + $0x11] sm:$0xff]
      %v5229 = vld [vmem:[#allocation2 + $0x19] sm:$0xff]
      %v5230 = vld [vmem:[#allocation2 + $0x21] sm:$0xff]
      %v5231 = vld [vmem:[#allocation2 + $0x29] sm:$0xff]
      %v5232 = vld [vmem:[#allocation2 + $0x31] sm:$0xff]
      %v5233 = vld [vmem:[#allocation2 + $0x39] sm:$0xff]
      %v5234 = vld [vmem:[#allocation2 + $0x41] sm:$0xff]
      %v5235 = vld [vmem:[#allocation2 + $0x49] sm:$0xff]
      %v5236 = vld [vmem:[#allocation2 + $0x51] sm:$0xff]
      %v5237 = vld [vmem:[#allocation2 + $0x59] sm:$0xff]
      %v5238 = vld [vmem:[#allocation2 + $0x61] sm:$0xff]
      %v5239 = vld [vmem:[#allocation2 + $0x69] sm:$0xff]
      %v5240 = vld [vmem:[#allocation2 + $0x71] sm:$0xff]
      %v5241 = vld [vmem:[#allocation2 + $0x79] sm:$0xff]
      %v5242 = vld [vmem:[#allocation2 + $0x81] sm:$0xff]
      %v5243 = vld [vmem:[#allocation2 + $0x89] sm:$0xff]
      %v5244 = vld [vmem:[#allocation2 + $0x91] sm:$0xff]
      %v5245 = vld [vmem:[#allocation2 + $0x99] sm:$0xff]
      %v5246 = vld [vmem:[#allocation2 + $0xa1] sm:$0xff]
      %v5247 = vld [vmem:[#allocation2 + $0xa9] sm:$0xff]
      %v5248 = vld [vmem:[#allocation2 + $0xb1] sm:$0xff]
      %v5249 = vld [vmem:[#allocation2 + $0xb9] sm:$0xff]
      %v5250 = vld [vmem:[#allocation2 + $0xc1] sm:$0xff]
      %v5251 = vld [vmem:[#allocation2 + $0xc9] sm:$0xff]
      %v5252 = vld [vmem:[#allocation2 + $0xd1] sm:$0xff]
      %v5253 = vld [vmem:[#allocation2 + $0xd9] sm:$0xff]
      %v5254 = vld [vmem:[#allocation2 + $0xe1] sm:$0xff]
      %v5255 = vld [vmem:[#allocation2 + $0xe9] sm:$0xff]
      %v5256 = vld [vmem:[#allocation2 + $0xf1] sm:$0xff]
      %v5257 = vld [vmem:[#allocation2 + $0xf9] sm:$0xff]
      %v5258 = vld [vmem:[#allocation2 + $0x101] sm:$0xff]
      %v5259 = vld [vmem:[#allocation2 + $0x109] sm:$0xff]
      %v5260 = vld [vmem:[#allocation2 + $0x111] sm:$0xff]
      %v5261 = vld [vmem:[#allocation2 + $0x119] sm:$0xff]
      %v5262 = vpack.c.bf16 %v5227, %v5226
      %v5263 = vpack.c.bf16 %v5229, %v5228
      %v5264 = vpack.c.bf16 %v5231, %v5230
      %v5265 = vpack.c.bf16 %v5233, %v5232
      %v5266 = vpack.c.bf16 %v5235, %v5234
      %v5267 = vpack.c.bf16 %v5237, %v5236
      %v5268 = vpack.c.bf16 %v5239, %v5238
      %v5269 = vpack.c.bf16 %v5241, %v5240
      %v5270 = vpack.c.bf16 %v5243, %v5242
      %v5271 = vpack.c.bf16 %v5245, %v5244
      %v5272 = vpack.c.bf16 %v5247, %v5246
      %v5273 = vpack.c.bf16 %v5249, %v5248
      %v5274 = vpack.c.bf16 %v5251, %v5250
      %v5275 = vpack.c.bf16 %v5253, %v5252
      %v5276 = vpack.c.bf16 %v5255, %v5254
      %v5277 = vpack.c.bf16 %v5257, %v5256
      %v5278 = vpack.c.bf16 %v5259, %v5258
      %v5279 = vpack.c.bf16 %v5261, %v5260
      %v5298 = vunpack.c.l.b16 %v5262
      %v5299 = vunpack.c.h.b16 %v5262
      %v5300 = vunpack.c.l.b16 %v5263
      %v5301 = vunpack.c.h.b16 %v5263
      %v5302 = vunpack.c.l.b16 %v5264
      %v5303 = vunpack.c.h.b16 %v5264
      %v5304 = vunpack.c.l.b16 %v5265
      %v5305 = vunpack.c.h.b16 %v5265
      %v5306 = vunpack.c.l.b16 %v5266
      %v5307 = vunpack.c.h.b16 %v5266
      %v5308 = vunpack.c.l.b16 %v5267
      %v5309 = vunpack.c.h.b16 %v5267
      %v5310 = vunpack.c.l.b16 %v5268
      %v5311 = vunpack.c.h.b16 %v5268
      %v5312 = vunpack.c.l.b16 %v5269
      %v5313 = vunpack.c.h.b16 %v5269
      %v5314 = vunpack.c.l.b16 %v5270
      %v5315 = vunpack.c.h.b16 %v5270
      %v5316 = vunpack.c.l.b16 %v5271
      %v5317 = vunpack.c.h.b16 %v5271
      %v5318 = vunpack.c.l.b16 %v5272
      %v5319 = vunpack.c.h.b16 %v5272
      %v5320 = vunpack.c.l.b16 %v5273
      %v5321 = vunpack.c.h.b16 %v5273
      %v5322 = vunpack.c.l.b16 %v5274
      %v5323 = vunpack.c.h.b16 %v5274
      %v5324 = vunpack.c.l.b16 %v5275
      %v5325 = vunpack.c.h.b16 %v5275
      %v5326 = vunpack.c.l.b16 %v5276
      %v5327 = vunpack.c.h.b16 %v5276
      %v5328 = vunpack.c.l.b16 %v5277
      %v5329 = vunpack.c.h.b16 %v5277
      %v5330 = vunpack.c.l.b16 %v5278
      %v5331 = vunpack.c.h.b16 %v5278
      %v5332 = vunpack.c.l.b16 %v5279
      %v5333 = vunpack.c.h.b16 %v5279
      %v5334 = vpack.c.b16 %v5298, %v5298
      %v5335 = vpack.c.b16 %v5299, %v5299
      %v5336 = vpack.c.b16 %v5300, %v5300
      %v5337 = vpack.c.b16 %v5301, %v5301
      %v5338 = vpack.c.b16 %v5302, %v5302
      %v5339 = vpack.c.b16 %v5303, %v5303
      %v5340 = vpack.c.b16 %v5304, %v5304
      %v5341 = vpack.c.b16 %v5305, %v5305
      %v5342 = vpack.c.b16 %v5306, %v5306
      %v5343 = vpack.c.b16 %v5307, %v5307
      %v5344 = vpack.c.b16 %v5308, %v5308
      %v5345 = vpack.c.b16 %v5309, %v5309
      %v5346 = vpack.c.b16 %v5310, %v5310
      %v5347 = vpack.c.b16 %v5311, %v5311
      %v5348 = vpack.c.b16 %v5312, %v5312
      %v5349 = vpack.c.b16 %v5313, %v5313
      %v5350 = vpack.c.b16 %v5314, %v5314
      %v5351 = vpack.c.b16 %v5315, %v5315
      %v5352 = vpack.c.b16 %v5316, %v5316
      %v5353 = vpack.c.b16 %v5317, %v5317
      %v5354 = vpack.c.b16 %v5318, %v5318
      %v5355 = vpack.c.b16 %v5319, %v5319
      %v5356 = vpack.c.b16 %v5320, %v5320
      %v5357 = vpack.c.b16 %v5321, %v5321
      %v5358 = vpack.c.b16 %v5322, %v5322
      %v5359 = vpack.c.b16 %v5323, %v5323
      %v5360 = vpack.c.b16 %v5324, %v5324
      %v5361 = vpack.c.b16 %v5325, %v5325
      %v5362 = vpack.c.b16 %v5326, %v5326
      %v5363 = vpack.c.b16 %v5327, %v5327
      %v5364 = vpack.c.b16 %v5328, %v5328
      %v5365 = vpack.c.b16 %v5329, %v5329
      %v5366 = vpack.c.b16 %v5330, %v5330
      %v5367 = vpack.c.b16 %v5331, %v5331
      %v5368 = vpack.c.b16 %v5332, %v5332
      %v5369 = vpack.c.b16 %v5333, %v5333
      %5370 = vrot.lane.b32.xlu0 %v5334, 4
      %v5371 = vpop.permute.xlu0 %5370
      %5372 = vrot.lane.b32.xlu0 %v5335, 4
      %v5373 = vpop.permute.xlu0 %5372
      %5374 = vrot.lane.b32.xlu0 %v5336, 4
      %v5375 = vpop.permute.xlu0 %5374
      %5376 = vrot.lane.b32.xlu0 %v5337, 4
      %v5377 = vpop.permute.xlu0 %5376
      %5378 = vrot.lane.b32.xlu0 %v5338, 4
      %v5379 = vpop.permute.xlu0 %5378
      %5380 = vrot.lane.b32.xlu0 %v5339, 4
      %v5381 = vpop.permute.xlu0 %5380
      %5382 = vrot.lane.b32.xlu0 %v5340, 4
      %v5383 = vpop.permute.xlu0 %5382
      %5384 = vrot.lane.b32.xlu0 %v5341, 4
      %v5385 = vpop.permute.xlu0 %5384
      %5386 = vrot.lane.b32.xlu0 %v5342, 4
      %v5387 = vpop.permute.xlu0 %5386
      %5388 = vrot.lane.b32.xlu0 %v5343, 4
      %v5389 = vpop.permute.xlu0 %5388
      %5390 = vrot.lane.b32.xlu0 %v5344, 4
      %v5391 = vpop.permute.xlu0 %5390
      %5392 = vrot.lane.b32.xlu0 %v5345, 4
      %v5393 = vpop.permute.xlu0 %5392
      %5394 = vrot.lane.b32.xlu0 %v5346, 4
      %v5395 = vpop.permute.xlu0 %5394
      %5396 = vrot.lane.b32.xlu0 %v5347, 4
      %v5397 = vpop.permute.xlu0 %5396
      %5398 = vrot.lane.b32.xlu0 %v5348, 4
      %v5399 = vpop.permute.xlu0 %5398
      %5400 = vrot.lane.b32.xlu0 %v5349, 4
      %v5401 = vpop.permute.xlu0 %5400
      %5402 = vrot.lane.b32.xlu0 %v5350, 4
      %v5403 = vpop.permute.xlu0 %5402
      %5404 = vrot.lane.b32.xlu0 %v5351, 4
      %v5405 = vpop.permute.xlu0 %5404
      %5406 = vrot.lane.b32.xlu0 %v5352, 4
      %v5407 = vpop.permute.xlu0 %5406
      %5408 = vrot.lane.b32.xlu0 %v5353, 4
      %v5409 = vpop.permute.xlu0 %5408
      %5410 = vrot.lane.b32.xlu0 %v5354, 4
      %v5411 = vpop.permute.xlu0 %5410
      %5412 = vrot.lane.b32.xlu0 %v5355, 4
      %v5413 = vpop.permute.xlu0 %5412
      %5414 = vrot.lane.b32.xlu0 %v5356, 4
      %v5415 = vpop.permute.xlu0 %5414
      %5416 = vrot.lane.b32.xlu0 %v5357, 4
      %v5417 = vpop.permute.xlu0 %5416
      %5418 = vrot.lane.b32.xlu0 %v5358, 4
      %v5419 = vpop.permute.xlu0 %5418
      %5420 = vrot.lane.b32.xlu0 %v5359, 4
      %v5421 = vpop.permute.xlu0 %5420
      %5422 = vrot.lane.b32.xlu0 %v5360, 4
      %v5423 = vpop.permute.xlu0 %5422
      %5424 = vrot.lane.b32.xlu0 %v5361, 4
      %v5425 = vpop.permute.xlu0 %5424
      %5426 = vrot.lane.b32.xlu0 %v5362, 4
      %v5427 = vpop.permute.xlu0 %5426
      %5428 = vrot.lane.b32.xlu0 %v5363, 4
      %v5429 = vpop.permute.xlu0 %5428
      %5430 = vrot.lane.b32.xlu0 %v5364, 4
      %v5431 = vpop.permute.xlu0 %5430
      %5432 = vrot.lane.b32.xlu0 %v5365, 4
      %v5433 = vpop.permute.xlu0 %5432
      %5434 = vrot.lane.b32.xlu0 %v5366, 4
      %v5435 = vpop.permute.xlu0 %5434
      %5436 = vrot.lane.b32.xlu0 %v5367, 4
      %v5437 = vpop.permute.xlu0 %5436
      %5438 = vrot.lane.b32.xlu0 %v5368, 4
      %v5439 = vpop.permute.xlu0 %5438
      %5440 = vrot.lane.b32.xlu0 %v5369, 4
      %v5441 = vpop.permute.xlu0 %5440
      %5478 = vst.msk [vmem:[#allocation3] sm:$0xf] %vm811, %v5371
      %5479 = vst.msk [vmem:[#allocation3 + $0x4] sm:$0xf] %vm811, %v5373
      %5480 = vst.msk [vmem:[#allocation3 + $0x8] sm:$0xf] %vm811, %v5375
      %5481 = vst.msk [vmem:[#allocation3 + $0xc] sm:$0xf] %vm811, %v5377
      %5482 = vst.msk [vmem:[#allocation3 + $0x10] sm:$0xf] %vm811, %v5379
      %5483 = vst.msk [vmem:[#allocation3 + $0x14] sm:$0xf] %vm811, %v5381
      %5484 = vst.msk [vmem:[#allocation3 + $0x18] sm:$0xf] %vm811, %v5383
      %5485 = vst.msk [vmem:[#allocation3 + $0x1c] sm:$0xf] %vm811, %v5385
      %5486 = vst.msk [vmem:[#allocation3 + $0x20] sm:$0xf] %vm811, %v5387
      %5487 = vst.msk [vmem:[#allocation3 + $0x24] sm:$0xf] %vm811, %v5389
      %5488 = vst.msk [vmem:[#allocation3 + $0x28] sm:$0xf] %vm811, %v5391
      %5489 = vst.msk [vmem:[#allocation3 + $0x2c] sm:$0xf] %vm811, %v5393
      %5490 = vst.msk [vmem:[#allocation3 + $0x30] sm:$0xf] %vm811, %v5395
      %5491 = vst.msk [vmem:[#allocation3 + $0x34] sm:$0xf] %vm811, %v5397
      %5492 = vst.msk [vmem:[#allocation3 + $0x38] sm:$0xf] %vm811, %v5399
      %5493 = vst.msk [vmem:[#allocation3 + $0x3c] sm:$0xf] %vm811, %v5401
      %5494 = vst.msk [vmem:[#allocation3 + $0x40] sm:$0xf] %vm811, %v5403
      %5495 = vst.msk [vmem:[#allocation3 + $0x44] sm:$0xf] %vm811, %v5405
      %5496 = vst.msk [vmem:[#allocation3 + $0x48] sm:$0xf] %vm811, %v5407
      %5497 = vst.msk [vmem:[#allocation3 + $0x4c] sm:$0xf] %vm811, %v5409
      %5498 = vst.msk [vmem:[#allocation3 + $0x50] sm:$0xf] %vm811, %v5411
      %5499 = vst.msk [vmem:[#allocation3 + $0x54] sm:$0xf] %vm811, %v5413
      %5500 = vst.msk [vmem:[#allocation3 + $0x58] sm:$0xf] %vm811, %v5415
      %5501 = vst.msk [vmem:[#allocation3 + $0x5c] sm:$0xf] %vm811, %v5417
      %5502 = vst.msk [vmem:[#allocation3 + $0x60] sm:$0xf] %vm811, %v5419
      %5503 = vst.msk [vmem:[#allocation3 + $0x64] sm:$0xf] %vm811, %v5421
      %5504 = vst.msk [vmem:[#allocation3 + $0x68] sm:$0xf] %vm811, %v5423
      %5505 = vst.msk [vmem:[#allocation3 + $0x6c] sm:$0xf] %vm811, %v5425
      %5506 = vst.msk [vmem:[#allocation3 + $0x70] sm:$0xf] %vm811, %v5427
      %5507 = vst.msk [vmem:[#allocation3 + $0x74] sm:$0xf] %vm811, %v5429
      %5508 = vst.msk [vmem:[#allocation3 + $0x78] sm:$0xf] %vm811, %v5431
      %5509 = vst.msk [vmem:[#allocation3 + $0x7c] sm:$0xf] %vm811, %v5433
      %5510 = vst.msk [vmem:[#allocation3 + $0x80] sm:$0xf] %vm811, %v5435
      %5511 = vst.msk [vmem:[#allocation3 + $0x84] sm:$0xf] %vm811, %v5437
      %5512 = vst.msk [vmem:[#allocation3 + $0x88] sm:$0xf] %vm811, %v5439
      %5513 = vst.msk [vmem:[#allocation3 + $0x8c] sm:$0xf] %vm811, %v5441
      %v5514 = vld [vmem:[#allocation2 + $0x2] sm:$0xff]
      %v5515 = vld [vmem:[#allocation2 + $0xa] sm:$0xff]
      %v5516 = vld [vmem:[#allocation2 + $0x12] sm:$0xff]
      %v5517 = vld [vmem:[#allocation2 + $0x1a] sm:$0xff]
      %v5518 = vld [vmem:[#allocation2 + $0x22] sm:$0xff]
      %v5519 = vld [vmem:[#allocation2 + $0x2a] sm:$0xff]
      %v5520 = vld [vmem:[#allocation2 + $0x32] sm:$0xff]
      %v5521 = vld [vmem:[#allocation2 + $0x3a] sm:$0xff]
      %v5522 = vld [vmem:[#allocation2 + $0x42] sm:$0xff]
      %v5523 = vld [vmem:[#allocation2 + $0x4a] sm:$0xff]
      %v5524 = vld [vmem:[#allocation2 + $0x52] sm:$0xff]
      %v5525 = vld [vmem:[#allocation2 + $0x5a] sm:$0xff]
      %v5526 = vld [vmem:[#allocation2 + $0x62] sm:$0xff]
      %v5527 = vld [vmem:[#allocation2 + $0x6a] sm:$0xff]
      %v5528 = vld [vmem:[#allocation2 + $0x72] sm:$0xff]
      %v5529 = vld [vmem:[#allocation2 + $0x7a] sm:$0xff]
      %v5530 = vld [vmem:[#allocation2 + $0x82] sm:$0xff]
      %v5531 = vld [vmem:[#allocation2 + $0x8a] sm:$0xff]
      %v5532 = vld [vmem:[#allocation2 + $0x92] sm:$0xff]
      %v5533 = vld [vmem:[#allocation2 + $0x9a] sm:$0xff]
      %v5534 = vld [vmem:[#allocation2 + $0xa2] sm:$0xff]
      %v5535 = vld [vmem:[#allocation2 + $0xaa] sm:$0xff]
      %v5536 = vld [vmem:[#allocation2 + $0xb2] sm:$0xff]
      %v5537 = vld [vmem:[#allocation2 + $0xba] sm:$0xff]
      %v5538 = vld [vmem:[#allocation2 + $0xc2] sm:$0xff]
      %v5539 = vld [vmem:[#allocation2 + $0xca] sm:$0xff]
      %v5540 = vld [vmem:[#allocation2 + $0xd2] sm:$0xff]
      %v5541 = vld [vmem:[#allocation2 + $0xda] sm:$0xff]
      %v5542 = vld [vmem:[#allocation2 + $0xe2] sm:$0xff]
      %v5543 = vld [vmem:[#allocation2 + $0xea] sm:$0xff]
      %v5544 = vld [vmem:[#allocation2 + $0xf2] sm:$0xff]
      %v5545 = vld [vmem:[#allocation2 + $0xfa] sm:$0xff]
      %v5546 = vld [vmem:[#allocation2 + $0x102] sm:$0xff]
      %v5547 = vld [vmem:[#allocation2 + $0x10a] sm:$0xff]
      %v5548 = vld [vmem:[#allocation2 + $0x112] sm:$0xff]
      %v5549 = vld [vmem:[#allocation2 + $0x11a] sm:$0xff]
      %v5550 = vpack.c.bf16 %v5515, %v5514
      %v5551 = vpack.c.bf16 %v5517, %v5516
      %v5552 = vpack.c.bf16 %v5519, %v5518
      %v5553 = vpack.c.bf16 %v5521, %v5520
      %v5554 = vpack.c.bf16 %v5523, %v5522
      %v5555 = vpack.c.bf16 %v5525, %v5524
      %v5556 = vpack.c.bf16 %v5527, %v5526
      %v5557 = vpack.c.bf16 %v5529, %v5528
      %v5558 = vpack.c.bf16 %v5531, %v5530
      %v5559 = vpack.c.bf16 %v5533, %v5532
      %v5560 = vpack.c.bf16 %v5535, %v5534
      %v5561 = vpack.c.bf16 %v5537, %v5536
      %v5562 = vpack.c.bf16 %v5539, %v5538
      %v5563 = vpack.c.bf16 %v5541, %v5540
      %v5564 = vpack.c.bf16 %v5543, %v5542
      %v5565 = vpack.c.bf16 %v5545, %v5544
      %v5566 = vpack.c.bf16 %v5547, %v5546
      %v5567 = vpack.c.bf16 %v5549, %v5548
      %v5586 = vunpack.c.l.b16 %v5550
      %v5587 = vunpack.c.h.b16 %v5550
      %v5588 = vunpack.c.l.b16 %v5551
      %v5589 = vunpack.c.h.b16 %v5551
      %v5590 = vunpack.c.l.b16 %v5552
      %v5591 = vunpack.c.h.b16 %v5552
      %v5592 = vunpack.c.l.b16 %v5553
      %v5593 = vunpack.c.h.b16 %v5553
      %v5594 = vunpack.c.l.b16 %v5554
      %v5595 = vunpack.c.h.b16 %v5554
      %v5596 = vunpack.c.l.b16 %v5555
      %v5597 = vunpack.c.h.b16 %v5555
      %v5598 = vunpack.c.l.b16 %v5556
      %v5599 = vunpack.c.h.b16 %v5556
      %v5600 = vunpack.c.l.b16 %v5557
      %v5601 = vunpack.c.h.b16 %v5557
      %v5602 = vunpack.c.l.b16 %v5558
      %v5603 = vunpack.c.h.b16 %v5558
      %v5604 = vunpack.c.l.b16 %v5559
      %v5605 = vunpack.c.h.b16 %v5559
      %v5606 = vunpack.c.l.b16 %v5560
      %v5607 = vunpack.c.h.b16 %v5560
      %v5608 = vunpack.c.l.b16 %v5561
      %v5609 = vunpack.c.h.b16 %v5561
      %v5610 = vunpack.c.l.b16 %v5562
      %v5611 = vunpack.c.h.b16 %v5562
      %v5612 = vunpack.c.l.b16 %v5563
      %v5613 = vunpack.c.h.b16 %v5563
      %v5614 = vunpack.c.l.b16 %v5564
      %v5615 = vunpack.c.h.b16 %v5564
      %v5616 = vunpack.c.l.b16 %v5565
      %v5617 = vunpack.c.h.b16 %v5565
      %v5618 = vunpack.c.l.b16 %v5566
      %v5619 = vunpack.c.h.b16 %v5566
      %v5620 = vunpack.c.l.b16 %v5567
      %v5621 = vunpack.c.h.b16 %v5567
      %v5622 = vpack.c.b16 %v5586, %v5586
      %v5623 = vpack.c.b16 %v5587, %v5587
      %v5624 = vpack.c.b16 %v5588, %v5588
      %v5625 = vpack.c.b16 %v5589, %v5589
      %v5626 = vpack.c.b16 %v5590, %v5590
      %v5627 = vpack.c.b16 %v5591, %v5591
      %v5628 = vpack.c.b16 %v5592, %v5592
      %v5629 = vpack.c.b16 %v5593, %v5593
      %v5630 = vpack.c.b16 %v5594, %v5594
      %v5631 = vpack.c.b16 %v5595, %v5595
      %v5632 = vpack.c.b16 %v5596, %v5596
      %v5633 = vpack.c.b16 %v5597, %v5597
      %v5634 = vpack.c.b16 %v5598, %v5598
      %v5635 = vpack.c.b16 %v5599, %v5599
      %v5636 = vpack.c.b16 %v5600, %v5600
      %v5637 = vpack.c.b16 %v5601, %v5601
      %v5638 = vpack.c.b16 %v5602, %v5602
      %v5639 = vpack.c.b16 %v5603, %v5603
      %v5640 = vpack.c.b16 %v5604, %v5604
      %v5641 = vpack.c.b16 %v5605, %v5605
      %v5642 = vpack.c.b16 %v5606, %v5606
      %v5643 = vpack.c.b16 %v5607, %v5607
      %v5644 = vpack.c.b16 %v5608, %v5608
      %v5645 = vpack.c.b16 %v5609, %v5609
      %v5646 = vpack.c.b16 %v5610, %v5610
      %v5647 = vpack.c.b16 %v5611, %v5611
      %v5648 = vpack.c.b16 %v5612, %v5612
      %v5649 = vpack.c.b16 %v5613, %v5613
      %v5650 = vpack.c.b16 %v5614, %v5614
      %v5651 = vpack.c.b16 %v5615, %v5615
      %v5652 = vpack.c.b16 %v5616, %v5616
      %v5653 = vpack.c.b16 %v5617, %v5617
      %v5654 = vpack.c.b16 %v5618, %v5618
      %v5655 = vpack.c.b16 %v5619, %v5619
      %v5656 = vpack.c.b16 %v5620, %v5620
      %v5657 = vpack.c.b16 %v5621, %v5621
      %5658 = vrot.lane.b32.xlu0 %v5622, 8
      %v5659 = vpop.permute.xlu0 %5658
      %5660 = vrot.lane.b32.xlu0 %v5623, 8
      %v5661 = vpop.permute.xlu0 %5660
      %5662 = vrot.lane.b32.xlu0 %v5624, 8
      %v5663 = vpop.permute.xlu0 %5662
      %5664 = vrot.lane.b32.xlu0 %v5625, 8
      %v5665 = vpop.permute.xlu0 %5664
      %5666 = vrot.lane.b32.xlu0 %v5626, 8
      %v5667 = vpop.permute.xlu0 %5666
      %5668 = vrot.lane.b32.xlu0 %v5627, 8
      %v5669 = vpop.permute.xlu0 %5668
      %5670 = vrot.lane.b32.xlu0 %v5628, 8
      %v5671 = vpop.permute.xlu0 %5670
      %5672 = vrot.lane.b32.xlu0 %v5629, 8
      %v5673 = vpop.permute.xlu0 %5672
      %5674 = vrot.lane.b32.xlu0 %v5630, 8
      %v5675 = vpop.permute.xlu0 %5674
      %5676 = vrot.lane.b32.xlu0 %v5631, 8
      %v5677 = vpop.permute.xlu0 %5676
      %5678 = vrot.lane.b32.xlu0 %v5632, 8
      %v5679 = vpop.permute.xlu0 %5678
      %5680 = vrot.lane.b32.xlu0 %v5633, 8
      %v5681 = vpop.permute.xlu0 %5680
      %5682 = vrot.lane.b32.xlu0 %v5634, 8
      %v5683 = vpop.permute.xlu0 %5682
      %5684 = vrot.lane.b32.xlu0 %v5635, 8
      %v5685 = vpop.permute.xlu0 %5684
      %5686 = vrot.lane.b32.xlu0 %v5636, 8
      %v5687 = vpop.permute.xlu0 %5686
      %5688 = vrot.lane.b32.xlu0 %v5637, 8
      %v5689 = vpop.permute.xlu0 %5688
      %5690 = vrot.lane.b32.xlu0 %v5638, 8
      %v5691 = vpop.permute.xlu0 %5690
      %5692 = vrot.lane.b32.xlu0 %v5639, 8
      %v5693 = vpop.permute.xlu0 %5692
      %5694 = vrot.lane.b32.xlu0 %v5640, 8
      %v5695 = vpop.permute.xlu0 %5694
      %5696 = vrot.lane.b32.xlu0 %v5641, 8
      %v5697 = vpop.permute.xlu0 %5696
      %5698 = vrot.lane.b32.xlu0 %v5642, 8
      %v5699 = vpop.permute.xlu0 %5698
      %5700 = vrot.lane.b32.xlu0 %v5643, 8
      %v5701 = vpop.permute.xlu0 %5700
      %5702 = vrot.lane.b32.xlu0 %v5644, 8
      %v5703 = vpop.permute.xlu0 %5702
      %5704 = vrot.lane.b32.xlu0 %v5645, 8
      %v5705 = vpop.permute.xlu0 %5704
      %5706 = vrot.lane.b32.xlu0 %v5646, 8
      %v5707 = vpop.permute.xlu0 %5706
      %5708 = vrot.lane.b32.xlu0 %v5647, 8
      %v5709 = vpop.permute.xlu0 %5708
      %5710 = vrot.lane.b32.xlu0 %v5648, 8
      %v5711 = vpop.permute.xlu0 %5710
      %5712 = vrot.lane.b32.xlu0 %v5649, 8
      %v5713 = vpop.permute.xlu0 %5712
      %5714 = vrot.lane.b32.xlu0 %v5650, 8
      %v5715 = vpop.permute.xlu0 %5714
      %5716 = vrot.lane.b32.xlu0 %v5651, 8
      %v5717 = vpop.permute.xlu0 %5716
      %5718 = vrot.lane.b32.xlu0 %v5652, 8
      %v5719 = vpop.permute.xlu0 %5718
      %5720 = vrot.lane.b32.xlu0 %v5653, 8
      %v5721 = vpop.permute.xlu0 %5720
      %5722 = vrot.lane.b32.xlu0 %v5654, 8
      %v5723 = vpop.permute.xlu0 %5722
      %5724 = vrot.lane.b32.xlu0 %v5655, 8
      %v5725 = vpop.permute.xlu0 %5724
      %5726 = vrot.lane.b32.xlu0 %v5656, 8
      %v5727 = vpop.permute.xlu0 %5726
      %5728 = vrot.lane.b32.xlu0 %v5657, 8
      %v5729 = vpop.permute.xlu0 %5728
      %5766 = vst.msk [vmem:[#allocation3] sm:$0xf] %vm1142, %v5659
      %5767 = vst.msk [vmem:[#allocation3 + $0x4] sm:$0xf] %vm1142, %v5661
      %5768 = vst.msk [vmem:[#allocation3 + $0x8] sm:$0xf] %vm1142, %v5663
      %5769 = vst.msk [vmem:[#allocation3 + $0xc] sm:$0xf] %vm1142, %v5665
      %5770 = vst.msk [vmem:[#allocation3 + $0x10] sm:$0xf] %vm1142, %v5667
      %5771 = vst.msk [vmem:[#allocation3 + $0x14] sm:$0xf] %vm1142, %v5669
      %5772 = vst.msk [vmem:[#allocation3 + $0x18] sm:$0xf] %vm1142, %v5671
      %5773 = vst.msk [vmem:[#allocation3 + $0x1c] sm:$0xf] %vm1142, %v5673
      %5774 = vst.msk [vmem:[#allocation3 + $0x20] sm:$0xf] %vm1142, %v5675
      %5775 = vst.msk [vmem:[#allocation3 + $0x24] sm:$0xf] %vm1142, %v5677
      %5776 = vst.msk [vmem:[#allocation3 + $0x28] sm:$0xf] %vm1142, %v5679
      %5777 = vst.msk [vmem:[#allocation3 + $0x2c] sm:$0xf] %vm1142, %v5681
      %5778 = vst.msk [vmem:[#allocation3 + $0x30] sm:$0xf] %vm1142, %v5683
      %5779 = vst.msk [vmem:[#allocation3 + $0x34] sm:$0xf] %vm1142, %v5685
      %5780 = vst.msk [vmem:[#allocation3 + $0x38] sm:$0xf] %vm1142, %v5687
      %5781 = vst.msk [vmem:[#allocation3 + $0x3c] sm:$0xf] %vm1142, %v5689
      %5782 = vst.msk [vmem:[#allocation3 + $0x40] sm:$0xf] %vm1142, %v5691
      %5783 = vst.msk [vmem:[#allocation3 + $0x44] sm:$0xf] %vm1142, %v5693
      %5784 = vst.msk [vmem:[#allocation3 + $0x48] sm:$0xf] %vm1142, %v5695
      %5785 = vst.msk [vmem:[#allocation3 + $0x4c] sm:$0xf] %vm1142, %v5697
      %5786 = vst.msk [vmem:[#allocation3 + $0x50] sm:$0xf] %vm1142, %v5699
      %5787 = vst.msk [vmem:[#allocation3 + $0x54] sm:$0xf] %vm1142, %v5701
      %5788 = vst.msk [vmem:[#allocation3 + $0x58] sm:$0xf] %vm1142, %v5703
      %5789 = vst.msk [vmem:[#allocation3 + $0x5c] sm:$0xf] %vm1142, %v5705
      %5790 = vst.msk [vmem:[#allocation3 + $0x60] sm:$0xf] %vm1142, %v5707
      %5791 = vst.msk [vmem:[#allocation3 + $0x64] sm:$0xf] %vm1142, %v5709
      %5792 = vst.msk [vmem:[#allocation3 + $0x68] sm:$0xf] %vm1142, %v5711
      %5793 = vst.msk [vmem:[#allocation3 + $0x6c] sm:$0xf] %vm1142, %v5713
      %5794 = vst.msk [vmem:[#allocation3 + $0x70] sm:$0xf] %vm1142, %v5715
      %5795 = vst.msk [vmem:[#allocation3 + $0x74] sm:$0xf] %vm1142, %v5717
      %5796 = vst.msk [vmem:[#allocation3 + $0x78] sm:$0xf] %vm1142, %v5719
      %5797 = vst.msk [vmem:[#allocation3 + $0x7c] sm:$0xf] %vm1142, %v5721
      %5798 = vst.msk [vmem:[#allocation3 + $0x80] sm:$0xf] %vm1142, %v5723
      %5799 = vst.msk [vmem:[#allocation3 + $0x84] sm:$0xf] %vm1142, %v5725
      %5800 = vst.msk [vmem:[#allocation3 + $0x88] sm:$0xf] %vm1142, %v5727
      %5801 = vst.msk [vmem:[#allocation3 + $0x8c] sm:$0xf] %vm1142, %v5729
      %v5802 = vld [vmem:[#allocation3] sm:$0xf]
      %v5803 = vld [vmem:[#allocation3 + $0x4] sm:$0xf]
      %v5804 = vld [vmem:[#allocation3 + $0x8] sm:$0xf]
      %v5805 = vld [vmem:[#allocation3 + $0xc] sm:$0xf]
      %v5806 = vld [vmem:[#allocation3 + $0x10] sm:$0xf]
      %v5807 = vld [vmem:[#allocation3 + $0x14] sm:$0xf]
      %v5808 = vld [vmem:[#allocation3 + $0x18] sm:$0xf]
      %v5809 = vld [vmem:[#allocation3 + $0x1c] sm:$0xf]
      %v5810 = vld [vmem:[#allocation3 + $0x20] sm:$0xf]
      %v5811 = vld [vmem:[#allocation3 + $0x24] sm:$0xf]
      %v5812 = vld [vmem:[#allocation3 + $0x28] sm:$0xf]
      %v5813 = vld [vmem:[#allocation3 + $0x2c] sm:$0xf]
      %v5814 = vld [vmem:[#allocation3 + $0x30] sm:$0xf]
      %v5815 = vld [vmem:[#allocation3 + $0x34] sm:$0xf]
      %v5816 = vld [vmem:[#allocation3 + $0x38] sm:$0xf]
      %v5817 = vld [vmem:[#allocation3 + $0x3c] sm:$0xf]
      %v5818 = vld [vmem:[#allocation3 + $0x40] sm:$0xf]
      %v5819 = vld [vmem:[#allocation3 + $0x44] sm:$0xf]
      %v5820 = vld [vmem:[#allocation3 + $0x48] sm:$0xf]
      %v5821 = vld [vmem:[#allocation3 + $0x4c] sm:$0xf]
      %v5822 = vld [vmem:[#allocation3 + $0x50] sm:$0xf]
      %v5823 = vld [vmem:[#allocation3 + $0x54] sm:$0xf]
      %v5824 = vld [vmem:[#allocation3 + $0x58] sm:$0xf]
      %v5825 = vld [vmem:[#allocation3 + $0x5c] sm:$0xf]
      %v5826 = vld [vmem:[#allocation3 + $0x60] sm:$0xf]
      %v5827 = vld [vmem:[#allocation3 + $0x64] sm:$0xf]
      %v5828 = vld [vmem:[#allocation3 + $0x68] sm:$0xf]
      %v5829 = vld [vmem:[#allocation3 + $0x6c] sm:$0xf]
      %v5830 = vld [vmem:[#allocation3 + $0x70] sm:$0xf]
      %v5831 = vld [vmem:[#allocation3 + $0x74] sm:$0xf]
      %v5832 = vld [vmem:[#allocation3 + $0x78] sm:$0xf]
      %v5833 = vld [vmem:[#allocation3 + $0x7c] sm:$0xf]
      %v5834 = vld [vmem:[#allocation3 + $0x80] sm:$0xf]
      %v5835 = vld [vmem:[#allocation3 + $0x84] sm:$0xf]
      %v5836 = vld [vmem:[#allocation3 + $0x88] sm:$0xf]
      %v5837 = vld [vmem:[#allocation3 + $0x8c] sm:$0xf]
      %v5838 = vld [vmem:[%s2] sm:$0xf]
      %v5839 = vld [vmem:[%s2 + $0x4] sm:$0x3]
      %v5840 = vld [vmem:[#allocation2 + $0x12] sm:$0xff]
      %v5841 = vld [vmem:[#allocation2 + $0x1a] sm:$0xff]
      %v5842 = vld [vmem:[#allocation2 + $0x22] sm:$0xff]
      %v5843 = vld [vmem:[#allocation2 + $0x2a] sm:$0xff]
      %v5844 = vld [vmem:[#allocation2 + $0x32] sm:$0xff]
      %v5845 = vld [vmem:[#allocation2 + $0x3a] sm:$0xff]
      %v5846 = vld [vmem:[#allocation2 + $0x42] sm:$0xff]
      %v5847 = vld [vmem:[#allocation2 + $0x4a] sm:$0xff]
      %v5848 = vld [vmem:[#allocation2 + $0x52] sm:$0xff]
      %v5849 = vld [vmem:[#allocation2 + $0x5a] sm:$0xff]
      %v5850 = vld [vmem:[#allocation2 + $0x62] sm:$0xff]
      %v5851 = vld [vmem:[#allocation2 + $0x6a] sm:$0xff]
      %v5852 = vld [vmem:[#allocation2 + $0x72] sm:$0xff]
      %v5853 = vld [vmem:[#allocation2 + $0x7a] sm:$0xff]
      %v5854 = vld [vmem:[#allocation2 + $0x82] sm:$0xff]
      %v5855 = vld [vmem:[#allocation2 + $0x8a] sm:$0xff]
      %v5856 = vld [vmem:[#allocation2 + $0x92] sm:$0xff]
      %v5857 = vld [vmem:[#allocation2 + $0x9a] sm:$0xff]
      %v5858 = vld [vmem:[#allocation2 + $0xa2] sm:$0xff]
      %v5859 = vld [vmem:[#allocation2 + $0xaa] sm:$0xff]
      %v5860 = vld [vmem:[#allocation2 + $0xb2] sm:$0xff]
      %v5861 = vld [vmem:[#allocation2 + $0xba] sm:$0xff]
      %v5862 = vld [vmem:[#allocation2 + $0xc2] sm:$0xff]
      %v5863 = vld [vmem:[#allocation2 + $0xca] sm:$0xff]
      %v5864 = vld [vmem:[#allocation2 + $0xd2] sm:$0xff]
      %v5865 = vld [vmem:[#allocation2 + $0xda] sm:$0xff]
      %v5866 = vld [vmem:[#allocation2 + $0xe2] sm:$0xff]
      %v5867 = vld [vmem:[#allocation2 + $0xea] sm:$0xff]
      %v5868 = vld [vmem:[#allocation2 + $0xf2] sm:$0xff]
      %v5869 = vld [vmem:[#allocation2 + $0xfa] sm:$0xff]
      %v5870 = vld [vmem:[#allocation2 + $0x102] sm:$0xff]
      %v5871 = vld [vmem:[#allocation2 + $0x10a] sm:$0xff]
      %v5872 = vld [vmem:[#allocation2 + $0x112] sm:$0xff]
      %v5873 = vld [vmem:[#allocation2 + $0x11a] sm:$0xff]
      %v5874 = vld [vmem:[#allocation2 + $0x122] sm:$0xff]
      %v5875 = vld [vmem:[#allocation2 + $0x12a] sm:$0xff]
      %v5876 = vpack.c.bf16 %v5841, %v5840
      %v5877 = vpack.c.bf16 %v5843, %v5842
      %v5878 = vpack.c.bf16 %v5845, %v5844
      %v5879 = vpack.c.bf16 %v5847, %v5846
      %v5880 = vpack.c.bf16 %v5849, %v5848
      %v5881 = vpack.c.bf16 %v5851, %v5850
      %v5882 = vpack.c.bf16 %v5853, %v5852
      %v5883 = vpack.c.bf16 %v5855, %v5854
      %v5884 = vpack.c.bf16 %v5857, %v5856
      %v5885 = vpack.c.bf16 %v5859, %v5858
      %v5886 = vpack.c.bf16 %v5861, %v5860
      %v5887 = vpack.c.bf16 %v5863, %v5862
      %v5888 = vpack.c.bf16 %v5865, %v5864
      %v5889 = vpack.c.bf16 %v5867, %v5866
      %v5890 = vpack.c.bf16 %v5869, %v5868
      %v5891 = vpack.c.bf16 %v5871, %v5870
      %v5892 = vpack.c.bf16 %v5873, %v5872
      %v5893 = vpack.c.bf16 %v5875, %v5874
      %v5912 = vunpack.c.l.b16 %v5876
      %v5913 = vunpack.c.h.b16 %v5876
      %v5914 = vunpack.c.l.b16 %v5877
      %v5915 = vunpack.c.h.b16 %v5877
      %v5916 = vunpack.c.l.b16 %v5878
      %v5917 = vunpack.c.h.b16 %v5878
      %v5918 = vunpack.c.l.b16 %v5879
      %v5919 = vunpack.c.h.b16 %v5879
      %v5920 = vunpack.c.l.b16 %v5880
      %v5921 = vunpack.c.h.b16 %v5880
      %v5922 = vunpack.c.l.b16 %v5881
      %v5923 = vunpack.c.h.b16 %v5881
      %v5924 = vunpack.c.l.b16 %v5882
      %v5925 = vunpack.c.h.b16 %v5882
      %v5926 = vunpack.c.l.b16 %v5883
      %v5927 = vunpack.c.h.b16 %v5883
      %v5928 = vunpack.c.l.b16 %v5884
      %v5929 = vunpack.c.h.b16 %v5884
      %v5930 = vunpack.c.l.b16 %v5885
      %v5931 = vunpack.c.h.b16 %v5885
      %v5932 = vunpack.c.l.b16 %v5886
      %v5933 = vunpack.c.h.b16 %v5886
      %v5934 = vunpack.c.l.b16 %v5887
      %v5935 = vunpack.c.h.b16 %v5887
      %v5936 = vunpack.c.l.b16 %v5888
      %v5937 = vunpack.c.h.b16 %v5888
      %v5938 = vunpack.c.l.b16 %v5889
      %v5939 = vunpack.c.h.b16 %v5889
      %v5940 = vunpack.c.l.b16 %v5890
      %v5941 = vunpack.c.h.b16 %v5890
      %v5942 = vunpack.c.l.b16 %v5891
      %v5943 = vunpack.c.h.b16 %v5891
      %v5944 = vunpack.c.l.b16 %v5892
      %v5945 = vunpack.c.h.b16 %v5892
      %v5946 = vunpack.c.l.b16 %v5893
      %v5947 = vunpack.c.h.b16 %v5893
      %v5948 = vpack.c.b16 %v5912, %v5912
      %v5949 = vpack.c.b16 %v5913, %v5913
      %v5950 = vpack.c.b16 %v5914, %v5914
      %v5951 = vpack.c.b16 %v5915, %v5915
      %v5952 = vpack.c.b16 %v5916, %v5916
      %v5953 = vpack.c.b16 %v5917, %v5917
      %v5954 = vpack.c.b16 %v5918, %v5918
      %v5955 = vpack.c.b16 %v5919, %v5919
      %v5956 = vpack.c.b16 %v5920, %v5920
      %v5957 = vpack.c.b16 %v5921, %v5921
      %v5958 = vpack.c.b16 %v5922, %v5922
      %v5959 = vpack.c.b16 %v5923, %v5923
      %v5960 = vpack.c.b16 %v5924, %v5924
      %v5961 = vpack.c.b16 %v5925, %v5925
      %v5962 = vpack.c.b16 %v5926, %v5926
      %v5963 = vpack.c.b16 %v5927, %v5927
      %v5964 = vpack.c.b16 %v5928, %v5928
      %v5965 = vpack.c.b16 %v5929, %v5929
      %v5966 = vpack.c.b16 %v5930, %v5930
      %v5967 = vpack.c.b16 %v5931, %v5931
      %v5968 = vpack.c.b16 %v5932, %v5932
      %v5969 = vpack.c.b16 %v5933, %v5933
      %v5970 = vpack.c.b16 %v5934, %v5934
      %v5971 = vpack.c.b16 %v5935, %v5935
      %v5972 = vpack.c.b16 %v5936, %v5936
      %v5973 = vpack.c.b16 %v5937, %v5937
      %v5974 = vpack.c.b16 %v5938, %v5938
      %v5975 = vpack.c.b16 %v5939, %v5939
      %v5976 = vpack.c.b16 %v5940, %v5940
      %v5977 = vpack.c.b16 %v5941, %v5941
      %v5978 = vpack.c.b16 %v5942, %v5942
      %v5979 = vpack.c.b16 %v5943, %v5943
      %v5980 = vpack.c.b16 %v5944, %v5944
      %v5981 = vpack.c.b16 %v5945, %v5945
      %v5982 = vpack.c.b16 %v5946, %v5946
      %v5983 = vpack.c.b16 %v5947, %v5947
      %6020 = vst.msk [vmem:[#allocation3] sm:$0xf] %vm262, %v5948
      %6021 = vst.msk [vmem:[#allocation3 + $0x4] sm:$0xf] %vm262, %v5949
      %6022 = vst.msk [vmem:[#allocation3 + $0x8] sm:$0xf] %vm262, %v5950
      %6023 = vst.msk [vmem:[#allocation3 + $0xc] sm:$0xf] %vm262, %v5951
      %6024 = vst.msk [vmem:[#allocation3 + $0x10] sm:$0xf] %vm262, %v5952
      %6025 = vst.msk [vmem:[#allocation3 + $0x14] sm:$0xf] %vm262, %v5953
      %6026 = vst.msk [vmem:[#allocation3 + $0x18] sm:$0xf] %vm262, %v5954
      %6027 = vst.msk [vmem:[#allocation3 + $0x1c] sm:$0xf] %vm262, %v5955
      %6028 = vst.msk [vmem:[#allocation3 + $0x20] sm:$0xf] %vm262, %v5956
      %6029 = vst.msk [vmem:[#allocation3 + $0x24] sm:$0xf] %vm262, %v5957
      %6030 = vst.msk [vmem:[#allocation3 + $0x28] sm:$0xf] %vm262, %v5958
      %6031 = vst.msk [vmem:[#allocation3 + $0x2c] sm:$0xf] %vm262, %v5959
      %6032 = vst.msk [vmem:[#allocation3 + $0x30] sm:$0xf] %vm262, %v5960
      %6033 = vst.msk [vmem:[#allocation3 + $0x34] sm:$0xf] %vm262, %v5961
      %6034 = vst.msk [vmem:[#allocation3 + $0x38] sm:$0xf] %vm262, %v5962
      %6035 = vst.msk [vmem:[#allocation3 + $0x3c] sm:$0xf] %vm262, %v5963
      %6036 = vst.msk [vmem:[#allocation3 + $0x40] sm:$0xf] %vm262, %v5964
      %6037 = vst.msk [vmem:[#allocation3 + $0x44] sm:$0xf] %vm262, %v5965
      %6038 = vst.msk [vmem:[#allocation3 + $0x48] sm:$0xf] %vm262, %v5966
      %6039 = vst.msk [vmem:[#allocation3 + $0x4c] sm:$0xf] %vm262, %v5967
      %6040 = vst.msk [vmem:[#allocation3 + $0x50] sm:$0xf] %vm262, %v5968
      %6041 = vst.msk [vmem:[#allocation3 + $0x54] sm:$0xf] %vm262, %v5969
      %6042 = vst.msk [vmem:[#allocation3 + $0x58] sm:$0xf] %vm262, %v5970
      %6043 = vst.msk [vmem:[#allocation3 + $0x5c] sm:$0xf] %vm262, %v5971
      %6044 = vst.msk [vmem:[#allocation3 + $0x60] sm:$0xf] %vm262, %v5972
      %6045 = vst.msk [vmem:[#allocation3 + $0x64] sm:$0xf] %vm262, %v5973
      %6046 = vst.msk [vmem:[#allocation3 + $0x68] sm:$0xf] %vm262, %v5974
      %6047 = vst.msk [vmem:[#allocation3 + $0x6c] sm:$0xf] %vm262, %v5975
      %6048 = vst.msk [vmem:[#allocation3 + $0x70] sm:$0xf] %vm262, %v5976
      %6049 = vst.msk [vmem:[#allocation3 + $0x74] sm:$0xf] %vm262, %v5977
      %6050 = vst.msk [vmem:[#allocation3 + $0x78] sm:$0xf] %vm262, %v5978
      %6051 = vst.msk [vmem:[#allocation3 + $0x7c] sm:$0xf] %vm262, %v5979
      %6052 = vst.msk [vmem:[#allocation3 + $0x80] sm:$0xf] %vm262, %v5980
      %6053 = vst.msk [vmem:[#allocation3 + $0x84] sm:$0xf] %vm262, %v5981
      %6054 = vst.msk [vmem:[#allocation3 + $0x88] sm:$0xf] %vm262, %v5982
      %6055 = vst.msk [vmem:[#allocation3 + $0x8c] sm:$0xf] %vm262, %v5983
      %v6056 = vld [vmem:[#allocation2 + $0x13] sm:$0xff]
      %v6057 = vld [vmem:[#allocation2 + $0x1b] sm:$0xff]
      %v6058 = vld [vmem:[#allocation2 + $0x23] sm:$0xff]
      %v6059 = vld [vmem:[#allocation2 + $0x2b] sm:$0xff]
      %v6060 = vld [vmem:[#allocation2 + $0x33] sm:$0xff]
      %v6061 = vld [vmem:[#allocation2 + $0x3b] sm:$0xff]
      %v6062 = vld [vmem:[#allocation2 + $0x43] sm:$0xff]
      %v6063 = vld [vmem:[#allocation2 + $0x4b] sm:$0xff]
      %v6064 = vld [vmem:[#allocation2 + $0x53] sm:$0xff]
      %v6065 = vld [vmem:[#allocation2 + $0x5b] sm:$0xff]
      %v6066 = vld [vmem:[#allocation2 + $0x63] sm:$0xff]
      %v6067 = vld [vmem:[#allocation2 + $0x6b] sm:$0xff]
      %v6068 = vld [vmem:[#allocation2 + $0x73] sm:$0xff]
      %v6069 = vld [vmem:[#allocation2 + $0x7b] sm:$0xff]
      %v6070 = vld [vmem:[#allocation2 + $0x83] sm:$0xff]
      %v6071 = vld [vmem:[#allocation2 + $0x8b] sm:$0xff]
      %v6072 = vld [vmem:[#allocation2 + $0x93] sm:$0xff]
      %v6073 = vld [vmem:[#allocation2 + $0x9b] sm:$0xff]
      %v6074 = vld [vmem:[#allocation2 + $0xa3] sm:$0xff]
      %v6075 = vld [vmem:[#allocation2 + $0xab] sm:$0xff]
      %v6076 = vld [vmem:[#allocation2 + $0xb3] sm:$0xff]
      %v6077 = vld [vmem:[#allocation2 + $0xbb] sm:$0xff]
      %v6078 = vld [vmem:[#allocation2 + $0xc3] sm:$0xff]
      %v6079 = vld [vmem:[#allocation2 + $0xcb] sm:$0xff]
      %v6080 = vld [vmem:[#allocation2 + $0xd3] sm:$0xff]
      %v6081 = vld [vmem:[#allocation2 + $0xdb] sm:$0xff]
      %v6082 = vld [vmem:[#allocation2 + $0xe3] sm:$0xff]
      %v6083 = vld [vmem:[#allocation2 + $0xeb] sm:$0xff]
      %v6084 = vld [vmem:[#allocation2 + $0xf3] sm:$0xff]
      %v6085 = vld [vmem:[#allocation2 + $0xfb] sm:$0xff]
      %v6086 = vld [vmem:[#allocation2 + $0x103] sm:$0xff]
      %v6087 = vld [vmem:[#allocation2 + $0x10b] sm:$0xff]
      %v6088 = vld [vmem:[#allocation2 + $0x113] sm:$0xff]
      %v6089 = vld [vmem:[#allocation2 + $0x11b] sm:$0xff]
      %v6090 = vld [vmem:[#allocation2 + $0x123] sm:$0xff]
      %v6091 = vld [vmem:[#allocation2 + $0x12b] sm:$0xff]
      %v6092 = vpack.c.bf16 %v6057, %v6056
      %v6093 = vpack.c.bf16 %v6059, %v6058
      %v6094 = vpack.c.bf16 %v6061, %v6060
      %v6095 = vpack.c.bf16 %v6063, %v6062
      %v6096 = vpack.c.bf16 %v6065, %v6064
      %v6097 = vpack.c.bf16 %v6067, %v6066
      %v6098 = vpack.c.bf16 %v6069, %v6068
      %v6099 = vpack.c.bf16 %v6071, %v6070
      %v6100 = vpack.c.bf16 %v6073, %v6072
      %v6101 = vpack.c.bf16 %v6075, %v6074
      %v6102 = vpack.c.bf16 %v6077, %v6076
      %v6103 = vpack.c.bf16 %v6079, %v6078
      %v6104 = vpack.c.bf16 %v6081, %v6080
      %v6105 = vpack.c.bf16 %v6083, %v6082
      %v6106 = vpack.c.bf16 %v6085, %v6084
      %v6107 = vpack.c.bf16 %v6087, %v6086
      %v6108 = vpack.c.bf16 %v6089, %v6088
      %v6109 = vpack.c.bf16 %v6091, %v6090
      %v6128 = vunpack.c.l.b16 %v6092
      %v6129 = vunpack.c.h.b16 %v6092
      %v6130 = vunpack.c.l.b16 %v6093
      %v6131 = vunpack.c.h.b16 %v6093
      %v6132 = vunpack.c.l.b16 %v6094
      %v6133 = vunpack.c.h.b16 %v6094
      %v6134 = vunpack.c.l.b16 %v6095
      %v6135 = vunpack.c.h.b16 %v6095
      %v6136 = vunpack.c.l.b16 %v6096
      %v6137 = vunpack.c.h.b16 %v6096
      %v6138 = vunpack.c.l.b16 %v6097
      %v6139 = vunpack.c.h.b16 %v6097
      %v6140 = vunpack.c.l.b16 %v6098
      %v6141 = vunpack.c.h.b16 %v6098
      %v6142 = vunpack.c.l.b16 %v6099
      %v6143 = vunpack.c.h.b16 %v6099
      %v6144 = vunpack.c.l.b16 %v6100
      %v6145 = vunpack.c.h.b16 %v6100
      %v6146 = vunpack.c.l.b16 %v6101
      %v6147 = vunpack.c.h.b16 %v6101
      %v6148 = vunpack.c.l.b16 %v6102
      %v6149 = vunpack.c.h.b16 %v6102
      %v6150 = vunpack.c.l.b16 %v6103
      %v6151 = vunpack.c.h.b16 %v6103
      %v6152 = vunpack.c.l.b16 %v6104
      %v6153 = vunpack.c.h.b16 %v6104
      %v6154 = vunpack.c.l.b16 %v6105
      %v6155 = vunpack.c.h.b16 %v6105
      %v6156 = vunpack.c.l.b16 %v6106
      %v6157 = vunpack.c.h.b16 %v6106
      %v6158 = vunpack.c.l.b16 %v6107
      %v6159 = vunpack.c.h.b16 %v6107
      %v6160 = vunpack.c.l.b16 %v6108
      %v6161 = vunpack.c.h.b16 %v6108
      %v6162 = vunpack.c.l.b16 %v6109
      %v6163 = vunpack.c.h.b16 %v6109
      %v6164 = vpack.c.b16 %v6128, %v6128
      %v6165 = vpack.c.b16 %v6129, %v6129
      %v6166 = vpack.c.b16 %v6130, %v6130
      %v6167 = vpack.c.b16 %v6131, %v6131
      %v6168 = vpack.c.b16 %v6132, %v6132
      %v6169 = vpack.c.b16 %v6133, %v6133
      %v6170 = vpack.c.b16 %v6134, %v6134
      %v6171 = vpack.c.b16 %v6135, %v6135
      %v6172 = vpack.c.b16 %v6136, %v6136
      %v6173 = vpack.c.b16 %v6137, %v6137
      %v6174 = vpack.c.b16 %v6138, %v6138
      %v6175 = vpack.c.b16 %v6139, %v6139
      %v6176 = vpack.c.b16 %v6140, %v6140
      %v6177 = vpack.c.b16 %v6141, %v6141
      %v6178 = vpack.c.b16 %v6142, %v6142
      %v6179 = vpack.c.b16 %v6143, %v6143
      %v6180 = vpack.c.b16 %v6144, %v6144
      %v6181 = vpack.c.b16 %v6145, %v6145
      %v6182 = vpack.c.b16 %v6146, %v6146
      %v6183 = vpack.c.b16 %v6147, %v6147
      %v6184 = vpack.c.b16 %v6148, %v6148
      %v6185 = vpack.c.b16 %v6149, %v6149
      %v6186 = vpack.c.b16 %v6150, %v6150
      %v6187 = vpack.c.b16 %v6151, %v6151
      %v6188 = vpack.c.b16 %v6152, %v6152
      %v6189 = vpack.c.b16 %v6153, %v6153
      %v6190 = vpack.c.b16 %v6154, %v6154
      %v6191 = vpack.c.b16 %v6155, %v6155
      %v6192 = vpack.c.b16 %v6156, %v6156
      %v6193 = vpack.c.b16 %v6157, %v6157
      %v6194 = vpack.c.b16 %v6158, %v6158
      %v6195 = vpack.c.b16 %v6159, %v6159
      %v6196 = vpack.c.b16 %v6160, %v6160
      %v6197 = vpack.c.b16 %v6161, %v6161
      %v6198 = vpack.c.b16 %v6162, %v6162
      %v6199 = vpack.c.b16 %v6163, %v6163
      %6200 = vrot.lane.b32.xlu0 %v6164, 4
      %v6201 = vpop.permute.xlu0 %6200
      %6202 = vrot.lane.b32.xlu0 %v6165, 4
      %v6203 = vpop.permute.xlu0 %6202
      %6204 = vrot.lane.b32.xlu0 %v6166, 4
      %v6205 = vpop.permute.xlu0 %6204
      %6206 = vrot.lane.b32.xlu0 %v6167, 4
      %v6207 = vpop.permute.xlu0 %6206
      %6208 = vrot.lane.b32.xlu0 %v6168, 4
      %v6209 = vpop.permute.xlu0 %6208
      %6210 = vrot.lane.b32.xlu0 %v6169, 4
      %v6211 = vpop.permute.xlu0 %6210
      %6212 = vrot.lane.b32.xlu0 %v6170, 4
      %v6213 = vpop.permute.xlu0 %6212
      %6214 = vrot.lane.b32.xlu0 %v6171, 4
      %v6215 = vpop.permute.xlu0 %6214
      %6216 = vrot.lane.b32.xlu0 %v6172, 4
      %v6217 = vpop.permute.xlu0 %6216
      %6218 = vrot.lane.b32.xlu0 %v6173, 4
      %v6219 = vpop.permute.xlu0 %6218
      %6220 = vrot.lane.b32.xlu0 %v6174, 4
      %v6221 = vpop.permute.xlu0 %6220
      %6222 = vrot.lane.b32.xlu0 %v6175, 4
      %v6223 = vpop.permute.xlu0 %6222
      %6224 = vrot.lane.b32.xlu0 %v6176, 4
      %v6225 = vpop.permute.xlu0 %6224
      %6226 = vrot.lane.b32.xlu0 %v6177, 4
      %v6227 = vpop.permute.xlu0 %6226
      %6228 = vrot.lane.b32.xlu0 %v6178, 4
      %v6229 = vpop.permute.xlu0 %6228
      %6230 = vrot.lane.b32.xlu0 %v6179, 4
      %v6231 = vpop.permute.xlu0 %6230
      %6232 = vrot.lane.b32.xlu0 %v6180, 4
      %v6233 = vpop.permute.xlu0 %6232
      %6234 = vrot.lane.b32.xlu0 %v6181, 4
      %v6235 = vpop.permute.xlu0 %6234
      %6236 = vrot.lane.b32.xlu0 %v6182, 4
      %v6237 = vpop.permute.xlu0 %6236
      %6238 = vrot.lane.b32.xlu0 %v6183, 4
      %v6239 = vpop.permute.xlu0 %6238
      %6240 = vrot.lane.b32.xlu0 %v6184, 4
      %v6241 = vpop.permute.xlu0 %6240
      %6242 = vrot.lane.b32.xlu0 %v6185, 4
      %v6243 = vpop.permute.xlu0 %6242
      %6244 = vrot.lane.b32.xlu0 %v6186, 4
      %v6245 = vpop.permute.xlu0 %6244
      %6246 = vrot.lane.b32.xlu0 %v6187, 4
      %v6247 = vpop.permute.xlu0 %6246
      %6248 = vrot.lane.b32.xlu0 %v6188, 4
      %v6249 = vpop.permute.xlu0 %6248
      %6250 = vrot.lane.b32.xlu0 %v6189, 4
      %v6251 = vpop.permute.xlu0 %6250
      %6252 = vrot.lane.b32.xlu0 %v6190, 4
      %v6253 = vpop.permute.xlu0 %6252
      %6254 = vrot.lane.b32.xlu0 %v6191, 4
      %v6255 = vpop.permute.xlu0 %6254
      %6256 = vrot.lane.b32.xlu0 %v6192, 4
      %v6257 = vpop.permute.xlu0 %6256
      %6258 = vrot.lane.b32.xlu0 %v6193, 4
      %v6259 = vpop.permute.xlu0 %6258
      %6260 = vrot.lane.b32.xlu0 %v6194, 4
      %v6261 = vpop.permute.xlu0 %6260
      %6262 = vrot.lane.b32.xlu0 %v6195, 4
      %v6263 = vpop.permute.xlu0 %6262
      %6264 = vrot.lane.b32.xlu0 %v6196, 4
      %v6265 = vpop.permute.xlu0 %6264
      %6266 = vrot.lane.b32.xlu0 %v6197, 4
      %v6267 = vpop.permute.xlu0 %6266
      %6268 = vrot.lane.b32.xlu0 %v6198, 4
      %v6269 = vpop.permute.xlu0 %6268
      %6270 = vrot.lane.b32.xlu0 %v6199, 4
      %v6271 = vpop.permute.xlu0 %6270
      %6308 = vst.msk [vmem:[#allocation3] sm:$0xf] %vm811, %v6201
      %6309 = vst.msk [vmem:[#allocation3 + $0x4] sm:$0xf] %vm811, %v6203
      %6310 = vst.msk [vmem:[#allocation3 + $0x8] sm:$0xf] %vm811, %v6205
      %6311 = vst.msk [vmem:[#allocation3 + $0xc] sm:$0xf] %vm811, %v6207
      %6312 = vst.msk [vmem:[#allocation3 + $0x10] sm:$0xf] %vm811, %v6209
      %6313 = vst.msk [vmem:[#allocation3 + $0x14] sm:$0xf] %vm811, %v6211
      %6314 = vst.msk [vmem:[#allocation3 + $0x18] sm:$0xf] %vm811, %v6213
      %6315 = vst.msk [vmem:[#allocation3 + $0x1c] sm:$0xf] %vm811, %v6215
      %6316 = vst.msk [vmem:[#allocation3 + $0x20] sm:$0xf] %vm811, %v6217
      %6317 = vst.msk [vmem:[#allocation3 + $0x24] sm:$0xf] %vm811, %v6219
      %6318 = vst.msk [vmem:[#allocation3 + $0x28] sm:$0xf] %vm811, %v6221
      %6319 = vst.msk [vmem:[#allocation3 + $0x2c] sm:$0xf] %vm811, %v6223
      %6320 = vst.msk [vmem:[#allocation3 + $0x30] sm:$0xf] %vm811, %v6225
      %6321 = vst.msk [vmem:[#allocation3 + $0x34] sm:$0xf] %vm811, %v6227
      %6322 = vst.msk [vmem:[#allocation3 + $0x38] sm:$0xf] %vm811, %v6229
      %6323 = vst.msk [vmem:[#allocation3 + $0x3c] sm:$0xf] %vm811, %v6231
      %6324 = vst.msk [vmem:[#allocation3 + $0x40] sm:$0xf] %vm811, %v6233
      %6325 = vst.msk [vmem:[#allocation3 + $0x44] sm:$0xf] %vm811, %v6235
      %6326 = vst.msk [vmem:[#allocation3 + $0x48] sm:$0xf] %vm811, %v6237
      %6327 = vst.msk [vmem:[#allocation3 + $0x4c] sm:$0xf] %vm811, %v6239
      %6328 = vst.msk [vmem:[#allocation3 + $0x50] sm:$0xf] %vm811, %v6241
      %6329 = vst.msk [vmem:[#allocation3 + $0x54] sm:$0xf] %vm811, %v6243
      %6330 = vst.msk [vmem:[#allocation3 + $0x58] sm:$0xf] %vm811, %v6245
      %6331 = vst.msk [vmem:[#allocation3 + $0x5c] sm:$0xf] %vm811, %v6247
      %6332 = vst.msk [vmem:[#allocation3 + $0x60] sm:$0xf] %vm811, %v6249
      %6333 = vst.msk [vmem:[#allocation3 + $0x64] sm:$0xf] %vm811, %v6251
      %6334 = vst.msk [vmem:[#allocation3 + $0x68] sm:$0xf] %vm811, %v6253
      %6335 = vst.msk [vmem:[#allocation3 + $0x6c] sm:$0xf] %vm811, %v6255
      %6336 = vst.msk [vmem:[#allocation3 + $0x70] sm:$0xf] %vm811, %v6257
      %6337 = vst.msk [vmem:[#allocation3 + $0x74] sm:$0xf] %vm811, %v6259
      %6338 = vst.msk [vmem:[#allocation3 + $0x78] sm:$0xf] %vm811, %v6261
      %6339 = vst.msk [vmem:[#allocation3 + $0x7c] sm:$0xf] %vm811, %v6263
      %6340 = vst.msk [vmem:[#allocation3 + $0x80] sm:$0xf] %vm811, %v6265
      %6341 = vst.msk [vmem:[#allocation3 + $0x84] sm:$0xf] %vm811, %v6267
      %6342 = vst.msk [vmem:[#allocation3 + $0x88] sm:$0xf] %vm811, %v6269
      %6343 = vst.msk [vmem:[#allocation3 + $0x8c] sm:$0xf] %vm811, %v6271
      %v6344 = vld [vmem:[#allocation2 + $0x14] sm:$0xff]
      %v6345 = vld [vmem:[#allocation2 + $0x1c] sm:$0xff]
      %v6346 = vld [vmem:[#allocation2 + $0x24] sm:$0xff]
      %v6347 = vld [vmem:[#allocation2 + $0x2c] sm:$0xff]
      %v6348 = vld [vmem:[#allocation2 + $0x34] sm:$0xff]
      %v6349 = vld [vmem:[#allocation2 + $0x3c] sm:$0xff]
      %v6350 = vld [vmem:[#allocation2 + $0x44] sm:$0xff]
      %v6351 = vld [vmem:[#allocation2 + $0x4c] sm:$0xff]
      %v6352 = vld [vmem:[#allocation2 + $0x54] sm:$0xff]
      %v6353 = vld [vmem:[#allocation2 + $0x5c] sm:$0xff]
      %v6354 = vld [vmem:[#allocation2 + $0x64] sm:$0xff]
      %v6355 = vld [vmem:[#allocation2 + $0x6c] sm:$0xff]
      %v6356 = vld [vmem:[#allocation2 + $0x74] sm:$0xff]
      %v6357 = vld [vmem:[#allocation2 + $0x7c] sm:$0xff]
      %v6358 = vld [vmem:[#allocation2 + $0x84] sm:$0xff]
      %v6359 = vld [vmem:[#allocation2 + $0x8c] sm:$0xff]
      %v6360 = vld [vmem:[#allocation2 + $0x94] sm:$0xff]
      %v6361 = vld [vmem:[#allocation2 + $0x9c] sm:$0xff]
      %v6362 = vld [vmem:[#allocation2 + $0xa4] sm:$0xff]
      %v6363 = vld [vmem:[#allocation2 + $0xac] sm:$0xff]
      %v6364 = vld [vmem:[#allocation2 + $0xb4] sm:$0xff]
      %v6365 = vld [vmem:[#allocation2 + $0xbc] sm:$0xff]
      %v6366 = vld [vmem:[#allocation2 + $0xc4] sm:$0xff]
      %v6367 = vld [vmem:[#allocation2 + $0xcc] sm:$0xff]
      %v6368 = vld [vmem:[#allocation2 + $0xd4] sm:$0xff]
      %v6369 = vld [vmem:[#allocation2 + $0xdc] sm:$0xff]
      %v6370 = vld [vmem:[#allocation2 + $0xe4] sm:$0xff]
      %v6371 = vld [vmem:[#allocation2 + $0xec] sm:$0xff]
      %v6372 = vld [vmem:[#allocation2 + $0xf4] sm:$0xff]
      %v6373 = vld [vmem:[#allocation2 + $0xfc] sm:$0xff]
      %v6374 = vld [vmem:[#allocation2 + $0x104] sm:$0xff]
      %v6375 = vld [vmem:[#allocation2 + $0x10c] sm:$0xff]
      %v6376 = vld [vmem:[#allocation2 + $0x114] sm:$0xff]
      %v6377 = vld [vmem:[#allocation2 + $0x11c] sm:$0xff]
      %v6378 = vld [vmem:[#allocation2 + $0x124] sm:$0xff]
      %v6379 = vld [vmem:[#allocation2 + $0x12c] sm:$0xff]
      %v6380 = vpack.c.bf16 %v6345, %v6344
      %v6381 = vpack.c.bf16 %v6347, %v6346
      %v6382 = vpack.c.bf16 %v6349, %v6348
      %v6383 = vpack.c.bf16 %v6351, %v6350
      %v6384 = vpack.c.bf16 %v6353, %v6352
      %v6385 = vpack.c.bf16 %v6355, %v6354
      %v6386 = vpack.c.bf16 %v6357, %v6356
      %v6387 = vpack.c.bf16 %v6359, %v6358
      %v6388 = vpack.c.bf16 %v6361, %v6360
      %v6389 = vpack.c.bf16 %v6363, %v6362
      %v6390 = vpack.c.bf16 %v6365, %v6364
      %v6391 = vpack.c.bf16 %v6367, %v6366
      %v6392 = vpack.c.bf16 %v6369, %v6368
      %v6393 = vpack.c.bf16 %v6371, %v6370
      %v6394 = vpack.c.bf16 %v6373, %v6372
      %v6395 = vpack.c.bf16 %v6375, %v6374
      %v6396 = vpack.c.bf16 %v6377, %v6376
      %v6397 = vpack.c.bf16 %v6379, %v6378
      %v6416 = vunpack.c.l.b16 %v6380
      %v6417 = vunpack.c.h.b16 %v6380
      %v6418 = vunpack.c.l.b16 %v6381
      %v6419 = vunpack.c.h.b16 %v6381
      %v6420 = vunpack.c.l.b16 %v6382
      %v6421 = vunpack.c.h.b16 %v6382
      %v6422 = vunpack.c.l.b16 %v6383
      %v6423 = vunpack.c.h.b16 %v6383
      %v6424 = vunpack.c.l.b16 %v6384
      %v6425 = vunpack.c.h.b16 %v6384
      %v6426 = vunpack.c.l.b16 %v6385
      %v6427 = vunpack.c.h.b16 %v6385
      %v6428 = vunpack.c.l.b16 %v6386
      %v6429 = vunpack.c.h.b16 %v6386
      %v6430 = vunpack.c.l.b16 %v6387
      %v6431 = vunpack.c.h.b16 %v6387
      %v6432 = vunpack.c.l.b16 %v6388
      %v6433 = vunpack.c.h.b16 %v6388
      %v6434 = vunpack.c.l.b16 %v6389
      %v6435 = vunpack.c.h.b16 %v6389
      %v6436 = vunpack.c.l.b16 %v6390
      %v6437 = vunpack.c.h.b16 %v6390
      %v6438 = vunpack.c.l.b16 %v6391
      %v6439 = vunpack.c.h.b16 %v6391
      %v6440 = vunpack.c.l.b16 %v6392
      %v6441 = vunpack.c.h.b16 %v6392
      %v6442 = vunpack.c.l.b16 %v6393
      %v6443 = vunpack.c.h.b16 %v6393
      %v6444 = vunpack.c.l.b16 %v6394
      %v6445 = vunpack.c.h.b16 %v6394
      %v6446 = vunpack.c.l.b16 %v6395
      %v6447 = vunpack.c.h.b16 %v6395
      %v6448 = vunpack.c.l.b16 %v6396
      %v6449 = vunpack.c.h.b16 %v6396
      %v6450 = vunpack.c.l.b16 %v6397
      %v6451 = vunpack.c.h.b16 %v6397
      %v6452 = vpack.c.b16 %v6416, %v6416
      %v6453 = vpack.c.b16 %v6417, %v6417
      %v6454 = vpack.c.b16 %v6418, %v6418
      %v6455 = vpack.c.b16 %v6419, %v6419
      %v6456 = vpack.c.b16 %v6420, %v6420
      %v6457 = vpack.c.b16 %v6421, %v6421
      %v6458 = vpack.c.b16 %v6422, %v6422
      %v6459 = vpack.c.b16 %v6423, %v6423
      %v6460 = vpack.c.b16 %v6424, %v6424
      %v6461 = vpack.c.b16 %v6425, %v6425
      %v6462 = vpack.c.b16 %v6426, %v6426
      %v6463 = vpack.c.b16 %v6427, %v6427
      %v6464 = vpack.c.b16 %v6428, %v6428
      %v6465 = vpack.c.b16 %v6429, %v6429
      %v6466 = vpack.c.b16 %v6430, %v6430
      %v6467 = vpack.c.b16 %v6431, %v6431
      %v6468 = vpack.c.b16 %v6432, %v6432
      %v6469 = vpack.c.b16 %v6433, %v6433
      %v6470 = vpack.c.b16 %v6434, %v6434
      %v6471 = vpack.c.b16 %v6435, %v6435
      %v6472 = vpack.c.b16 %v6436, %v6436
      %v6473 = vpack.c.b16 %v6437, %v6437
      %v6474 = vpack.c.b16 %v6438, %v6438
      %v6475 = vpack.c.b16 %v6439, %v6439
      %v6476 = vpack.c.b16 %v6440, %v6440
      %v6477 = vpack.c.b16 %v6441, %v6441
      %v6478 = vpack.c.b16 %v6442, %v6442
      %v6479 = vpack.c.b16 %v6443, %v6443
      %v6480 = vpack.c.b16 %v6444, %v6444
      %v6481 = vpack.c.b16 %v6445, %v6445
      %v6482 = vpack.c.b16 %v6446, %v6446
      %v6483 = vpack.c.b16 %v6447, %v6447
      %v6484 = vpack.c.b16 %v6448, %v6448
      %v6485 = vpack.c.b16 %v6449, %v6449
      %v6486 = vpack.c.b16 %v6450, %v6450
      %v6487 = vpack.c.b16 %v6451, %v6451
      %6488 = vrot.lane.b32.xlu0 %v6452, 8
      %v6489 = vpop.permute.xlu0 %6488
      %6490 = vrot.lane.b32.xlu0 %v6453, 8
      %v6491 = vpop.permute.xlu0 %6490
      %6492 = vrot.lane.b32.xlu0 %v6454, 8
      %v6493 = vpop.permute.xlu0 %6492
      %6494 = vrot.lane.b32.xlu0 %v6455, 8
      %v6495 = vpop.permute.xlu0 %6494
      %6496 = vrot.lane.b32.xlu0 %v6456, 8
      %v6497 = vpop.permute.xlu0 %6496
      %6498 = vrot.lane.b32.xlu0 %v6457, 8
      %v6499 = vpop.permute.xlu0 %6498
      %6500 = vrot.lane.b32.xlu0 %v6458, 8
      %v6501 = vpop.permute.xlu0 %6500
      %6502 = vrot.lane.b32.xlu0 %v6459, 8
      %v6503 = vpop.permute.xlu0 %6502
      %6504 = vrot.lane.b32.xlu0 %v6460, 8
      %v6505 = vpop.permute.xlu0 %6504
      %6506 = vrot.lane.b32.xlu0 %v6461, 8
      %v6507 = vpop.permute.xlu0 %6506
      %6508 = vrot.lane.b32.xlu0 %v6462, 8
      %v6509 = vpop.permute.xlu0 %6508
      %6510 = vrot.lane.b32.xlu0 %v6463, 8
      %v6511 = vpop.permute.xlu0 %6510
      %6512 = vrot.lane.b32.xlu0 %v6464, 8
      %v6513 = vpop.permute.xlu0 %6512
      %6514 = vrot.lane.b32.xlu0 %v6465, 8
      %v6515 = vpop.permute.xlu0 %6514
      %6516 = vrot.lane.b32.xlu0 %v6466, 8
      %v6517 = vpop.permute.xlu0 %6516
      %6518 = vrot.lane.b32.xlu0 %v6467, 8
      %v6519 = vpop.permute.xlu0 %6518
      %6520 = vrot.lane.b32.xlu0 %v6468, 8
      %v6521 = vpop.permute.xlu0 %6520
      %6522 = vrot.lane.b32.xlu0 %v6469, 8
      %v6523 = vpop.permute.xlu0 %6522
      %6524 = vrot.lane.b32.xlu0 %v6470, 8
      %v6525 = vpop.permute.xlu0 %6524
      %6526 = vrot.lane.b32.xlu0 %v6471, 8
      %v6527 = vpop.permute.xlu0 %6526
      %6528 = vrot.lane.b32.xlu0 %v6472, 8
      %v6529 = vpop.permute.xlu0 %6528
      %6530 = vrot.lane.b32.xlu0 %v6473, 8
      %v6531 = vpop.permute.xlu0 %6530
      %6532 = vrot.lane.b32.xlu0 %v6474, 8
      %v6533 = vpop.permute.xlu0 %6532
      %6534 = vrot.lane.b32.xlu0 %v6475, 8
      %v6535 = vpop.permute.xlu0 %6534
      %6536 = vrot.lane.b32.xlu0 %v6476, 8
      %v6537 = vpop.permute.xlu0 %6536
      %6538 = vrot.lane.b32.xlu0 %v6477, 8
      %v6539 = vpop.permute.xlu0 %6538
      %6540 = vrot.lane.b32.xlu0 %v6478, 8
      %v6541 = vpop.permute.xlu0 %6540
      %6542 = vrot.lane.b32.xlu0 %v6479, 8
      %v6543 = vpop.permute.xlu0 %6542
      %6544 = vrot.lane.b32.xlu0 %v6480, 8
      %v6545 = vpop.permute.xlu0 %6544
      %6546 = vrot.lane.b32.xlu0 %v6481, 8
      %v6547 = vpop.permute.xlu0 %6546
      %6548 = vrot.lane.b32.xlu0 %v6482, 8
      %v6549 = vpop.permute.xlu0 %6548
      %6550 = vrot.lane.b32.xlu0 %v6483, 8
      %v6551 = vpop.permute.xlu0 %6550
      %6552 = vrot.lane.b32.xlu0 %v6484, 8
      %v6553 = vpop.permute.xlu0 %6552
      %6554 = vrot.lane.b32.xlu0 %v6485, 8
      %v6555 = vpop.permute.xlu0 %6554
      %6556 = vrot.lane.b32.xlu0 %v6486, 8
      %v6557 = vpop.permute.xlu0 %6556
      %6558 = vrot.lane.b32.xlu0 %v6487, 8
      %v6559 = vpop.permute.xlu0 %6558
      %6596 = vst.msk [vmem:[#allocation3] sm:$0xf] %vm1142, %v6489
      %6597 = vst.msk [vmem:[#allocation3 + $0x4] sm:$0xf] %vm1142, %v6491
      %6598 = vst.msk [vmem:[#allocation3 + $0x8] sm:$0xf] %vm1142, %v6493
      %6599 = vst.msk [vmem:[#allocation3 + $0xc] sm:$0xf] %vm1142, %v6495
      %6600 = vst.msk [vmem:[#allocation3 + $0x10] sm:$0xf] %vm1142, %v6497
      %6601 = vst.msk [vmem:[#allocation3 + $0x14] sm:$0xf] %vm1142, %v6499
      %6602 = vst.msk [vmem:[#allocation3 + $0x18] sm:$0xf] %vm1142, %v6501
      %6603 = vst.msk [vmem:[#allocation3 + $0x1c] sm:$0xf] %vm1142, %v6503
      %6604 = vst.msk [vmem:[#allocation3 + $0x20] sm:$0xf] %vm1142, %v6505
      %6605 = vst.msk [vmem:[#allocation3 + $0x24] sm:$0xf] %vm1142, %v6507
      %6606 = vst.msk [vmem:[#allocation3 + $0x28] sm:$0xf] %vm1142, %v6509
      %6607 = vst.msk [vmem:[#allocation3 + $0x2c] sm:$0xf] %vm1142, %v6511
      %6608 = vst.msk [vmem:[#allocation3 + $0x30] sm:$0xf] %vm1142, %v6513
      %6609 = vst.msk [vmem:[#allocation3 + $0x34] sm:$0xf] %vm1142, %v6515
      %6610 = vst.msk [vmem:[#allocation3 + $0x38] sm:$0xf] %vm1142, %v6517
      %6611 = vst.msk [vmem:[#allocation3 + $0x3c] sm:$0xf] %vm1142, %v6519
      %6612 = vst.msk [vmem:[#allocation3 + $0x40] sm:$0xf] %vm1142, %v6521
      %6613 = vst.msk [vmem:[#allocation3 + $0x44] sm:$0xf] %vm1142, %v6523
      %6614 = vst.msk [vmem:[#allocation3 + $0x48] sm:$0xf] %vm1142, %v6525
      %6615 = vst.msk [vmem:[#allocation3 + $0x4c] sm:$0xf] %vm1142, %v6527
      %6616 = vst.msk [vmem:[#allocation3 + $0x50] sm:$0xf] %vm1142, %v6529
      %6617 = vst.msk [vmem:[#allocation3 + $0x54] sm:$0xf] %vm1142, %v6531
      %6618 = vst.msk [vmem:[#allocation3 + $0x58] sm:$0xf] %vm1142, %v6533
      %6619 = vst.msk [vmem:[#allocation3 + $0x5c] sm:$0xf] %vm1142, %v6535
      %6620 = vst.msk [vmem:[#allocation3 + $0x60] sm:$0xf] %vm1142, %v6537
      %6621 = vst.msk [vmem:[#allocation3 + $0x64] sm:$0xf] %vm1142, %v6539
      %6622 = vst.msk [vmem:[#allocation3 + $0x68] sm:$0xf] %vm1142, %v6541
      %6623 = vst.msk [vmem:[#allocation3 + $0x6c] sm:$0xf] %vm1142, %v6543
      %6624 = vst.msk [vmem:[#allocation3 + $0x70] sm:$0xf] %vm1142, %v6545
      %6625 = vst.msk [vmem:[#allocation3 + $0x74] sm:$0xf] %vm1142, %v6547
      %6626 = vst.msk [vmem:[#allocation3 + $0x78] sm:$0xf] %vm1142, %v6549
      %6627 = vst.msk [vmem:[#allocation3 + $0x7c] sm:$0xf] %vm1142, %v6551
      %6628 = vst.msk [vmem:[#allocation3 + $0x80] sm:$0xf] %vm1142, %v6553
      %6629 = vst.msk [vmem:[#allocation3 + $0x84] sm:$0xf] %vm1142, %v6555
      %6630 = vst.msk [vmem:[#allocation3 + $0x88] sm:$0xf] %vm1142, %v6557
      %6631 = vst.msk [vmem:[#allocation3 + $0x8c] sm:$0xf] %vm1142, %v6559
      %v6632 = vld [vmem:[#allocation3] sm:$0xf]
      %v6633 = vld [vmem:[#allocation3 + $0x4] sm:$0xf]
      %v6634 = vld [vmem:[#allocation3 + $0x8] sm:$0xf]
      %v6635 = vld [vmem:[#allocation3 + $0xc] sm:$0xf]
      %v6636 = vld [vmem:[#allocation3 + $0x10] sm:$0xf]
      %v6637 = vld [vmem:[#allocation3 + $0x14] sm:$0xf]
      %v6638 = vld [vmem:[#allocation3 + $0x18] sm:$0xf]
      %v6639 = vld [vmem:[#allocation3 + $0x1c] sm:$0xf]
      %v6640 = vld [vmem:[#allocation3 + $0x20] sm:$0xf]
      %v6641 = vld [vmem:[#allocation3 + $0x24] sm:$0xf]
      %v6642 = vld [vmem:[#allocation3 + $0x28] sm:$0xf]
      %v6643 = vld [vmem:[#allocation3 + $0x2c] sm:$0xf]
      %v6644 = vld [vmem:[#allocation3 + $0x30] sm:$0xf]
      %v6645 = vld [vmem:[#allocation3 + $0x34] sm:$0xf]
      %v6646 = vld [vmem:[#allocation3 + $0x38] sm:$0xf]
      %v6647 = vld [vmem:[#allocation3 + $0x3c] sm:$0xf]
      %v6648 = vld [vmem:[#allocation3 + $0x40] sm:$0xf]
      %v6649 = vld [vmem:[#allocation3 + $0x44] sm:$0xf]
      %v6650 = vld [vmem:[#allocation3 + $0x48] sm:$0xf]
      %v6651 = vld [vmem:[#allocation3 + $0x4c] sm:$0xf]
      %v6652 = vld [vmem:[#allocation3 + $0x50] sm:$0xf]
      %v6653 = vld [vmem:[#allocation3 + $0x54] sm:$0xf]
      %v6654 = vld [vmem:[#allocation3 + $0x58] sm:$0xf]
      %v6655 = vld [vmem:[#allocation3 + $0x5c] sm:$0xf]
      %v6656 = vld [vmem:[#allocation3 + $0x60] sm:$0xf]
      %v6657 = vld [vmem:[#allocation3 + $0x64] sm:$0xf]
      %v6658 = vld [vmem:[#allocation3 + $0x68] sm:$0xf]
      %v6659 = vld [vmem:[#allocation3 + $0x6c] sm:$0xf]
      %v6660 = vld [vmem:[#allocation3 + $0x70] sm:$0xf]
      %v6661 = vld [vmem:[#allocation3 + $0x74] sm:$0xf]
      %v6662 = vld [vmem:[#allocation3 + $0x78] sm:$0xf]
      %v6663 = vld [vmem:[#allocation3 + $0x7c] sm:$0xf]
      %v6664 = vld [vmem:[#allocation3 + $0x80] sm:$0xf]
      %v6665 = vld [vmem:[#allocation3 + $0x84] sm:$0xf]
      %v6666 = vld [vmem:[#allocation3 + $0x88] sm:$0xf]
      %v6667 = vld [vmem:[#allocation3 + $0x8c] sm:$0xf]
      %s6668 = scalar_lea.vmem %s2, 8
      %v6669 = vld [vmem:[%s6668] sm:$0xf]
      %v6670 = vld [vmem:[%s6668 + $0x4] sm:$0x3]
      %v6707 = vunpack.c.l.b16 %v6632
      %v6708 = vunpack.c.l.b16 %v6633
      %v6709 = vunpack.c.l.b16 %v6634
      %v6710 = vunpack.c.l.b16 %v6635
      %v6711 = vunpack.c.l.b16 %v6636
      %v6712 = vunpack.c.l.b16 %v6637
      %v6713 = vunpack.c.l.b16 %v6638
      %v6714 = vunpack.c.l.b16 %v6639
      %v6715 = vunpack.c.l.b16 %v6640
      %v6716 = vunpack.c.l.b16 %v6641
      %v6717 = vunpack.c.l.b16 %v6642
      %v6718 = vunpack.c.l.b16 %v6643
      %v6719 = vunpack.c.l.b16 %v6644
      %v6720 = vunpack.c.l.b16 %v6645
      %v6721 = vunpack.c.l.b16 %v6646
      %v6722 = vunpack.c.l.b16 %v6647
      %v6723 = vunpack.c.l.b16 %v6648
      %v6724 = vunpack.c.l.b16 %v6649
      %v6725 = vunpack.c.l.b16 %v6650
      %v6726 = vunpack.c.l.b16 %v6651
      %v6727 = vunpack.c.l.b16 %v6652
      %v6728 = vunpack.c.l.b16 %v6653
      %v6729 = vunpack.c.l.b16 %v6654
      %v6730 = vunpack.c.l.b16 %v6655
      %v6731 = vunpack.c.l.b16 %v6656
      %v6732 = vunpack.c.l.b16 %v6657
      %v6733 = vunpack.c.l.b16 %v6658
      %v6734 = vunpack.c.l.b16 %v6659
      %v6735 = vunpack.c.l.b16 %v6660
      %v6736 = vunpack.c.l.b16 %v6661
      %v6737 = vunpack.c.l.b16 %v6662
      %v6738 = vunpack.c.l.b16 %v6663
      %v6739 = vunpack.c.l.b16 %v6664
      %v6740 = vunpack.c.l.b16 %v6665
      %v6741 = vunpack.c.l.b16 %v6666
      %v6742 = vunpack.c.l.b16 %v6667
      %v6743 = vpack.c.b16 %v6708, %v6707
      %v6744 = vpack.c.b16 %v6710, %v6709
      %v6745 = vpack.c.b16 %v6712, %v6711
      %v6746 = vpack.c.b16 %v6714, %v6713
      %v6747 = vpack.c.b16 %v6716, %v6715
      %v6748 = vpack.c.b16 %v6718, %v6717
      %v6749 = vpack.c.b16 %v6720, %v6719
      %v6750 = vpack.c.b16 %v6722, %v6721
      %v6751 = vpack.c.b16 %v6724, %v6723
      %v6752 = vpack.c.b16 %v6726, %v6725
      %v6753 = vpack.c.b16 %v6728, %v6727
      %v6754 = vpack.c.b16 %v6730, %v6729
      %v6755 = vpack.c.b16 %v6732, %v6731
      %v6756 = vpack.c.b16 %v6734, %v6733
      %v6757 = vpack.c.b16 %v6736, %v6735
      %v6758 = vpack.c.b16 %v6738, %v6737
      %v6759 = vpack.c.b16 %v6740, %v6739
      %v6760 = vpack.c.b16 %v6742, %v6741
      %v6763 = vunpack.c.l.b16 %v6669
      %v6764 = vunpack.c.l.b16 %v6670
      %v6765 = vpack.c.b16 %v6764, %v6763
      %v6767 = vsel %vm2488, %v6743, 0
      %v6770 = vsel %vm2488, %v6744, 0
      %v6773 = vsel %vm2488, %v6745, 0
      %v6776 = vsel %vm2488, %v6746, 0
      %v6779 = vsel %vm2488, %v6747, 0
      %v6782 = vsel %vm2488, %v6748, 0
      %v6785 = vsel %vm2488, %v6749, 0
      %v6788 = vsel %vm2488, %v6750, 0
      %v6791 = vsel %vm2488, %v6751, 0
      %v6794 = vsel %vm2488, %v6752, 0
      %v6797 = vsel %vm2488, %v6753, 0
      %v6800 = vsel %vm2488, %v6754, 0
      %v6803 = vsel %vm2488, %v6755, 0
      %v6806 = vsel %vm2488, %v6756, 0
      %v6809 = vsel %vm2488, %v6757, 0
      %v6812 = vsel %vm2488, %v6758, 0
      %v6815 = vsel %vm2488, %v6759, 0
      %v6818 = vsel %vm2488, %v6760, 0
      %v6821 = vsel %vm2543, %v6765, 0
      %6823 = vmatprep.subr.bf16.mxu0 0
      %6824 = vmatpush1.bf16.msra.mxu0 0
      %6825 = vmatprep.subr.bf16.mxu0 0
      %6826 = vmatpush1.bf16.msra.mxu0 0
      %6827 = vmatprep.subr.bf16.mxu0 0
      %6828 = vmatpush1.bf16.msra.mxu0 0
      %6829 = vmatprep.subr.bf16.mxu0 0
      %6830 = vmatpush1.bf16.msra.mxu0 0
      %6831 = vmatprep.subr.bf16.mxu0 0
      %6832 = vmatpush1.bf16.msra.mxu0 0
      %6833 = vmatprep.subr.bf16.mxu0 0
      %6834 = vmatpush1.bf16.msra.mxu0 0
      %6835 = vmatprep.subr.bf16.mxu0 0
      %6836 = vmatpush1.bf16.msra.mxu0 0
      %6837 = vmatprep.subr.bf16.mxu0 0
      %6838 = vmatpush1.bf16.msra.mxu0 %v6821
      %6839 = vmatprep.subr.bf16.mxu0 0
      %6840 = vmatpush2.bf16.msra.mxu0 0
      %6841 = vmatprep.subr.bf16.mxu0 0
      %6842 = vmatpush2.bf16.msra.mxu0 0
      %6843 = vmatprep.subr.bf16.mxu0 0
      %6844 = vmatpush2.bf16.msra.mxu0 0
      %6845 = vmatprep.subr.bf16.mxu0 0
      %6846 = vmatpush2.bf16.msra.mxu0 0
      %6847 = vmatprep.subr.bf16.mxu0 0
      %6848 = vmatpush2.bf16.msra.mxu0 0
      %6849 = vmatprep.subr.bf16.mxu0 0
      %6850 = vmatpush2.bf16.msra.mxu0 0
      %6851 = vmatprep.subr.bf16.mxu0 0
      %6852 = vmatpush2.bf16.msra.mxu0 0
      %6853 = vmatprep.subr.bf16.mxu0 0
      %6854 = vmatpush2.bf16.msra.mxu0 0
      %6855 = vmatprep.mubr.bf16.mxu0 0
      %6856 = vmatmul.mubr.bf16.gmra.mxu0 %v6767
      %v6857 = vpop.f32.mrf.mxu0
      %v6858 = vadd.f32 0.0, %v6857
      %v6859 = vpop.f32.mrf.mxu0
      %v6860 = vpop.f32.mrf.mxu0
      %v6861 = vadd.f32 0.0, %v6860
      %v6862 = vpop.f32.mrf.mxu0
      %6863 = vmatprep.mubr.bf16.mxu0 0
      %6864 = vmatmul.mubr.bf16.gmra.mxu0 %v6770
      %v6865 = vpop.f32.mrf.mxu0
      %v6866 = vadd.f32 0.0, %v6865
      %v6867 = vpop.f32.mrf.mxu0
      %v6868 = vpop.f32.mrf.mxu0
      %v6869 = vadd.f32 0.0, %v6868
      %v6870 = vpop.f32.mrf.mxu0
      %6871 = vmatprep.mubr.bf16.mxu0 0
      %6872 = vmatmul.mubr.bf16.gmra.mxu0 %v6773
      %v6873 = vpop.f32.mrf.mxu0
      %v6874 = vadd.f32 0.0, %v6873
      %v6875 = vpop.f32.mrf.mxu0
      %v6876 = vpop.f32.mrf.mxu0
      %v6877 = vadd.f32 0.0, %v6876
      %v6878 = vpop.f32.mrf.mxu0
      %6879 = vmatprep.mubr.bf16.mxu0 0
      %6880 = vmatmul.mubr.bf16.gmra.mxu0 %v6776
      %v6881 = vpop.f32.mrf.mxu0
      %v6882 = vadd.f32 0.0, %v6881
      %v6883 = vpop.f32.mrf.mxu0
      %v6884 = vpop.f32.mrf.mxu0
      %v6885 = vadd.f32 0.0, %v6884
      %v6886 = vpop.f32.mrf.mxu0
      %6887 = vmatprep.mubr.bf16.mxu0 0
      %6888 = vmatmul.mubr.bf16.gmra.mxu0 %v6779
      %v6889 = vpop.f32.mrf.mxu0
      %v6890 = vadd.f32 0.0, %v6889
      %v6891 = vpop.f32.mrf.mxu0
      %v6892 = vpop.f32.mrf.mxu0
      %v6893 = vadd.f32 0.0, %v6892
      %v6894 = vpop.f32.mrf.mxu0
      %6895 = vmatprep.mubr.bf16.mxu0 0
      %6896 = vmatmul.mubr.bf16.gmra.mxu0 %v6782
      %v6897 = vpop.f32.mrf.mxu0
      %v6898 = vadd.f32 0.0, %v6897
      %v6899 = vpop.f32.mrf.mxu0
      %v6900 = vpop.f32.mrf.mxu0
      %v6901 = vadd.f32 0.0, %v6900
      %v6902 = vpop.f32.mrf.mxu0
      %6903 = vmatprep.mubr.bf16.mxu0 0
      %6904 = vmatmul.mubr.bf16.gmra.mxu0 %v6785
      %v6905 = vpop.f32.mrf.mxu0
      %v6906 = vadd.f32 0.0, %v6905
      %v6907 = vpop.f32.mrf.mxu0
      %v6908 = vpop.f32.mrf.mxu0
      %v6909 = vadd.f32 0.0, %v6908
      %v6910 = vpop.f32.mrf.mxu0
      %6911 = vmatprep.mubr.bf16.mxu0 0
      %6912 = vmatmul.mubr.bf16.gmra.mxu0 %v6788
      %v6913 = vpop.f32.mrf.mxu0
      %v6914 = vadd.f32 0.0, %v6913
      %v6915 = vpop.f32.mrf.mxu0
      %v6916 = vpop.f32.mrf.mxu0
      %v6917 = vadd.f32 0.0, %v6916
      %v6918 = vpop.f32.mrf.mxu0
      %6919 = vmatprep.mubr.bf16.mxu0 0
      %6920 = vmatmul.mubr.bf16.gmra.mxu0 %v6791
      %v6921 = vpop.f32.mrf.mxu0
      %v6922 = vadd.f32 0.0, %v6921
      %v6923 = vpop.f32.mrf.mxu0
      %v6924 = vpop.f32.mrf.mxu0
      %v6925 = vadd.f32 0.0, %v6924
      %v6926 = vpop.f32.mrf.mxu0
      %6927 = vmatprep.mubr.bf16.mxu0 0
      %6928 = vmatmul.mubr.bf16.gmra.mxu0 %v6794
      %v6929 = vpop.f32.mrf.mxu0
      %v6930 = vadd.f32 0.0, %v6929
      %v6931 = vpop.f32.mrf.mxu0
      %v6932 = vpop.f32.mrf.mxu0
      %v6933 = vadd.f32 0.0, %v6932
      %v6934 = vpop.f32.mrf.mxu0
      %6935 = vmatprep.mubr.bf16.mxu0 0
      %6936 = vmatmul.mubr.bf16.gmra.mxu0 %v6797
      %v6937 = vpop.f32.mrf.mxu0
      %v6938 = vadd.f32 0.0, %v6937
      %v6939 = vpop.f32.mrf.mxu0
      %v6940 = vpop.f32.mrf.mxu0
      %v6941 = vadd.f32 0.0, %v6940
      %v6942 = vpop.f32.mrf.mxu0
      %6943 = vmatprep.mubr.bf16.mxu0 0
      %6944 = vmatmul.mubr.bf16.gmra.mxu0 %v6800
      %v6945 = vpop.f32.mrf.mxu0
      %v6946 = vadd.f32 0.0, %v6945
      %v6947 = vpop.f32.mrf.mxu0
      %v6948 = vpop.f32.mrf.mxu0
      %v6949 = vadd.f32 0.0, %v6948
      %v6950 = vpop.f32.mrf.mxu0
      %6951 = vmatprep.mubr.bf16.mxu0 0
      %6952 = vmatmul.mubr.bf16.gmra.mxu0 %v6803
      %v6953 = vpop.f32.mrf.mxu0
      %v6954 = vadd.f32 0.0, %v6953
      %v6955 = vpop.f32.mrf.mxu0
      %v6956 = vpop.f32.mrf.mxu0
      %v6957 = vadd.f32 0.0, %v6956
      %v6958 = vpop.f32.mrf.mxu0
      %6959 = vmatprep.mubr.bf16.mxu0 0
      %6960 = vmatmul.mubr.bf16.gmra.mxu0 %v6806
      %v6961 = vpop.f32.mrf.mxu0
      %v6962 = vadd.f32 0.0, %v6961
      %v6963 = vpop.f32.mrf.mxu0
      %v6964 = vpop.f32.mrf.mxu0
      %v6965 = vadd.f32 0.0, %v6964
      %v6966 = vpop.f32.mrf.mxu0
      %6967 = vmatprep.mubr.bf16.mxu0 0
      %6968 = vmatmul.mubr.bf16.gmra.mxu0 %v6809
      %v6969 = vpop.f32.mrf.mxu0
      %v6970 = vadd.f32 0.0, %v6969
      %v6971 = vpop.f32.mrf.mxu0
      %v6972 = vpop.f32.mrf.mxu0
      %v6973 = vadd.f32 0.0, %v6972
      %v6974 = vpop.f32.mrf.mxu0
      %6975 = vmatprep.mubr.bf16.mxu0 0
      %6976 = vmatmul.mubr.bf16.gmra.mxu0 %v6812
      %v6977 = vpop.f32.mrf.mxu0
      %v6978 = vadd.f32 0.0, %v6977
      %v6979 = vpop.f32.mrf.mxu0
      %v6980 = vpop.f32.mrf.mxu0
      %v6981 = vadd.f32 0.0, %v6980
      %v6982 = vpop.f32.mrf.mxu0
      %6983 = vmatprep.mubr.bf16.mxu0 0
      %6984 = vmatmul.mubr.bf16.gmra.mxu0 %v6815
      %v6985 = vpop.f32.mrf.mxu0
      %v6986 = vadd.f32 0.0, %v6985
      %v6987 = vpop.f32.mrf.mxu0
      %v6988 = vpop.f32.mrf.mxu0
      %v6989 = vadd.f32 0.0, %v6988
      %v6990 = vpop.f32.mrf.mxu0
      %6991 = vmatprep.mubr.bf16.mxu0 0
      %6992 = vmatmul.mubr.bf16.gmra.mxu0 %v6818
      %v6993 = vpop.f32.mrf.mxu0
      %v6994 = vadd.f32 0.0, %v6993
      %v6995 = vpop.f32.mrf.mxu0
      %v6996 = vpop.f32.mrf.mxu0
      %v6997 = vadd.f32 0.0, %v6996
      %v6998 = vpop.f32.mrf.mxu0
      %6999 = vdwg.mxu0
      %v7036 = vunpack.c.l.b16 %v5802
      %v7037 = vunpack.c.l.b16 %v5803
      %v7038 = vunpack.c.l.b16 %v5804
      %v7039 = vunpack.c.l.b16 %v5805
      %v7040 = vunpack.c.l.b16 %v5806
      %v7041 = vunpack.c.l.b16 %v5807
      %v7042 = vunpack.c.l.b16 %v5808
      %v7043 = vunpack.c.l.b16 %v5809
      %v7044 = vunpack.c.l.b16 %v5810
      %v7045 = vunpack.c.l.b16 %v5811
      %v7046 = vunpack.c.l.b16 %v5812
      %v7047 = vunpack.c.l.b16 %v5813
      %v7048 = vunpack.c.l.b16 %v5814
      %v7049 = vunpack.c.l.b16 %v5815
      %v7050 = vunpack.c.l.b16 %v5816
      %v7051 = vunpack.c.l.b16 %v5817
      %v7052 = vunpack.c.l.b16 %v5818
      %v7053 = vunpack.c.l.b16 %v5819
      %v7054 = vunpack.c.l.b16 %v5820
      %v7055 = vunpack.c.l.b16 %v5821
      %v7056 = vunpack.c.l.b16 %v5822
      %v7057 = vunpack.c.l.b16 %v5823
      %v7058 = vunpack.c.l.b16 %v5824
      %v7059 = vunpack.c.l.b16 %v5825
      %v7060 = vunpack.c.l.b16 %v5826
      %v7061 = vunpack.c.l.b16 %v5827
      %v7062 = vunpack.c.l.b16 %v5828
      %v7063 = vunpack.c.l.b16 %v5829
      %v7064 = vunpack.c.l.b16 %v5830
      %v7065 = vunpack.c.l.b16 %v5831
      %v7066 = vunpack.c.l.b16 %v5832
      %v7067 = vunpack.c.l.b16 %v5833
      %v7068 = vunpack.c.l.b16 %v5834
      %v7069 = vunpack.c.l.b16 %v5835
      %v7070 = vunpack.c.l.b16 %v5836
      %v7071 = vunpack.c.l.b16 %v5837
      %v7072 = vpack.c.b16 %v7037, %v7036
      %v7073 = vpack.c.b16 %v7039, %v7038
      %v7074 = vpack.c.b16 %v7041, %v7040
      %v7075 = vpack.c.b16 %v7043, %v7042
      %v7076 = vpack.c.b16 %v7045, %v7044
      %v7077 = vpack.c.b16 %v7047, %v7046
      %v7078 = vpack.c.b16 %v7049, %v7048
      %v7079 = vpack.c.b16 %v7051, %v7050
      %v7080 = vpack.c.b16 %v7053, %v7052
      %v7081 = vpack.c.b16 %v7055, %v7054
      %v7082 = vpack.c.b16 %v7057, %v7056
      %v7083 = vpack.c.b16 %v7059, %v7058
      %v7084 = vpack.c.b16 %v7061, %v7060
      %v7085 = vpack.c.b16 %v7063, %v7062
      %v7086 = vpack.c.b16 %v7065, %v7064
      %v7087 = vpack.c.b16 %v7067, %v7066
      %v7088 = vpack.c.b16 %v7069, %v7068
      %v7089 = vpack.c.b16 %v7071, %v7070
      %v7092 = vunpack.c.l.b16 %v5838
      %v7093 = vunpack.c.l.b16 %v5839
      %v7094 = vpack.c.b16 %v7093, %v7092
      %v7096 = vsel %vm2488, %v7072, 0
      %v7099 = vsel %vm2488, %v7073, 0
      %v7102 = vsel %vm2488, %v7074, 0
      %v7105 = vsel %vm2488, %v7075, 0
      %v7108 = vsel %vm2488, %v7076, 0
      %v7111 = vsel %vm2488, %v7077, 0
      %v7114 = vsel %vm2488, %v7078, 0
      %v7117 = vsel %vm2488, %v7079, 0
      %v7120 = vsel %vm2488, %v7080, 0
      %v7123 = vsel %vm2488, %v7081, 0
      %v7126 = vsel %vm2488, %v7082, 0
      %v7129 = vsel %vm2488, %v7083, 0
      %v7132 = vsel %vm2488, %v7084, 0
      %v7135 = vsel %vm2488, %v7085, 0
      %v7138 = vsel %vm2488, %v7086, 0
      %v7141 = vsel %vm2488, %v7087, 0
      %v7144 = vsel %vm2488, %v7088, 0
      %v7147 = vsel %vm2488, %v7089, 0
      %v7150 = vsel %vm2543, %v7094, 0
      %7152 = vmatprep.subr.bf16.mxu0 0
      %7153 = vmatpush1.bf16.msra.mxu0 0
      %7154 = vmatprep.subr.bf16.mxu0 0
      %7155 = vmatpush1.bf16.msra.mxu0 0
      %7156 = vmatprep.subr.bf16.mxu0 0
      %7157 = vmatpush1.bf16.msra.mxu0 0
      %7158 = vmatprep.subr.bf16.mxu0 0
      %7159 = vmatpush1.bf16.msra.mxu0 0
      %7160 = vmatprep.subr.bf16.mxu0 0
      %7161 = vmatpush1.bf16.msra.mxu0 0
      %7162 = vmatprep.subr.bf16.mxu0 0
      %7163 = vmatpush1.bf16.msra.mxu0 0
      %7164 = vmatprep.subr.bf16.mxu0 0
      %7165 = vmatpush1.bf16.msra.mxu0 0
      %7166 = vmatprep.subr.bf16.mxu0 0
      %7167 = vmatpush1.bf16.msra.mxu0 %v7150
      %7168 = vmatprep.subr.bf16.mxu0 0
      %7169 = vmatpush2.bf16.msra.mxu0 0
      %7170 = vmatprep.subr.bf16.mxu0 0
      %7171 = vmatpush2.bf16.msra.mxu0 0
      %7172 = vmatprep.subr.bf16.mxu0 0
      %7173 = vmatpush2.bf16.msra.mxu0 0
      %7174 = vmatprep.subr.bf16.mxu0 0
      %7175 = vmatpush2.bf16.msra.mxu0 0
      %7176 = vmatprep.subr.bf16.mxu0 0
      %7177 = vmatpush2.bf16.msra.mxu0 0
      %7178 = vmatprep.subr.bf16.mxu0 0
      %7179 = vmatpush2.bf16.msra.mxu0 0
      %7180 = vmatprep.subr.bf16.mxu0 0
      %7181 = vmatpush2.bf16.msra.mxu0 0
      %7182 = vmatprep.subr.bf16.mxu0 0
      %7183 = vmatpush2.bf16.msra.mxu0 0
      %7184 = vmatprep.mubr.bf16.mxu0 0
      %7185 = vmatmul.mubr.bf16.gmra.mxu0 %v7096
      %v7186 = vpop.f32.mrf.mxu0
      %v7187 = vadd.f32 %v6858, %v7186
      %v7188 = vpop.f32.mrf.mxu0
      %v7189 = vpop.f32.mrf.mxu0
      %v7190 = vadd.f32 %v6861, %v7189
      %v7191 = vpop.f32.mrf.mxu0
      %7192 = vmatprep.mubr.bf16.mxu0 0
      %7193 = vmatmul.mubr.bf16.gmra.mxu0 %v7099
      %v7194 = vpop.f32.mrf.mxu0
      %v7195 = vadd.f32 %v6866, %v7194
      %v7196 = vpop.f32.mrf.mxu0
      %v7197 = vpop.f32.mrf.mxu0
      %v7198 = vadd.f32 %v6869, %v7197
      %v7199 = vpop.f32.mrf.mxu0
      %7200 = vmatprep.mubr.bf16.mxu0 0
      %7201 = vmatmul.mubr.bf16.gmra.mxu0 %v7102
      %v7202 = vpop.f32.mrf.mxu0
      %v7203 = vadd.f32 %v6874, %v7202
      %v7204 = vpop.f32.mrf.mxu0
      %v7205 = vpop.f32.mrf.mxu0
      %v7206 = vadd.f32 %v6877, %v7205
      %v7207 = vpop.f32.mrf.mxu0
      %7208 = vmatprep.mubr.bf16.mxu0 0
      %7209 = vmatmul.mubr.bf16.gmra.mxu0 %v7105
      %v7210 = vpop.f32.mrf.mxu0
      %v7211 = vadd.f32 %v6882, %v7210
      %v7212 = vpop.f32.mrf.mxu0
      %v7213 = vpop.f32.mrf.mxu0
      %v7214 = vadd.f32 %v6885, %v7213
      %v7215 = vpop.f32.mrf.mxu0
      %7216 = vmatprep.mubr.bf16.mxu0 0
      %7217 = vmatmul.mubr.bf16.gmra.mxu0 %v7108
      %v7218 = vpop.f32.mrf.mxu0
      %v7219 = vadd.f32 %v6890, %v7218
      %v7220 = vpop.f32.mrf.mxu0
      %v7221 = vpop.f32.mrf.mxu0
      %v7222 = vadd.f32 %v6893, %v7221
      %v7223 = vpop.f32.mrf.mxu0
      %7224 = vmatprep.mubr.bf16.mxu0 0
      %7225 = vmatmul.mubr.bf16.gmra.mxu0 %v7111
      %v7226 = vpop.f32.mrf.mxu0
      %v7227 = vadd.f32 %v6898, %v7226
      %v7228 = vpop.f32.mrf.mxu0
      %v7229 = vpop.f32.mrf.mxu0
      %v7230 = vadd.f32 %v6901, %v7229
      %v7231 = vpop.f32.mrf.mxu0
      %7232 = vmatprep.mubr.bf16.mxu0 0
      %7233 = vmatmul.mubr.bf16.gmra.mxu0 %v7114
      %v7234 = vpop.f32.mrf.mxu0
      %v7235 = vadd.f32 %v6906, %v7234
      %v7236 = vpop.f32.mrf.mxu0
      %v7237 = vpop.f32.mrf.mxu0
      %v7238 = vadd.f32 %v6909, %v7237
      %v7239 = vpop.f32.mrf.mxu0
      %7240 = vmatprep.mubr.bf16.mxu0 0
      %7241 = vmatmul.mubr.bf16.gmra.mxu0 %v7117
      %v7242 = vpop.f32.mrf.mxu0
      %v7243 = vadd.f32 %v6914, %v7242
      %v7244 = vpop.f32.mrf.mxu0
      %v7245 = vpop.f32.mrf.mxu0
      %v7246 = vadd.f32 %v6917, %v7245
      %v7247 = vpop.f32.mrf.mxu0
      %7248 = vmatprep.mubr.bf16.mxu0 0
      %7249 = vmatmul.mubr.bf16.gmra.mxu0 %v7120
      %v7250 = vpop.f32.mrf.mxu0
      %v7251 = vadd.f32 %v6922, %v7250
      %v7252 = vpop.f32.mrf.mxu0
      %v7253 = vpop.f32.mrf.mxu0
      %v7254 = vadd.f32 %v6925, %v7253
      %v7255 = vpop.f32.mrf.mxu0
      %7256 = vmatprep.mubr.bf16.mxu0 0
      %7257 = vmatmul.mubr.bf16.gmra.mxu0 %v7123
      %v7258 = vpop.f32.mrf.mxu0
      %v7259 = vadd.f32 %v6930, %v7258
      %v7260 = vpop.f32.mrf.mxu0
      %v7261 = vpop.f32.mrf.mxu0
      %v7262 = vadd.f32 %v6933, %v7261
      %v7263 = vpop.f32.mrf.mxu0
      %7264 = vmatprep.mubr.bf16.mxu0 0
      %7265 = vmatmul.mubr.bf16.gmra.mxu0 %v7126
      %v7266 = vpop.f32.mrf.mxu0
      %v7267 = vadd.f32 %v6938, %v7266
      %v7268 = vpop.f32.mrf.mxu0
      %v7269 = vpop.f32.mrf.mxu0
      %v7270 = vadd.f32 %v6941, %v7269
      %v7271 = vpop.f32.mrf.mxu0
      %7272 = vmatprep.mubr.bf16.mxu0 0
      %7273 = vmatmul.mubr.bf16.gmra.mxu0 %v7129
      %v7274 = vpop.f32.mrf.mxu0
      %v7275 = vadd.f32 %v6946, %v7274
      %v7276 = vpop.f32.mrf.mxu0
      %v7277 = vpop.f32.mrf.mxu0
      %v7278 = vadd.f32 %v6949, %v7277
      %v7279 = vpop.f32.mrf.mxu0
      %7280 = vmatprep.mubr.bf16.mxu0 0
      %7281 = vmatmul.mubr.bf16.gmra.mxu0 %v7132
      %v7282 = vpop.f32.mrf.mxu0
      %v7283 = vadd.f32 %v6954, %v7282
      %v7284 = vpop.f32.mrf.mxu0
      %v7285 = vpop.f32.mrf.mxu0
      %v7286 = vadd.f32 %v6957, %v7285
      %v7287 = vpop.f32.mrf.mxu0
      %7288 = vmatprep.mubr.bf16.mxu0 0
      %7289 = vmatmul.mubr.bf16.gmra.mxu0 %v7135
      %v7290 = vpop.f32.mrf.mxu0
      %v7291 = vadd.f32 %v6962, %v7290
      %v7292 = vpop.f32.mrf.mxu0
      %v7293 = vpop.f32.mrf.mxu0
      %v7294 = vadd.f32 %v6965, %v7293
      %v7295 = vpop.f32.mrf.mxu0
      %7296 = vmatprep.mubr.bf16.mxu0 0
      %7297 = vmatmul.mubr.bf16.gmra.mxu0 %v7138
      %v7298 = vpop.f32.mrf.mxu0
      %v7299 = vadd.f32 %v6970, %v7298
      %v7300 = vpop.f32.mrf.mxu0
      %v7301 = vpop.f32.mrf.mxu0
      %v7302 = vadd.f32 %v6973, %v7301
      %v7303 = vpop.f32.mrf.mxu0
      %7304 = vmatprep.mubr.bf16.mxu0 0
      %7305 = vmatmul.mubr.bf16.gmra.mxu0 %v7141
      %v7306 = vpop.f32.mrf.mxu0
      %v7307 = vadd.f32 %v6978, %v7306
      %v7308 = vpop.f32.mrf.mxu0
      %v7309 = vpop.f32.mrf.mxu0
      %v7310 = vadd.f32 %v6981, %v7309
      %v7311 = vpop.f32.mrf.mxu0
      %7312 = vmatprep.mubr.bf16.mxu0 0
      %7313 = vmatmul.mubr.bf16.gmra.mxu0 %v7144
      %v7314 = vpop.f32.mrf.mxu0
      %v7315 = vadd.f32 %v6986, %v7314
      %v7316 = vpop.f32.mrf.mxu0
      %v7317 = vpop.f32.mrf.mxu0
      %v7318 = vadd.f32 %v6989, %v7317
      %v7319 = vpop.f32.mrf.mxu0
      %7320 = vmatprep.mubr.bf16.mxu0 0
      %7321 = vmatmul.mubr.bf16.gmra.mxu0 %v7147
      %v7322 = vpop.f32.mrf.mxu0
      %v7323 = vadd.f32 %v6994, %v7322
      %v7324 = vpop.f32.mrf.mxu0
      %v7325 = vpop.f32.mrf.mxu0
      %v7326 = vadd.f32 %v6997, %v7325
      %v7327 = vpop.f32.mrf.mxu0
      %7328 = vdwg.mxu0
      %v7329 = vld [vmem:[#allocation2 + $0x24] sm:$0xff]
      %v7330 = vld [vmem:[#allocation2 + $0x2c] sm:$0xff]
      %v7331 = vld [vmem:[#allocation2 + $0x34] sm:$0xff]
      %v7332 = vld [vmem:[#allocation2 + $0x3c] sm:$0xff]
      %v7333 = vld [vmem:[#allocation2 + $0x44] sm:$0xff]
      %v7334 = vld [vmem:[#allocation2 + $0x4c] sm:$0xff]
      %v7335 = vld [vmem:[#allocation2 + $0x54] sm:$0xff]
      %v7336 = vld [vmem:[#allocation2 + $0x5c] sm:$0xff]
      %v7337 = vld [vmem:[#allocation2 + $0x64] sm:$0xff]
      %v7338 = vld [vmem:[#allocation2 + $0x6c] sm:$0xff]
      %v7339 = vld [vmem:[#allocation2 + $0x74] sm:$0xff]
      %v7340 = vld [vmem:[#allocation2 + $0x7c] sm:$0xff]
      %v7341 = vld [vmem:[#allocation2 + $0x84] sm:$0xff]
      %v7342 = vld [vmem:[#allocation2 + $0x8c] sm:$0xff]
      %v7343 = vld [vmem:[#allocation2 + $0x94] sm:$0xff]
      %v7344 = vld [vmem:[#allocation2 + $0x9c] sm:$0xff]
      %v7345 = vld [vmem:[#allocation2 + $0xa4] sm:$0xff]
      %v7346 = vld [vmem:[#allocation2 + $0xac] sm:$0xff]
      %v7347 = vld [vmem:[#allocation2 + $0xb4] sm:$0xff]
      %v7348 = vld [vmem:[#allocation2 + $0xbc] sm:$0xff]
      %v7349 = vld [vmem:[#allocation2 + $0xc4] sm:$0xff]
      %v7350 = vld [vmem:[#allocation2 + $0xcc] sm:$0xff]
      %v7351 = vld [vmem:[#allocation2 + $0xd4] sm:$0xff]
      %v7352 = vld [vmem:[#allocation2 + $0xdc] sm:$0xff]
      %v7353 = vld [vmem:[#allocation2 + $0xe4] sm:$0xff]
      %v7354 = vld [vmem:[#allocation2 + $0xec] sm:$0xff]
      %v7355 = vld [vmem:[#allocation2 + $0xf4] sm:$0xff]
      %v7356 = vld [vmem:[#allocation2 + $0xfc] sm:$0xff]
      %v7357 = vld [vmem:[#allocation2 + $0x104] sm:$0xff]
      %v7358 = vld [vmem:[#allocation2 + $0x10c] sm:$0xff]
      %v7359 = vld [vmem:[#allocation2 + $0x114] sm:$0xff]
      %v7360 = vld [vmem:[#allocation2 + $0x11c] sm:$0xff]
      %v7361 = vld [vmem:[#allocation2 + $0x124] sm:$0xff]
      %v7362 = vld [vmem:[#allocation2 + $0x12c] sm:$0xff]
      %v7363 = vld [vmem:[#allocation2 + $0x134] sm:$0xff]
      %v7364 = vld [vmem:[#allocation2 + $0x13c] sm:$0xff]
      %v7365 = vpack.c.bf16 %v7330, %v7329
      %v7366 = vpack.c.bf16 %v7332, %v7331
      %v7367 = vpack.c.bf16 %v7334, %v7333
      %v7368 = vpack.c.bf16 %v7336, %v7335
      %v7369 = vpack.c.bf16 %v7338, %v7337
      %v7370 = vpack.c.bf16 %v7340, %v7339
      %v7371 = vpack.c.bf16 %v7342, %v7341
      %v7372 = vpack.c.bf16 %v7344, %v7343
      %v7373 = vpack.c.bf16 %v7346, %v7345
      %v7374 = vpack.c.bf16 %v7348, %v7347
      %v7375 = vpack.c.bf16 %v7350, %v7349
      %v7376 = vpack.c.bf16 %v7352, %v7351
      %v7377 = vpack.c.bf16 %v7354, %v7353
      %v7378 = vpack.c.bf16 %v7356, %v7355
      %v7379 = vpack.c.bf16 %v7358, %v7357
      %v7380 = vpack.c.bf16 %v7360, %v7359
      %v7381 = vpack.c.bf16 %v7362, %v7361
      %v7382 = vpack.c.bf16 %v7364, %v7363
      %v7401 = vunpack.c.l.b16 %v7365
      %v7402 = vunpack.c.h.b16 %v7365
      %v7403 = vunpack.c.l.b16 %v7366
      %v7404 = vunpack.c.h.b16 %v7366
      %v7405 = vunpack.c.l.b16 %v7367
      %v7406 = vunpack.c.h.b16 %v7367
      %v7407 = vunpack.c.l.b16 %v7368
      %v7408 = vunpack.c.h.b16 %v7368
      %v7409 = vunpack.c.l.b16 %v7369
      %v7410 = vunpack.c.h.b16 %v7369
      %v7411 = vunpack.c.l.b16 %v7370
      %v7412 = vunpack.c.h.b16 %v7370
      %v7413 = vunpack.c.l.b16 %v7371
      %v7414 = vunpack.c.h.b16 %v7371
      %v7415 = vunpack.c.l.b16 %v7372
      %v7416 = vunpack.c.h.b16 %v7372
      %v7417 = vunpack.c.l.b16 %v7373
      %v7418 = vunpack.c.h.b16 %v7373
      %v7419 = vunpack.c.l.b16 %v7374
      %v7420 = vunpack.c.h.b16 %v7374
      %v7421 = vunpack.c.l.b16 %v7375
      %v7422 = vunpack.c.h.b16 %v7375
      %v7423 = vunpack.c.l.b16 %v7376
      %v7424 = vunpack.c.h.b16 %v7376
      %v7425 = vunpack.c.l.b16 %v7377
      %v7426 = vunpack.c.h.b16 %v7377
      %v7427 = vunpack.c.l.b16 %v7378
      %v7428 = vunpack.c.h.b16 %v7378
      %v7429 = vunpack.c.l.b16 %v7379
      %v7430 = vunpack.c.h.b16 %v7379
      %v7431 = vunpack.c.l.b16 %v7380
      %v7432 = vunpack.c.h.b16 %v7380
      %v7433 = vunpack.c.l.b16 %v7381
      %v7434 = vunpack.c.h.b16 %v7381
      %v7435 = vunpack.c.l.b16 %v7382
      %v7436 = vunpack.c.h.b16 %v7382
      %v7437 = vpack.c.b16 %v7401, %v7401
      %v7438 = vpack.c.b16 %v7402, %v7402
      %v7439 = vpack.c.b16 %v7403, %v7403
      %v7440 = vpack.c.b16 %v7404, %v7404
      %v7441 = vpack.c.b16 %v7405, %v7405
      %v7442 = vpack.c.b16 %v7406, %v7406
      %v7443 = vpack.c.b16 %v7407, %v7407
      %v7444 = vpack.c.b16 %v7408, %v7408
      %v7445 = vpack.c.b16 %v7409, %v7409
      %v7446 = vpack.c.b16 %v7410, %v7410
      %v7447 = vpack.c.b16 %v7411, %v7411
      %v7448 = vpack.c.b16 %v7412, %v7412
      %v7449 = vpack.c.b16 %v7413, %v7413
      %v7450 = vpack.c.b16 %v7414, %v7414
      %v7451 = vpack.c.b16 %v7415, %v7415
      %v7452 = vpack.c.b16 %v7416, %v7416
      %v7453 = vpack.c.b16 %v7417, %v7417
      %v7454 = vpack.c.b16 %v7418, %v7418
      %v7455 = vpack.c.b16 %v7419, %v7419
      %v7456 = vpack.c.b16 %v7420, %v7420
      %v7457 = vpack.c.b16 %v7421, %v7421
      %v7458 = vpack.c.b16 %v7422, %v7422
      %v7459 = vpack.c.b16 %v7423, %v7423
      %v7460 = vpack.c.b16 %v7424, %v7424
      %v7461 = vpack.c.b16 %v7425, %v7425
      %v7462 = vpack.c.b16 %v7426, %v7426
      %v7463 = vpack.c.b16 %v7427, %v7427
      %v7464 = vpack.c.b16 %v7428, %v7428
      %v7465 = vpack.c.b16 %v7429, %v7429
      %v7466 = vpack.c.b16 %v7430, %v7430
      %v7467 = vpack.c.b16 %v7431, %v7431
      %v7468 = vpack.c.b16 %v7432, %v7432
      %v7469 = vpack.c.b16 %v7433, %v7433
      %v7470 = vpack.c.b16 %v7434, %v7434
      %v7471 = vpack.c.b16 %v7435, %v7435
      %v7472 = vpack.c.b16 %v7436, %v7436
      %7509 = vst.msk [vmem:[#allocation3] sm:$0xf] %vm262, %v7437
      %7510 = vst.msk [vmem:[#allocation3 + $0x4] sm:$0xf] %vm262, %v7438
      %7511 = vst.msk [vmem:[#allocation3 + $0x8] sm:$0xf] %vm262, %v7439
      %7512 = vst.msk [vmem:[#allocation3 + $0xc] sm:$0xf] %vm262, %v7440
      %7513 = vst.msk [vmem:[#allocation3 + $0x10] sm:$0xf] %vm262, %v7441
      %7514 = vst.msk [vmem:[#allocation3 + $0x14] sm:$0xf] %vm262, %v7442
      %7515 = vst.msk [vmem:[#allocation3 + $0x18] sm:$0xf] %vm262, %v7443
      %7516 = vst.msk [vmem:[#allocation3 + $0x1c] sm:$0xf] %vm262, %v7444
      %7517 = vst.msk [vmem:[#allocation3 + $0x20] sm:$0xf] %vm262, %v7445
      %7518 = vst.msk [vmem:[#allocation3 + $0x24] sm:$0xf] %vm262, %v7446
      %7519 = vst.msk [vmem:[#allocation3 + $0x28] sm:$0xf] %vm262, %v7447
      %7520 = vst.msk [vmem:[#allocation3 + $0x2c] sm:$0xf] %vm262, %v7448
      %7521 = vst.msk [vmem:[#allocation3 + $0x30] sm:$0xf] %vm262, %v7449
      %7522 = vst.msk [vmem:[#allocation3 + $0x34] sm:$0xf] %vm262, %v7450
      %7523 = vst.msk [vmem:[#allocation3 + $0x38] sm:$0xf] %vm262, %v7451
      %7524 = vst.msk [vmem:[#allocation3 + $0x3c] sm:$0xf] %vm262, %v7452
      %7525 = vst.msk [vmem:[#allocation3 + $0x40] sm:$0xf] %vm262, %v7453
      %7526 = vst.msk [vmem:[#allocation3 + $0x44] sm:$0xf] %vm262, %v7454
      %7527 = vst.msk [vmem:[#allocation3 + $0x48] sm:$0xf] %vm262, %v7455
      %7528 = vst.msk [vmem:[#allocation3 + $0x4c] sm:$0xf] %vm262, %v7456
      %7529 = vst.msk [vmem:[#allocation3 + $0x50] sm:$0xf] %vm262, %v7457
      %7530 = vst.msk [vmem:[#allocation3 + $0x54] sm:$0xf] %vm262, %v7458
      %7531 = vst.msk [vmem:[#allocation3 + $0x58] sm:$0xf] %vm262, %v7459
      %7532 = vst.msk [vmem:[#allocation3 + $0x5c] sm:$0xf] %vm262, %v7460
      %7533 = vst.msk [vmem:[#allocation3 + $0x60] sm:$0xf] %vm262, %v7461
      %7534 = vst.msk [vmem:[#allocation3 + $0x64] sm:$0xf] %vm262, %v7462
      %7535 = vst.msk [vmem:[#allocation3 + $0x68] sm:$0xf] %vm262, %v7463
      %7536 = vst.msk [vmem:[#allocation3 + $0x6c] sm:$0xf] %vm262, %v7464
      %7537 = vst.msk [vmem:[#allocation3 + $0x70] sm:$0xf] %vm262, %v7465
      %7538 = vst.msk [vmem:[#allocation3 + $0x74] sm:$0xf] %vm262, %v7466
      %7539 = vst.msk [vmem:[#allocation3 + $0x78] sm:$0xf] %vm262, %v7467
      %7540 = vst.msk [vmem:[#allocation3 + $0x7c] sm:$0xf] %vm262, %v7468
      %7541 = vst.msk [vmem:[#allocation3 + $0x80] sm:$0xf] %vm262, %v7469
      %7542 = vst.msk [vmem:[#allocation3 + $0x84] sm:$0xf] %vm262, %v7470
      %7543 = vst.msk [vmem:[#allocation3 + $0x88] sm:$0xf] %vm262, %v7471
      %7544 = vst.msk [vmem:[#allocation3 + $0x8c] sm:$0xf] %vm262, %v7472
      %v7545 = vld [vmem:[#allocation2 + $0x25] sm:$0xff]
      %v7546 = vld [vmem:[#allocation2 + $0x2d] sm:$0xff]
      %v7547 = vld [vmem:[#allocation2 + $0x35] sm:$0xff]
      %v7548 = vld [vmem:[#allocation2 + $0x3d] sm:$0xff]
      %v7549 = vld [vmem:[#allocation2 + $0x45] sm:$0xff]
      %v7550 = vld [vmem:[#allocation2 + $0x4d] sm:$0xff]
      %v7551 = vld [vmem:[#allocation2 + $0x55] sm:$0xff]
      %v7552 = vld [vmem:[#allocation2 + $0x5d] sm:$0xff]
      %v7553 = vld [vmem:[#allocation2 + $0x65] sm:$0xff]
      %v7554 = vld [vmem:[#allocation2 + $0x6d] sm:$0xff]
      %v7555 = vld [vmem:[#allocation2 + $0x75] sm:$0xff]
      %v7556 = vld [vmem:[#allocation2 + $0x7d] sm:$0xff]
      %v7557 = vld [vmem:[#allocation2 + $0x85] sm:$0xff]
      %v7558 = vld [vmem:[#allocation2 + $0x8d] sm:$0xff]
      %v7559 = vld [vmem:[#allocation2 + $0x95] sm:$0xff]
      %v7560 = vld [vmem:[#allocation2 + $0x9d] sm:$0xff]
      %v7561 = vld [vmem:[#allocation2 + $0xa5] sm:$0xff]
      %v7562 = vld [vmem:[#allocation2 + $0xad] sm:$0xff]
      %v7563 = vld [vmem:[#allocation2 + $0xb5] sm:$0xff]
      %v7564 = vld [vmem:[#allocation2 + $0xbd] sm:$0xff]
      %v7565 = vld [vmem:[#allocation2 + $0xc5] sm:$0xff]
      %v7566 = vld [vmem:[#allocation2 + $0xcd] sm:$0xff]
      %v7567 = vld [vmem:[#allocation2 + $0xd5] sm:$0xff]
      %v7568 = vld [vmem:[#allocation2 + $0xdd] sm:$0xff]
      %v7569 = vld [vmem:[#allocation2 + $0xe5] sm:$0xff]
      %v7570 = vld [vmem:[#allocation2 + $0xed] sm:$0xff]
      %v7571 = vld [vmem:[#allocation2 + $0xf5] sm:$0xff]
      %v7572 = vld [vmem:[#allocation2 + $0xfd] sm:$0xff]
      %v7573 = vld [vmem:[#allocation2 + $0x105] sm:$0xff]
      %v7574 = vld [vmem:[#allocation2 + $0x10d] sm:$0xff]
      %v7575 = vld [vmem:[#allocation2 + $0x115] sm:$0xff]
      %v7576 = vld [vmem:[#allocation2 + $0x11d] sm:$0xff]
      %v7577 = vld [vmem:[#allocation2 + $0x125] sm:$0xff]
      %v7578 = vld [vmem:[#allocation2 + $0x12d] sm:$0xff]
      %v7579 = vld [vmem:[#allocation2 + $0x135] sm:$0xff]
      %v7580 = vld [vmem:[#allocation2 + $0x13d] sm:$0xff]
      %v7581 = vpack.c.bf16 %v7546, %v7545
      %v7582 = vpack.c.bf16 %v7548, %v7547
      %v7583 = vpack.c.bf16 %v7550, %v7549
      %v7584 = vpack.c.bf16 %v7552, %v7551
      %v7585 = vpack.c.bf16 %v7554, %v7553
      %v7586 = vpack.c.bf16 %v7556, %v7555
      %v7587 = vpack.c.bf16 %v7558, %v7557
      %v7588 = vpack.c.bf16 %v7560, %v7559
      %v7589 = vpack.c.bf16 %v7562, %v7561
      %v7590 = vpack.c.bf16 %v7564, %v7563
      %v7591 = vpack.c.bf16 %v7566, %v7565
      %v7592 = vpack.c.bf16 %v7568, %v7567
      %v7593 = vpack.c.bf16 %v7570, %v7569
      %v7594 = vpack.c.bf16 %v7572, %v7571
      %v7595 = vpack.c.bf16 %v7574, %v7573
      %v7596 = vpack.c.bf16 %v7576, %v7575
      %v7597 = vpack.c.bf16 %v7578, %v7577
      %v7598 = vpack.c.bf16 %v7580, %v7579
      %v7617 = vunpack.c.l.b16 %v7581
      %v7618 = vunpack.c.h.b16 %v7581
      %v7619 = vunpack.c.l.b16 %v7582
      %v7620 = vunpack.c.h.b16 %v7582
      %v7621 = vunpack.c.l.b16 %v7583
      %v7622 = vunpack.c.h.b16 %v7583
      %v7623 = vunpack.c.l.b16 %v7584
      %v7624 = vunpack.c.h.b16 %v7584
      %v7625 = vunpack.c.l.b16 %v7585
      %v7626 = vunpack.c.h.b16 %v7585
      %v7627 = vunpack.c.l.b16 %v7586
      %v7628 = vunpack.c.h.b16 %v7586
      %v7629 = vunpack.c.l.b16 %v7587
      %v7630 = vunpack.c.h.b16 %v7587
      %v7631 = vunpack.c.l.b16 %v7588
      %v7632 = vunpack.c.h.b16 %v7588
      %v7633 = vunpack.c.l.b16 %v7589
      %v7634 = vunpack.c.h.b16 %v7589
      %v7635 = vunpack.c.l.b16 %v7590
      %v7636 = vunpack.c.h.b16 %v7590
      %v7637 = vunpack.c.l.b16 %v7591
      %v7638 = vunpack.c.h.b16 %v7591
      %v7639 = vunpack.c.l.b16 %v7592
      %v7640 = vunpack.c.h.b16 %v7592
      %v7641 = vunpack.c.l.b16 %v7593
      %v7642 = vunpack.c.h.b16 %v7593
      %v7643 = vunpack.c.l.b16 %v7594
      %v7644 = vunpack.c.h.b16 %v7594
      %v7645 = vunpack.c.l.b16 %v7595
      %v7646 = vunpack.c.h.b16 %v7595
      %v7647 = vunpack.c.l.b16 %v7596
      %v7648 = vunpack.c.h.b16 %v7596
      %v7649 = vunpack.c.l.b16 %v7597
      %v7650 = vunpack.c.h.b16 %v7597
      %v7651 = vunpack.c.l.b16 %v7598
      %v7652 = vunpack.c.h.b16 %v7598
      %v7653 = vpack.c.b16 %v7617, %v7617
      %v7654 = vpack.c.b16 %v7618, %v7618
      %v7655 = vpack.c.b16 %v7619, %v7619
      %v7656 = vpack.c.b16 %v7620, %v7620
      %v7657 = vpack.c.b16 %v7621, %v7621
      %v7658 = vpack.c.b16 %v7622, %v7622
      %v7659 = vpack.c.b16 %v7623, %v7623
      %v7660 = vpack.c.b16 %v7624, %v7624
      %v7661 = vpack.c.b16 %v7625, %v7625
      %v7662 = vpack.c.b16 %v7626, %v7626
      %v7663 = vpack.c.b16 %v7627, %v7627
      %v7664 = vpack.c.b16 %v7628, %v7628
      %v7665 = vpack.c.b16 %v7629, %v7629
      %v7666 = vpack.c.b16 %v7630, %v7630
      %v7667 = vpack.c.b16 %v7631, %v7631
      %v7668 = vpack.c.b16 %v7632, %v7632
      %v7669 = vpack.c.b16 %v7633, %v7633
      %v7670 = vpack.c.b16 %v7634, %v7634
      %v7671 = vpack.c.b16 %v7635, %v7635
      %v7672 = vpack.c.b16 %v7636, %v7636
      %v7673 = vpack.c.b16 %v7637, %v7637
      %v7674 = vpack.c.b16 %v7638, %v7638
      %v7675 = vpack.c.b16 %v7639, %v7639
      %v7676 = vpack.c.b16 %v7640, %v7640
      %v7677 = vpack.c.b16 %v7641, %v7641
      %v7678 = vpack.c.b16 %v7642, %v7642
      %v7679 = vpack.c.b16 %v7643, %v7643
      %v7680 = vpack.c.b16 %v7644, %v7644
      %v7681 = vpack.c.b16 %v7645, %v7645
      %v7682 = vpack.c.b16 %v7646, %v7646
      %v7683 = vpack.c.b16 %v7647, %v7647
      %v7684 = vpack.c.b16 %v7648, %v7648
      %v7685 = vpack.c.b16 %v7649, %v7649
      %v7686 = vpack.c.b16 %v7650, %v7650
      %v7687 = vpack.c.b16 %v7651, %v7651
      %v7688 = vpack.c.b16 %v7652, %v7652
      %7689 = vrot.lane.b32.xlu0 %v7653, 4
      %v7690 = vpop.permute.xlu0 %7689
      %7691 = vrot.lane.b32.xlu0 %v7654, 4
      %v7692 = vpop.permute.xlu0 %7691
      %7693 = vrot.lane.b32.xlu0 %v7655, 4
      %v7694 = vpop.permute.xlu0 %7693
      %7695 = vrot.lane.b32.xlu0 %v7656, 4
      %v7696 = vpop.permute.xlu0 %7695
      %7697 = vrot.lane.b32.xlu0 %v7657, 4
      %v7698 = vpop.permute.xlu0 %7697
      %7699 = vrot.lane.b32.xlu0 %v7658, 4
      %v7700 = vpop.permute.xlu0 %7699
      %7701 = vrot.lane.b32.xlu0 %v7659, 4
      %v7702 = vpop.permute.xlu0 %7701
      %7703 = vrot.lane.b32.xlu0 %v7660, 4
      %v7704 = vpop.permute.xlu0 %7703
      %7705 = vrot.lane.b32.xlu0 %v7661, 4
      %v7706 = vpop.permute.xlu0 %7705
      %7707 = vrot.lane.b32.xlu0 %v7662, 4
      %v7708 = vpop.permute.xlu0 %7707
      %7709 = vrot.lane.b32.xlu0 %v7663, 4
      %v7710 = vpop.permute.xlu0 %7709
      %7711 = vrot.lane.b32.xlu0 %v7664, 4
      %v7712 = vpop.permute.xlu0 %7711
      %7713 = vrot.lane.b32.xlu0 %v7665, 4
      %v7714 = vpop.permute.xlu0 %7713
      %7715 = vrot.lane.b32.xlu0 %v7666, 4
      %v7716 = vpop.permute.xlu0 %7715
      %7717 = vrot.lane.b32.xlu0 %v7667, 4
      %v7718 = vpop.permute.xlu0 %7717
      %7719 = vrot.lane.b32.xlu0 %v7668, 4
      %v7720 = vpop.permute.xlu0 %7719
      %7721 = vrot.lane.b32.xlu0 %v7669, 4
      %v7722 = vpop.permute.xlu0 %7721
      %7723 = vrot.lane.b32.xlu0 %v7670, 4
      %v7724 = vpop.permute.xlu0 %7723
      %7725 = vrot.lane.b32.xlu0 %v7671, 4
      %v7726 = vpop.permute.xlu0 %7725
      %7727 = vrot.lane.b32.xlu0 %v7672, 4
      %v7728 = vpop.permute.xlu0 %7727
      %7729 = vrot.lane.b32.xlu0 %v7673, 4
      %v7730 = vpop.permute.xlu0 %7729
      %7731 = vrot.lane.b32.xlu0 %v7674, 4
      %v7732 = vpop.permute.xlu0 %7731
      %7733 = vrot.lane.b32.xlu0 %v7675, 4
      %v7734 = vpop.permute.xlu0 %7733
      %7735 = vrot.lane.b32.xlu0 %v7676, 4
      %v7736 = vpop.permute.xlu0 %7735
      %7737 = vrot.lane.b32.xlu0 %v7677, 4
      %v7738 = vpop.permute.xlu0 %7737
      %7739 = vrot.lane.b32.xlu0 %v7678, 4
      %v7740 = vpop.permute.xlu0 %7739
      %7741 = vrot.lane.b32.xlu0 %v7679, 4
      %v7742 = vpop.permute.xlu0 %7741
      %7743 = vrot.lane.b32.xlu0 %v7680, 4
      %v7744 = vpop.permute.xlu0 %7743
      %7745 = vrot.lane.b32.xlu0 %v7681, 4
      %v7746 = vpop.permute.xlu0 %7745
      %7747 = vrot.lane.b32.xlu0 %v7682, 4
      %v7748 = vpop.permute.xlu0 %7747
      %7749 = vrot.lane.b32.xlu0 %v7683, 4
      %v7750 = vpop.permute.xlu0 %7749
      %7751 = vrot.lane.b32.xlu0 %v7684, 4
      %v7752 = vpop.permute.xlu0 %7751
      %7753 = vrot.lane.b32.xlu0 %v7685, 4
      %v7754 = vpop.permute.xlu0 %7753
      %7755 = vrot.lane.b32.xlu0 %v7686, 4
      %v7756 = vpop.permute.xlu0 %7755
      %7757 = vrot.lane.b32.xlu0 %v7687, 4
      %v7758 = vpop.permute.xlu0 %7757
      %7759 = vrot.lane.b32.xlu0 %v7688, 4
      %v7760 = vpop.permute.xlu0 %7759
      %7797 = vst.msk [vmem:[#allocation3] sm:$0xf] %vm811, %v7690
      %7798 = vst.msk [vmem:[#allocation3 + $0x4] sm:$0xf] %vm811, %v7692
      %7799 = vst.msk [vmem:[#allocation3 + $0x8] sm:$0xf] %vm811, %v7694
      %7800 = vst.msk [vmem:[#allocation3 + $0xc] sm:$0xf] %vm811, %v7696
      %7801 = vst.msk [vmem:[#allocation3 + $0x10] sm:$0xf] %vm811, %v7698
      %7802 = vst.msk [vmem:[#allocation3 + $0x14] sm:$0xf] %vm811, %v7700
      %7803 = vst.msk [vmem:[#allocation3 + $0x18] sm:$0xf] %vm811, %v7702
      %7804 = vst.msk [vmem:[#allocation3 + $0x1c] sm:$0xf] %vm811, %v7704
      %7805 = vst.msk [vmem:[#allocation3 + $0x20] sm:$0xf] %vm811, %v7706
      %7806 = vst.msk [vmem:[#allocation3 + $0x24] sm:$0xf] %vm811, %v7708
      %7807 = vst.msk [vmem:[#allocation3 + $0x28] sm:$0xf] %vm811, %v7710
      %7808 = vst.msk [vmem:[#allocation3 + $0x2c] sm:$0xf] %vm811, %v7712
      %7809 = vst.msk [vmem:[#allocation3 + $0x30] sm:$0xf] %vm811, %v7714
      %7810 = vst.msk [vmem:[#allocation3 + $0x34] sm:$0xf] %vm811, %v7716
      %7811 = vst.msk [vmem:[#allocation3 + $0x38] sm:$0xf] %vm811, %v7718
      %7812 = vst.msk [vmem:[#allocation3 + $0x3c] sm:$0xf] %vm811, %v7720
      %7813 = vst.msk [vmem:[#allocation3 + $0x40] sm:$0xf] %vm811, %v7722
      %7814 = vst.msk [vmem:[#allocation3 + $0x44] sm:$0xf] %vm811, %v7724
      %7815 = vst.msk [vmem:[#allocation3 + $0x48] sm:$0xf] %vm811, %v7726
      %7816 = vst.msk [vmem:[#allocation3 + $0x4c] sm:$0xf] %vm811, %v7728
      %7817 = vst.msk [vmem:[#allocation3 + $0x50] sm:$0xf] %vm811, %v7730
      %7818 = vst.msk [vmem:[#allocation3 + $0x54] sm:$0xf] %vm811, %v7732
      %7819 = vst.msk [vmem:[#allocation3 + $0x58] sm:$0xf] %vm811, %v7734
      %7820 = vst.msk [vmem:[#allocation3 + $0x5c] sm:$0xf] %vm811, %v7736
      %7821 = vst.msk [vmem:[#allocation3 + $0x60] sm:$0xf] %vm811, %v7738
      %7822 = vst.msk [vmem:[#allocation3 + $0x64] sm:$0xf] %vm811, %v7740
      %7823 = vst.msk [vmem:[#allocation3 + $0x68] sm:$0xf] %vm811, %v7742
      %7824 = vst.msk [vmem:[#allocation3 + $0x6c] sm:$0xf] %vm811, %v7744
      %7825 = vst.msk [vmem:[#allocation3 + $0x70] sm:$0xf] %vm811, %v7746
      %7826 = vst.msk [vmem:[#allocation3 + $0x74] sm:$0xf] %vm811, %v7748
      %7827 = vst.msk [vmem:[#allocation3 + $0x78] sm:$0xf] %vm811, %v7750
      %7828 = vst.msk [vmem:[#allocation3 + $0x7c] sm:$0xf] %vm811, %v7752
      %7829 = vst.msk [vmem:[#allocation3 + $0x80] sm:$0xf] %vm811, %v7754
      %7830 = vst.msk [vmem:[#allocation3 + $0x84] sm:$0xf] %vm811, %v7756
      %7831 = vst.msk [vmem:[#allocation3 + $0x88] sm:$0xf] %vm811, %v7758
      %7832 = vst.msk [vmem:[#allocation3 + $0x8c] sm:$0xf] %vm811, %v7760
      %v7833 = vld [vmem:[#allocation2 + $0x26] sm:$0xff]
      %v7834 = vld [vmem:[#allocation2 + $0x2e] sm:$0xff]
      %v7835 = vld [vmem:[#allocation2 + $0x36] sm:$0xff]
      %v7836 = vld [vmem:[#allocation2 + $0x3e] sm:$0xff]
      %v7837 = vld [vmem:[#allocation2 + $0x46] sm:$0xff]
      %v7838 = vld [vmem:[#allocation2 + $0x4e] sm:$0xff]
      %v7839 = vld [vmem:[#allocation2 + $0x56] sm:$0xff]
      %v7840 = vld [vmem:[#allocation2 + $0x5e] sm:$0xff]
      %v7841 = vld [vmem:[#allocation2 + $0x66] sm:$0xff]
      %v7842 = vld [vmem:[#allocation2 + $0x6e] sm:$0xff]
      %v7843 = vld [vmem:[#allocation2 + $0x76] sm:$0xff]
      %v7844 = vld [vmem:[#allocation2 + $0x7e] sm:$0xff]
      %v7845 = vld [vmem:[#allocation2 + $0x86] sm:$0xff]
      %v7846 = vld [vmem:[#allocation2 + $0x8e] sm:$0xff]
      %v7847 = vld [vmem:[#allocation2 + $0x96] sm:$0xff]
      %v7848 = vld [vmem:[#allocation2 + $0x9e] sm:$0xff]
      %v7849 = vld [vmem:[#allocation2 + $0xa6] sm:$0xff]
      %v7850 = vld [vmem:[#allocation2 + $0xae] sm:$0xff]
      %v7851 = vld [vmem:[#allocation2 + $0xb6] sm:$0xff]
      %v7852 = vld [vmem:[#allocation2 + $0xbe] sm:$0xff]
      %v7853 = vld [vmem:[#allocation2 + $0xc6] sm:$0xff]
      %v7854 = vld [vmem:[#allocation2 + $0xce] sm:$0xff]
      %v7855 = vld [vmem:[#allocation2 + $0xd6] sm:$0xff]
      %v7856 = vld [vmem:[#allocation2 + $0xde] sm:$0xff]
      %v7857 = vld [vmem:[#allocation2 + $0xe6] sm:$0xff]
      %v7858 = vld [vmem:[#allocation2 + $0xee] sm:$0xff]
      %v7859 = vld [vmem:[#allocation2 + $0xf6] sm:$0xff]
      %v7860 = vld [vmem:[#allocation2 + $0xfe] sm:$0xff]
      %v7861 = vld [vmem:[#allocation2 + $0x106] sm:$0xff]
      %v7862 = vld [vmem:[#allocation2 + $0x10e] sm:$0xff]
      %v7863 = vld [vmem:[#allocation2 + $0x116] sm:$0xff]
      %v7864 = vld [vmem:[#allocation2 + $0x11e] sm:$0xff]
      %v7865 = vld [vmem:[#allocation2 + $0x126] sm:$0xff]
      %v7866 = vld [vmem:[#allocation2 + $0x12e] sm:$0xff]
      %v7867 = vld [vmem:[#allocation2 + $0x136] sm:$0xff]
      %v7868 = vld [vmem:[#allocation2 + $0x13e] sm:$0xff]
      %v7869 = vpack.c.bf16 %v7834, %v7833
      %v7870 = vpack.c.bf16 %v7836, %v7835
      %v7871 = vpack.c.bf16 %v7838, %v7837
      %v7872 = vpack.c.bf16 %v7840, %v7839
      %v7873 = vpack.c.bf16 %v7842, %v7841
      %v7874 = vpack.c.bf16 %v7844, %v7843
      %v7875 = vpack.c.bf16 %v7846, %v7845
      %v7876 = vpack.c.bf16 %v7848, %v7847
      %v7877 = vpack.c.bf16 %v7850, %v7849
      %v7878 = vpack.c.bf16 %v7852, %v7851
      %v7879 = vpack.c.bf16 %v7854, %v7853
      %v7880 = vpack.c.bf16 %v7856, %v7855
      %v7881 = vpack.c.bf16 %v7858, %v7857
      %v7882 = vpack.c.bf16 %v7860, %v7859
      %v7883 = vpack.c.bf16 %v7862, %v7861
      %v7884 = vpack.c.bf16 %v7864, %v7863
      %v7885 = vpack.c.bf16 %v7866, %v7865
      %v7886 = vpack.c.bf16 %v7868, %v7867
      %v7905 = vunpack.c.l.b16 %v7869
      %v7906 = vunpack.c.h.b16 %v7869
      %v7907 = vunpack.c.l.b16 %v7870
      %v7908 = vunpack.c.h.b16 %v7870
      %v7909 = vunpack.c.l.b16 %v7871
      %v7910 = vunpack.c.h.b16 %v7871
      %v7911 = vunpack.c.l.b16 %v7872
      %v7912 = vunpack.c.h.b16 %v7872
      %v7913 = vunpack.c.l.b16 %v7873
      %v7914 = vunpack.c.h.b16 %v7873
      %v7915 = vunpack.c.l.b16 %v7874
      %v7916 = vunpack.c.h.b16 %v7874
      %v7917 = vunpack.c.l.b16 %v7875
      %v7918 = vunpack.c.h.b16 %v7875
      %v7919 = vunpack.c.l.b16 %v7876
      %v7920 = vunpack.c.h.b16 %v7876
      %v7921 = vunpack.c.l.b16 %v7877
      %v7922 = vunpack.c.h.b16 %v7877
      %v7923 = vunpack.c.l.b16 %v7878
      %v7924 = vunpack.c.h.b16 %v7878
      %v7925 = vunpack.c.l.b16 %v7879
      %v7926 = vunpack.c.h.b16 %v7879
      %v7927 = vunpack.c.l.b16 %v7880
      %v7928 = vunpack.c.h.b16 %v7880
      %v7929 = vunpack.c.l.b16 %v7881
      %v7930 = vunpack.c.h.b16 %v7881
      %v7931 = vunpack.c.l.b16 %v7882
      %v7932 = vunpack.c.h.b16 %v7882
      %v7933 = vunpack.c.l.b16 %v7883
      %v7934 = vunpack.c.h.b16 %v7883
      %v7935 = vunpack.c.l.b16 %v7884
      %v7936 = vunpack.c.h.b16 %v7884
      %v7937 = vunpack.c.l.b16 %v7885
      %v7938 = vunpack.c.h.b16 %v7885
      %v7939 = vunpack.c.l.b16 %v7886
      %v7940 = vunpack.c.h.b16 %v7886
      %v7941 = vpack.c.b16 %v7905, %v7905
      %v7942 = vpack.c.b16 %v7906, %v7906
      %v7943 = vpack.c.b16 %v7907, %v7907
      %v7944 = vpack.c.b16 %v7908, %v7908
      %v7945 = vpack.c.b16 %v7909, %v7909
      %v7946 = vpack.c.b16 %v7910, %v7910
      %v7947 = vpack.c.b16 %v7911, %v7911
      %v7948 = vpack.c.b16 %v7912, %v7912
      %v7949 = vpack.c.b16 %v7913, %v7913
      %v7950 = vpack.c.b16 %v7914, %v7914
      %v7951 = vpack.c.b16 %v7915, %v7915
      %v7952 = vpack.c.b16 %v7916, %v7916
      %v7953 = vpack.c.b16 %v7917, %v7917
      %v7954 = vpack.c.b16 %v7918, %v7918
      %v7955 = vpack.c.b16 %v7919, %v7919
      %v7956 = vpack.c.b16 %v7920, %v7920
      %v7957 = vpack.c.b16 %v7921, %v7921
      %v7958 = vpack.c.b16 %v7922, %v7922
      %v7959 = vpack.c.b16 %v7923, %v7923
      %v7960 = vpack.c.b16 %v7924, %v7924
      %v7961 = vpack.c.b16 %v7925, %v7925
      %v7962 = vpack.c.b16 %v7926, %v7926
      %v7963 = vpack.c.b16 %v7927, %v7927
      %v7964 = vpack.c.b16 %v7928, %v7928
      %v7965 = vpack.c.b16 %v7929, %v7929
      %v7966 = vpack.c.b16 %v7930, %v7930
      %v7967 = vpack.c.b16 %v7931, %v7931
      %v7968 = vpack.c.b16 %v7932, %v7932
      %v7969 = vpack.c.b16 %v7933, %v7933
      %v7970 = vpack.c.b16 %v7934, %v7934
      %v7971 = vpack.c.b16 %v7935, %v7935
      %v7972 = vpack.c.b16 %v7936, %v7936
      %v7973 = vpack.c.b16 %v7937, %v7937
      %v7974 = vpack.c.b16 %v7938, %v7938
      %v7975 = vpack.c.b16 %v7939, %v7939
      %v7976 = vpack.c.b16 %v7940, %v7940
      %7977 = vrot.lane.b32.xlu0 %v7941, 8
      %v7978 = vpop.permute.xlu0 %7977
      %7979 = vrot.lane.b32.xlu0 %v7942, 8
      %v7980 = vpop.permute.xlu0 %7979
      %7981 = vrot.lane.b32.xlu0 %v7943, 8
      %v7982 = vpop.permute.xlu0 %7981
      %7983 = vrot.lane.b32.xlu0 %v7944, 8
      %v7984 = vpop.permute.xlu0 %7983
      %7985 = vrot.lane.b32.xlu0 %v7945, 8
      %v7986 = vpop.permute.xlu0 %7985
      %7987 = vrot.lane.b32.xlu0 %v7946, 8
      %v7988 = vpop.permute.xlu0 %7987
      %7989 = vrot.lane.b32.xlu0 %v7947, 8
      %v7990 = vpop.permute.xlu0 %7989
      %7991 = vrot.lane.b32.xlu0 %v7948, 8
      %v7992 = vpop.permute.xlu0 %7991
      %7993 = vrot.lane.b32.xlu0 %v7949, 8
      %v7994 = vpop.permute.xlu0 %7993
      %7995 = vrot.lane.b32.xlu0 %v7950, 8
      %v7996 = vpop.permute.xlu0 %7995
      %7997 = vrot.lane.b32.xlu0 %v7951, 8
      %v7998 = vpop.permute.xlu0 %7997
      %7999 = vrot.lane.b32.xlu0 %v7952, 8
      %v8000 = vpop.permute.xlu0 %7999
      %8001 = vrot.lane.b32.xlu0 %v7953, 8
      %v8002 = vpop.permute.xlu0 %8001
      %8003 = vrot.lane.b32.xlu0 %v7954, 8
      %v8004 = vpop.permute.xlu0 %8003
      %8005 = vrot.lane.b32.xlu0 %v7955, 8
      %v8006 = vpop.permute.xlu0 %8005
      %8007 = vrot.lane.b32.xlu0 %v7956, 8
      %v8008 = vpop.permute.xlu0 %8007
      %8009 = vrot.lane.b32.xlu0 %v7957, 8
      %v8010 = vpop.permute.xlu0 %8009
      %8011 = vrot.lane.b32.xlu0 %v7958, 8
      %v8012 = vpop.permute.xlu0 %8011
      %8013 = vrot.lane.b32.xlu0 %v7959, 8
      %v8014 = vpop.permute.xlu0 %8013
      %8015 = vrot.lane.b32.xlu0 %v7960, 8
      %v8016 = vpop.permute.xlu0 %8015
      %8017 = vrot.lane.b32.xlu0 %v7961, 8
      %v8018 = vpop.permute.xlu0 %8017
      %8019 = vrot.lane.b32.xlu0 %v7962, 8
      %v8020 = vpop.permute.xlu0 %8019
      %8021 = vrot.lane.b32.xlu0 %v7963, 8
      %v8022 = vpop.permute.xlu0 %8021
      %8023 = vrot.lane.b32.xlu0 %v7964, 8
      %v8024 = vpop.permute.xlu0 %8023
      %8025 = vrot.lane.b32.xlu0 %v7965, 8
      %v8026 = vpop.permute.xlu0 %8025
      %8027 = vrot.lane.b32.xlu0 %v7966, 8
      %v8028 = vpop.permute.xlu0 %8027
      %8029 = vrot.lane.b32.xlu0 %v7967, 8
      %v8030 = vpop.permute.xlu0 %8029
      %8031 = vrot.lane.b32.xlu0 %v7968, 8
      %v8032 = vpop.permute.xlu0 %8031
      %8033 = vrot.lane.b32.xlu0 %v7969, 8
      %v8034 = vpop.permute.xlu0 %8033
      %8035 = vrot.lane.b32.xlu0 %v7970, 8
      %v8036 = vpop.permute.xlu0 %8035
      %8037 = vrot.lane.b32.xlu0 %v7971, 8
      %v8038 = vpop.permute.xlu0 %8037
      %8039 = vrot.lane.b32.xlu0 %v7972, 8
      %v8040 = vpop.permute.xlu0 %8039
      %8041 = vrot.lane.b32.xlu0 %v7973, 8
      %v8042 = vpop.permute.xlu0 %8041
      %8043 = vrot.lane.b32.xlu0 %v7974, 8
      %v8044 = vpop.permute.xlu0 %8043
      %8045 = vrot.lane.b32.xlu0 %v7975, 8
      %v8046 = vpop.permute.xlu0 %8045
      %8047 = vrot.lane.b32.xlu0 %v7976, 8
      %v8048 = vpop.permute.xlu0 %8047
      %8085 = vst.msk [vmem:[#allocation3] sm:$0xf] %vm1142, %v7978
      %8086 = vst.msk [vmem:[#allocation3 + $0x4] sm:$0xf] %vm1142, %v7980
      %8087 = vst.msk [vmem:[#allocation3 + $0x8] sm:$0xf] %vm1142, %v7982
      %8088 = vst.msk [vmem:[#allocation3 + $0xc] sm:$0xf] %vm1142, %v7984
      %8089 = vst.msk [vmem:[#allocation3 + $0x10] sm:$0xf] %vm1142, %v7986
      %8090 = vst.msk [vmem:[#allocation3 + $0x14] sm:$0xf] %vm1142, %v7988
      %8091 = vst.msk [vmem:[#allocation3 + $0x18] sm:$0xf] %vm1142, %v7990
      %8092 = vst.msk [vmem:[#allocation3 + $0x1c] sm:$0xf] %vm1142, %v7992
      %8093 = vst.msk [vmem:[#allocation3 + $0x20] sm:$0xf] %vm1142, %v7994
      %8094 = vst.msk [vmem:[#allocation3 + $0x24] sm:$0xf] %vm1142, %v7996
      %8095 = vst.msk [vmem:[#allocation3 + $0x28] sm:$0xf] %vm1142, %v7998
      %8096 = vst.msk [vmem:[#allocation3 + $0x2c] sm:$0xf] %vm1142, %v8000
      %8097 = vst.msk [vmem:[#allocation3 + $0x30] sm:$0xf] %vm1142, %v8002
      %8098 = vst.msk [vmem:[#allocation3 + $0x34] sm:$0xf] %vm1142, %v8004
      %8099 = vst.msk [vmem:[#allocation3 + $0x38] sm:$0xf] %vm1142, %v8006
      %8100 = vst.msk [vmem:[#allocation3 + $0x3c] sm:$0xf] %vm1142, %v8008
      %8101 = vst.msk [vmem:[#allocation3 + $0x40] sm:$0xf] %vm1142, %v8010
      %8102 = vst.msk [vmem:[#allocation3 + $0x44] sm:$0xf] %vm1142, %v8012
      %8103 = vst.msk [vmem:[#allocation3 + $0x48] sm:$0xf] %vm1142, %v8014
      %8104 = vst.msk [vmem:[#allocation3 + $0x4c] sm:$0xf] %vm1142, %v8016
      %8105 = vst.msk [vmem:[#allocation3 + $0x50] sm:$0xf] %vm1142, %v8018
      %8106 = vst.msk [vmem:[#allocation3 + $0x54] sm:$0xf] %vm1142, %v8020
      %8107 = vst.msk [vmem:[#allocation3 + $0x58] sm:$0xf] %vm1142, %v8022
      %8108 = vst.msk [vmem:[#allocation3 + $0x5c] sm:$0xf] %vm1142, %v8024
      %8109 = vst.msk [vmem:[#allocation3 + $0x60] sm:$0xf] %vm1142, %v8026
      %8110 = vst.msk [vmem:[#allocation3 + $0x64] sm:$0xf] %vm1142, %v8028
      %8111 = vst.msk [vmem:[#allocation3 + $0x68] sm:$0xf] %vm1142, %v8030
      %8112 = vst.msk [vmem:[#allocation3 + $0x6c] sm:$0xf] %vm1142, %v8032
      %8113 = vst.msk [vmem:[#allocation3 + $0x70] sm:$0xf] %vm1142, %v8034
      %8114 = vst.msk [vmem:[#allocation3 + $0x74] sm:$0xf] %vm1142, %v8036
      %8115 = vst.msk [vmem:[#allocation3 + $0x78] sm:$0xf] %vm1142, %v8038
      %8116 = vst.msk [vmem:[#allocation3 + $0x7c] sm:$0xf] %vm1142, %v8040
      %8117 = vst.msk [vmem:[#allocation3 + $0x80] sm:$0xf] %vm1142, %v8042
      %8118 = vst.msk [vmem:[#allocation3 + $0x84] sm:$0xf] %vm1142, %v8044
      %8119 = vst.msk [vmem:[#allocation3 + $0x88] sm:$0xf] %vm1142, %v8046
      %8120 = vst.msk [vmem:[#allocation3 + $0x8c] sm:$0xf] %vm1142, %v8048
      %v8121 = vld [vmem:[#allocation3] sm:$0xf]
      %v8122 = vld [vmem:[#allocation3 + $0x4] sm:$0xf]
      %v8123 = vld [vmem:[#allocation3 + $0x8] sm:$0xf]
      %v8124 = vld [vmem:[#allocation3 + $0xc] sm:$0xf]
      %v8125 = vld [vmem:[#allocation3 + $0x10] sm:$0xf]
      %v8126 = vld [vmem:[#allocation3 + $0x14] sm:$0xf]
      %v8127 = vld [vmem:[#allocation3 + $0x18] sm:$0xf]
      %v8128 = vld [vmem:[#allocation3 + $0x1c] sm:$0xf]
      %v8129 = vld [vmem:[#allocation3 + $0x20] sm:$0xf]
      %v8130 = vld [vmem:[#allocation3 + $0x24] sm:$0xf]
      %v8131 = vld [vmem:[#allocation3 + $0x28] sm:$0xf]
      %v8132 = vld [vmem:[#allocation3 + $0x2c] sm:$0xf]
      %v8133 = vld [vmem:[#allocation3 + $0x30] sm:$0xf]
      %v8134 = vld [vmem:[#allocation3 + $0x34] sm:$0xf]
      %v8135 = vld [vmem:[#allocation3 + $0x38] sm:$0xf]
      %v8136 = vld [vmem:[#allocation3 + $0x3c] sm:$0xf]
      %v8137 = vld [vmem:[#allocation3 + $0x40] sm:$0xf]
      %v8138 = vld [vmem:[#allocation3 + $0x44] sm:$0xf]
      %v8139 = vld [vmem:[#allocation3 + $0x48] sm:$0xf]
      %v8140 = vld [vmem:[#allocation3 + $0x4c] sm:$0xf]
      %v8141 = vld [vmem:[#allocation3 + $0x50] sm:$0xf]
      %v8142 = vld [vmem:[#allocation3 + $0x54] sm:$0xf]
      %v8143 = vld [vmem:[#allocation3 + $0x58] sm:$0xf]
      %v8144 = vld [vmem:[#allocation3 + $0x5c] sm:$0xf]
      %v8145 = vld [vmem:[#allocation3 + $0x60] sm:$0xf]
      %v8146 = vld [vmem:[#allocation3 + $0x64] sm:$0xf]
      %v8147 = vld [vmem:[#allocation3 + $0x68] sm:$0xf]
      %v8148 = vld [vmem:[#allocation3 + $0x6c] sm:$0xf]
      %v8149 = vld [vmem:[#allocation3 + $0x70] sm:$0xf]
      %v8150 = vld [vmem:[#allocation3 + $0x74] sm:$0xf]
      %v8151 = vld [vmem:[#allocation3 + $0x78] sm:$0xf]
      %v8152 = vld [vmem:[#allocation3 + $0x7c] sm:$0xf]
      %v8153 = vld [vmem:[#allocation3 + $0x80] sm:$0xf]
      %v8154 = vld [vmem:[#allocation3 + $0x84] sm:$0xf]
      %v8155 = vld [vmem:[#allocation3 + $0x88] sm:$0xf]
      %v8156 = vld [vmem:[#allocation3 + $0x8c] sm:$0xf]
      %s8157 = scalar_lea.vmem %s2, 16
      %v8158 = vld [vmem:[%s8157] sm:$0xf]
      %v8159 = vld [vmem:[%s8157 + $0x4] sm:$0x3]
      %v8196 = vunpack.c.l.b16 %v8121
      %v8197 = vunpack.c.l.b16 %v8122
      %v8198 = vunpack.c.l.b16 %v8123
      %v8199 = vunpack.c.l.b16 %v8124
      %v8200 = vunpack.c.l.b16 %v8125
      %v8201 = vunpack.c.l.b16 %v8126
      %v8202 = vunpack.c.l.b16 %v8127
      %v8203 = vunpack.c.l.b16 %v8128
      %v8204 = vunpack.c.l.b16 %v8129
      %v8205 = vunpack.c.l.b16 %v8130
      %v8206 = vunpack.c.l.b16 %v8131
      %v8207 = vunpack.c.l.b16 %v8132
      %v8208 = vunpack.c.l.b16 %v8133
      %v8209 = vunpack.c.l.b16 %v8134
      %v8210 = vunpack.c.l.b16 %v8135
      %v8211 = vunpack.c.l.b16 %v8136
      %v8212 = vunpack.c.l.b16 %v8137
      %v8213 = vunpack.c.l.b16 %v8138
      %v8214 = vunpack.c.l.b16 %v8139
      %v8215 = vunpack.c.l.b16 %v8140
      %v8216 = vunpack.c.l.b16 %v8141
      %v8217 = vunpack.c.l.b16 %v8142
      %v8218 = vunpack.c.l.b16 %v8143
      %v8219 = vunpack.c.l.b16 %v8144
      %v8220 = vunpack.c.l.b16 %v8145
      %v8221 = vunpack.c.l.b16 %v8146
      %v8222 = vunpack.c.l.b16 %v8147
      %v8223 = vunpack.c.l.b16 %v8148
      %v8224 = vunpack.c.l.b16 %v8149
      %v8225 = vunpack.c.l.b16 %v8150
      %v8226 = vunpack.c.l.b16 %v8151
      %v8227 = vunpack.c.l.b16 %v8152
      %v8228 = vunpack.c.l.b16 %v8153
      %v8229 = vunpack.c.l.b16 %v8154
      %v8230 = vunpack.c.l.b16 %v8155
      %v8231 = vunpack.c.l.b16 %v8156
      %v8232 = vpack.c.b16 %v8197, %v8196
      %v8233 = vpack.c.b16 %v8199, %v8198
      %v8234 = vpack.c.b16 %v8201, %v8200
      %v8235 = vpack.c.b16 %v8203, %v8202
      %v8236 = vpack.c.b16 %v8205, %v8204
      %v8237 = vpack.c.b16 %v8207, %v8206
      %v8238 = vpack.c.b16 %v8209, %v8208
      %v8239 = vpack.c.b16 %v8211, %v8210
      %v8240 = vpack.c.b16 %v8213, %v8212
      %v8241 = vpack.c.b16 %v8215, %v8214
      %v8242 = vpack.c.b16 %v8217, %v8216
      %v8243 = vpack.c.b16 %v8219, %v8218
      %v8244 = vpack.c.b16 %v8221, %v8220
      %v8245 = vpack.c.b16 %v8223, %v8222
      %v8246 = vpack.c.b16 %v8225, %v8224
      %v8247 = vpack.c.b16 %v8227, %v8226
      %v8248 = vpack.c.b16 %v8229, %v8228
      %v8249 = vpack.c.b16 %v8231, %v8230
      %v8252 = vunpack.c.l.b16 %v8158
      %v8253 = vunpack.c.l.b16 %v8159
      %v8254 = vpack.c.b16 %v8253, %v8252
      %v8256 = vsel %vm2488, %v8232, 0
      %v8259 = vsel %vm2488, %v8233, 0
      %v8262 = vsel %vm2488, %v8234, 0
      %v8265 = vsel %vm2488, %v8235, 0
      %v8268 = vsel %vm2488, %v8236, 0
      %v8271 = vsel %vm2488, %v8237, 0
      %v8274 = vsel %vm2488, %v8238, 0
      %v8277 = vsel %vm2488, %v8239, 0
      %v8280 = vsel %vm2488, %v8240, 0
      %v8283 = vsel %vm2488, %v8241, 0
      %v8286 = vsel %vm2488, %v8242, 0
      %v8289 = vsel %vm2488, %v8243, 0
      %v8292 = vsel %vm2488, %v8244, 0
      %v8295 = vsel %vm2488, %v8245, 0
      %v8298 = vsel %vm2488, %v8246, 0
      %v8301 = vsel %vm2488, %v8247, 0
      %v8304 = vsel %vm2488, %v8248, 0
      %v8307 = vsel %vm2488, %v8249, 0
      %v8310 = vsel %vm2543, %v8254, 0
      %8312 = vmatprep.subr.bf16.mxu0 0
      %8313 = vmatpush1.bf16.msra.mxu0 0
      %8314 = vmatprep.subr.bf16.mxu0 0
      %8315 = vmatpush1.bf16.msra.mxu0 0
      %8316 = vmatprep.subr.bf16.mxu0 0
      %8317 = vmatpush1.bf16.msra.mxu0 0
      %8318 = vmatprep.subr.bf16.mxu0 0
      %8319 = vmatpush1.bf16.msra.mxu0 0
      %8320 = vmatprep.subr.bf16.mxu0 0
      %8321 = vmatpush1.bf16.msra.mxu0 0
      %8322 = vmatprep.subr.bf16.mxu0 0
      %8323 = vmatpush1.bf16.msra.mxu0 0
      %8324 = vmatprep.subr.bf16.mxu0 0
      %8325 = vmatpush1.bf16.msra.mxu0 0
      %8326 = vmatprep.subr.bf16.mxu0 0
      %8327 = vmatpush1.bf16.msra.mxu0 %v8310
      %8328 = vmatprep.subr.bf16.mxu0 0
      %8329 = vmatpush2.bf16.msra.mxu0 0
      %8330 = vmatprep.subr.bf16.mxu0 0
      %8331 = vmatpush2.bf16.msra.mxu0 0
      %8332 = vmatprep.subr.bf16.mxu0 0
      %8333 = vmatpush2.bf16.msra.mxu0 0
      %8334 = vmatprep.subr.bf16.mxu0 0
      %8335 = vmatpush2.bf16.msra.mxu0 0
      %8336 = vmatprep.subr.bf16.mxu0 0
      %8337 = vmatpush2.bf16.msra.mxu0 0
      %8338 = vmatprep.subr.bf16.mxu0 0
      %8339 = vmatpush2.bf16.msra.mxu0 0
      %8340 = vmatprep.subr.bf16.mxu0 0
      %8341 = vmatpush2.bf16.msra.mxu0 0
      %8342 = vmatprep.subr.bf16.mxu0 0
      %8343 = vmatpush2.bf16.msra.mxu0 0
      %8344 = vmatprep.mubr.bf16.mxu0 0
      %8345 = vmatmul.mubr.bf16.gmra.mxu0 %v8256
      %v8346 = vpop.f32.mrf.mxu0
      %v8347 = vadd.f32 0.0, %v8346
      %v8348 = vpop.f32.mrf.mxu0
      %v8349 = vpop.f32.mrf.mxu0
      %v8350 = vadd.f32 0.0, %v8349
      %v8351 = vpop.f32.mrf.mxu0
      %8352 = vmatprep.mubr.bf16.mxu0 0
      %8353 = vmatmul.mubr.bf16.gmra.mxu0 %v8259
      %v8354 = vpop.f32.mrf.mxu0
      %v8355 = vadd.f32 0.0, %v8354
      %v8356 = vpop.f32.mrf.mxu0
      %v8357 = vpop.f32.mrf.mxu0
      %v8358 = vadd.f32 0.0, %v8357
      %v8359 = vpop.f32.mrf.mxu0
      %8360 = vmatprep.mubr.bf16.mxu0 0
      %8361 = vmatmul.mubr.bf16.gmra.mxu0 %v8262
      %v8362 = vpop.f32.mrf.mxu0
      %v8363 = vadd.f32 0.0, %v8362
      %v8364 = vpop.f32.mrf.mxu0
      %v8365 = vpop.f32.mrf.mxu0
      %v8366 = vadd.f32 0.0, %v8365
      %v8367 = vpop.f32.mrf.mxu0
      %8368 = vmatprep.mubr.bf16.mxu0 0
      %8369 = vmatmul.mubr.bf16.gmra.mxu0 %v8265
      %v8370 = vpop.f32.mrf.mxu0
      %v8371 = vadd.f32 0.0, %v8370
      %v8372 = vpop.f32.mrf.mxu0
      %v8373 = vpop.f32.mrf.mxu0
      %v8374 = vadd.f32 0.0, %v8373
      %v8375 = vpop.f32.mrf.mxu0
      %8376 = vmatprep.mubr.bf16.mxu0 0
      %8377 = vmatmul.mubr.bf16.gmra.mxu0 %v8268
      %v8378 = vpop.f32.mrf.mxu0
      %v8379 = vadd.f32 0.0, %v8378
      %v8380 = vpop.f32.mrf.mxu0
      %v8381 = vpop.f32.mrf.mxu0
      %v8382 = vadd.f32 0.0, %v8381
      %v8383 = vpop.f32.mrf.mxu0
      %8384 = vmatprep.mubr.bf16.mxu0 0
      %8385 = vmatmul.mubr.bf16.gmra.mxu0 %v8271
      %v8386 = vpop.f32.mrf.mxu0
      %v8387 = vadd.f32 0.0, %v8386
      %v8388 = vpop.f32.mrf.mxu0
      %v8389 = vpop.f32.mrf.mxu0
      %v8390 = vadd.f32 0.0, %v8389
      %v8391 = vpop.f32.mrf.mxu0
      %8392 = vmatprep.mubr.bf16.mxu0 0
      %8393 = vmatmul.mubr.bf16.gmra.mxu0 %v8274
      %v8394 = vpop.f32.mrf.mxu0
      %v8395 = vadd.f32 0.0, %v8394
      %v8396 = vpop.f32.mrf.mxu0
      %v8397 = vpop.f32.mrf.mxu0
      %v8398 = vadd.f32 0.0, %v8397
      %v8399 = vpop.f32.mrf.mxu0
      %8400 = vmatprep.mubr.bf16.mxu0 0
      %8401 = vmatmul.mubr.bf16.gmra.mxu0 %v8277
      %v8402 = vpop.f32.mrf.mxu0
      %v8403 = vadd.f32 0.0, %v8402
      %v8404 = vpop.f32.mrf.mxu0
      %v8405 = vpop.f32.mrf.mxu0
      %v8406 = vadd.f32 0.0, %v8405
      %v8407 = vpop.f32.mrf.mxu0
      %8408 = vmatprep.mubr.bf16.mxu0 0
      %8409 = vmatmul.mubr.bf16.gmra.mxu0 %v8280
      %v8410 = vpop.f32.mrf.mxu0
      %v8411 = vadd.f32 0.0, %v8410
      %v8412 = vpop.f32.mrf.mxu0
      %v8413 = vpop.f32.mrf.mxu0
      %v8414 = vadd.f32 0.0, %v8413
      %v8415 = vpop.f32.mrf.mxu0
      %8416 = vmatprep.mubr.bf16.mxu0 0
      %8417 = vmatmul.mubr.bf16.gmra.mxu0 %v8283
      %v8418 = vpop.f32.mrf.mxu0
      %v8419 = vadd.f32 0.0, %v8418
      %v8420 = vpop.f32.mrf.mxu0
      %v8421 = vpop.f32.mrf.mxu0
      %v8422 = vadd.f32 0.0, %v8421
      %v8423 = vpop.f32.mrf.mxu0
      %8424 = vmatprep.mubr.bf16.mxu0 0
      %8425 = vmatmul.mubr.bf16.gmra.mxu0 %v8286
      %v8426 = vpop.f32.mrf.mxu0
      %v8427 = vadd.f32 0.0, %v8426
      %v8428 = vpop.f32.mrf.mxu0
      %v8429 = vpop.f32.mrf.mxu0
      %v8430 = vadd.f32 0.0, %v8429
      %v8431 = vpop.f32.mrf.mxu0
      %8432 = vmatprep.mubr.bf16.mxu0 0
      %8433 = vmatmul.mubr.bf16.gmra.mxu0 %v8289
      %v8434 = vpop.f32.mrf.mxu0
      %v8435 = vadd.f32 0.0, %v8434
      %v8436 = vpop.f32.mrf.mxu0
      %v8437 = vpop.f32.mrf.mxu0
      %v8438 = vadd.f32 0.0, %v8437
      %v8439 = vpop.f32.mrf.mxu0
      %8440 = vmatprep.mubr.bf16.mxu0 0
      %8441 = vmatmul.mubr.bf16.gmra.mxu0 %v8292
      %v8442 = vpop.f32.mrf.mxu0
      %v8443 = vadd.f32 0.0, %v8442
      %v8444 = vpop.f32.mrf.mxu0
      %v8445 = vpop.f32.mrf.mxu0
      %v8446 = vadd.f32 0.0, %v8445
      %v8447 = vpop.f32.mrf.mxu0
      %8448 = vmatprep.mubr.bf16.mxu0 0
      %8449 = vmatmul.mubr.bf16.gmra.mxu0 %v8295
      %v8450 = vpop.f32.mrf.mxu0
      %v8451 = vadd.f32 0.0, %v8450
      %v8452 = vpop.f32.mrf.mxu0
      %v8453 = vpop.f32.mrf.mxu0
      %v8454 = vadd.f32 0.0, %v8453
      %v8455 = vpop.f32.mrf.mxu0
      %8456 = vmatprep.mubr.bf16.mxu0 0
      %8457 = vmatmul.mubr.bf16.gmra.mxu0 %v8298
      %v8458 = vpop.f32.mrf.mxu0
      %v8459 = vadd.f32 0.0, %v8458
      %v8460 = vpop.f32.mrf.mxu0
      %v8461 = vpop.f32.mrf.mxu0
      %v8462 = vadd.f32 0.0, %v8461
      %v8463 = vpop.f32.mrf.mxu0
      %8464 = vmatprep.mubr.bf16.mxu0 0
      %8465 = vmatmul.mubr.bf16.gmra.mxu0 %v8301
      %v8466 = vpop.f32.mrf.mxu0
      %v8467 = vadd.f32 0.0, %v8466
      %v8468 = vpop.f32.mrf.mxu0
      %v8469 = vpop.f32.mrf.mxu0
      %v8470 = vadd.f32 0.0, %v8469
      %v8471 = vpop.f32.mrf.mxu0
      %8472 = vmatprep.mubr.bf16.mxu0 0
      %8473 = vmatmul.mubr.bf16.gmra.mxu0 %v8304
      %v8474 = vpop.f32.mrf.mxu0
      %v8475 = vadd.f32 0.0, %v8474
      %v8476 = vpop.f32.mrf.mxu0
      %v8477 = vpop.f32.mrf.mxu0
      %v8478 = vadd.f32 0.0, %v8477
      %v8479 = vpop.f32.mrf.mxu0
      %8480 = vmatprep.mubr.bf16.mxu0 0
      %8481 = vmatmul.mubr.bf16.gmra.mxu0 %v8307
      %v8482 = vpop.f32.mrf.mxu0
      %v8483 = vadd.f32 0.0, %v8482
      %v8484 = vpop.f32.mrf.mxu0
      %v8485 = vpop.f32.mrf.mxu0
      %v8486 = vadd.f32 0.0, %v8485
      %v8487 = vpop.f32.mrf.mxu0
      %8488 = vdwg.mxu0
      %v8489 = vadd.f32 %v7187, %v8347
      %v8490 = vadd.f32 %v7190, %v8350
      %v8491 = vadd.f32 %v7195, %v8355
      %v8492 = vadd.f32 %v7198, %v8358
      %v8493 = vadd.f32 %v7203, %v8363
      %v8494 = vadd.f32 %v7206, %v8366
      %v8495 = vadd.f32 %v7211, %v8371
      %v8496 = vadd.f32 %v7214, %v8374
      %v8497 = vadd.f32 %v7219, %v8379
      %v8498 = vadd.f32 %v7222, %v8382
      %v8499 = vadd.f32 %v7227, %v8387
      %v8500 = vadd.f32 %v7230, %v8390
      %v8501 = vadd.f32 %v7235, %v8395
      %v8502 = vadd.f32 %v7238, %v8398
      %v8503 = vadd.f32 %v7243, %v8403
      %v8504 = vadd.f32 %v7246, %v8406
      %v8505 = vadd.f32 %v7251, %v8411
      %v8506 = vadd.f32 %v7254, %v8414
      %v8507 = vadd.f32 %v7259, %v8419
      %v8508 = vadd.f32 %v7262, %v8422
      %v8509 = vadd.f32 %v7267, %v8427
      %v8510 = vadd.f32 %v7270, %v8430
      %v8511 = vadd.f32 %v7275, %v8435
      %v8512 = vadd.f32 %v7278, %v8438
      %v8513 = vadd.f32 %v7283, %v8443
      %v8514 = vadd.f32 %v7286, %v8446
      %v8515 = vadd.f32 %v7291, %v8451
      %v8516 = vadd.f32 %v7294, %v8454
      %v8517 = vadd.f32 %v7299, %v8459
      %v8518 = vadd.f32 %v7302, %v8462
      %v8519 = vadd.f32 %v7307, %v8467
      %v8520 = vadd.f32 %v7310, %v8470
      %v8521 = vadd.f32 %v7315, %v8475
      %v8522 = vadd.f32 %v7318, %v8478
      %v8523 = vadd.f32 %v7323, %v8483
      %v8524 = vadd.f32 %v7326, %v8486
      %v8525 = vld [vmem:[%s219 + $0x8] sm:$0xe]
      %v8526 = vld [vmem:[%s219 + $0xc] sm:$0xf]
      %v8527 = vld [vmem:[%s219 + $0x10] sm:$0xf]
      %v8528 = vld [vmem:[%s219 + $0x14] sm:$0xf]
      %v8529 = vld [vmem:[%s219 + $0x18] sm:$0xf]
      %v8530 = vld [vmem:[%s219 + $0x1c] sm:$0xf]
      %v8531 = vld [vmem:[%s219 + $0x20] sm:$0xf]
      %v8532 = vld [vmem:[%s219 + $0x24] sm:$0xf]
      %v8533 = vld [vmem:[%s219 + $0x28] sm:$0xf]
      %v8534 = vld [vmem:[%s219 + $0x2c] sm:$0xf]
      %v8535 = vld [vmem:[%s219 + $0x30] sm:$0xf]
      %v8536 = vld [vmem:[%s219 + $0x34] sm:$0xf]
      %v8537 = vld [vmem:[%s219 + $0x38] sm:$0xf]
      %v8538 = vld [vmem:[%s219 + $0x3c] sm:$0xf]
      %v8539 = vld [vmem:[%s219 + $0x40] sm:$0xf]
      %v8540 = vld [vmem:[%s219 + $0x44] sm:$0xf]
      %v8541 = vld [vmem:[%s219 + $0x48] sm:$0xf]
      %v8542 = vld [vmem:[%s219 + $0x4c] sm:$0xf]
      %v8543 = vld [vmem:[%s219 + $0x50] sm:$0xf]
      %v8544 = vld [vmem:[%s219 + $0x54] sm:$0xf]
      %v8545 = vld [vmem:[%s219 + $0x58] sm:$0xf]
      %v8546 = vld [vmem:[%s219 + $0x5c] sm:$0xf]
      %v8547 = vld [vmem:[%s219 + $0x60] sm:$0xf]
      %v8548 = vld [vmem:[%s219 + $0x64] sm:$0xf]
      %v8549 = vld [vmem:[%s219 + $0x68] sm:$0xf]
      %v8550 = vld [vmem:[%s219 + $0x6c] sm:$0xf]
      %v8551 = vld [vmem:[%s219 + $0x70] sm:$0xf]
      %v8552 = vld [vmem:[%s219 + $0x74] sm:$0xf]
      %v8553 = vld [vmem:[%s219 + $0x78] sm:$0xf]
      %v8554 = vld [vmem:[%s219 + $0x7c] sm:$0xf]
      %v8555 = vld [vmem:[%s219 + $0x80] sm:$0xf]
      %v8556 = vld [vmem:[%s219 + $0x84] sm:$0xf]
      %v8557 = vld [vmem:[%s219 + $0x88] sm:$0xf]
      %v8558 = vld [vmem:[%s219 + $0x8c] sm:$0xf]
      %v8559 = vld [vmem:[%s219 + $0x90] sm:$0xf]
      %v8560 = vld [vmem:[%s219 + $0x94] sm:$0xf]
      %v8561 = vld [vmem:[%s219 + $0x98] sm:$0x3]
      %v8562 = vunpack.c.l.bf16 %v8525
      %v8563 = vunpack.c.l.bf16 %v8526
      %v8564 = vunpack.c.l.bf16 %v8527
      %v8565 = vunpack.c.l.bf16 %v8528
      %v8566 = vunpack.c.l.bf16 %v8529
      %v8567 = vunpack.c.l.bf16 %v8530
      %v8568 = vunpack.c.l.bf16 %v8531
      %v8569 = vunpack.c.l.bf16 %v8532
      %v8570 = vunpack.c.l.bf16 %v8533
      %v8571 = vunpack.c.l.bf16 %v8534
      %v8572 = vunpack.c.l.bf16 %v8535
      %v8573 = vunpack.c.l.bf16 %v8536
      %v8574 = vunpack.c.l.bf16 %v8537
      %v8575 = vunpack.c.l.bf16 %v8538
      %v8576 = vunpack.c.l.bf16 %v8539
      %v8577 = vunpack.c.l.bf16 %v8540
      %v8578 = vunpack.c.l.bf16 %v8541
      %v8579 = vunpack.c.l.bf16 %v8542
      %v8580 = vunpack.c.l.bf16 %v8543
      %v8581 = vunpack.c.l.bf16 %v8544
      %v8582 = vunpack.c.l.bf16 %v8545
      %v8583 = vunpack.c.l.bf16 %v8546
      %v8584 = vunpack.c.l.bf16 %v8547
      %v8585 = vunpack.c.l.bf16 %v8548
      %v8586 = vunpack.c.l.bf16 %v8549
      %v8587 = vunpack.c.l.bf16 %v8550
      %v8588 = vunpack.c.l.bf16 %v8551
      %v8589 = vunpack.c.l.bf16 %v8552
      %v8590 = vunpack.c.l.bf16 %v8553
      %v8591 = vunpack.c.l.bf16 %v8554
      %v8592 = vunpack.c.l.bf16 %v8555
      %v8593 = vunpack.c.l.bf16 %v8556
      %v8594 = vunpack.c.l.bf16 %v8557
      %v8595 = vunpack.c.l.bf16 %v8558
      %v8596 = vunpack.c.l.bf16 %v8559
      %v8597 = vunpack.c.l.bf16 %v8560
      %v8598 = vunpack.c.l.bf16 %v8561
      %v8599 = vld [vmem:[%s3 + $0x2] sm:$0x1]
      %v8600 = vlaneseq
      %v8601 = vshrl.u32 %v8600, 7
      %v8602 = vsub.s32 0, %v8601
      %v8603 = vrot.slane %v8599, %v8602
      %v8604 = vmul.f32 %v8489, %v8603
      %v8605 = vmul.f32 %v8490, %v8603
      %v8606 = vmul.f32 %v8491, %v8603
      %v8607 = vmul.f32 %v8492, %v8603
      %v8608 = vmul.f32 %v8493, %v8603
      %v8609 = vmul.f32 %v8494, %v8603
      %v8610 = vmul.f32 %v8495, %v8603
      %v8611 = vmul.f32 %v8496, %v8603
      %v8612 = vmul.f32 %v8497, %v8603
      %v8613 = vmul.f32 %v8498, %v8603
      %v8614 = vmul.f32 %v8499, %v8603
      %v8615 = vmul.f32 %v8500, %v8603
      %v8616 = vmul.f32 %v8501, %v8603
      %v8617 = vmul.f32 %v8502, %v8603
      %v8618 = vmul.f32 %v8503, %v8603
      %v8619 = vmul.f32 %v8504, %v8603
      %v8620 = vmul.f32 %v8505, %v8603
      %v8621 = vmul.f32 %v8506, %v8603
      %v8622 = vmul.f32 %v8507, %v8603
      %v8623 = vmul.f32 %v8508, %v8603
      %v8624 = vmul.f32 %v8509, %v8603
      %v8625 = vmul.f32 %v8510, %v8603
      %v8626 = vmul.f32 %v8511, %v8603
      %v8627 = vmul.f32 %v8512, %v8603
      %v8628 = vmul.f32 %v8513, %v8603
      %v8629 = vmul.f32 %v8514, %v8603
      %v8630 = vmul.f32 %v8515, %v8603
      %v8631 = vmul.f32 %v8516, %v8603
      %v8632 = vmul.f32 %v8517, %v8603
      %v8633 = vmul.f32 %v8518, %v8603
      %v8634 = vmul.f32 %v8519, %v8603
      %v8635 = vmul.f32 %v8520, %v8603
      %v8636 = vmul.f32 %v8521, %v8603
      %v8637 = vmul.f32 %v8522, %v8603
      %v8638 = vmul.f32 %v8523, %v8603
      %v8639 = vmul.f32 %v8524, %v8603
      %v8640 = vld [vmem:[%s3 + $0x3] sm:$0x1]
      %v8641 = vlaneseq
      %v8642 = vshrl.u32 %v8641, 7
      %v8643 = vsub.s32 0, %v8642
      %v8644 = vrot.slane %v8640, %v8643
      %v8645 = vadd.f32 %v8644, %v8562
      %v8646 = vadd.f32 %v8644, %v8563
      %v8647 = vadd.f32 %v8644, %v8564
      %v8648 = vadd.f32 %v8644, %v8565
      %v8649 = vadd.f32 %v8644, %v8566
      %v8650 = vadd.f32 %v8644, %v8567
      %v8651 = vadd.f32 %v8644, %v8568
      %v8652 = vadd.f32 %v8644, %v8569
      %v8653 = vadd.f32 %v8644, %v8570
      %v8654 = vadd.f32 %v8644, %v8571
      %v8655 = vadd.f32 %v8644, %v8572
      %v8656 = vadd.f32 %v8644, %v8573
      %v8657 = vadd.f32 %v8644, %v8574
      %v8658 = vadd.f32 %v8644, %v8575
      %v8659 = vadd.f32 %v8644, %v8576
      %v8660 = vadd.f32 %v8644, %v8577
      %v8661 = vadd.f32 %v8644, %v8578
      %v8662 = vadd.f32 %v8644, %v8579
      %v8663 = vadd.f32 %v8644, %v8580
      %v8664 = vadd.f32 %v8644, %v8581
      %v8665 = vadd.f32 %v8644, %v8582
      %v8666 = vadd.f32 %v8644, %v8583
      %v8667 = vadd.f32 %v8644, %v8584
      %v8668 = vadd.f32 %v8644, %v8585
      %v8669 = vadd.f32 %v8644, %v8586
      %v8670 = vadd.f32 %v8644, %v8587
      %v8671 = vadd.f32 %v8644, %v8588
      %v8672 = vadd.f32 %v8644, %v8589
      %v8673 = vadd.f32 %v8644, %v8590
      %v8674 = vadd.f32 %v8644, %v8591
      %v8675 = vadd.f32 %v8644, %v8592
      %v8676 = vadd.f32 %v8644, %v8593
      %v8677 = vadd.f32 %v8644, %v8594
      %v8678 = vadd.f32 %v8644, %v8595
      %v8679 = vadd.f32 %v8644, %v8596
      %v8680 = vadd.f32 %v8644, %v8597
      %v8681 = vadd.f32 %v8644, %v8598
      %vm8719 = vcmask 1044480
      %v8720 = vrot.slane %v8645, 3
      %v8721 = vrot.slane %v8646, 3
      %v8722 = vsel %vm8719, %v8720, %v8721
      %v8723 = vrot.slane %v8647, 3
      %v8724 = vsel %vm8719, %v8721, %v8723
      %v8725 = vrot.slane %v8648, 3
      %v8726 = vsel %vm8719, %v8723, %v8725
      %v8727 = vrot.slane %v8649, 3
      %v8728 = vsel %vm8719, %v8725, %v8727
      %v8729 = vrot.slane %v8650, 3
      %v8730 = vsel %vm8719, %v8727, %v8729
      %v8731 = vrot.slane %v8651, 3
      %v8732 = vsel %vm8719, %v8729, %v8731
      %v8733 = vrot.slane %v8652, 3
      %v8734 = vsel %vm8719, %v8731, %v8733
      %v8735 = vrot.slane %v8653, 3
      %v8736 = vsel %vm8719, %v8733, %v8735
      %v8737 = vrot.slane %v8654, 3
      %v8738 = vsel %vm8719, %v8735, %v8737
      %v8739 = vrot.slane %v8655, 3
      %v8740 = vsel %vm8719, %v8737, %v8739
      %v8741 = vrot.slane %v8656, 3
      %v8742 = vsel %vm8719, %v8739, %v8741
      %v8743 = vrot.slane %v8657, 3
      %v8744 = vsel %vm8719, %v8741, %v8743
      %v8745 = vrot.slane %v8658, 3
      %v8746 = vsel %vm8719, %v8743, %v8745
      %v8747 = vrot.slane %v8659, 3
      %v8748 = vsel %vm8719, %v8745, %v8747
      %v8749 = vrot.slane %v8660, 3
      %v8750 = vsel %vm8719, %v8747, %v8749
      %v8751 = vrot.slane %v8661, 3
      %v8752 = vsel %vm8719, %v8749, %v8751
      %v8753 = vrot.slane %v8662, 3
      %v8754 = vsel %vm8719, %v8751, %v8753
      %v8755 = vrot.slane %v8663, 3
      %v8756 = vsel %vm8719, %v8753, %v8755
      %v8757 = vrot.slane %v8664, 3
      %v8758 = vsel %vm8719, %v8755, %v8757
      %v8759 = vrot.slane %v8665, 3
      %v8760 = vsel %vm8719, %v8757, %v8759
      %v8761 = vrot.slane %v8666, 3
      %v8762 = vsel %vm8719, %v8759, %v8761
      %v8763 = vrot.slane %v8667, 3
      %v8764 = vsel %vm8719, %v8761, %v8763
      %v8765 = vrot.slane %v8668, 3
      %v8766 = vsel %vm8719, %v8763, %v8765
      %v8767 = vrot.slane %v8669, 3
      %v8768 = vsel %vm8719, %v8765, %v8767
      %v8769 = vrot.slane %v8670, 3
      %v8770 = vsel %vm8719, %v8767, %v8769
      %v8771 = vrot.slane %v8671, 3
      %v8772 = vsel %vm8719, %v8769, %v8771
      %v8773 = vrot.slane %v8672, 3
      %v8774 = vsel %vm8719, %v8771, %v8773
      %v8775 = vrot.slane %v8673, 3
      %v8776 = vsel %vm8719, %v8773, %v8775
      %v8777 = vrot.slane %v8674, 3
      %v8778 = vsel %vm8719, %v8775, %v8777
      %v8779 = vrot.slane %v8675, 3
      %v8780 = vsel %vm8719, %v8777, %v8779
      %v8781 = vrot.slane %v8676, 3
      %v8782 = vsel %vm8719, %v8779, %v8781
      %v8783 = vrot.slane %v8677, 3
      %v8784 = vsel %vm8719, %v8781, %v8783
      %v8785 = vrot.slane %v8678, 3
      %v8786 = vsel %vm8719, %v8783, %v8785
      %v8787 = vrot.slane %v8679, 3
      %v8788 = vsel %vm8719, %v8785, %v8787
      %v8789 = vrot.slane %v8680, 3
      %v8790 = vsel %vm8719, %v8787, %v8789
      %v8791 = vrot.slane %v8681, 3
      %v8792 = vsel %vm8719, %v8789, %v8791
      %v8829 = vadd.f32 %v8604, %v8722
      %v8830 = vadd.f32 %v8605, %v8724
      %v8831 = vadd.f32 %v8606, %v8726
      %v8832 = vadd.f32 %v8607, %v8728
      %v8833 = vadd.f32 %v8608, %v8730
      %v8834 = vadd.f32 %v8609, %v8732
      %v8835 = vadd.f32 %v8610, %v8734
      %v8836 = vadd.f32 %v8611, %v8736
      %v8837 = vadd.f32 %v8612, %v8738
      %v8838 = vadd.f32 %v8613, %v8740
      %v8839 = vadd.f32 %v8614, %v8742
      %v8840 = vadd.f32 %v8615, %v8744
      %v8841 = vadd.f32 %v8616, %v8746
      %v8842 = vadd.f32 %v8617, %v8748
      %v8843 = vadd.f32 %v8618, %v8750
      %v8844 = vadd.f32 %v8619, %v8752
      %v8845 = vadd.f32 %v8620, %v8754
      %v8846 = vadd.f32 %v8621, %v8756
      %v8847 = vadd.f32 %v8622, %v8758
      %v8848 = vadd.f32 %v8623, %v8760
      %v8849 = vadd.f32 %v8624, %v8762
      %v8850 = vadd.f32 %v8625, %v8764
      %v8851 = vadd.f32 %v8626, %v8766
      %v8852 = vadd.f32 %v8627, %v8768
      %v8853 = vadd.f32 %v8628, %v8770
      %v8854 = vadd.f32 %v8629, %v8772
      %v8855 = vadd.f32 %v8630, %v8774
      %v8856 = vadd.f32 %v8631, %v8776
      %v8857 = vadd.f32 %v8632, %v8778
      %v8858 = vadd.f32 %v8633, %v8780
      %v8859 = vadd.f32 %v8634, %v8782
      %v8860 = vadd.f32 %v8635, %v8784
      %v8861 = vadd.f32 %v8636, %v8786
      %v8862 = vadd.f32 %v8637, %v8788
      %v8863 = vadd.f32 %v8638, %v8790
      %v8864 = vadd.f32 %v8639, %v8792
      %v8865 = vmax.f32 %v8829, 0.0
      %v8866 = vmax.f32 %v8830, 0.0
      %v8867 = vmax.f32 %v8831, 0.0
      %v8868 = vmax.f32 %v8832, 0.0
      %v8869 = vmax.f32 %v8833, 0.0
      %v8870 = vmax.f32 %v8834, 0.0
      %v8871 = vmax.f32 %v8835, 0.0
      %v8872 = vmax.f32 %v8836, 0.0
      %v8873 = vmax.f32 %v8837, 0.0
      %v8874 = vmax.f32 %v8838, 0.0
      %v8875 = vmax.f32 %v8839, 0.0
      %v8876 = vmax.f32 %v8840, 0.0
      %v8877 = vmax.f32 %v8841, 0.0
      %v8878 = vmax.f32 %v8842, 0.0
      %v8879 = vmax.f32 %v8843, 0.0
      %v8880 = vmax.f32 %v8844, 0.0
      %v8881 = vmax.f32 %v8845, 0.0
      %v8882 = vmax.f32 %v8846, 0.0
      %v8883 = vmax.f32 %v8847, 0.0
      %v8884 = vmax.f32 %v8848, 0.0
      %v8885 = vmax.f32 %v8849, 0.0
      %v8886 = vmax.f32 %v8850, 0.0
      %v8887 = vmax.f32 %v8851, 0.0
      %v8888 = vmax.f32 %v8852, 0.0
      %v8889 = vmax.f32 %v8853, 0.0
      %v8890 = vmax.f32 %v8854, 0.0
      %v8891 = vmax.f32 %v8855, 0.0
      %v8892 = vmax.f32 %v8856, 0.0
      %v8893 = vmax.f32 %v8857, 0.0
      %v8894 = vmax.f32 %v8858, 0.0
      %v8895 = vmax.f32 %v8859, 0.0
      %v8896 = vmax.f32 %v8860, 0.0
      %v8897 = vmax.f32 %v8861, 0.0
      %v8898 = vmax.f32 %v8862, 0.0
      %v8899 = vmax.f32 %v8863, 0.0
      %v8900 = vmax.f32 %v8864, 0.0
      %8901 = vst.msk [vmem:[%s224] sm:$0xff] %vm4964, %v8865
      %8902 = vst.msk [vmem:[%s224 + $0x8] sm:$0xff] %vm4964, %v8866
      %8903 = vst.msk [vmem:[%s224 + $0x10] sm:$0xff] %vm4964, %v8867
      %8904 = vst.msk [vmem:[%s224 + $0x18] sm:$0xff] %vm4964, %v8868
      %8905 = vst.msk [vmem:[%s224 + $0x20] sm:$0xff] %vm4964, %v8869
      %8906 = vst.msk [vmem:[%s224 + $0x28] sm:$0xff] %vm4964, %v8870
      %8907 = vst.msk [vmem:[%s224 + $0x30] sm:$0xff] %vm4964, %v8871
      %8908 = vst.msk [vmem:[%s224 + $0x38] sm:$0xff] %vm4964, %v8872
      %8909 = vst.msk [vmem:[%s224 + $0x40] sm:$0xff] %vm4964, %v8873
      %8910 = vst.msk [vmem:[%s224 + $0x48] sm:$0xff] %vm4964, %v8874
      %8911 = vst.msk [vmem:[%s224 + $0x50] sm:$0xff] %vm4964, %v8875
      %8912 = vst.msk [vmem:[%s224 + $0x58] sm:$0xff] %vm4964, %v8876
      %8913 = vst.msk [vmem:[%s224 + $0x60] sm:$0xff] %vm4964, %v8877
      %8914 = vst.msk [vmem:[%s224 + $0x68] sm:$0xff] %vm4964, %v8878
      %8915 = vst.msk [vmem:[%s224 + $0x70] sm:$0xff] %vm4964, %v8879
      %8916 = vst.msk [vmem:[%s224 + $0x78] sm:$0xff] %vm4964, %v8880
      %8917 = vst.msk [vmem:[%s224 + $0x80] sm:$0xff] %vm4964, %v8881
      %8918 = vst.msk [vmem:[%s224 + $0x88] sm:$0xff] %vm4964, %v8882
      %8919 = vst.msk [vmem:[%s224 + $0x90] sm:$0xff] %vm4964, %v8883
      %8920 = vst.msk [vmem:[%s224 + $0x98] sm:$0xff] %vm4964, %v8884
      %8921 = vst.msk [vmem:[%s224 + $0xa0] sm:$0xff] %vm4964, %v8885
      %8922 = vst.msk [vmem:[%s224 + $0xa8] sm:$0xff] %vm4964, %v8886
      %8923 = vst.msk [vmem:[%s224 + $0xb0] sm:$0xff] %vm4964, %v8887
      %8924 = vst.msk [vmem:[%s224 + $0xb8] sm:$0xff] %vm4964, %v8888
      %8925 = vst.msk [vmem:[%s224 + $0xc0] sm:$0xff] %vm4964, %v8889
      %8926 = vst.msk [vmem:[%s224 + $0xc8] sm:$0xff] %vm4964, %v8890
      %8927 = vst.msk [vmem:[%s224 + $0xd0] sm:$0xff] %vm4964, %v8891
      %8928 = vst.msk [vmem:[%s224 + $0xd8] sm:$0xff] %vm4964, %v8892
      %8929 = vst.msk [vmem:[%s224 + $0xe0] sm:$0xff] %vm4964, %v8893
      %8930 = vst.msk [vmem:[%s224 + $0xe8] sm:$0xff] %vm4964, %v8894
      %8931 = vst.msk [vmem:[%s224 + $0xf0] sm:$0xff] %vm4964, %v8895
      %8932 = vst.msk [vmem:[%s224 + $0xf8] sm:$0xff] %vm4964, %v8896
      %8933 = vst.msk [vmem:[%s224 + $0x100] sm:$0xff] %vm4964, %v8897
      %8934 = vst.msk [vmem:[%s224 + $0x108] sm:$0xff] %vm4964, %v8898
      %8935 = vst.msk [vmem:[%s224 + $0x110] sm:$0xff] %vm4964, %v8899
      %8936 = vst.msk [vmem:[%s224 + $0x118] sm:$0xff] %vm4964, %v8900
      %p8937 = scmp.lt.s32.totalorder %s16, 1
      %s8938 = scalar_select %p8937, %s16, 1
      %s8939 = smul.addr %s8938, 36
      %s8940 = smul.addr %s8939, 8
      %s8941 = scalar_lea.vmem %s5, %s8940
      // Predicated region
      $region41: #{tpu_custom_call.1} parent=39 // pred_check
        %p8942 = pneg %p144
      $region42: #{tpu_custom_call.1} parent=39 // pred_check_branch
        %8944 = sbr.rel (%p8942) target = $region44
      $region43: #{tpu_custom_call.1} parent=39 // pred_region
        _
      $region44: #{tpu_custom_call.1} parent=39 // pred_fallthru
        _
    $region40: #{tpu_custom_call.1} parent=5 // pred_fallthru
      _
    %p8945 = scmp.le.s32.totalorder 2, %s11
    // Predicated region
    $region45: #{tpu_custom_call.1} parent=5 // pred_check
      %p8946 = pneg %p8945
    $region46: #{tpu_custom_call.1} parent=5 // pred_check_branch
      %8948 = sbr.rel (%p8946) target = $region48
    $region47: #{tpu_custom_call.1} parent=5 // pred_region
      %s8949 = ssub.s32 %s11, 2
      // Predicated region
      $region49: #{tpu_custom_call.1} parent=47 // pred_check
        %p8950 = pneg %p150
      $region50: #{tpu_custom_call.1} parent=47 // pred_check_branch
        %8952 = sbr.rel (%p8950) target = $region52
      $region51: #{tpu_custom_call.1} parent=47 // pred_region
        %p8953 = scmp.lt.s32.totalorder %s17, 1
        %s8954 = scalar_select %p8953, %s17, 1
        %s8955 = smul.addr %s8954, 36
        %s8956 = smul.addr %s8955, 8
        %s8957 = scalar_lea.vmem %s5, %s8956
      $region52: #{tpu_custom_call.1} parent=47 // pred_fallthru
        _
    $region48: #{tpu_custom_call.1} parent=5 // pred_fallthru
      _
  $region6: #{tpu_custom_call.1} parent=0 // loop_footer
    %s15 = sadd.s32 1, %s11
  $region7: #{tpu_custom_call.1} parent=0 // loop_footer_branch
    %10 = sbr.rel target = $region3
  $region8: #{tpu_custom_call.1} parent=0 // loop_exit
    _

</llo_original>
